<compile_context>
chip_gen: v7x
topology: tpu7x:2x2x1
jax: 0.10.0
libtpu: 0.0.40
codegen_flags: <defaults>
</compile_context>

<pallas_src>
import functools

import jax
import jax.numpy as jnp
from jax.experimental import pallas as pl
from jax.experimental.pallas import tpu as pltpu

# ----- small config consistent with the module -----
B = 2
VOCAB = 128            # config.vocab_size
CHAR_DIM = 64          # char_emb_dim (hard-coded 64 in the module)
DIM = 128              # config.hidden_size
MAX_WORD_LEN = 8
S_ENC = 16             # encoder char sequence length
S_DEC = 16             # decoder char sequence length
NW_ENC = 4             # encoder word count
NW_DEC = 4             # decoder word count
L_LSTM = 16            # lstm_input_ids length
LSTM_H = 128
MAX_POS = 64           # max_pos_embs (small)


# ---------------- Pallas kernels ----------------

def _lee_embed_kernel(emb_ref, pos_ref, pool_ref, wp_ref, bp_ref, o_ref):
    # One grid step = one branch (0: enc_lee, 1: dec_lee), whole batch at once.
    # emb/pos: (1, B*S, C)  pool: (1, B*Nw, B*S) block-diagonal  wp: (1, C, D)
    # bp: (1, 1, D)  out: (1, B*Nw, D)
    x = emb_ref[0] + pos_ref[0]                                                # (B*S, C)
    pooled = jnp.dot(pool_ref[0], x, preferred_element_type=jnp.float32)       # (B*Nw, C)
    o_ref[0] = (jnp.dot(pooled, wp_ref[0], preferred_element_type=jnp.float32)
                + bp_ref[0])


def lee_embed_both(emb2, pos2, pool2, wp2, bp2):
    # emb2/pos2: (2, B*S, C)  pool2: (2, B*Nw, B*S)  wp2: (2, C, D)  bp2: (2, 1, D)
    n_br, BS, C = emb2.shape
    BNw = pool2.shape[1]
    D = wp2.shape[2]
    flops = 2 * n_br * (BNw * BS * C + BNw * C * D)
    bytes_acc = 4 * (emb2.size + pos2.size + pool2.size + wp2.size + bp2.size
                     + n_br * BNw * D)
    return pl.pallas_call(
        _lee_embed_kernel,
        out_shape=jax.ShapeDtypeStruct((n_br, BNw, D), jnp.float32),
        grid=(n_br,),
        in_specs=[
            pl.BlockSpec((1, BS, C), lambda r: (r, 0, 0)),
            pl.BlockSpec((1, BS, C), lambda r: (r, 0, 0)),
            pl.BlockSpec((1, BNw, BS), lambda r: (r, 0, 0)),
            pl.BlockSpec((1, C, D), lambda r: (r, 0, 0)),
            pl.BlockSpec((1, 1, D), lambda r: (r, 0, 0)),
        ],
        out_specs=pl.BlockSpec((1, BNw, D), lambda r: (r, 0, 0)),
        compiler_params=pltpu.CompilerParams(dimension_semantics=("parallel",)),
        cost_estimate=pl.CostEstimate(flops=flops, transcendentals=0,
                                      bytes_accessed=bytes_acc),
    )(emb2, pos2, pool2, wp2, bp2)


def _xattn_proj_kernel(x_ref, ctx_ref, mask_ref, wq_ref, wk_ref, wv_ref,
                       wo_ref, pw_ref, pb_ref, o_ref):
    # x: (B*Nd, D)  ctx: (B*Ne, D)  mask: (B*Nd, B*Ne) (1 = attend; block-diag
    # per batch so the whole batch runs as plain 2-D MXU matmuls).
    x = x_ref[...]
    ctx = ctx_ref[...]
    q = jnp.dot(x, wq_ref[...], preferred_element_type=jnp.float32)
    k = jnp.dot(ctx, wk_ref[...], preferred_element_type=jnp.float32)
    v = jnp.dot(ctx, wv_ref[...], preferred_element_type=jnp.float32)
    scale = 1.0 / float(x.shape[-1]) ** 0.5
    s = jnp.dot(q, k.T, preferred_element_type=jnp.float32) * scale
    # NOTE: if an entire mask row were zero this degenerates to uniform
    # attention (fine for the all-ones masks used here).
    s = jnp.where(mask_ref[...] > 0.0, s, jnp.float32(-1e9))
    m = jnp.max(s, axis=-1, keepdims=True)
    e = jnp.exp(s - m)
    p = e * pl.reciprocal(jnp.sum(e, axis=-1, keepdims=True), approx=True)
    attn = jnp.dot(p, v, preferred_element_type=jnp.float32)
    h = x + jnp.dot(attn, wo_ref[...], preferred_element_type=jnp.float32)
    # fused decoding_proj_layer: (B*Nd, D) @ (D, MAX_WORD_LEN*CHAR_DIM)
    o_ref[...] = (jnp.dot(h, pw_ref[...], preferred_element_type=jnp.float32)
                  + pb_ref[...])


def cross_attention_proj(x2, ctx2, mask2, wq, wk, wv, wo, proj_w, proj_b):
    M, D = x2.shape
    Mk = ctx2.shape[0]
    P = proj_w.shape[1]
    flops = 2 * (M * D * D + 2 * Mk * D * D + 2 * M * Mk * D + M * D * D + M * D * P)
    bytes_acc = 4 * (x2.size + ctx2.size + mask2.size + 4 * D * D
                     + proj_w.size + proj_b.size + M * P)
    return pl.pallas_call(
        _xattn_proj_kernel,
        out_shape=jax.ShapeDtypeStruct((M, P), jnp.float32),
        grid=(1,),
        in_specs=[
            pl.BlockSpec((M, D), lambda i: (0, 0)),
            pl.BlockSpec((Mk, D), lambda i: (0, 0)),
            pl.BlockSpec((M, Mk), lambda i: (0, 0)),
            pl.BlockSpec((D, D), lambda i: (0, 0)),
            pl.BlockSpec((D, D), lambda i: (0, 0)),
            pl.BlockSpec((D, D), lambda i: (0, 0)),
            pl.BlockSpec((D, D), lambda i: (0, 0)),
            pl.BlockSpec((D, P), lambda i: (0, 0)),
            pl.BlockSpec((1, P), lambda i: (0, 0)),
        ],
        out_specs=pl.BlockSpec((M, P), lambda i: (0, 0)),
        compiler_params=pltpu.CompilerParams(dimension_semantics=("arbitrary",)),
        cost_estimate=pl.CostEstimate(flops=flops, transcendentals=M * Mk,
                                      bytes_accessed=bytes_acc),
    )(x2, ctx2, mask2, wq, wk, wv, wo, proj_w, proj_b.reshape(1, P))


def _lstm_pred_kernel(x_ref, wih_ref, whh_ref, b_ref, pw_ref, pb_ref, o_ref,
                      xg_ref, hs_ref, *, batch, steps):
    # PyTorch LSTM semantics, gate order [i, f, g, o]; h0 = c0 = 0.
    # x: (steps*batch, IN) time-major (row = t*batch + b); out: (steps*batch, V).
    H = whh_ref.shape[0]

    # All input-to-hidden gate pre-activations in one batched MXU matmul.
    xg_ref[...] = (jnp.dot(x_ref[...], wih_ref[...],
                           preferred_element_type=jnp.float32) + b_ref[...])

    def step(t, carry):
        h, c = carry                                                # vreg-resident
        row = t * batch
        g = xg_ref[pl.ds(row, batch), :] + jnp.dot(
            h, whh_ref[...], preferred_element_type=jnp.float32)    # (B, 4H)
        i_g = jax.nn.sigmoid(g[:, 0:H])
        f_g = jax.nn.sigmoid(g[:, H:2 * H])
        g_g = jnp.tanh(g[:, 2 * H:3 * H])
        o_g = jax.nn.sigmoid(g[:, 3 * H:4 * H])
        c_new = f_g * c + i_g * g_g
        h_new = o_g * jnp.tanh(c_new)
        hs_ref[pl.ds(row, batch), :] = h_new
        return (h_new, c_new)

    h0 = jnp.zeros((batch, H), jnp.float32)
    c0 = jnp.zeros((batch, H), jnp.float32)
    jax.lax.fori_loop(0, steps, step, (h0, c0), unroll=True)

    # fused pred_layer: (L*B, H) @ (H, VOCAB) -> logits emitted directly.
    o_ref[...] = (jnp.dot(hs_ref[...], pw_ref[...],
                          preferred_element_type=jnp.float32) + pb_ref[...])


def lstm_pred(x_tm_flat, wih_t, whh_t, b, pred_w, pred_b, *, batch, steps):
    M, IN = x_tm_flat.shape          # M = steps * batch
    H = whh_t.shape[0]
    V = pred_w.shape[1]
    flops = 2 * (M * IN * 4 * H + steps * batch * H * 4 * H + M * H * V)
    trans = steps * batch * 5 * H
    bytes_acc = 4 * (x_tm_flat.size + wih_t.size + whh_t.size + b.size
                     + pred_w.size + pred_b.size + M * V)
    kernel = functools.partial(_lstm_pred_kernel, batch=batch, steps=steps)
    return pl.pallas_call(
        kernel,
        out_shape=jax.ShapeDtypeStruct((M, V), jnp.float32),
        grid=(1,),
        in_specs=[
            pl.BlockSpec((M, IN), lambda i: (0, 0)),
            pl.BlockSpec((IN, 4 * H), lambda i: (0, 0)),
            pl.BlockSpec((H, 4 * H), lambda i: (0, 0)),
            pl.BlockSpec((1, 4 * H), lambda i: (0, 0)),
            pl.BlockSpec((H, V), lambda i: (0, 0)),
            pl.BlockSpec((1, V), lambda i: (0, 0)),
        ],
        out_specs=pl.BlockSpec((M, V), lambda i: (0, 0)),
        scratch_shapes=[pltpu.VMEM((M, 4 * H), jnp.float32),   # xg
                        pltpu.VMEM((M, H), jnp.float32)],      # hidden states
        compiler_params=pltpu.CompilerParams(dimension_semantics=("arbitrary",)),
        cost_estimate=pl.CostEstimate(flops=flops, transcendentals=trans,
                                      bytes_accessed=bytes_acc),
    )(x_tm_flat, wih_t, whh_t, b.reshape(1, 4 * H), pred_w, pred_b.reshape(1, V))


# ---------------- model glue (index plumbing stays in plain JAX) ----------------

def make_pool(word_lens, char_mask, S):
    wl = word_lens.astype(jnp.int32)
    ends = jnp.cumsum(wl)
    starts = ends - wl
    c = jnp.arange(S)
    in_word = (c[None, :] >= starts[:, None]) & (c[None, :] < ends[:, None])  # (Nw, S)
    pool = in_word.astype(jnp.float32) * char_mask[None, :]
    denom = jnp.maximum(wl, 1).astype(jnp.float32)[:, None]
    return pool / denom


def block_diag_pool(pool):
    # (B, Nw, S) -> (B*Nw, B*S) block-diagonal so the whole batch pools in one
    # 2-D MXU matmul (8 LHS sublanes instead of 4).
    Bb, Nw, S = pool.shape
    eye = jnp.eye(Bb, dtype=pool.dtype)
    full = eye[:, None, :, None] * pool[:, :, None, :]        # (B, Nw, B, S)
    return full.reshape(Bb * Nw, Bb * S)


def forward(params, input_ids, input_word_lens, attention_mask,
            decoder_input_ids, decoder_input_word_lens, decoder_attention_mask,
            lstm_input_ids, lstm_word_lens):
    Bb, S = input_ids.shape
    Sd = decoder_input_ids.shape[1]
    Nw = input_word_lens.shape[1]
    Nd = decoder_input_word_lens.shape[1]

    # ---- enc_lee + dec_lee fused into ONE pallas_call (identical shapes) ----
    # CharEmbedderWord: emb lookup + (dropout = eval no-op) + positional emb,
    # then char->word reduction.
    # TODO(synk): CharToWord is not defined in the reference source; stand-in is
    # masked mean-pooling of each word's chars followed by a 64->dim projection.
    enc_emb = params['enc_emb'][input_ids].reshape(Bb * S, CHAR_DIM)
    dec_emb = params['dec_emb'][decoder_input_ids].reshape(Bb * Sd, CHAR_DIM)
    enc_pos = jnp.tile(params['enc_pos'][0, :S], (Bb, 1))
    dec_pos = jnp.tile(params['dec_pos'][0, :Sd], (Bb, 1))

    enc_pool = jax.vmap(make_pool, in_axes=(0, 0, None))(
        input_word_lens, attention_mask.astype(jnp.float32), S)
    dec_pool = jax.vmap(make_pool, in_axes=(0, 0, None))(
        decoder_input_word_lens, decoder_attention_mask.astype(jnp.float32), Sd)

    emb2 = jnp.stack([enc_emb, dec_emb])
    pos2 = jnp.stack([enc_pos, dec_pos])
    pool2 = jnp.stack([block_diag_pool(enc_pool), block_diag_pool(dec_pool)])
    wp2 = jnp.stack([params['enc_wp'], params['dec_wp']])
    bp2 = jnp.stack([params['enc_bp'].reshape(1, DIM),
                     params['dec_bp'].reshape(1, DIM)])

    word2 = lee_embed_both(emb2, pos2, pool2, wp2, bp2)          # (2, B*Nw, DIM)
    embed_flat = word2[0]                                        # encoder words
    dec_embed_flat = word2[1]                                    # decoder words
    enc_word_mask = (input_word_lens > 0).astype(jnp.float32)    # (B, Nw)

    # ---- cross-attention stand-in + decoding_proj_layer, fused ----
    # TODO(synk): the full HF BertModel / EncoderDecoderModel is not defined in
    # the reference source; stand-in is one single-head cross-attention block
    # producing the last decoder hidden states, fused with decoding_proj_layer.
    Ne = Nw
    qb = jnp.repeat(jnp.arange(Bb), Nd)
    kb = jnp.repeat(jnp.arange(Bb), Ne)
    same_batch = (qb[:, None] == kb[None, :]).astype(jnp.float32)
    attn_mask2 = same_batch * enc_word_mask.reshape(Bb * Ne)[None, :]

    hidden_proj = cross_attention_proj(
        dec_embed_flat, embed_flat, attn_mask2,
        params['xattn_wq'], params['xattn_wk'], params['xattn_wv'],
        params['xattn_wo'], params['proj_w'], params['proj_b'])   # (B*Nd, 512)
    repeated_out = hidden_proj.reshape(Bb, Nd, MAX_WORD_LEN, CHAR_DIM)

    # decoding_char_embs(lstm_input_ids)  (embedding gather stays in XLA glue)
    dec_char_embs = params['decoding_char_embs'][lstm_input_ids]  # (B, L, 64)
    L = lstm_input_ids.shape[1]

    # boolean selection + ragged scatter into a zero-padded buffer (index glue)
    selection_mask = (jnp.arange(MAX_WORD_LEN)[None, None, :]
                      < lstm_word_lens[:, :, None])

    def pad_masked(rep, sel):
        rep_flat = rep.reshape(-1, CHAR_DIM)
        sel_flat = sel.reshape(-1)
        pos = jnp.cumsum(sel_flat.astype(jnp.int32)) - 1
        # entries beyond L are dropped, matching the [:L] truncation in the module
        pos = jnp.where(sel_flat, pos, L)
        return jnp.zeros((L, CHAR_DIM), jnp.float32).at[pos].set(rep_flat,
                                                                 mode='drop')

    padded_masked_repeated = jax.vmap(pad_masked)(repeated_out, selection_mask)

    concatenated = jnp.concatenate([dec_char_embs, padded_masked_repeated],
                                   axis=-1)                        # (B, L, 128)

    # ---- LSTM recurrence + pred_layer fused; batch folded into each step ----
    x_tm = jnp.transpose(concatenated, (1, 0, 2)).reshape(L * Bb, 2 * CHAR_DIM)
    logits_flat = lstm_pred(x_tm, params['lstm_wih_t'], params['lstm_whh_t'],
                            params['lstm_b'], params['pred_w'], params['pred_b'],
                            batch=Bb, steps=L)                     # (L*B, VOCAB)
    lm_logits = logits_flat.reshape(L, Bb, VOCAB).transpose(1, 0, 2)
    return lm_logits


def init_params(key):
    ks = jax.random.split(key, 16)
    s = 0.02

    def n(k, shape):
        return jax.random.normal(k, shape, jnp.float32) * s

    return {
        'enc_emb': n(ks[0], (VOCAB, CHAR_DIM)),
        'enc_pos': n(ks[1], (1, MAX_POS, CHAR_DIM)),
        'enc_wp': n(ks[2], (CHAR_DIM, DIM)),
        'enc_bp': jnp.zeros((DIM,), jnp.float32),
        'dec_emb': n(ks[3], (VOCAB, CHAR_DIM)),
        'dec_pos': n(ks[4], (1, MAX_POS, CHAR_DIM)),
        'dec_wp': n(ks[5], (CHAR_DIM, DIM)),
        'dec_bp': jnp.zeros((DIM,), jnp.float32),
        'xattn_wq': n(ks[6], (DIM, DIM)),
        'xattn_wk': n(ks[7], (DIM, DIM)),
        'xattn_wv': n(ks[8], (DIM, DIM)),
        'xattn_wo': n(ks[9], (DIM, DIM)),
        'decoding_char_embs': n(ks[10], (VOCAB, CHAR_DIM)),
        'proj_w': n(ks[11], (DIM, CHAR_DIM * MAX_WORD_LEN)),
        'proj_b': jnp.zeros((CHAR_DIM * MAX_WORD_LEN,), jnp.float32),
        'lstm_wih_t': n(ks[12], (2 * CHAR_DIM, 4 * LSTM_H)),
        'lstm_whh_t': n(ks[13], (LSTM_H, 4 * LSTM_H)),
        # NOTE: real PyTorch weights must be loaded as b_ih + b_hh summed.
        'lstm_b': jnp.zeros((4 * LSTM_H,), jnp.float32),
        'pred_w': n(ks[14], (LSTM_H, VOCAB)),
        'pred_b': jnp.zeros((VOCAB,), jnp.float32),
    }


if __name__ == "__main__":
    key = jax.random.PRNGKey(0)
    pkey, dkey = jax.random.split(key)
    params = init_params(pkey)

    k1, k2, k3 = jax.random.split(dkey, 3)
    input_ids = jax.random.randint(k1, (B, S_ENC), 0, VOCAB, dtype=jnp.int32)
    decoder_input_ids = jax.random.randint(k2, (B, S_DEC), 0, VOCAB, dtype=jnp.int32)
    lstm_input_ids = jax.random.randint(k3, (B, L_LSTM), 0, VOCAB, dtype=jnp.int32)

    input_word_lens = jnp.array([[3, 4, 2, 5], [4, 4, 4, 4]], dtype=jnp.int32)
    decoder_input_word_lens = jnp.array([[2, 5, 3, 4], [3, 3, 5, 2]], dtype=jnp.int32)
    lstm_word_lens = jnp.array([[3, 2, 4, 1], [2, 5, 3, 4]], dtype=jnp.int32)

    attention_mask = jnp.ones((B, S_ENC), dtype=jnp.float32)
    decoder_attention_mask = jnp.ones((B, S_DEC), dtype=jnp.float32)

    logits = jax.jit(forward)(params, input_ids, input_word_lens, attention_mask,
                              decoder_input_ids, decoder_input_word_lens,
                              decoder_attention_mask, lstm_input_ids,
                              lstm_word_lens)
    jax.block_until_ready(logits)
    assert logits.shape == (B, L_LSTM, VOCAB)
    print("KERNEL_OK")
</pallas_src>

<mosaic_0001>
module attributes {stable_mosaic.version = 11 : i64} {
  func.func @_lee_embed_kernel(%arg0: i32, %arg1: memref<1x32x64xf32, #tpu.memory_space<vmem>>, %arg2: memref<1x32x64xf32, #tpu.memory_space<vmem>>, %arg3: memref<1x8x32xf32, #tpu.memory_space<vmem>>, %arg4: memref<1x64x128xf32, #tpu.memory_space<vmem>>, %arg5: memref<1x1x128xf32, #tpu.memory_space<vmem>>, %arg6: memref<1x8x128xf32, #tpu.memory_space<vmem>>) attributes {dimension_semantics = [#tpu.dimension_semantics<parallel>], iteration_bounds = array<i64: 2>, scalar_prefetch = 0 : i64, scratch_operands = 0 : i64, tpu.core_type = #tpu.core_type<tc>, window_params = [{transform_indices = @transform_0, window_bounds = array<i64: 1, 32, 64>}, {transform_indices = @transform_1, window_bounds = array<i64: 1, 32, 64>}, {transform_indices = @transform_2, window_bounds = array<i64: 1, 8, 32>}, {transform_indices = @transform_3, window_bounds = array<i64: 1, 64, 128>}, {transform_indices = @transform_4, window_bounds = array<i64: 1, 1, 128>}, {transform_indices = @transform_5, window_bounds = array<i64: 1, 8, 128>}]} {
    %c0 = arith.constant 0 : index
    %c0_0 = arith.constant 0 : index
    %c0_1 = arith.constant 0 : index
    %0 = vector.load %arg1[%c0, %c0_0, %c0_1] : memref<1x32x64xf32, #tpu.memory_space<vmem>>, vector<1x32x64xf32>
    %1 = vector.shape_cast %0 : vector<1x32x64xf32> to vector<32x64xf32>
    %c0_2 = arith.constant 0 : index
    %c0_3 = arith.constant 0 : index
    %c0_4 = arith.constant 0 : index
    %2 = vector.load %arg2[%c0_2, %c0_3, %c0_4] : memref<1x32x64xf32, #tpu.memory_space<vmem>>, vector<1x32x64xf32>
    %3 = vector.shape_cast %2 : vector<1x32x64xf32> to vector<32x64xf32>
    %4 = arith.addf %1, %3 : vector<32x64xf32>
    %c0_5 = arith.constant 0 : index
    %c0_6 = arith.constant 0 : index
    %c0_7 = arith.constant 0 : index
    %5 = vector.load %arg3[%c0_5, %c0_6, %c0_7] : memref<1x8x32xf32, #tpu.memory_space<vmem>>, vector<1x8x32xf32>
    %6 = vector.shape_cast %5 : vector<1x8x32xf32> to vector<8x32xf32>
    %cst = arith.constant dense<0.000000e+00> : vector<8x64xf32>
    %7 = tpu.matmul %6, %4, %cst {dimension_numbers = #tpu.dot_dimension_numbers<[1], [0], [0], [1], [0, 0, 1, 1], [], []>} : vector<8x32xf32>, vector<32x64xf32>, vector<8x64xf32> -> vector<8x64xf32>
    %c0_8 = arith.constant 0 : index
    %c0_9 = arith.constant 0 : index
    %c0_10 = arith.constant 0 : index
    %8 = vector.load %arg4[%c0_8, %c0_9, %c0_10] : memref<1x64x128xf32, #tpu.memory_space<vmem>>, vector<1x64x128xf32>
    %9 = vector.shape_cast %8 : vector<1x64x128xf32> to vector<64x128xf32>
    %cst_11 = arith.constant dense<0.000000e+00> : vector<8x128xf32>
    %10 = tpu.matmul %7, %9, %cst_11 {dimension_numbers = #tpu.dot_dimension_numbers<[1], [0], [0], [1], [0, 0, 1, 1], [], []>} : vector<8x64xf32>, vector<64x128xf32>, vector<8x128xf32> -> vector<8x128xf32>
    %c0_12 = arith.constant 0 : index
    %c0_13 = arith.constant 0 : index
    %c0_14 = arith.constant 0 : index
    %11 = vector.load %arg5[%c0_12, %c0_13, %c0_14] : memref<1x1x128xf32, #tpu.memory_space<vmem>>, vector<1x1x128xf32>
    %12 = vector.shape_cast %11 : vector<1x1x128xf32> to vector<1x128xf32>
    %13 = vector.broadcast %12 : vector<1x128xf32> to vector<8x128xf32>
    %14 = arith.addf %10, %13 : vector<8x128xf32>
    %c0_15 = arith.constant 0 : index
    %c0_16 = arith.constant 0 : index
    %c0_17 = arith.constant 0 : index
    %15 = vector.load %arg6[%c0_15, %c0_16, %c0_17] : memref<1x8x128xf32, #tpu.memory_space<vmem>>, vector<1x8x128xf32>
    %16 = vector.shape_cast %15 : vector<1x8x128xf32> to vector<8x128xf32>
    %17 = vector.shape_cast %14 : vector<8x128xf32> to vector<1x8x128xf32>
    tpu.vector_store %arg6[%c0_15, %c0_16, %c0_17], %17 {strides = array<i32>} : memref<1x8x128xf32, #tpu.memory_space<vmem>>, vector<1x8x128xf32>,
    return
  }
  func.func @transform_0(%arg0: i32) -> (i32, i32, i32) {
    %c0_i32 = arith.constant 0 : i32
    %c0_i32_0 = arith.constant 0 : i32
    %c0_i32_1 = arith.constant 0 : i32
    return %arg0, %c0_i32, %c0_i32_0 : i32, i32, i32
  }
  func.func @transform_1(%arg0: i32) -> (i32, i32, i32) {
    %c0_i32 = arith.constant 0 : i32
    %c0_i32_0 = arith.constant 0 : i32
    %c0_i32_1 = arith.constant 0 : i32
    return %arg0, %c0_i32, %c0_i32_0 : i32, i32, i32
  }
  func.func @transform_2(%arg0: i32) -> (i32, i32, i32) {
    %c0_i32 = arith.constant 0 : i32
    %c0_i32_0 = arith.constant 0 : i32
    %c0_i32_1 = arith.constant 0 : i32
    return %arg0, %c0_i32, %c0_i32_0 : i32, i32, i32
  }
  func.func @transform_3(%arg0: i32) -> (i32, i32, i32) {
    %c0_i32 = arith.constant 0 : i32
    %c0_i32_0 = arith.constant 0 : i32
    %c0_i32_1 = arith.constant 0 : i32
    return %arg0, %c0_i32, %c0_i32_0 : i32, i32, i32
  }
  func.func @transform_4(%arg0: i32) -> (i32, i32, i32) {
    %c0_i32 = arith.constant 0 : i32
    %c0_i32_0 = arith.constant 0 : i32
    %c0_i32_1 = arith.constant 0 : i32
    return %arg0, %c0_i32, %c0_i32_0 : i32, i32, i32
  }
  func.func @transform_5(%arg0: i32) -> (i32, i32, i32) {
    %c0_i32 = arith.constant 0 : i32
    %c0_i32_0 = arith.constant 0 : i32
    %c0_i32_1 = arith.constant 0 : i32
    return %arg0, %c0_i32, %c0_i32_0 : i32, i32, i32
  }
}

module attributes {stable_mosaic.version = 11 : i64} {
  func.func @_xattn_proj_kernel(%arg0: i32, %arg1: memref<8x128xf32, #tpu.memory_space<vmem>>, %arg2: memref<8x128xf32, #tpu.memory_space<vmem>>, %arg3: memref<8x8xf32, #tpu.memory_space<vmem>>, %arg4: memref<128x128xf32, #tpu.memory_space<vmem>>, %arg5: memref<128x128xf32, #tpu.memory_space<vmem>>, %arg6: memref<128x128xf32, #tpu.memory_space<vmem>>, %arg7: memref<128x128xf32, #tpu.memory_space<vmem>>, %arg8: memref<128x512xf32, #tpu.memory_space<vmem>>, %arg9: memref<1x512xf32, #tpu.memory_space<vmem>>, %arg10: memref<8x512xf32, #tpu.memory_space<vmem>>) attributes {dimension_semantics = [#tpu.dimension_semantics<arbitrary>], iteration_bounds = array<i64: 1>, scalar_prefetch = 0 : i64, scratch_operands = 0 : i64, tpu.core_type = #tpu.core_type<tc>, window_params = [{pipeline_mode = #tpu.pipeline_mode<synchronous>, transform_indices = @transform_0, window_bounds = array<i64: 8, 128>}, {pipeline_mode = #tpu.pipeline_mode<synchronous>, transform_indices = @transform_1, window_bounds = array<i64: 8, 128>}, {pipeline_mode = #tpu.pipeline_mode<synchronous>, transform_indices = @transform_2, window_bounds = array<i64: 8, 8>}, {pipeline_mode = #tpu.pipeline_mode<synchronous>, transform_indices = @transform_3, window_bounds = array<i64: 128, 128>}, {pipeline_mode = #tpu.pipeline_mode<synchronous>, transform_indices = @transform_4, window_bounds = array<i64: 128, 128>}, {pipeline_mode = #tpu.pipeline_mode<synchronous>, transform_indices = @transform_5, window_bounds = array<i64: 128, 128>}, {pipeline_mode = #tpu.pipeline_mode<synchronous>, transform_indices = @transform_6, window_bounds = array<i64: 128, 128>}, {pipeline_mode = #tpu.pipeline_mode<synchronous>, transform_indices = @transform_7, window_bounds = array<i64: 128, 512>}, {pipeline_mode = #tpu.pipeline_mode<synchronous>, transform_indices = @transform_8, window_bounds = array<i64: 1, 512>}, {pipeline_mode = #tpu.pipeline_mode<synchronous>, transform_indices = @transform_9, window_bounds = array<i64: 8, 512>}]} {
    %c0 = arith.constant 0 : index
    %c0_0 = arith.constant 0 : index
    %0 = vector.load %arg1[%c0, %c0_0] : memref<8x128xf32, #tpu.memory_space<vmem>>, vector<8x128xf32>
    %c0_1 = arith.constant 0 : index
    %c0_2 = arith.constant 0 : index
    %1 = vector.load %arg2[%c0_1, %c0_2] : memref<8x128xf32, #tpu.memory_space<vmem>>, vector<8x128xf32>
    %c0_3 = arith.constant 0 : index
    %c0_4 = arith.constant 0 : index
    %2 = vector.load %arg4[%c0_3, %c0_4] : memref<128x128xf32, #tpu.memory_space<vmem>>, vector<128x128xf32>
    %cst = arith.constant dense<0.000000e+00> : vector<8x128xf32>
    %3 = tpu.matmul %0, %2, %cst {dimension_numbers = #tpu.dot_dimension_numbers<[1], [0], [0], [1], [0, 0, 1, 1], [], []>} : vector<8x128xf32>, vector<128x128xf32>, vector<8x128xf32> -> vector<8x128xf32>
    %c0_5 = arith.constant 0 : index
    %c0_6 = arith.constant 0 : index
    %4 = vector.load %arg5[%c0_5, %c0_6] : memref<128x128xf32, #tpu.memory_space<vmem>>, vector<128x128xf32>
    %cst_7 = arith.constant dense<0.000000e+00> : vector<8x128xf32>
    %5 = tpu.matmul %1, %4, %cst_7 {dimension_numbers = #tpu.dot_dimension_numbers<[1], [0], [0], [1], [0, 0, 1, 1], [], []>} : vector<8x128xf32>, vector<128x128xf32>, vector<8x128xf32> -> vector<8x128xf32>
    %c0_8 = arith.constant 0 : index
    %c0_9 = arith.constant 0 : index
    %6 = vector.load %arg6[%c0_8, %c0_9] : memref<128x128xf32, #tpu.memory_space<vmem>>, vector<128x128xf32>
    %cst_10 = arith.constant dense<0.000000e+00> : vector<8x128xf32>
    %7 = tpu.matmul %1, %6, %cst_10 {dimension_numbers = #tpu.dot_dimension_numbers<[1], [0], [0], [1], [0, 0, 1, 1], [], []>} : vector<8x128xf32>, vector<128x128xf32>, vector<8x128xf32> -> vector<8x128xf32>
    %8 = tpu.transpose %5, [1, 0] : vector<8x128xf32> -> vector<128x8xf32>
    %cst_11 = arith.constant dense<0.000000e+00> : vector<8x8xf32>
    %9 = tpu.matmul %3, %8, %cst_11 {dimension_numbers = #tpu.dot_dimension_numbers<[1], [0], [0], [1], [0, 0, 1, 1], [], []>} : vector<8x128xf32>, vector<128x8xf32>, vector<8x8xf32> -> vector<8x8xf32>
    %cst_12 = arith.constant 0.0883883461 : f32
    %10 = vector.broadcast %cst_12 : f32 to vector<8x8xf32>
    %11 = arith.mulf %9, %10 : vector<8x8xf32>
    %c0_13 = arith.constant 0 : index
    %c0_14 = arith.constant 0 : index
    %12 = vector.load %arg3[%c0_13, %c0_14] : memref<8x8xf32, #tpu.memory_space<vmem>>, vector<8x8xf32>
    %cst_15 = arith.constant 0.000000e+00 : f32
    %13 = vector.broadcast %cst_15 : f32 to vector<8x8xf32>
    %14 = arith.cmpf ogt, %12, %13 : vector<8x8xf32>
    %cst_16 = arith.constant -1.000000e+09 : f32
    %15 = vector.broadcast %cst_16 : f32 to vector<8x8xf32>
    %16 = arith.select %14, %11, %15 : vector<8x8xi1>, vector<8x8xf32>
    %cst_17 = arith.constant dense<0xFF800000> : vector<8xf32>
    %17 = vector.multi_reduction <maximumf>, %16, %cst_17 [1] : vector<8x8xf32> to vector<8xf32>
    %18 = vector.shape_cast %17 : vector<8xf32> to vector<8x1xf32>
    %19 = vector.broadcast %18 : vector<8x1xf32> to vector<8x8xf32>
    %20 = arith.subf %16, %19 : vector<8x8xf32>
    %21 = math.exp %20 : vector<8x8xf32>
    %cst_18 = arith.constant dense<0.000000e+00> : vector<8xf32>
    %22 = vector.multi_reduction <add>, %21, %cst_18 [1] : vector<8x8xf32> to vector<8xf32>
    %23 = vector.shape_cast %22 : vector<8xf32> to vector<8x1xf32>
    %24 = tpu.reciprocal %23 {approx = true} : vector<8x1xf32> -> vector<8x1xf32>
    %25 = vector.broadcast %24 : vector<8x1xf32> to vector<8x8xf32>
    %26 = arith.mulf %21, %25 : vector<8x8xf32>
    %cst_19 = arith.constant dense<0.000000e+00> : vector<8x128xf32>
    %27 = tpu.matmul %26, %7, %cst_19 {dimension_numbers = #tpu.dot_dimension_numbers<[1], [0], [0], [1], [0, 0, 1, 1], [], []>} : vector<8x8xf32>, vector<8x128xf32>, vector<8x128xf32> -> vector<8x128xf32>
    %c0_20 = arith.constant 0 : index
    %c0_21 = arith.constant 0 : index
    %28 = vector.load %arg7[%c0_20, %c0_21] : memref<128x128xf32, #tpu.memory_space<vmem>>, vector<128x128xf32>
    %cst_22 = arith.constant dense<0.000000e+00> : vector<8x128xf32>
    %29 = tpu.matmul %27, %28, %cst_22 {dimension_numbers = #tpu.dot_dimension_numbers<[1], [0], [0], [1], [0, 0, 1, 1], [], []>} : vector<8x128xf32>, vector<128x128xf32>, vector<8x128xf32> -> vector<8x128xf32>
    %30 = arith.addf %0, %29 : vector<8x128xf32>
    %c0_23 = arith.constant 0 : index
    %c0_24 = arith.constant 0 : index
    %31 = vector.load %arg8[%c0_23, %c0_24] : memref<128x512xf32, #tpu.memory_space<vmem>>, vector<128x512xf32>
    %cst_25 = arith.constant dense<0.000000e+00> : vector<8x512xf32>
    %32 = tpu.matmul %30, %31, %cst_25 {dimension_numbers = #tpu.dot_dimension_numbers<[1], [0], [0], [1], [0, 0, 1, 1], [], []>} : vector<8x128xf32>, vector<128x512xf32>, vector<8x512xf32> -> vector<8x512xf32>
    %c0_26 = arith.constant 0 : index
    %c0_27 = arith.constant 0 : index
    %33 = vector.load %arg9[%c0_26, %c0_27] : memref<1x512xf32, #tpu.memory_space<vmem>>, vector<1x512xf32>
    %34 = vector.broadcast %33 : vector<1x512xf32> to vector<8x512xf32>
    %35 = arith.addf %32, %34 : vector<8x512xf32>
    %c0_28 = arith.constant 0 : index
    %c0_29 = arith.constant 0 : index
    %36 = vector.load %arg10[%c0_28, %c0_29] : memref<8x512xf32, #tpu.memory_space<vmem>>, vector<8x512xf32>
    tpu.vector_store %arg10[%c0_28, %c0_29], %35 {strides = array<i32>} : memref<8x512xf32, #tpu.memory_space<vmem>>, vector<8x512xf32>,
    return
  }
  func.func @transform_0(%arg0: i32) -> (i32, i32) {
    %c0_i32 = arith.constant 0 : i32
    %c0_i32_0 = arith.constant 0 : i32
    %c0_i32_1 = arith.constant 0 : i32
    return %c0_i32, %c0_i32_0 : i32, i32
  }
  func.func @transform_1(%arg0: i32) -> (i32, i32) {
    %c0_i32 = arith.constant 0 : i32
    %c0_i32_0 = arith.constant 0 : i32
    %c0_i32_1 = arith.constant 0 : i32
    return %c0_i32, %c0_i32_0 : i32, i32
  }
  func.func @transform_2(%arg0: i32) -> (i32, i32) {
    %c0_i32 = arith.constant 0 : i32
    %c0_i32_0 = arith.constant 0 : i32
    %c0_i32_1 = arith.constant 0 : i32
    return %c0_i32, %c0_i32_0 : i32, i32
  }
  func.func @transform_3(%arg0: i32) -> (i32, i32) {
    %c0_i32 = arith.constant 0 : i32
    %c0_i32_0 = arith.constant 0 : i32
    %c0_i32_1 = arith.constant 0 : i32
    return %c0_i32, %c0_i32_0 : i32, i32
  }
  func.func @transform_4(%arg0: i32) -> (i32, i32) {
    %c0_i32 = arith.constant 0 : i32
    %c0_i32_0 = arith.constant 0 : i32
    %c0_i32_1 = arith.constant 0 : i32
    return %c0_i32, %c0_i32_0 : i32, i32
  }
  func.func @transform_5(%arg0: i32) -> (i32, i32) {
    %c0_i32 = arith.constant 0 : i32
    %c0_i32_0 = arith.constant 0 : i32
    %c0_i32_1 = arith.constant 0 : i32
    return %c0_i32, %c0_i32_0 : i32, i32
  }
  func.func @transform_6(%arg0: i32) -> (i32, i32) {
    %c0_i32 = arith.constant 0 : i32
    %c0_i32_0 = arith.constant 0 : i32
    %c0_i32_1 = arith.constant 0 : i32
    return %c0_i32, %c0_i32_0 : i32, i32
  }
  func.func @transform_7(%arg0: i32) -> (i32, i32) {
    %c0_i32 = arith.constant 0 : i32
    %c0_i32_0 = arith.constant 0 : i32
    %c0_i32_1 = arith.constant 0 : i32
    return %c0_i32, %c0_i32_0 : i32, i32
  }
  func.func @transform_8(%arg0: i32) -> (i32, i32) {
    %c0_i32 = arith.constant 0 : i32
    %c0_i32_0 = arith.constant 0 : i32
    %c0_i32_1 = arith.constant 0 : i32
    return %c0_i32, %c0_i32_0 : i32, i32
  }
  func.func @transform_9(%arg0: i32) -> (i32, i32) {
    %c0_i32 = arith.constant 0 : i32
    %c0_i32_0 = arith.constant 0 : i32
    %c0_i32_1 = arith.constant 0 : i32
    return %c0_i32, %c0_i32_0 : i32, i32
  }
}

module attributes {stable_mosaic.version = 11 : i64} {
  func.func @_lstm_pred_kernel(%arg0: i32, %arg1: memref<32x128xf32, #tpu.memory_space<vmem>>, %arg2: memref<128x512xf32, #tpu.memory_space<vmem>>, %arg3: memref<128x512xf32, #tpu.memory_space<vmem>>, %arg4: memref<1x512xf32, #tpu.memory_space<vmem>>, %arg5: memref<128x128xf32, #tpu.memory_space<vmem>>, %arg6: memref<1x128xf32, #tpu.memory_space<vmem>>, %arg7: memref<32x128xf32, #tpu.memory_space<vmem>>, %arg8: memref<32x512xf32, #tpu.memory_space<vmem>>, %arg9: memref<32x128xf32, #tpu.memory_space<vmem>>) attributes {dimension_semantics = [#tpu.dimension_semantics<arbitrary>], iteration_bounds = array<i64: 1>, scalar_prefetch = 0 : i64, scratch_operands = 2 : i64, tpu.core_type = #tpu.core_type<tc>, window_params = [{pipeline_mode = #tpu.pipeline_mode<synchronous>, transform_indices = @transform_0, window_bounds = array<i64: 32, 128>}, {pipeline_mode = #tpu.pipeline_mode<synchronous>, transform_indices = @transform_1, window_bounds = array<i64: 128, 512>}, {pipeline_mode = #tpu.pipeline_mode<synchronous>, transform_indices = @transform_2, window_bounds = array<i64: 128, 512>}, {pipeline_mode = #tpu.pipeline_mode<synchronous>, transform_indices = @transform_3, window_bounds = array<i64: 1, 512>}, {pipeline_mode = #tpu.pipeline_mode<synchronous>, transform_indices = @transform_4, window_bounds = array<i64: 128, 128>}, {pipeline_mode = #tpu.pipeline_mode<synchronous>, transform_indices = @transform_5, window_bounds = array<i64: 1, 128>}, {pipeline_mode = #tpu.pipeline_mode<synchronous>, transform_indices = @transform_6, window_bounds = array<i64: 32, 128>}]} {
    %c0 = arith.constant 0 : index
    %c0_0 = arith.constant 0 : index
    %0 = vector.load %arg1[%c0, %c0_0] : memref<32x128xf32, #tpu.memory_space<vmem>>, vector<32x128xf32>
    %c0_1 = arith.constant 0 : index
    %c0_2 = arith.constant 0 : index
    %1 = vector.load %arg2[%c0_1, %c0_2] : memref<128x512xf32, #tpu.memory_space<vmem>>, vector<128x512xf32>
    %cst = arith.constant dense<0.000000e+00> : vector<32x512xf32>
    %2 = tpu.matmul %0, %1, %cst {dimension_numbers = #tpu.dot_dimension_numbers<[1], [0], [0], [1], [0, 0, 1, 1], [], []>} : vector<32x128xf32>, vector<128x512xf32>, vector<32x512xf32> -> vector<32x512xf32>
    %c0_3 = arith.constant 0 : index
    %c0_4 = arith.constant 0 : index
    %3 = vector.load %arg4[%c0_3, %c0_4] : memref<1x512xf32, #tpu.memory_space<vmem>>, vector<1x512xf32>
    %4 = vector.broadcast %3 : vector<1x512xf32> to vector<32x512xf32>
    %5 = arith.addf %2, %4 : vector<32x512xf32>
    %c0_5 = arith.constant 0 : index
    %c0_6 = arith.constant 0 : index
    %6 = vector.load %arg8[%c0_5, %c0_6] : memref<32x512xf32, #tpu.memory_space<vmem>>, vector<32x512xf32>
    tpu.vector_store %arg8[%c0_5, %c0_6], %5 {strides = array<i32>} : memref<32x512xf32, #tpu.memory_space<vmem>>, vector<32x512xf32>,
    %cst_7 = arith.constant 0.000000e+00 : f32
    %7 = vector.broadcast %cst_7 : f32 to vector<2x128xf32>
    %cst_8 = arith.constant 0.000000e+00 : f32
    %8 = vector.broadcast %cst_8 : f32 to vector<2x128xf32>
    %c0_i32 = arith.constant 0 : i32
    %c2_i32 = arith.constant 2 : i32
    %9 = arith.muli %c0_i32, %c2_i32 : i32
    %10 = arith.index_cast %9 : i32 to index
    %c0_9 = arith.constant 0 : index
    %11 = vector.load %arg8[%10, %c0_9] : memref<32x512xf32, #tpu.memory_space<vmem>>, vector<2x512xf32>
    %c0_10 = arith.constant 0 : index
    %c0_11 = arith.constant 0 : index
    %12 = vector.load %arg3[%c0_10, %c0_11] : memref<128x512xf32, #tpu.memory_space<vmem>>, vector<128x512xf32>
    %cst_12 = arith.constant dense<0.000000e+00> : vector<2x512xf32>
    %13 = tpu.matmul %7, %12, %cst_12 {dimension_numbers = #tpu.dot_dimension_numbers<[1], [0], [0], [1], [0, 0, 1, 1], [], []>} : vector<2x128xf32>, vector<128x512xf32>, vector<2x512xf32> -> vector<2x512xf32>
    %14 = arith.addf %11, %13 : vector<2x512xf32>
    %15 = vector.extract_strided_slice %14 {offsets = [0, 0], sizes = [2, 128], strides = [1, 1]} : vector<2x512xf32> to vector<2x128xf32>
    %16 = arith.negf %15 : vector<2x128xf32>
    %17 = math.exp %16 : vector<2x128xf32>
    %cst_13 = arith.constant 1.000000e+00 : f32
    %18 = vector.broadcast %cst_13 : f32 to vector<2x128xf32>
    %19 = arith.addf %18, %17 : vector<2x128xf32>
    %20 = arith.divf %18, %19 : vector<2x128xf32>
    %21 = vector.extract_strided_slice %14 {offsets = [0, 128], sizes = [2, 128], strides = [1, 1]} : vector<2x512xf32> to vector<2x128xf32>
    %22 = arith.negf %21 : vector<2x128xf32>
    %23 = math.exp %22 : vector<2x128xf32>
    %cst_14 = arith.constant 1.000000e+00 : f32
    %24 = vector.broadcast %cst_14 : f32 to vector<2x128xf32>
    %25 = arith.addf %24, %23 : vector<2x128xf32>
    %26 = arith.divf %24, %25 : vector<2x128xf32>
    %27 = vector.extract_strided_slice %14 {offsets = [0, 256], sizes = [2, 128], strides = [1, 1]} : vector<2x512xf32> to vector<2x128xf32>
    %28 = math.tanh %27 : vector<2x128xf32>
    %29 = vector.extract_strided_slice %14 {offsets = [0, 384], sizes = [2, 128], strides = [1, 1]} : vector<2x512xf32> to vector<2x128xf32>
    %30 = arith.negf %29 : vector<2x128xf32>
    %31 = math.exp %30 : vector<2x128xf32>
    %cst_15 = arith.constant 1.000000e+00 : f32
    %32 = vector.broadcast %cst_15 : f32 to vector<2x128xf32>
    %33 = arith.addf %32, %31 : vector<2x128xf32>
    %34 = arith.divf %32, %33 : vector<2x128xf32>
    %35 = arith.mulf %26, %8 : vector<2x128xf32>
    %36 = arith.mulf %20, %28 : vector<2x128xf32>
    %37 = arith.addf %35, %36 : vector<2x128xf32>
    %38 = math.tanh %37 : vector<2x128xf32>
    %39 = arith.mulf %34, %38 : vector<2x128xf32>
    %40 = arith.index_cast %9 : i32 to index
    %c0_16 = arith.constant 0 : index
    %41 = vector.load %arg9[%40, %c0_16] : memref<32x128xf32, #tpu.memory_space<vmem>>, vector<2x128xf32>
    tpu.vector_store %arg9[%40, %c0_16], %39 {strides = array<i32>} : memref<32x128xf32, #tpu.memory_space<vmem>>, vector<2x128xf32>,
    %c1_i32 = arith.constant 1 : i32
    %c2_i32_17 = arith.constant 2 : i32
    %42 = arith.muli %c1_i32, %c2_i32_17 : i32
    %43 = arith.index_cast %42 : i32 to index
    %c0_18 = arith.constant 0 : index
    %44 = vector.load %arg8[%43, %c0_18] : memref<32x512xf32, #tpu.memory_space<vmem>>, vector<2x512xf32>
    %c0_19 = arith.constant 0 : index
    %c0_20 = arith.constant 0 : index
    %45 = vector.load %arg3[%c0_19, %c0_20] : memref<128x512xf32, #tpu.memory_space<vmem>>, vector<128x512xf32>
    %cst_21 = arith.constant dense<0.000000e+00> : vector<2x512xf32>
    %46 = tpu.matmul %39, %45, %cst_21 {dimension_numbers = #tpu.dot_dimension_numbers<[1], [0], [0], [1], [0, 0, 1, 1], [], []>} : vector<2x128xf32>, vector<128x512xf32>, vector<2x512xf32> -> vector<2x512xf32>
    %47 = arith.addf %44, %46 : vector<2x512xf32>
    %48 = vector.extract_strided_slice %47 {offsets = [0, 0], sizes = [2, 128], strides = [1, 1]} : vector<2x512xf32> to vector<2x128xf32>
    %49 = arith.negf %48 : vector<2x128xf32>
    %50 = math.exp %49 : vector<2x128xf32>
    %cst_22 = arith.constant 1.000000e+00 : f32
    %51 = vector.broadcast %cst_22 : f32 to vector<2x128xf32>
    %52 = arith.addf %51, %50 : vector<2x128xf32>
    %53 = arith.divf %51, %52 : vector<2x128xf32>
    %54 = vector.extract_strided_slice %47 {offsets = [0, 128], sizes = [2, 128], strides = [1, 1]} : vector<2x512xf32> to vector<2x128xf32>
    %55 = arith.negf %54 : vector<2x128xf32>
    %56 = math.exp %55 : vector<2x128xf32>
    %cst_23 = arith.constant 1.000000e+00 : f32
    %57 = vector.broadcast %cst_23 : f32 to vector<2x128xf32>
    %58 = arith.addf %57, %56 : vector<2x128xf32>
    %59 = arith.divf %57, %58 : vector<2x128xf32>
    %60 = vector.extract_strided_slice %47 {offsets = [0, 256], sizes = [2, 128], strides = [1, 1]} : vector<2x512xf32> to vector<2x128xf32>
    %61 = math.tanh %60 : vector<2x128xf32>
    %62 = vector.extract_strided_slice %47 {offsets = [0, 384], sizes = [2, 128], strides = [1, 1]} : vector<2x512xf32> to vector<2x128xf32>
    %63 = arith.negf %62 : vector<2x128xf32>
    %64 = math.exp %63 : vector<2x128xf32>
    %cst_24 = arith.constant 1.000000e+00 : f32
    %65 = vector.broadcast %cst_24 : f32 to vector<2x128xf32>
    %66 = arith.addf %65, %64 : vector<2x128xf32>
    %67 = arith.divf %65, %66 : vector<2x128xf32>
    %68 = arith.mulf %59, %37 : vector<2x128xf32>
    %69 = arith.mulf %53, %61 : vector<2x128xf32>
    %70 = arith.addf %68, %69 : vector<2x128xf32>
    %71 = math.tanh %70 : vector<2x128xf32>
    %72 = arith.mulf %67, %71 : vector<2x128xf32>
    %73 = arith.index_cast %42 : i32 to index
    %c0_25 = arith.constant 0 : index
    %74 = vector.load %arg9[%73, %c0_25] : memref<32x128xf32, #tpu.memory_space<vmem>>, vector<2x128xf32>
    tpu.vector_store %arg9[%73, %c0_25], %72 {strides = array<i32>} : memref<32x128xf32, #tpu.memory_space<vmem>>, vector<2x128xf32>,
    %c2_i32_26 = arith.constant 2 : i32
    %c2_i32_27 = arith.constant 2 : i32
    %75 = arith.muli %c2_i32_26, %c2_i32_27 : i32
    %76 = arith.index_cast %75 : i32 to index
    %c0_28 = arith.constant 0 : index
    %77 = vector.load %arg8[%76, %c0_28] : memref<32x512xf32, #tpu.memory_space<vmem>>, vector<2x512xf32>
    %c0_29 = arith.constant 0 : index
    %c0_30 = arith.constant 0 : index
    %78 = vector.load %arg3[%c0_29, %c0_30] : memref<128x512xf32, #tpu.memory_space<vmem>>, vector<128x512xf32>
    %cst_31 = arith.constant dense<0.000000e+00> : vector<2x512xf32>
    %79 = tpu.matmul %72, %78, %cst_31 {dimension_numbers = #tpu.dot_dimension_numbers<[1], [0], [0], [1], [0, 0, 1, 1], [], []>} : vector<2x128xf32>, vector<128x512xf32>, vector<2x512xf32> -> vector<2x512xf32>
    %80 = arith.addf %77, %79 : vector<2x512xf32>
    %81 = vector.extract_strided_slice %80 {offsets = [0, 0], sizes = [2, 128], strides = [1, 1]} : vector<2x512xf32> to vector<2x128xf32>
    %82 = arith.negf %81 : vector<2x128xf32>
    %83 = math.exp %82 : vector<2x128xf32>
    %cst_32 = arith.constant 1.000000e+00 : f32
    %84 = vector.broadcast %cst_32 : f32 to vector<2x128xf32>
    %85 = arith.addf %84, %83 : vector<2x128xf32>
    %86 = arith.divf %84, %85 : vector<2x128xf32>
    %87 = vector.extract_strided_slice %80 {offsets = [0, 128], sizes = [2, 128], strides = [1, 1]} : vector<2x512xf32> to vector<2x128xf32>
    %88 = arith.negf %87 : vector<2x128xf32>
    %89 = math.exp %88 : vector<2x128xf32>
    %cst_33 = arith.constant 1.000000e+00 : f32
    %90 = vector.broadcast %cst_33 : f32 to vector<2x128xf32>
    %91 = arith.addf %90, %89 : vector<2x128xf32>
    %92 = arith.divf %90, %91 : vector<2x128xf32>
    %93 = vector.extract_strided_slice %80 {offsets = [0, 256], sizes = [2, 128], strides = [1, 1]} : vector<2x512xf32> to vector<2x128xf32>
    %94 = math.tanh %93 : vector<2x128xf32>
    %95 = vector.extract_strided_slice %80 {offsets = [0, 384], sizes = [2, 128], strides = [1, 1]} : vector<2x512xf32> to vector<2x128xf32>
    %96 = arith.negf %95 : vector<2x128xf32>
    %97 = math.exp %96 : vector<2x128xf32>
    %cst_34 = arith.constant 1.000000e+00 : f32
    %98 = vector.broadcast %cst_34 : f32 to vector<2x128xf32>
    %99 = arith.addf %98, %97 : vector<2x128xf32>
    %100 = arith.divf %98, %99 : vector<2x128xf32>
    %101 = arith.mulf %92, %70 : vector<2x128xf32>
    %102 = arith.mulf %86, %94 : vector<2x128xf32>
    %103 = arith.addf %101, %102 : vector<2x128xf32>
    %104 = math.tanh %103 : vector<2x128xf32>
    %105 = arith.mulf %100, %104 : vector<2x128xf32>
    %106 = arith.index_cast %75 : i32 to index
    %c0_35 = arith.constant 0 : index
    %107 = vector.load %arg9[%106, %c0_35] : memref<32x128xf32, #tpu.memory_space<vmem>>, vector<2x128xf32>
    tpu.vector_store %arg9[%106, %c0_35], %105 {strides = array<i32>} : memref<32x128xf32, #tpu.memory_space<vmem>>, vector<2x128xf32>,
    %c3_i32 = arith.constant 3 : i32
    %c2_i32_36 = arith.constant 2 : i32
    %108 = arith.muli %c3_i32, %c2_i32_36 : i32
    %109 = arith.index_cast %108 : i32 to index
    %c0_37 = arith.constant 0 : index
    %110 = vector.load %arg8[%109, %c0_37] : memref<32x512xf32, #tpu.memory_space<vmem>>, vector<2x512xf32>
    %c0_38 = arith.constant 0 : index
    %c0_39 = arith.constant 0 : index
    %111 = vector.load %arg3[%c0_38, %c0_39] : memref<128x512xf32, #tpu.memory_space<vmem>>, vector<128x512xf32>
    %cst_40 = arith.constant dense<0.000000e+00> : vector<2x512xf32>
    %112 = tpu.matmul %105, %111, %cst_40 {dimension_numbers = #tpu.dot_dimension_numbers<[1], [0], [0], [1], [0, 0, 1, 1], [], []>} : vector<2x128xf32>, vector<128x512xf32>, vector<2x512xf32> -> vector<2x512xf32>
    %113 = arith.addf %110, %112 : vector<2x512xf32>
    %114 = vector.extract_strided_slice %113 {offsets = [0, 0], sizes = [2, 128], strides = [1, 1]} : vector<2x512xf32> to vector<2x128xf32>
    %115 = arith.negf %114 : vector<2x128xf32>
    %116 = math.exp %115 : vector<2x128xf32>
    %cst_41 = arith.constant 1.000000e+00 : f32
    %117 = vector.broadcast %cst_41 : f32 to vector<2x128xf32>
    %118 = arith.addf %117, %116 : vector<2x128xf32>
    %119 = arith.divf %117, %118 : vector<2x128xf32>
    %120 = vector.extract_strided_slice %113 {offsets = [0, 128], sizes = [2, 128], strides = [1, 1]} : vector<2x512xf32> to vector<2x128xf32>
    %121 = arith.negf %120 : vector<2x128xf32>
    %122 = math.exp %121 : vector<2x128xf32>
    %cst_42 = arith.constant 1.000000e+00 : f32
    %123 = vector.broadcast %cst_42 : f32 to vector<2x128xf32>
    %124 = arith.addf %123, %122 : vector<2x128xf32>
    %125 = arith.divf %123, %124 : vector<2x128xf32>
    %126 = vector.extract_strided_slice %113 {offsets = [0, 256], sizes = [2, 128], strides = [1, 1]} : vector<2x512xf32> to vector<2x128xf32>
    %127 = math.tanh %126 : vector<2x128xf32>
    %128 = vector.extract_strided_slice %113 {offsets = [0, 384], sizes = [2, 128], strides = [1, 1]} : vector<2x512xf32> to vector<2x128xf32>
    %129 = arith.negf %128 : vector<2x128xf32>
    %130 = math.exp %129 : vector<2x128xf32>
    %cst_43 = arith.constant 1.000000e+00 : f32
    %131 = vector.broadcast %cst_43 : f32 to vector<2x128xf32>
    %132 = arith.addf %131, %130 : vector<2x128xf32>
    %133 = arith.divf %131, %132 : vector<2x128xf32>
    %134 = arith.mulf %125, %103 : vector<2x128xf32>
    %135 = arith.mulf %119, %127 : vector<2x128xf32>
    %136 = arith.addf %134, %135 : vector<2x128xf32>
    %137 = math.tanh %136 : vector<2x128xf32>
    %138 = arith.mulf %133, %137 : vector<2x128xf32>
    %139 = arith.index_cast %108 : i32 to index
    %c0_44 = arith.constant 0 : index
    %140 = vector.load %arg9[%139, %c0_44] : memref<32x128xf32, #tpu.memory_space<vmem>>, vector<2x128xf32>
    tpu.vector_store %arg9[%139, %c0_44], %138 {strides = array<i32>} : memref<32x128xf32, #tpu.memory_space<vmem>>, vector<2x128xf32>,
    %c4_i32 = arith.constant 4 : i32
    %c2_i32_45 = arith.constant 2 : i32
    %141 = arith.muli %c4_i32, %c2_i32_45 : i32
    %142 = arith.index_cast %141 : i32 to index
    %c0_46 = arith.constant 0 : index
    %143 = vector.load %arg8[%142, %c0_46] : memref<32x512xf32, #tpu.memory_space<vmem>>, vector<2x512xf32>
    %c0_47 = arith.constant 0 : index
    %c0_48 = arith.constant 0 : index
    %144 = vector.load %arg3[%c0_47, %c0_48] : memref<128x512xf32, #tpu.memory_space<vmem>>, vector<128x512xf32>
    %cst_49 = arith.constant dense<0.000000e+00> : vector<2x512xf32>
    %145 = tpu.matmul %138, %144, %cst_49 {dimension_numbers = #tpu.dot_dimension_numbers<[1], [0], [0], [1], [0, 0, 1, 1], [], []>} : vector<2x128xf32>, vector<128x512xf32>, vector<2x512xf32> -> vector<2x512xf32>
    %146 = arith.addf %143, %145 : vector<2x512xf32>
    %147 = vector.extract_strided_slice %146 {offsets = [0, 0], sizes = [2, 128], strides = [1, 1]} : vector<2x512xf32> to vector<2x128xf32>
    %148 = arith.negf %147 : vector<2x128xf32>
    %149 = math.exp %148 : vector<2x128xf32>
    %cst_50 = arith.constant 1.000000e+00 : f32
    %150 = vector.broadcast %cst_50 : f32 to vector<2x128xf32>
    %151 = arith.addf %150, %149 : vector<2x128xf32>
    %152 = arith.divf %150, %151 : vector<2x128xf32>
    %153 = vector.extract_strided_slice %146 {offsets = [0, 128], sizes = [2, 128], strides = [1, 1]} : vector<2x512xf32> to vector<2x128xf32>
    %154 = arith.negf %153 : vector<2x128xf32>
    %155 = math.exp %154 : vector<2x128xf32>
    %cst_51 = arith.constant 1.000000e+00 : f32
    %156 = vector.broadcast %cst_51 : f32 to vector<2x128xf32>
    %157 = arith.addf %156, %155 : vector<2x128xf32>
    %158 = arith.divf %156, %157 : vector<2x128xf32>
    %159 = vector.extract_strided_slice %146 {offsets = [0, 256], sizes = [2, 128], strides = [1, 1]} : vector<2x512xf32> to vector<2x128xf32>
    %160 = math.tanh %159 : vector<2x128xf32>
    %161 = vector.extract_strided_slice %146 {offsets = [0, 384], sizes = [2, 128], strides = [1, 1]} : vector<2x512xf32> to vector<2x128xf32>
    %162 = arith.negf %161 : vector<2x128xf32>
    %163 = math.exp %162 : vector<2x128xf32>
    %cst_52 = arith.constant 1.000000e+00 : f32
    %164 = vector.broadcast %cst_52 : f32 to vector<2x128xf32>
    %165 = arith.addf %164, %163 : vector<2x128xf32>
    %166 = arith.divf %164, %165 : vector<2x128xf32>
    %167 = arith.mulf %158, %136 : vector<2x128xf32>
    %168 = arith.mulf %152, %160 : vector<2x128xf32>
    %169 = arith.addf %167, %168 : vector<2x128xf32>
    %170 = math.tanh %169 : vector<2x128xf32>
    %171 = arith.mulf %166, %170 : vector<2x128xf32>
    %172 = arith.index_cast %141 : i32 to index
    %c0_53 = arith.constant 0 : index
    %173 = vector.load %arg9[%172, %c0_53] : memref<32x128xf32, #tpu.memory_space<vmem>>, vector<2x128xf32>
    tpu.vector_store %arg9[%172, %c0_53], %171 {strides = array<i32>} : memref<32x128xf32, #tpu.memory_space<vmem>>, vector<2x128xf32>,
    %c5_i32 = arith.constant 5 : i32
    %c2_i32_54 = arith.constant 2 : i32
    %174 = arith.muli %c5_i32, %c2_i32_54 : i32
    %175 = arith.index_cast %174 : i32 to index
    %c0_55 = arith.constant 0 : index
    %176 = vector.load %arg8[%175, %c0_55] : memref<32x512xf32, #tpu.memory_space<vmem>>, vector<2x512xf32>
    %c0_56 = arith.constant 0 : index
    %c0_57 = arith.constant 0 : index
    %177 = vector.load %arg3[%c0_56, %c0_57] : memref<128x512xf32, #tpu.memory_space<vmem>>, vector<128x512xf32>
    %cst_58 = arith.constant dense<0.000000e+00> : vector<2x512xf32>
    %178 = tpu.matmul %171, %177, %cst_58 {dimension_numbers = #tpu.dot_dimension_numbers<[1], [0], [0], [1], [0, 0, 1, 1], [], []>} : vector<2x128xf32>, vector<128x512xf32>, vector<2x512xf32> -> vector<2x512xf32>
    %179 = arith.addf %176, %178 : vector<2x512xf32>
    %180 = vector.extract_strided_slice %179 {offsets = [0, 0], sizes = [2, 128], strides = [1, 1]} : vector<2x512xf32> to vector<2x128xf32>
    %181 = arith.negf %180 : vector<2x128xf32>
    %182 = math.exp %181 : vector<2x128xf32>
    %cst_59 = arith.constant 1.000000e+00 : f32
    %183 = vector.broadcast %cst_59 : f32 to vector<2x128xf32>
    %184 = arith.addf %183, %182 : vector<2x128xf32>
    %185 = arith.divf %183, %184 : vector<2x128xf32>
    %186 = vector.extract_strided_slice %179 {offsets = [0, 128], sizes = [2, 128], strides = [1, 1]} : vector<2x512xf32> to vector<2x128xf32>
    %187 = arith.negf %186 : vector<2x128xf32>
    %188 = math.exp %187 : vector<2x128xf32>
    %cst_60 = arith.constant 1.000000e+00 : f32
    %189 = vector.broadcast %cst_60 : f32 to vector<2x128xf32>
    %190 = arith.addf %189, %188 : vector<2x128xf32>
    %191 = arith.divf %189, %190 : vector<2x128xf32>
    %192 = vector.extract_strided_slice %179 {offsets = [0, 256], sizes = [2, 128], strides = [1, 1]} : vector<2x512xf32> to vector<2x128xf32>
    %193 = math.tanh %192 : vector<2x128xf32>
    %194 = vector.extract_strided_slice %179 {offsets = [0, 384], sizes = [2, 128], strides = [1, 1]} : vector<2x512xf32> to vector<2x128xf32>
    %195 = arith.negf %194 : vector<2x128xf32>
    %196 = math.exp %195 : vector<2x128xf32>
    %cst_61 = arith.constant 1.000000e+00 : f32
    %197 = vector.broadcast %cst_61 : f32 to vector<2x128xf32>
    %198 = arith.addf %197, %196 : vector<2x128xf32>
    %199 = arith.divf %197, %198 : vector<2x128xf32>
    %200 = arith.mulf %191, %169 : vector<2x128xf32>
    %201 = arith.mulf %185, %193 : vector<2x128xf32>
    %202 = arith.addf %200, %201 : vector<2x128xf32>
    %203 = math.tanh %202 : vector<2x128xf32>
    %204 = arith.mulf %199, %203 : vector<2x128xf32>
    %205 = arith.index_cast %174 : i32 to index
    %c0_62 = arith.constant 0 : index
    %206 = vector.load %arg9[%205, %c0_62] : memref<32x128xf32, #tpu.memory_space<vmem>>, vector<2x128xf32>
    tpu.vector_store %arg9[%205, %c0_62], %204 {strides = array<i32>} : memref<32x128xf32, #tpu.memory_space<vmem>>, vector<2x128xf32>,
    %c6_i32 = arith.constant 6 : i32
    %c2_i32_63 = arith.constant 2 : i32
    %207 = arith.muli %c6_i32, %c2_i32_63 : i32
    %208 = arith.index_cast %207 : i32 to index
    %c0_64 = arith.constant 0 : index
    %209 = vector.load %arg8[%208, %c0_64] : memref<32x512xf32, #tpu.memory_space<vmem>>, vector<2x512xf32>
    %c0_65 = arith.constant 0 : index
    %c0_66 = arith.constant 0 : index
    %210 = vector.load %arg3[%c0_65, %c0_66] : memref<128x512xf32, #tpu.memory_space<vmem>>, vector<128x512xf32>
    %cst_67 = arith.constant dense<0.000000e+00> : vector<2x512xf32>
    %211 = tpu.matmul %204, %210, %cst_67 {dimension_numbers = #tpu.dot_dimension_numbers<[1], [0], [0], [1], [0, 0, 1, 1], [], []>} : vector<2x128xf32>, vector<128x512xf32>, vector<2x512xf32> -> vector<2x512xf32>
    %212 = arith.addf %209, %211 : vector<2x512xf32>
    %213 = vector.extract_strided_slice %212 {offsets = [0, 0], sizes = [2, 128], strides = [1, 1]} : vector<2x512xf32> to vector<2x128xf32>
    %214 = arith.negf %213 : vector<2x128xf32>
    %215 = math.exp %214 : vector<2x128xf32>
    %cst_68 = arith.constant 1.000000e+00 : f32
    %216 = vector.broadcast %cst_68 : f32 to vector<2x128xf32>
    %217 = arith.addf %216, %215 : vector<2x128xf32>
    %218 = arith.divf %216, %217 : vector<2x128xf32>
    %219 = vector.extract_strided_slice %212 {offsets = [0, 128], sizes = [2, 128], strides = [1, 1]} : vector<2x512xf32> to vector<2x128xf32>
    %220 = arith.negf %219 : vector<2x128xf32>
    %221 = math.exp %220 : vector<2x128xf32>
    %cst_69 = arith.constant 1.000000e+00 : f32
    %222 = vector.broadcast %cst_69 : f32 to vector<2x128xf32>
    %223 = arith.addf %222, %221 : vector<2x128xf32>
    %224 = arith.divf %222, %223 : vector<2x128xf32>
    %225 = vector.extract_strided_slice %212 {offsets = [0, 256], sizes = [2, 128], strides = [1, 1]} : vector<2x512xf32> to vector<2x128xf32>
    %226 = math.tanh %225 : vector<2x128xf32>
    %227 = vector.extract_strided_slice %212 {offsets = [0, 384], sizes = [2, 128], strides = [1, 1]} : vector<2x512xf32> to vector<2x128xf32>
    %228 = arith.negf %227 : vector<2x128xf32>
    %229 = math.exp %228 : vector<2x128xf32>
    %cst_70 = arith.constant 1.000000e+00 : f32
    %230 = vector.broadcast %cst_70 : f32 to vector<2x128xf32>
    %231 = arith.addf %230, %229 : vector<2x128xf32>
    %232 = arith.divf %230, %231 : vector<2x128xf32>
    %233 = arith.mulf %224, %202 : vector<2x128xf32>
    %234 = arith.mulf %218, %226 : vector<2x128xf32>
    %235 = arith.addf %233, %234 : vector<2x128xf32>
    %236 = math.tanh %235 : vector<2x128xf32>
    %237 = arith.mulf %232, %236 : vector<2x128xf32>
    %238 = arith.index_cast %207 : i32 to index
    %c0_71 = arith.constant 0 : index
    %239 = vector.load %arg9[%238, %c0_71] : memref<32x128xf32, #tpu.memory_space<vmem>>, vector<2x128xf32>
    tpu.vector_store %arg9[%238, %c0_71], %237 {strides = array<i32>} : memref<32x128xf32, #tpu.memory_space<vmem>>, vector<2x128xf32>,
    %c7_i32 = arith.constant 7 : i32
    %c2_i32_72 = arith.constant 2 : i32
    %240 = arith.muli %c7_i32, %c2_i32_72 : i32
    %241 = arith.index_cast %240 : i32 to index
    %c0_73 = arith.constant 0 : index
    %242 = vector.load %arg8[%241, %c0_73] : memref<32x512xf32, #tpu.memory_space<vmem>>, vector<2x512xf32>
    %c0_74 = arith.constant 0 : index
    %c0_75 = arith.constant 0 : index
    %243 = vector.load %arg3[%c0_74, %c0_75] : memref<128x512xf32, #tpu.memory_space<vmem>>, vector<128x512xf32>
    %cst_76 = arith.constant dense<0.000000e+00> : vector<2x512xf32>
    %244 = tpu.matmul %237, %243, %cst_76 {dimension_numbers = #tpu.dot_dimension_numbers<[1], [0], [0], [1], [0, 0, 1, 1], [], []>} : vector<2x128xf32>, vector<128x512xf32>, vector<2x512xf32> -> vector<2x512xf32>
    %245 = arith.addf %242, %244 : vector<2x512xf32>
    %246 = vector.extract_strided_slice %245 {offsets = [0, 0], sizes = [2, 128], strides = [1, 1]} : vector<2x512xf32> to vector<2x128xf32>
    %247 = arith.negf %246 : vector<2x128xf32>
    %248 = math.exp %247 : vector<2x128xf32>
    %cst_77 = arith.constant 1.000000e+00 : f32
    %249 = vector.broadcast %cst_77 : f32 to vector<2x128xf32>
    %250 = arith.addf %249, %248 : vector<2x128xf32>
    %251 = arith.divf %249, %250 : vector<2x128xf32>
    %252 = vector.extract_strided_slice %245 {offsets = [0, 128], sizes = [2, 128], strides = [1, 1]} : vector<2x512xf32> to vector<2x128xf32>
    %253 = arith.negf %252 : vector<2x128xf32>
    %254 = math.exp %253 : vector<2x128xf32>
    %cst_78 = arith.constant 1.000000e+00 : f32
    %255 = vector.broadcast %cst_78 : f32 to vector<2x128xf32>
    %256 = arith.addf %255, %254 : vector<2x128xf32>
    %257 = arith.divf %255, %256 : vector<2x128xf32>
    %258 = vector.extract_strided_slice %245 {offsets = [0, 256], sizes = [2, 128], strides = [1, 1]} : vector<2x512xf32> to vector<2x128xf32>
    %259 = math.tanh %258 : vector<2x128xf32>
    %260 = vector.extract_strided_slice %245 {offsets = [0, 384], sizes = [2, 128], strides = [1, 1]} : vector<2x512xf32> to vector<2x128xf32>
    %261 = arith.negf %260 : vector<2x128xf32>
    %262 = math.exp %261 : vector<2x128xf32>
    %cst_79 = arith.constant 1.000000e+00 : f32
    %263 = vector.broadcast %cst_79 : f32 to vector<2x128xf32>
    %264 = arith.addf %263, %262 : vector<2x128xf32>
    %265 = arith.divf %263, %264 : vector<2x128xf32>
    %266 = arith.mulf %257, %235 : vector<2x128xf32>
    %267 = arith.mulf %251, %259 : vector<2x128xf32>
    %268 = arith.addf %266, %267 : vector<2x128xf32>
    %269 = math.tanh %268 : vector<2x128xf32>
    %270 = arith.mulf %265, %269 : vector<2x128xf32>
    %271 = arith.index_cast %240 : i32 to index
    %c0_80 = arith.constant 0 : index
    %272 = vector.load %arg9[%271, %c0_80] : memref<32x128xf32, #tpu.memory_space<vmem>>, vector<2x128xf32>
    tpu.vector_store %arg9[%271, %c0_80], %270 {strides = array<i32>} : memref<32x128xf32, #tpu.memory_space<vmem>>, vector<2x128xf32>,
    %c8_i32 = arith.constant 8 : i32
    %c2_i32_81 = arith.constant 2 : i32
    %273 = arith.muli %c8_i32, %c2_i32_81 : i32
    %274 = arith.index_cast %273 : i32 to index
    %c0_82 = arith.constant 0 : index
    %275 = vector.load %arg8[%274, %c0_82] : memref<32x512xf32, #tpu.memory_space<vmem>>, vector<2x512xf32>
    %c0_83 = arith.constant 0 : index
    %c0_84 = arith.constant 0 : index
    %276 = vector.load %arg3[%c0_83, %c0_84] : memref<128x512xf32, #tpu.memory_space<vmem>>, vector<128x512xf32>
    %cst_85 = arith.constant dense<0.000000e+00> : vector<2x512xf32>
    %277 = tpu.matmul %270, %276, %cst_85 {dimension_numbers = #tpu.dot_dimension_numbers<[1], [0], [0], [1], [0, 0, 1, 1], [], []>} : vector<2x128xf32>, vector<128x512xf32>, vector<2x512xf32> -> vector<2x512xf32>
    %278 = arith.addf %275, %277 : vector<2x512xf32>
    %279 = vector.extract_strided_slice %278 {offsets = [0, 0], sizes = [2, 128], strides = [1, 1]} : vector<2x512xf32> to vector<2x128xf32>
    %280 = arith.negf %279 : vector<2x128xf32>
    %281 = math.exp %280 : vector<2x128xf32>
    %cst_86 = arith.constant 1.000000e+00 : f32
    %282 = vector.broadcast %cst_86 : f32 to vector<2x128xf32>
    %283 = arith.addf %282, %281 : vector<2x128xf32>
    %284 = arith.divf %282, %283 : vector<2x128xf32>
    %285 = vector.extract_strided_slice %278 {offsets = [0, 128], sizes = [2, 128], strides = [1, 1]} : vector<2x512xf32> to vector<2x128xf32>
    %286 = arith.negf %285 : vector<2x128xf32>
    %287 = math.exp %286 : vector<2x128xf32>
    %cst_87 = arith.constant 1.000000e+00 : f32
    %288 = vector.broadcast %cst_87 : f32 to vector<2x128xf32>
    %289 = arith.addf %288, %287 : vector<2x128xf32>
    %290 = arith.divf %288, %289 : vector<2x128xf32>
    %291 = vector.extract_strided_slice %278 {offsets = [0, 256], sizes = [2, 128], strides = [1, 1]} : vector<2x512xf32> to vector<2x128xf32>
    %292 = math.tanh %291 : vector<2x128xf32>
    %293 = vector.extract_strided_slice %278 {offsets = [0, 384], sizes = [2, 128], strides = [1, 1]} : vector<2x512xf32> to vector<2x128xf32>
    %294 = arith.negf %293 : vector<2x128xf32>
    %295 = math.exp %294 : vector<2x128xf32>
    %cst_88 = arith.constant 1.000000e+00 : f32
    %296 = vector.broadcast %cst_88 : f32 to vector<2x128xf32>
    %297 = arith.addf %296, %295 : vector<2x128xf32>
    %298 = arith.divf %296, %297 : vector<2x128xf32>
    %299 = arith.mulf %290, %268 : vector<2x128xf32>
    %300 = arith.mulf %284, %292 : vector<2x128xf32>
    %301 = arith.addf %299, %300 : vector<2x128xf32>
    %302 = math.tanh %301 : vector<2x128xf32>
    %303 = arith.mulf %298, %302 : vector<2x128xf32>
    %304 = arith.index_cast %273 : i32 to index
    %c0_89 = arith.constant 0 : index
    %305 = vector.load %arg9[%304, %c0_89] : memref<32x128xf32, #tpu.memory_space<vmem>>, vector<2x128xf32>
    tpu.vector_store %arg9[%304, %c0_89], %303 {strides = array<i32>} : memref<32x128xf32, #tpu.memory_space<vmem>>, vector<2x128xf32>,
    %c9_i32 = arith.constant 9 : i32
    %c2_i32_90 = arith.constant 2 : i32
    %306 = arith.muli %c9_i32, %c2_i32_90 : i32
    %307 = arith.index_cast %306 : i32 to index
    %c0_91 = arith.constant 0 : index
    %308 = vector.load %arg8[%307, %c0_91] : memref<32x512xf32, #tpu.memory_space<vmem>>, vector<2x512xf32>
    %c0_92 = arith.constant 0 : index
    %c0_93 = arith.constant 0 : index
    %309 = vector.load %arg3[%c0_92, %c0_93] : memref<128x512xf32, #tpu.memory_space<vmem>>, vector<128x512xf32>
    %cst_94 = arith.constant dense<0.000000e+00> : vector<2x512xf32>
    %310 = tpu.matmul %303, %309, %cst_94 {dimension_numbers = #tpu.dot_dimension_numbers<[1], [0], [0], [1], [0, 0, 1, 1], [], []>} : vector<2x128xf32>, vector<128x512xf32>, vector<2x512xf32> -> vector<2x512xf32>
    %311 = arith.addf %308, %310 : vector<2x512xf32>
    %312 = vector.extract_strided_slice %311 {offsets = [0, 0], sizes = [2, 128], strides = [1, 1]} : vector<2x512xf32> to vector<2x128xf32>
    %313 = arith.negf %312 : vector<2x128xf32>
    %314 = math.exp %313 : vector<2x128xf32>
    %cst_95 = arith.constant 1.000000e+00 : f32
    %315 = vector.broadcast %cst_95 : f32 to vector<2x128xf32>
    %316 = arith.addf %315, %314 : vector<2x128xf32>
    %317 = arith.divf %315, %316 : vector<2x128xf32>
    %318 = vector.extract_strided_slice %311 {offsets = [0, 128], sizes = [2, 128], strides = [1, 1]} : vector<2x512xf32> to vector<2x128xf32>
    %319 = arith.negf %318 : vector<2x128xf32>
    %320 = math.exp %319 : vector<2x128xf32>
    %cst_96 = arith.constant 1.000000e+00 : f32
    %321 = vector.broadcast %cst_96 : f32 to vector<2x128xf32>
    %322 = arith.addf %321, %320 : vector<2x128xf32>
    %323 = arith.divf %321, %322 : vector<2x128xf32>
    %324 = vector.extract_strided_slice %311 {offsets = [0, 256], sizes = [2, 128], strides = [1, 1]} : vector<2x512xf32> to vector<2x128xf32>
    %325 = math.tanh %324 : vector<2x128xf32>
    %326 = vector.extract_strided_slice %311 {offsets = [0, 384], sizes = [2, 128], strides = [1, 1]} : vector<2x512xf32> to vector<2x128xf32>
    %327 = arith.negf %326 : vector<2x128xf32>
    %328 = math.exp %327 : vector<2x128xf32>
    %cst_97 = arith.constant 1.000000e+00 : f32
    %329 = vector.broadcast %cst_97 : f32 to vector<2x128xf32>
    %330 = arith.addf %329, %328 : vector<2x128xf32>
    %331 = arith.divf %329, %330 : vector<2x128xf32>
    %332 = arith.mulf %323, %301 : vector<2x128xf32>
    %333 = arith.mulf %317, %325 : vector<2x128xf32>
    %334 = arith.addf %332, %333 : vector<2x128xf32>
    %335 = math.tanh %334 : vector<2x128xf32>
    %336 = arith.mulf %331, %335 : vector<2x128xf32>
    %337 = arith.index_cast %306 : i32 to index
    %c0_98 = arith.constant 0 : index
    %338 = vector.load %arg9[%337, %c0_98] : memref<32x128xf32, #tpu.memory_space<vmem>>, vector<2x128xf32>
    tpu.vector_store %arg9[%337, %c0_98], %336 {strides = array<i32>} : memref<32x128xf32, #tpu.memory_space<vmem>>, vector<2x128xf32>,
    %c10_i32 = arith.constant 10 : i32
    %c2_i32_99 = arith.constant 2 : i32
    %339 = arith.muli %c10_i32, %c2_i32_99 : i32
    %340 = arith.index_cast %339 : i32 to index
    %c0_100 = arith.constant 0 : index
    %341 = vector.load %arg8[%340, %c0_100] : memref<32x512xf32, #tpu.memory_space<vmem>>, vector<2x512xf32>
    %c0_101 = arith.constant 0 : index
    %c0_102 = arith.constant 0 : index
    %342 = vector.load %arg3[%c0_101, %c0_102] : memref<128x512xf32, #tpu.memory_space<vmem>>, vector<128x512xf32>
    %cst_103 = arith.constant dense<0.000000e+00> : vector<2x512xf32>
    %343 = tpu.matmul %336, %342, %cst_103 {dimension_numbers = #tpu.dot_dimension_numbers<[1], [0], [0], [1], [0, 0, 1, 1], [], []>} : vector<2x128xf32>, vector<128x512xf32>, vector<2x512xf32> -> vector<2x512xf32>
    %344 = arith.addf %341, %343 : vector<2x512xf32>
    %345 = vector.extract_strided_slice %344 {offsets = [0, 0], sizes = [2, 128], strides = [1, 1]} : vector<2x512xf32> to vector<2x128xf32>
    %346 = arith.negf %345 : vector<2x128xf32>
    %347 = math.exp %346 : vector<2x128xf32>
    %cst_104 = arith.constant 1.000000e+00 : f32
    %348 = vector.broadcast %cst_104 : f32 to vector<2x128xf32>
    %349 = arith.addf %348, %347 : vector<2x128xf32>
    %350 = arith.divf %348, %349 : vector<2x128xf32>
    %351 = vector.extract_strided_slice %344 {offsets = [0, 128], sizes = [2, 128], strides = [1, 1]} : vector<2x512xf32> to vector<2x128xf32>
    %352 = arith.negf %351 : vector<2x128xf32>
    %353 = math.exp %352 : vector<2x128xf32>
    %cst_105 = arith.constant 1.000000e+00 : f32
    %354 = vector.broadcast %cst_105 : f32 to vector<2x128xf32>
    %355 = arith.addf %354, %353 : vector<2x128xf32>
    %356 = arith.divf %354, %355 : vector<2x128xf32>
    %357 = vector.extract_strided_slice %344 {offsets = [0, 256], sizes = [2, 128], strides = [1, 1]} : vector<2x512xf32> to vector<2x128xf32>
    %358 = math.tanh %357 : vector<2x128xf32>
    %359 = vector.extract_strided_slice %344 {offsets = [0, 384], sizes = [2, 128], strides = [1, 1]} : vector<2x512xf32> to vector<2x128xf32>
    %360 = arith.negf %359 : vector<2x128xf32>
    %361 = math.exp %360 : vector<2x128xf32>
    %cst_106 = arith.constant 1.000000e+00 : f32
    %362 = vector.broadcast %cst_106 : f32 to vector<2x128xf32>
    %363 = arith.addf %362, %361 : vector<2x128xf32>
    %364 = arith.divf %362, %363 : vector<2x128xf32>
    %365 = arith.mulf %356, %334 : vector<2x128xf32>
    %366 = arith.mulf %350, %358 : vector<2x128xf32>
    %367 = arith.addf %365, %366 : vector<2x128xf32>
    %368 = math.tanh %367 : vector<2x128xf32>
    %369 = arith.mulf %364, %368 : vector<2x128xf32>
    %370 = arith.index_cast %339 : i32 to index
    %c0_107 = arith.constant 0 : index
    %371 = vector.load %arg9[%370, %c0_107] : memref<32x128xf32, #tpu.memory_space<vmem>>, vector<2x128xf32>
    tpu.vector_store %arg9[%370, %c0_107], %369 {strides = array<i32>} : memref<32x128xf32, #tpu.memory_space<vmem>>, vector<2x128xf32>,
    %c11_i32 = arith.constant 11 : i32
    %c2_i32_108 = arith.constant 2 : i32
    %372 = arith.muli %c11_i32, %c2_i32_108 : i32
    %373 = arith.index_cast %372 : i32 to index
    %c0_109 = arith.constant 0 : index
    %374 = vector.load %arg8[%373, %c0_109] : memref<32x512xf32, #tpu.memory_space<vmem>>, vector<2x512xf32>
    %c0_110 = arith.constant 0 : index
    %c0_111 = arith.constant 0 : index
    %375 = vector.load %arg3[%c0_110, %c0_111] : memref<128x512xf32, #tpu.memory_space<vmem>>, vector<128x512xf32>
    %cst_112 = arith.constant dense<0.000000e+00> : vector<2x512xf32>
    %376 = tpu.matmul %369, %375, %cst_112 {dimension_numbers = #tpu.dot_dimension_numbers<[1], [0], [0], [1], [0, 0, 1, 1], [], []>} : vector<2x128xf32>, vector<128x512xf32>, vector<2x512xf32> -> vector<2x512xf32>
    %377 = arith.addf %374, %376 : vector<2x512xf32>
    %378 = vector.extract_strided_slice %377 {offsets = [0, 0], sizes = [2, 128], strides = [1, 1]} : vector<2x512xf32> to vector<2x128xf32>
    %379 = arith.negf %378 : vector<2x128xf32>
    %380 = math.exp %379 : vector<2x128xf32>
    %cst_113 = arith.constant 1.000000e+00 : f32
    %381 = vector.broadcast %cst_113 : f32 to vector<2x128xf32>
    %382 = arith.addf %381, %380 : vector<2x128xf32>
    %383 = arith.divf %381, %382 : vector<2x128xf32>
    %384 = vector.extract_strided_slice %377 {offsets = [0, 128], sizes = [2, 128], strides = [1, 1]} : vector<2x512xf32> to vector<2x128xf32>
    %385 = arith.negf %384 : vector<2x128xf32>
    %386 = math.exp %385 : vector<2x128xf32>
    %cst_114 = arith.constant 1.000000e+00 : f32
    %387 = vector.broadcast %cst_114 : f32 to vector<2x128xf32>
    %388 = arith.addf %387, %386 : vector<2x128xf32>
    %389 = arith.divf %387, %388 : vector<2x128xf32>
    %390 = vector.extract_strided_slice %377 {offsets = [0, 256], sizes = [2, 128], strides = [1, 1]} : vector<2x512xf32> to vector<2x128xf32>
    %391 = math.tanh %390 : vector<2x128xf32>
    %392 = vector.extract_strided_slice %377 {offsets = [0, 384], sizes = [2, 128], strides = [1, 1]} : vector<2x512xf32> to vector<2x128xf32>
    %393 = arith.negf %392 : vector<2x128xf32>
    %394 = math.exp %393 : vector<2x128xf32>
    %cst_115 = arith.constant 1.000000e+00 : f32
    %395 = vector.broadcast %cst_115 : f32 to vector<2x128xf32>
    %396 = arith.addf %395, %394 : vector<2x128xf32>
    %397 = arith.divf %395, %396 : vector<2x128xf32>
    %398 = arith.mulf %389, %367 : vector<2x128xf32>
    %399 = arith.mulf %383, %391 : vector<2x128xf32>
    %400 = arith.addf %398, %399 : vector<2x128xf32>
    %401 = math.tanh %400 : vector<2x128xf32>
    %402 = arith.mulf %397, %401 : vector<2x128xf32>
    %403 = arith.index_cast %372 : i32 to index
    %c0_116 = arith.constant 0 : index
    %404 = vector.load %arg9[%403, %c0_116] : memref<32x128xf32, #tpu.memory_space<vmem>>, vector<2x128xf32>
    tpu.vector_store %arg9[%403, %c0_116], %402 {strides = array<i32>} : memref<32x128xf32, #tpu.memory_space<vmem>>, vector<2x128xf32>,
    %c12_i32 = arith.constant 12 : i32
    %c2_i32_117 = arith.constant 2 : i32
    %405 = arith.muli %c12_i32, %c2_i32_117 : i32
    %406 = arith.index_cast %405 : i32 to index
    %c0_118 = arith.constant 0 : index
    %407 = vector.load %arg8[%406, %c0_118] : memref<32x512xf32, #tpu.memory_space<vmem>>, vector<2x512xf32>
    %c0_119 = arith.constant 0 : index
    %c0_120 = arith.constant 0 : index
    %408 = vector.load %arg3[%c0_119, %c0_120] : memref<128x512xf32, #tpu.memory_space<vmem>>, vector<128x512xf32>
    %cst_121 = arith.constant dense<0.000000e+00> : vector<2x512xf32>
    %409 = tpu.matmul %402, %408, %cst_121 {dimension_numbers = #tpu.dot_dimension_numbers<[1], [0], [0], [1], [0, 0, 1, 1], [], []>} : vector<2x128xf32>, vector<128x512xf32>, vector<2x512xf32> -> vector<2x512xf32>
    %410 = arith.addf %407, %409 : vector<2x512xf32>
    %411 = vector.extract_strided_slice %410 {offsets = [0, 0], sizes = [2, 128], strides = [1, 1]} : vector<2x512xf32> to vector<2x128xf32>
    %412 = arith.negf %411 : vector<2x128xf32>
    %413 = math.exp %412 : vector<2x128xf32>
    %cst_122 = arith.constant 1.000000e+00 : f32
    %414 = vector.broadcast %cst_122 : f32 to vector<2x128xf32>
    %415 = arith.addf %414, %413 : vector<2x128xf32>
    %416 = arith.divf %414, %415 : vector<2x128xf32>
    %417 = vector.extract_strided_slice %410 {offsets = [0, 128], sizes = [2, 128], strides = [1, 1]} : vector<2x512xf32> to vector<2x128xf32>
    %418 = arith.negf %417 : vector<2x128xf32>
    %419 = math.exp %418 : vector<2x128xf32>
    %cst_123 = arith.constant 1.000000e+00 : f32
    %420 = vector.broadcast %cst_123 : f32 to vector<2x128xf32>
    %421 = arith.addf %420, %419 : vector<2x128xf32>
    %422 = arith.divf %420, %421 : vector<2x128xf32>
    %423 = vector.extract_strided_slice %410 {offsets = [0, 256], sizes = [2, 128], strides = [1, 1]} : vector<2x512xf32> to vector<2x128xf32>
    %424 = math.tanh %423 : vector<2x128xf32>
    %425 = vector.extract_strided_slice %410 {offsets = [0, 384], sizes = [2, 128], strides = [1, 1]} : vector<2x512xf32> to vector<2x128xf32>
    %426 = arith.negf %425 : vector<2x128xf32>
    %427 = math.exp %426 : vector<2x128xf32>
    %cst_124 = arith.constant 1.000000e+00 : f32
    %428 = vector.broadcast %cst_124 : f32 to vector<2x128xf32>
    %429 = arith.addf %428, %427 : vector<2x128xf32>
    %430 = arith.divf %428, %429 : vector<2x128xf32>
    %431 = arith.mulf %422, %400 : vector<2x128xf32>
    %432 = arith.mulf %416, %424 : vector<2x128xf32>
    %433 = arith.addf %431, %432 : vector<2x128xf32>
    %434 = math.tanh %433 : vector<2x128xf32>
    %435 = arith.mulf %430, %434 : vector<2x128xf32>
    %436 = arith.index_cast %405 : i32 to index
    %c0_125 = arith.constant 0 : index
    %437 = vector.load %arg9[%436, %c0_125] : memref<32x128xf32, #tpu.memory_space<vmem>>, vector<2x128xf32>
    tpu.vector_store %arg9[%436, %c0_125], %435 {strides = array<i32>} : memref<32x128xf32, #tpu.memory_space<vmem>>, vector<2x128xf32>,
    %c13_i32 = arith.constant 13 : i32
    %c2_i32_126 = arith.constant 2 : i32
    %438 = arith.muli %c13_i32, %c2_i32_126 : i32
    %439 = arith.index_cast %438 : i32 to index
    %c0_127 = arith.constant 0 : index
    %440 = vector.load %arg8[%439, %c0_127] : memref<32x512xf32, #tpu.memory_space<vmem>>, vector<2x512xf32>
    %c0_128 = arith.constant 0 : index
    %c0_129 = arith.constant 0 : index
    %441 = vector.load %arg3[%c0_128, %c0_129] : memref<128x512xf32, #tpu.memory_space<vmem>>, vector<128x512xf32>
    %cst_130 = arith.constant dense<0.000000e+00> : vector<2x512xf32>
    %442 = tpu.matmul %435, %441, %cst_130 {dimension_numbers = #tpu.dot_dimension_numbers<[1], [0], [0], [1], [0, 0, 1, 1], [], []>} : vector<2x128xf32>, vector<128x512xf32>, vector<2x512xf32> -> vector<2x512xf32>
    %443 = arith.addf %440, %442 : vector<2x512xf32>
    %444 = vector.extract_strided_slice %443 {offsets = [0, 0], sizes = [2, 128], strides = [1, 1]} : vector<2x512xf32> to vector<2x128xf32>
    %445 = arith.negf %444 : vector<2x128xf32>
    %446 = math.exp %445 : vector<2x128xf32>
    %cst_131 = arith.constant 1.000000e+00 : f32
    %447 = vector.broadcast %cst_131 : f32 to vector<2x128xf32>
    %448 = arith.addf %447, %446 : vector<2x128xf32>
    %449 = arith.divf %447, %448 : vector<2x128xf32>
    %450 = vector.extract_strided_slice %443 {offsets = [0, 128], sizes = [2, 128], strides = [1, 1]} : vector<2x512xf32> to vector<2x128xf32>
    %451 = arith.negf %450 : vector<2x128xf32>
    %452 = math.exp %451 : vector<2x128xf32>
    %cst_132 = arith.constant 1.000000e+00 : f32
    %453 = vector.broadcast %cst_132 : f32 to vector<2x128xf32>
    %454 = arith.addf %453, %452 : vector<2x128xf32>
    %455 = arith.divf %453, %454 : vector<2x128xf32>
    %456 = vector.extract_strided_slice %443 {offsets = [0, 256], sizes = [2, 128], strides = [1, 1]} : vector<2x512xf32> to vector<2x128xf32>
    %457 = math.tanh %456 : vector<2x128xf32>
    %458 = vector.extract_strided_slice %443 {offsets = [0, 384], sizes = [2, 128], strides = [1, 1]} : vector<2x512xf32> to vector<2x128xf32>
    %459 = arith.negf %458 : vector<2x128xf32>
    %460 = math.exp %459 : vector<2x128xf32>
    %cst_133 = arith.constant 1.000000e+00 : f32
    %461 = vector.broadcast %cst_133 : f32 to vector<2x128xf32>
    %462 = arith.addf %461, %460 : vector<2x128xf32>
    %463 = arith.divf %461, %462 : vector<2x128xf32>
    %464 = arith.mulf %455, %433 : vector<2x128xf32>
    %465 = arith.mulf %449, %457 : vector<2x128xf32>
    %466 = arith.addf %464, %465 : vector<2x128xf32>
    %467 = math.tanh %466 : vector<2x128xf32>
    %468 = arith.mulf %463, %467 : vector<2x128xf32>
    %469 = arith.index_cast %438 : i32 to index
    %c0_134 = arith.constant 0 : index
    %470 = vector.load %arg9[%469, %c0_134] : memref<32x128xf32, #tpu.memory_space<vmem>>, vector<2x128xf32>
    tpu.vector_store %arg9[%469, %c0_134], %468 {strides = array<i32>} : memref<32x128xf32, #tpu.memory_space<vmem>>, vector<2x128xf32>,
    %c14_i32 = arith.constant 14 : i32
    %c2_i32_135 = arith.constant 2 : i32
    %471 = arith.muli %c14_i32, %c2_i32_135 : i32
    %472 = arith.index_cast %471 : i32 to index
    %c0_136 = arith.constant 0 : index
    %473 = vector.load %arg8[%472, %c0_136] : memref<32x512xf32, #tpu.memory_space<vmem>>, vector<2x512xf32>
    %c0_137 = arith.constant 0 : index
    %c0_138 = arith.constant 0 : index
    %474 = vector.load %arg3[%c0_137, %c0_138] : memref<128x512xf32, #tpu.memory_space<vmem>>, vector<128x512xf32>
    %cst_139 = arith.constant dense<0.000000e+00> : vector<2x512xf32>
    %475 = tpu.matmul %468, %474, %cst_139 {dimension_numbers = #tpu.dot_dimension_numbers<[1], [0], [0], [1], [0, 0, 1, 1], [], []>} : vector<2x128xf32>, vector<128x512xf32>, vector<2x512xf32> -> vector<2x512xf32>
    %476 = arith.addf %473, %475 : vector<2x512xf32>
    %477 = vector.extract_strided_slice %476 {offsets = [0, 0], sizes = [2, 128], strides = [1, 1]} : vector<2x512xf32> to vector<2x128xf32>
    %478 = arith.negf %477 : vector<2x128xf32>
    %479 = math.exp %478 : vector<2x128xf32>
    %cst_140 = arith.constant 1.000000e+00 : f32
    %480 = vector.broadcast %cst_140 : f32 to vector<2x128xf32>
    %481 = arith.addf %480, %479 : vector<2x128xf32>
    %482 = arith.divf %480, %481 : vector<2x128xf32>
    %483 = vector.extract_strided_slice %476 {offsets = [0, 128], sizes = [2, 128], strides = [1, 1]} : vector<2x512xf32> to vector<2x128xf32>
    %484 = arith.negf %483 : vector<2x128xf32>
    %485 = math.exp %484 : vector<2x128xf32>
    %cst_141 = arith.constant 1.000000e+00 : f32
    %486 = vector.broadcast %cst_141 : f32 to vector<2x128xf32>
    %487 = arith.addf %486, %485 : vector<2x128xf32>
    %488 = arith.divf %486, %487 : vector<2x128xf32>
    %489 = vector.extract_strided_slice %476 {offsets = [0, 256], sizes = [2, 128], strides = [1, 1]} : vector<2x512xf32> to vector<2x128xf32>
    %490 = math.tanh %489 : vector<2x128xf32>
    %491 = vector.extract_strided_slice %476 {offsets = [0, 384], sizes = [2, 128], strides = [1, 1]} : vector<2x512xf32> to vector<2x128xf32>
    %492 = arith.negf %491 : vector<2x128xf32>
    %493 = math.exp %492 : vector<2x128xf32>
    %cst_142 = arith.constant 1.000000e+00 : f32
    %494 = vector.broadcast %cst_142 : f32 to vector<2x128xf32>
    %495 = arith.addf %494, %493 : vector<2x128xf32>
    %496 = arith.divf %494, %495 : vector<2x128xf32>
    %497 = arith.mulf %488, %466 : vector<2x128xf32>
    %498 = arith.mulf %482, %490 : vector<2x128xf32>
    %499 = arith.addf %497, %498 : vector<2x128xf32>
    %500 = math.tanh %499 : vector<2x128xf32>
    %501 = arith.mulf %496, %500 : vector<2x128xf32>
    %502 = arith.index_cast %471 : i32 to index
    %c0_143 = arith.constant 0 : index
    %503 = vector.load %arg9[%502, %c0_143] : memref<32x128xf32, #tpu.memory_space<vmem>>, vector<2x128xf32>
    tpu.vector_store %arg9[%502, %c0_143], %501 {strides = array<i32>} : memref<32x128xf32, #tpu.memory_space<vmem>>, vector<2x128xf32>,
    %c15_i32 = arith.constant 15 : i32
    %c2_i32_144 = arith.constant 2 : i32
    %504 = arith.muli %c15_i32, %c2_i32_144 : i32
    %505 = arith.index_cast %504 : i32 to index
    %c0_145 = arith.constant 0 : index
    %506 = vector.load %arg8[%505, %c0_145] : memref<32x512xf32, #tpu.memory_space<vmem>>, vector<2x512xf32>
    %c0_146 = arith.constant 0 : index
    %c0_147 = arith.constant 0 : index
    %507 = vector.load %arg3[%c0_146, %c0_147] : memref<128x512xf32, #tpu.memory_space<vmem>>, vector<128x512xf32>
    %cst_148 = arith.constant dense<0.000000e+00> : vector<2x512xf32>
    %508 = tpu.matmul %501, %507, %cst_148 {dimension_numbers = #tpu.dot_dimension_numbers<[1], [0], [0], [1], [0, 0, 1, 1], [], []>} : vector<2x128xf32>, vector<128x512xf32>, vector<2x512xf32> -> vector<2x512xf32>
    %509 = arith.addf %506, %508 : vector<2x512xf32>
    %510 = vector.extract_strided_slice %509 {offsets = [0, 0], sizes = [2, 128], strides = [1, 1]} : vector<2x512xf32> to vector<2x128xf32>
    %511 = arith.negf %510 : vector<2x128xf32>
    %512 = math.exp %511 : vector<2x128xf32>
    %cst_149 = arith.constant 1.000000e+00 : f32
    %513 = vector.broadcast %cst_149 : f32 to vector<2x128xf32>
    %514 = arith.addf %513, %512 : vector<2x128xf32>
    %515 = arith.divf %513, %514 : vector<2x128xf32>
    %516 = vector.extract_strided_slice %509 {offsets = [0, 128], sizes = [2, 128], strides = [1, 1]} : vector<2x512xf32> to vector<2x128xf32>
    %517 = arith.negf %516 : vector<2x128xf32>
    %518 = math.exp %517 : vector<2x128xf32>
    %cst_150 = arith.constant 1.000000e+00 : f32
    %519 = vector.broadcast %cst_150 : f32 to vector<2x128xf32>
    %520 = arith.addf %519, %518 : vector<2x128xf32>
    %521 = arith.divf %519, %520 : vector<2x128xf32>
    %522 = vector.extract_strided_slice %509 {offsets = [0, 256], sizes = [2, 128], strides = [1, 1]} : vector<2x512xf32> to vector<2x128xf32>
    %523 = math.tanh %522 : vector<2x128xf32>
    %524 = vector.extract_strided_slice %509 {offsets = [0, 384], sizes = [2, 128], strides = [1, 1]} : vector<2x512xf32> to vector<2x128xf32>
    %525 = arith.negf %524 : vector<2x128xf32>
    %526 = math.exp %525 : vector<2x128xf32>
    %cst_151 = arith.constant 1.000000e+00 : f32
    %527 = vector.broadcast %cst_151 : f32 to vector<2x128xf32>
    %528 = arith.addf %527, %526 : vector<2x128xf32>
    %529 = arith.divf %527, %528 : vector<2x128xf32>
    %530 = arith.mulf %521, %499 : vector<2x128xf32>
    %531 = arith.mulf %515, %523 : vector<2x128xf32>
    %532 = arith.addf %530, %531 : vector<2x128xf32>
    %533 = math.tanh %532 : vector<2x128xf32>
    %534 = arith.mulf %529, %533 : vector<2x128xf32>
    %535 = arith.index_cast %504 : i32 to index
    %c0_152 = arith.constant 0 : index
    %536 = vector.load %arg9[%535, %c0_152] : memref<32x128xf32, #tpu.memory_space<vmem>>, vector<2x128xf32>
    tpu.vector_store %arg9[%535, %c0_152], %534 {strides = array<i32>} : memref<32x128xf32, #tpu.memory_space<vmem>>, vector<2x128xf32>,
    %c16_i32 = arith.constant 16 : i32
    %c0_153 = arith.constant 0 : index
    %c0_154 = arith.constant 0 : index
    %537 = vector.load %arg9[%c0_153, %c0_154] : memref<32x128xf32, #tpu.memory_space<vmem>>, vector<32x128xf32>
    %c0_155 = arith.constant 0 : index
    %c0_156 = arith.constant 0 : index
    %538 = vector.load %arg5[%c0_155, %c0_156] : memref<128x128xf32, #tpu.memory_space<vmem>>, vector<128x128xf32>
    %cst_157 = arith.constant dense<0.000000e+00> : vector<32x128xf32>
    %539 = tpu.matmul %537, %538, %cst_157 {dimension_numbers = #tpu.dot_dimension_numbers<[1], [0], [0], [1], [0, 0, 1, 1], [], []>} : vector<32x128xf32>, vector<128x128xf32>, vector<32x128xf32> -> vector<32x128xf32>
    %c0_158 = arith.constant 0 : index
    %c0_159 = arith.constant 0 : index
    %540 = vector.load %arg6[%c0_158, %c0_159] : memref<1x128xf32, #tpu.memory_space<vmem>>, vector<1x128xf32>
    %541 = vector.broadcast %540 : vector<1x128xf32> to vector<32x128xf32>
    %542 = arith.addf %539, %541 : vector<32x128xf32>
    %c0_160 = arith.constant 0 : index
    %c0_161 = arith.constant 0 : index
    %543 = vector.load %arg7[%c0_160, %c0_161] : memref<32x128xf32, #tpu.memory_space<vmem>>, vector<32x128xf32>
    tpu.vector_store %arg7[%c0_160, %c0_161], %542 {strides = array<i32>} : memref<32x128xf32, #tpu.memory_space<vmem>>, vector<32x128xf32>,
    return
  }
  func.func @transform_0(%arg0: i32) -> (i32, i32) {
    %c0_i32 = arith.constant 0 : i32
    %c0_i32_0 = arith.constant 0 : i32
    %c0_i32_1 = arith.constant 0 : i32
    return %c0_i32, %c0_i32_0 : i32, i32
  }
  func.func @transform_1(%arg0: i32) -> (i32, i32) {
    %c0_i32 = arith.constant 0 : i32
    %c0_i32_0 = arith.constant 0 : i32
    %c0_i32_1 = arith.constant 0 : i32
    return %c0_i32, %c0_i32_0 : i32, i32
  }
  func.func @transform_2(%arg0: i32) -> (i32, i32) {
    %c0_i32 = arith.constant 0 : i32
    %c0_i32_0 = arith.constant 0 : i32
    %c0_i32_1 = arith.constant 0 : i32
    return %c0_i32, %c0_i32_0 : i32, i32
  }
  func.func @transform_3(%arg0: i32) -> (i32, i32) {
    %c0_i32 = arith.constant 0 : i32
    %c0_i32_0 = arith.constant 0 : i32
    %c0_i32_1 = arith.constant 0 : i32
    return %c0_i32, %c0_i32_0 : i32, i32
  }
  func.func @transform_4(%arg0: i32) -> (i32, i32) {
    %c0_i32 = arith.constant 0 : i32
    %c0_i32_0 = arith.constant 0 : i32
    %c0_i32_1 = arith.constant 0 : i32
    return %c0_i32, %c0_i32_0 : i32, i32
  }
  func.func @transform_5(%arg0: i32) -> (i32, i32) {
    %c0_i32 = arith.constant 0 : i32
    %c0_i32_0 = arith.constant 0 : i32
    %c0_i32_1 = arith.constant 0 : i32
    return %c0_i32, %c0_i32_0 : i32, i32
  }
  func.func @transform_6(%arg0: i32) -> (i32, i32) {
    %c0_i32 = arith.constant 0 : i32
    %c0_i32_0 = arith.constant 0 : i32
    %c0_i32_1 = arith.constant 0 : i32
    return %c0_i32, %c0_i32_0 : i32, i32
  }
}

</mosaic_0001>

<llo_original>
// kernel: eq.12
$region0: #{eq.12}
  %s0 = inlined_call_operand.vmem [shape: s32[2,4], index: 0, kind: input, shape index: {}]
  %s1 = inlined_call_operand.vmem [shape: s32[8], index: 1, kind: output, shape index: {}]
  $region1: #{eq.12} parent=0
    #allocation0 [shape = 'u8[4096]{0}', space=vmem, size = 0x1000, scoped, tag = 'scoped mem for output reshape']
    #allocation1 [shape = 'u8[4096]{0}', space=vmem, size = 0x1000, scoped, tag = 'scoped mem for input reshape']
    %s3 = sshllo.u32 0, 2
    %v4 = vld [vmem:[%s0] sm:%s3]
    %5 = vst [vmem:[#allocation1] sm:%s3] %v4
    %v6 = vld [vmem:[#allocation1] sm:$0x1]
    %vm7 = vcmask 31744
    %8 = vst.msk [vmem:[#allocation0] sm:$0x1] %vm7, %v6
    %s9 = scalar_lea.vmem [#allocation1], 1
    %v10 = vld [vmem:[%s9] sm:$0x1]
    %11 = vrot.lane.b32.xlu0 %v10, 4
    %v12 = vpop.permute.xlu0 %11
    %vm13 = vcmask 64544
    %14 = vst.msk [vmem:[#allocation0] sm:$0x1] %vm13, %v12
    %s16 = sshllo.u32 0, 1
    %v18 = vld [vmem:[#allocation0] sm:%s16]
    %s19 = sshllo.u32 0, 1
    %20 = vst [vmem:[%s1] sm:%s19] %v18

// kernel: forward.3
$region0: #{forward.3}
  #allocation0 [shape = 'u32[]', space=smem, size = 0x4, offset = 0x4, fixed_abs, tag = 'smem constant byte address 0x4 - core index']
  #allocation1 [shape = 'u32[144,128]{1,0:T(1,128)}', space=vmem, size = 0x12000, scoped, tag = 'internal scratch']
  %s0 = inlined_call_operand.vmem [shape: f32[2,32,64], index: 0, kind: input, shape index: {}]
  %s1 = inlined_call_operand.vmem [shape: f32[2,32,64], index: 1, kind: input, shape index: {}]
  %s2 = inlined_call_operand.vmem [shape: f32[2,8,32], index: 2, kind: input, shape index: {}]
  %s3 = inlined_call_operand.vmem [shape: f32[2,64,128], index: 3, kind: input, shape index: {}]
  %s4 = inlined_call_operand.vmem [shape: f32[2,1,128], index: 4, kind: input, shape index: {}]
  %s5 = inlined_call_operand.vmem [shape: f32[2,8,128], index: 5, kind: output, shape index: {}]
  %s6 = sld [smem:[#allocation0]]
  $region53: #{forward.3} parent=0
    _
  %s8 = ssub.s32 1, %s6
  %s9 = scalar_select 0, %s8, %s6
  loop: start=0, step=1, limit=4
  $region2: #{forward.3} parent=0 // loop_pre_header
    _
  $region3: #{forward.3} parent=0 // loop_header
    %s11 = sphi 0, %s15
    %p12 = scmp.ge.s32.totalorder %s11, 4
    %s21 = sphi 0, %s23
    %s24 = sphi 0, %s21
    %s25 = sphi 0, %s24
    %s41 = sphi 0, %s25
    %s47 = sphi 0, %s49
    %s50 = sphi 0, %s47
    %s51 = sphi 0, %s50
    %s67 = sphi 0, %s51
    %s73 = sphi 0, %s75
    %s76 = sphi 0, %s73
    %s77 = sphi 0, %s76
    %s93 = sphi 0, %s77
    %s99 = sphi 0, %s101
    %s102 = sphi 0, %s99
    %s103 = sphi 0, %s102
    %s119 = sphi 0, %s103
    %s125 = sphi 0, %s127
    %s128 = sphi 0, %s125
    %s129 = sphi 0, %s128
    %s145 = sphi 0, %s129
    %s151 = sphi 0, %s153
    %s154 = sphi 0, %s151
    %s155 = sphi 0, %s154
    %s171 = sphi 0, %s155
  $region4: #{forward.3} parent=0 // loop_header_branch
    %14 = sbr.rel (%p12) target = $region8
  $region5: #{forward.3} parent=0 // loop_body
    %s16 = ssub.s32 %s11, 1
    %s17 = ssub.s32 %s11, 2
    %s18 = sadd.s32 %s11, 1
    %s19 = ssub.s32 %s11, %s18
    %p20 = scmp.eq.s32.totalorder %s19, 0
    %s22 = sadd.s32 %s21, 1
    %s23 = scalar_select %p20, %s21, %s22
    %p26 = pneg %p20
    %p27 = scmp.eq.s32.totalorder %s11, 1
    %p28 = por %p26, %p27
    %p29 = scmp.ne.s32.totalorder %s21, %s24
    %p30 = scmp.eq.s32.totalorder %s11, 0
    %p31 = por %p29, %p30
    %p32 = scmp.ne.s32.totalorder %s21, %s24
    %p33 = scmp.eq.s32.totalorder %s16, 1
    %p34 = por %p32, %p33
    %p35 = scmp.ne.s32.totalorder %s24, %s25
    %p36 = scmp.eq.s32.totalorder %s16, 0
    %p37 = por %p35, %p36
    %p38 = scmp.ne.s32.totalorder %s24, %s25
    %p39 = scmp.eq.s32.totalorder %s17, 1
    %p40 = por %p38, %p39
    %p42 = scmp.ne.s32.totalorder %s25, %s41
    %p43 = scmp.eq.s32.totalorder %s17, 0
    %p44 = por %p42, %p43
    %s45 = ssub.s32 %s11, %s18
    %p46 = scmp.eq.s32.totalorder %s45, 0
    %s48 = sadd.s32 %s47, 1
    %s49 = scalar_select %p46, %s47, %s48
    %p52 = pneg %p46
    %p53 = scmp.eq.s32.totalorder %s11, 1
    %p54 = por %p52, %p53
    %p55 = scmp.ne.s32.totalorder %s47, %s50
    %p56 = scmp.eq.s32.totalorder %s11, 0
    %p57 = por %p55, %p56
    %p58 = scmp.ne.s32.totalorder %s47, %s50
    %p59 = scmp.eq.s32.totalorder %s16, 1
    %p60 = por %p58, %p59
    %p61 = scmp.ne.s32.totalorder %s50, %s51
    %p62 = scmp.eq.s32.totalorder %s16, 0
    %p63 = por %p61, %p62
    %p64 = scmp.ne.s32.totalorder %s50, %s51
    %p65 = scmp.eq.s32.totalorder %s17, 1
    %p66 = por %p64, %p65
    %p68 = scmp.ne.s32.totalorder %s51, %s67
    %p69 = scmp.eq.s32.totalorder %s17, 0
    %p70 = por %p68, %p69
    %s71 = ssub.s32 %s11, %s18
    %p72 = scmp.eq.s32.totalorder %s71, 0
    %s74 = sadd.s32 %s73, 1
    %s75 = scalar_select %p72, %s73, %s74
    %p78 = pneg %p72
    %p79 = scmp.eq.s32.totalorder %s11, 1
    %p80 = por %p78, %p79
    %p81 = scmp.ne.s32.totalorder %s73, %s76
    %p82 = scmp.eq.s32.totalorder %s11, 0
    %p83 = por %p81, %p82
    %p84 = scmp.ne.s32.totalorder %s73, %s76
    %p85 = scmp.eq.s32.totalorder %s16, 1
    %p86 = por %p84, %p85
    %p87 = scmp.ne.s32.totalorder %s76, %s77
    %p88 = scmp.eq.s32.totalorder %s16, 0
    %p89 = por %p87, %p88
    %p90 = scmp.ne.s32.totalorder %s76, %s77
    %p91 = scmp.eq.s32.totalorder %s17, 1
    %p92 = por %p90, %p91
    %p94 = scmp.ne.s32.totalorder %s77, %s93
    %p95 = scmp.eq.s32.totalorder %s17, 0
    %p96 = por %p94, %p95
    %s97 = ssub.s32 %s11, %s18
    %p98 = scmp.eq.s32.totalorder %s97, 0
    %s100 = sadd.s32 %s99, 1
    %s101 = scalar_select %p98, %s99, %s100
    %p104 = pneg %p98
    %p105 = scmp.eq.s32.totalorder %s11, 1
    %p106 = por %p104, %p105
    %p107 = scmp.ne.s32.totalorder %s99, %s102
    %p108 = scmp.eq.s32.totalorder %s11, 0
    %p109 = por %p107, %p108
    %p110 = scmp.ne.s32.totalorder %s99, %s102
    %p111 = scmp.eq.s32.totalorder %s16, 1
    %p112 = por %p110, %p111
    %p113 = scmp.ne.s32.totalorder %s102, %s103
    %p114 = scmp.eq.s32.totalorder %s16, 0
    %p115 = por %p113, %p114
    %p116 = scmp.ne.s32.totalorder %s102, %s103
    %p117 = scmp.eq.s32.totalorder %s17, 1
    %p118 = por %p116, %p117
    %p120 = scmp.ne.s32.totalorder %s103, %s119
    %p121 = scmp.eq.s32.totalorder %s17, 0
    %p122 = por %p120, %p121
    %s123 = ssub.s32 %s11, %s18
    %p124 = scmp.eq.s32.totalorder %s123, 0
    %s126 = sadd.s32 %s125, 1
    %s127 = scalar_select %p124, %s125, %s126
    %p130 = pneg %p124
    %p131 = scmp.eq.s32.totalorder %s11, 1
    %p132 = por %p130, %p131
    %p133 = scmp.ne.s32.totalorder %s125, %s128
    %p134 = scmp.eq.s32.totalorder %s11, 0
    %p135 = por %p133, %p134
    %p136 = scmp.ne.s32.totalorder %s125, %s128
    %p137 = scmp.eq.s32.totalorder %s16, 1
    %p138 = por %p136, %p137
    %p139 = scmp.ne.s32.totalorder %s128, %s129
    %p140 = scmp.eq.s32.totalorder %s16, 0
    %p141 = por %p139, %p140
    %p142 = scmp.ne.s32.totalorder %s128, %s129
    %p143 = scmp.eq.s32.totalorder %s17, 1
    %p144 = por %p142, %p143
    %p146 = scmp.ne.s32.totalorder %s129, %s145
    %p147 = scmp.eq.s32.totalorder %s17, 0
    %p148 = por %p146, %p147
    %s149 = ssub.s32 %s11, %s18
    %p150 = scmp.eq.s32.totalorder %s149, 0
    %s152 = sadd.s32 %s151, 1
    %s153 = scalar_select %p150, %s151, %s152
    %p156 = pneg %p150
    %p157 = scmp.eq.s32.totalorder %s11, 1
    %p158 = por %p156, %p157
    %p159 = scmp.ne.s32.totalorder %s151, %s154
    %p160 = scmp.eq.s32.totalorder %s11, 0
    %p161 = por %p159, %p160
    %p162 = scmp.ne.s32.totalorder %s151, %s154
    %p163 = scmp.eq.s32.totalorder %s16, 1
    %p164 = por %p162, %p163
    %p165 = scmp.ne.s32.totalorder %s154, %s155
    %p166 = scmp.eq.s32.totalorder %s16, 0
    %p167 = por %p165, %p166
    %p168 = scmp.ne.s32.totalorder %s154, %s155
    %p169 = scmp.eq.s32.totalorder %s17, 1
    %p170 = por %p168, %p169
    %p172 = scmp.ne.s32.totalorder %s155, %s171
    %p173 = scmp.eq.s32.totalorder %s17, 0
    %p174 = por %p172, %p173
    %p175 = scmp.le.s32.totalorder 1, %s11
    %p176 = scmp.lt.s32.totalorder %s11, 3
    %p177 = pnand %p175, %p176
    %p178 = pneg %p177
    // Predicated region
    $region9: #{forward.3} parent=5 // pred_check
      _
    $region10: #{forward.3} parent=5 // pred_check_branch
      %180 = sbr.rel (%p177) target = $region12
    $region11: #{forward.3} parent=5 // pred_region
      %s181 = ssub.s32 %s11, 1
    $region12: #{forward.3} parent=5 // pred_fallthru
      _
    %p182 = scmp.lt.s32.totalorder %s11, 2
    // Predicated region
    $region13: #{forward.3} parent=5 // pred_check
      %p183 = pneg %p182
    $region14: #{forward.3} parent=5 // pred_check_branch
      %185 = sbr.rel (%p183) target = $region16
    $region15: #{forward.3} parent=5 // pred_region
      // Predicated region
      $region17: #{forward.3} parent=15 // pred_check
        %p186 = pneg %p31
      $region18: #{forward.3} parent=15 // pred_check_branch
        %188 = sbr.rel (%p186) target = $region20
      $region19: #{forward.3} parent=15 // pred_region
        %p189 = scmp.lt.s32.totalorder %s11, 1
        %s190 = scalar_select %p189, %s11, 1
        %s191 = smul.addr %s190, 4
        %s192 = smul.addr %s191, 8
        %s193 = scalar_lea.vmem %s0, %s192
      $region20: #{forward.3} parent=15 // pred_fallthru
        _
      // Predicated region
      $region21: #{forward.3} parent=15 // pred_check
        %p194 = pneg %p57
      $region22: #{forward.3} parent=15 // pred_check_branch
        %196 = sbr.rel (%p194) target = $region24
      $region23: #{forward.3} parent=15 // pred_region
        %p197 = scmp.lt.s32.totalorder %s11, 1
        %s198 = scalar_select %p197, %s11, 1
        %s199 = smul.addr %s198, 4
        %s200 = smul.addr %s199, 8
        %s201 = scalar_lea.vmem %s1, %s200
      $region24: #{forward.3} parent=15 // pred_fallthru
        _
      // Predicated region
      $region25: #{forward.3} parent=15 // pred_check
        %p202 = pneg %p83
      $region26: #{forward.3} parent=15 // pred_check_branch
        %204 = sbr.rel (%p202) target = $region28
      $region27: #{forward.3} parent=15 // pred_region
        %p205 = scmp.lt.s32.totalorder %s11, 1
        %s206 = scalar_select %p205, %s11, 1
        %s207 = smul.addr %s206, 8
        %s208 = scalar_lea.vmem %s2, %s207
      $region28: #{forward.3} parent=15 // pred_fallthru
        _
      // Predicated region
      $region29: #{forward.3} parent=15 // pred_check
        %p209 = pneg %p109
      $region30: #{forward.3} parent=15 // pred_check_branch
        %211 = sbr.rel (%p209) target = $region32
      $region31: #{forward.3} parent=15 // pred_region
        %p212 = scmp.lt.s32.totalorder %s11, 1
        %s213 = scalar_select %p212, %s11, 1
        %s214 = smul.addr %s213, 8
        %s215 = smul.addr %s214, 8
        %s216 = scalar_lea.vmem %s3, %s215
      $region32: #{forward.3} parent=15 // pred_fallthru
        _
      // Predicated region
      $region33: #{forward.3} parent=15 // pred_check
        %p217 = pneg %p135
      $region34: #{forward.3} parent=15 // pred_check_branch
        %219 = sbr.rel (%p217) target = $region36
      $region35: #{forward.3} parent=15 // pred_region
        %p220 = scmp.lt.s32.totalorder %s11, 1
        %s221 = scalar_select %p220, %s11, 1
        %s222 = scalar_lea.vmem %s4, %s221
      $region36: #{forward.3} parent=15 // pred_fallthru
        _
    $region16: #{forward.3} parent=5 // pred_fallthru
      _
    %p223 = scmp.le.s32.totalorder 1, %s11
    %p224 = scmp.lt.s32.totalorder %s11, 3
    %p225 = pnand %p223, %p224
    %p226 = pneg %p225
    // Predicated region
    $region37: #{forward.3} parent=5 // pred_check
      _
    $region38: #{forward.3} parent=5 // pred_check_branch
      %228 = sbr.rel (%p225) target = $region40
    $region39: #{forward.3} parent=5 // pred_region
      %s229 = ssub.s32 %s11, 1
      %p230 = scmp.lt.s32.totalorder %s16, 1
      %s231 = scalar_select %p230, %s16, 1
      %s232 = smul.addr %s231, 4
      %s233 = smul.addr %s232, 8
      %s234 = scalar_lea.vmem %s0, %s233
      %p235 = pneg %p37
      %p236 = pneg %p34
      %p237 = scmp.lt.s32.totalorder %s16, 1
      %s238 = scalar_select %p237, %s16, 1
      %s239 = smul.addr %s238, 4
      %s240 = smul.addr %s239, 8
      %s241 = scalar_lea.vmem %s1, %s240
      %p242 = pneg %p63
      %p243 = pneg %p60
      %p244 = scmp.lt.s32.totalorder %s16, 1
      %s245 = scalar_select %p244, %s16, 1
      %s246 = smul.addr %s245, 8
      %s247 = scalar_lea.vmem %s2, %s246
      %p248 = pneg %p89
      %p249 = pneg %p86
      %p250 = scmp.lt.s32.totalorder %s16, 1
      %s251 = scalar_select %p250, %s16, 1
      %s252 = smul.addr %s251, 8
      %s253 = smul.addr %s252, 8
      %s254 = scalar_lea.vmem %s3, %s253
      %p255 = pneg %p115
      %p256 = pneg %p112
      %p257 = scmp.lt.s32.totalorder %s16, 1
      %s258 = scalar_select %p257, %s16, 1
      %s259 = scalar_lea.vmem %s4, %s258
      %p260 = pneg %p141
      %p261 = pneg %p138
      %p262 = pneg %p167
      %p263 = pneg %p164
      %p264 = scmp.lt.s32.totalorder %s16, 1
      %s265 = scalar_select %p264, %s16, 1
      %s266 = smul.addr %s265, 8
      %s267 = scalar_lea.vmem %s5, %s266
      %p268 = scmp.lt.s32.totalorder %s16, 1
      %s269 = scalar_select %p268, %s16, 1
      %s270 = smul.addr %s269, 4
      %s271 = smul.addr %s270, 8
      %s272 = scalar_lea.vmem %s0, %s271
      %p273 = scmp.lt.s32.totalorder %s16, 1
      %s274 = scalar_select %p273, %s16, 1
      %s275 = smul.addr %s274, 4
      %s276 = smul.addr %s275, 8
      %s277 = scalar_lea.vmem %s1, %s276
      %p278 = scmp.lt.s32.totalorder %s16, 1
      %s279 = scalar_select %p278, %s16, 1
      %s280 = smul.addr %s279, 8
      %s281 = scalar_lea.vmem %s2, %s280
      %p282 = scmp.lt.s32.totalorder %s16, 1
      %s283 = scalar_select %p282, %s16, 1
      %s284 = smul.addr %s283, 8
      %s285 = smul.addr %s284, 8
      %s286 = scalar_lea.vmem %s3, %s285
      %p287 = scmp.lt.s32.totalorder %s16, 1
      %s288 = scalar_select %p287, %s16, 1
      %s289 = scalar_lea.vmem %s4, %s288
      %p290 = scmp.lt.s32.totalorder %s16, 1
      %s291 = scalar_select %p290, %s16, 1
      %s292 = smul.addr %s291, 8
      %s293 = scalar_lea.vmem %s5, %s292
      %v294 = vld [vmem:[%s272] sm:$0xff]
      %v295 = vld [vmem:[%s272 + $0x8] sm:$0xff]
      %v296 = vld [vmem:[%s272 + $0x10] sm:$0xff]
      %v297 = vld [vmem:[%s272 + $0x18] sm:$0xff]
      %v298 = vld [vmem:[%s277] sm:$0xff]
      %v299 = vld [vmem:[%s277 + $0x8] sm:$0xff]
      %v300 = vld [vmem:[%s277 + $0x10] sm:$0xff]
      %v301 = vld [vmem:[%s277 + $0x18] sm:$0xff]
      %v302 = vadd.f32 %v294, %v298
      %v303 = vadd.f32 %v295, %v299
      %v304 = vadd.f32 %v296, %v300
      %v305 = vadd.f32 %v297, %v301
      %v306 = vld [vmem:[%s281] sm:$0xff]
      %vm307 = vcmask 261120
      %v309 = vsel %vm307, %v306, 0
      %311 = vmatprep.subr.mxu0 0.0
      %312 = vmatpush1.msra.mxu0 %v302
      %313 = vmatprep.subr.mxu0 0.0
      %314 = vmatpush1.msra.mxu0 %v303
      %315 = vmatprep.subr.mxu0 0.0
      %316 = vmatpush1.msra.mxu0 %v304
      %317 = vmatprep.subr.mxu0 0.0
      %318 = vmatpush1.msra.mxu0 %v305
      %319 = vmatprep.subr.mxu0 0.0
      %320 = vmatpush1.msra.mxu0 0.0
      %321 = vmatprep.subr.mxu0 0.0
      %322 = vmatpush1.msra.mxu0 0.0
      %323 = vmatprep.subr.mxu0 0.0
      %324 = vmatpush1.msra.mxu0 0.0
      %325 = vmatprep.subr.mxu0 0.0
      %326 = vmatpush1.msra.mxu0 0.0
      %327 = vmatprep.subr.mxu0 0.0
      %328 = vmatpush1.msra.mxu0 0.0
      %329 = vmatprep.subr.mxu0 0.0
      %330 = vmatpush1.msra.mxu0 0.0
      %331 = vmatprep.subr.mxu0 0.0
      %332 = vmatpush1.msra.mxu0 0.0
      %333 = vmatprep.subr.mxu0 0.0
      %334 = vmatpush1.msra.mxu0 0.0
      %335 = vmatprep.subr.mxu0 0.0
      %336 = vmatpush1.msra.mxu0 0.0
      %337 = vmatprep.subr.mxu0 0.0
      %338 = vmatpush1.msra.mxu0 0.0
      %339 = vmatprep.subr.mxu0 0.0
      %340 = vmatpush1.msra.mxu0 0.0
      %341 = vmatprep.subr.mxu0 0.0
      %342 = vmatpush1.msra.mxu0 0.0
      %343 = vmatprep.subr.mxu0 0.0
      %344 = vmatpush1.msra.mxu0 0.0
      %345 = vmatprep.subr.mxu0 0.0
      %346 = vmatpush1.msra.mxu0 0.0
      %347 = vmatprep.subr.mxu0 0.0
      %348 = vmatpush1.msra.mxu0 0.0
      %349 = vmatprep.subr.mxu0 0.0
      %350 = vmatpush1.msra.mxu0 0.0
      %351 = vmatprep.subr.mxu0 0.0
      %352 = vmatpush1.msra.mxu0 0.0
      %353 = vmatprep.subr.mxu0 0.0
      %354 = vmatpush1.msra.mxu0 0.0
      %355 = vmatprep.subr.mxu0 0.0
      %356 = vmatpush1.msra.mxu0 0.0
      %357 = vmatprep.subr.mxu0 0.0
      %358 = vmatpush1.msra.mxu0 0.0
      %359 = vmatprep.subr.mxu0 0.0
      %360 = vmatpush1.msra.mxu0 0.0
      %361 = vmatprep.subr.mxu0 0.0
      %362 = vmatpush1.msra.mxu0 0.0
      %363 = vmatprep.subr.mxu0 0.0
      %364 = vmatpush1.msra.mxu0 0.0
      %365 = vmatprep.subr.mxu0 0.0
      %366 = vmatpush1.msra.mxu0 0.0
      %367 = vmatprep.subr.mxu0 0.0
      %368 = vmatpush1.msra.mxu0 0.0
      %369 = vmatprep.subr.mxu0 0.0
      %370 = vmatpush1.msra.mxu0 0.0
      %371 = vmatprep.subr.mxu0 0.0
      %372 = vmatpush1.msra.mxu0 0.0
      %373 = vmatprep.subr.mxu0 0.0
      %374 = vmatpush1.msra.mxu0 0.0
      %375 = vmatprep.mubr.f32.mxu0 0.0
      %376 = vmatmul.mubr.f32.gmra.mrb[0].mxu0 %v309
      %v377 = vpop.f32.mrb[0].mxu0
      %v378 = vadd.f32 0.0, %v377
      %v379 = vpop.f32.mrb[0].mxu0
      %380 = vdwg.mxu0
      %v381 = vld [vmem:[%s286] sm:$0xff]
      %v382 = vld [vmem:[%s286 + $0x8] sm:$0xff]
      %v383 = vld [vmem:[%s286 + $0x10] sm:$0xff]
      %v384 = vld [vmem:[%s286 + $0x18] sm:$0xff]
      %v385 = vld [vmem:[%s286 + $0x20] sm:$0xff]
      %v386 = vld [vmem:[%s286 + $0x28] sm:$0xff]
      %v387 = vld [vmem:[%s286 + $0x30] sm:$0xff]
      %v388 = vld [vmem:[%s286 + $0x38] sm:$0xff]
      %v389 = vld [vmem:[%s289] sm:$0x1]
      %v391 = vlaneseq
      %v392 = vshrl.u32 %v391, 7
      %v393 = vsub.s32 0, %v392
      %v394 = vrot.slane %v389, %v393
      %vm396 = vcmask 523264
      %v398 = vsel %vm396, %v378, 0
      %400 = vmatprep.subr.mxu0 0.0
      %401 = vmatpush1.msra.mxu0 %v381
      %402 = vmatprep.subr.mxu0 0.0
      %403 = vmatpush1.msra.mxu0 %v382
      %404 = vmatprep.subr.mxu0 0.0
      %405 = vmatpush1.msra.mxu0 %v383
      %406 = vmatprep.subr.mxu0 0.0
      %407 = vmatpush1.msra.mxu0 %v384
      %408 = vmatprep.subr.mxu0 0.0
      %409 = vmatpush1.msra.mxu0 %v385
      %410 = vmatprep.subr.mxu0 0.0
      %411 = vmatpush1.msra.mxu0 %v386
      %412 = vmatprep.subr.mxu0 0.0
      %413 = vmatpush1.msra.mxu0 %v387
      %414 = vmatprep.subr.mxu0 0.0
      %415 = vmatpush1.msra.mxu0 %v388
      %416 = vmatprep.subr.mxu0 0.0
      %417 = vmatpush1.msra.mxu0 0.0
      %418 = vmatprep.subr.mxu0 0.0
      %419 = vmatpush1.msra.mxu0 0.0
      %420 = vmatprep.subr.mxu0 0.0
      %421 = vmatpush1.msra.mxu0 0.0
      %422 = vmatprep.subr.mxu0 0.0
      %423 = vmatpush1.msra.mxu0 0.0
      %424 = vmatprep.subr.mxu0 0.0
      %425 = vmatpush1.msra.mxu0 0.0
      %426 = vmatprep.subr.mxu0 0.0
      %427 = vmatpush1.msra.mxu0 0.0
      %428 = vmatprep.subr.mxu0 0.0
      %429 = vmatpush1.msra.mxu0 0.0
      %430 = vmatprep.subr.mxu0 0.0
      %431 = vmatpush1.msra.mxu0 0.0
      %432 = vmatprep.subr.mxu0 0.0
      %433 = vmatpush1.msra.mxu0 0.0
      %434 = vmatprep.subr.mxu0 0.0
      %435 = vmatpush1.msra.mxu0 0.0
      %436 = vmatprep.subr.mxu0 0.0
      %437 = vmatpush1.msra.mxu0 0.0
      %438 = vmatprep.subr.mxu0 0.0
      %439 = vmatpush1.msra.mxu0 0.0
      %440 = vmatprep.subr.mxu0 0.0
      %441 = vmatpush1.msra.mxu0 0.0
      %442 = vmatprep.subr.mxu0 0.0
      %443 = vmatpush1.msra.mxu0 0.0
      %444 = vmatprep.subr.mxu0 0.0
      %445 = vmatpush1.msra.mxu0 0.0
      %446 = vmatprep.subr.mxu0 0.0
      %447 = vmatpush1.msra.mxu0 0.0
      %448 = vmatprep.subr.mxu0 0.0
      %449 = vmatpush1.msra.mxu0 0.0
      %450 = vmatprep.subr.mxu0 0.0
      %451 = vmatpush1.msra.mxu0 0.0
      %452 = vmatprep.subr.mxu0 0.0
      %453 = vmatpush1.msra.mxu0 0.0
      %454 = vmatprep.subr.mxu0 0.0
      %455 = vmatpush1.msra.mxu0 0.0
      %456 = vmatprep.subr.mxu0 0.0
      %457 = vmatpush1.msra.mxu0 0.0
      %458 = vmatprep.subr.mxu0 0.0
      %459 = vmatpush1.msra.mxu0 0.0
      %460 = vmatprep.subr.mxu0 0.0
      %461 = vmatpush1.msra.mxu0 0.0
      %462 = vmatprep.subr.mxu0 0.0
      %463 = vmatpush1.msra.mxu0 0.0
      %464 = vmatprep.mubr.f32.mxu0 0.0
      %465 = vmatmul.mubr.f32.gmra.mrb[0].mxu0 %v398
      %v466 = vpop.f32.mrb[0].mxu0
      %v467 = vadd.f32 %v394, %v466
      %v468 = vpop.f32.mrb[0].mxu0
      %469 = vdwg.mxu0
      %470 = vst [vmem:[%s293] sm:$0xff] %v467
      %p471 = scmp.lt.s32.totalorder %s16, 1
      %s472 = scalar_select %p471, %s16, 1
      %s473 = smul.addr %s472, 8
      %s474 = scalar_lea.vmem %s5, %s473
      // Predicated region
      $region41: #{forward.3} parent=39 // pred_check
        %p475 = pneg %p164
      $region42: #{forward.3} parent=39 // pred_check_branch
        %477 = sbr.rel (%p475) target = $region44
      $region43: #{forward.3} parent=39 // pred_region
        _
      $region44: #{forward.3} parent=39 // pred_fallthru
        _
    $region40: #{forward.3} parent=5 // pred_fallthru
      _
    %p478 = scmp.le.s32.totalorder 2, %s11
    // Predicated region
    $region45: #{forward.3} parent=5 // pred_check
      %p479 = pneg %p478
    $region46: #{forward.3} parent=5 // pred_check_branch
      %481 = sbr.rel (%p479) target = $region48
    $region47: #{forward.3} parent=5 // pred_region
      %s482 = ssub.s32 %s11, 2
      // Predicated region
      $region49: #{forward.3} parent=47 // pred_check
        %p483 = pneg %p170
      $region50: #{forward.3} parent=47 // pred_check_branch
        %485 = sbr.rel (%p483) target = $region52
      $region51: #{forward.3} parent=47 // pred_region
        %p486 = scmp.lt.s32.totalorder %s17, 1
        %s487 = scalar_select %p486, %s17, 1
        %s488 = smul.addr %s487, 8
        %s489 = scalar_lea.vmem %s5, %s488
      $region52: #{forward.3} parent=47 // pred_fallthru
        _
    $region48: #{forward.3} parent=5 // pred_fallthru
      _
  $region6: #{forward.3} parent=0 // loop_footer
    %s15 = sadd.s32 1, %s11
  $region7: #{forward.3} parent=0 // loop_footer_branch
    %10 = sbr.rel target = $region3
  $region8: #{forward.3} parent=0 // loop_exit
    _

// kernel: forward.4
$region0: #{forward.4}
  #allocation0 [shape = 'u32[]', space=smem, size = 0x4, offset = 0x4, fixed_abs, tag = 'smem constant byte address 0x4 - core index']
  #allocation1 [shape = 'u32[144,128]{1,0:T(1,128)}', space=vmem, size = 0x12000, scoped, tag = 'internal scratch']
  %s0 = inlined_call_operand.vmem [shape: f32[8,128], index: 0, kind: input, shape index: {}]
  %s1 = inlined_call_operand.vmem [shape: f32[8,128], index: 1, kind: input, shape index: {}]
  %s2 = inlined_call_operand.vmem [shape: f32[8,8], index: 2, kind: input, shape index: {}]
  %s3 = inlined_call_operand.vmem [shape: f32[128,128], index: 3, kind: input, shape index: {}]
  %s4 = inlined_call_operand.vmem [shape: f32[128,128], index: 4, kind: input, shape index: {}]
  %s5 = inlined_call_operand.vmem [shape: f32[128,128], index: 5, kind: input, shape index: {}]
  %s6 = inlined_call_operand.vmem [shape: f32[128,128], index: 6, kind: input, shape index: {}]
  %s7 = inlined_call_operand.vmem [shape: f32[128,512], index: 7, kind: input, shape index: {}]
  %s8 = inlined_call_operand.vmem [shape: f32[1,512], index: 8, kind: input, shape index: {}]
  %s9 = inlined_call_operand.vmem [shape: f32[8,512], index: 9, kind: output, shape index: {}]
  %s10 = sld [smem:[#allocation0]]
  $region46: #{forward.4} parent=0
    _
  %s12 = ssub.s32 1, %s10
  %s13 = scalar_select 0, %s12, %s10
  // Predicated region
  $region2: #{forward.4} parent=0 // pred_check
    _
  $region3: #{forward.4} parent=0 // pred_check_branch
    %15 = sbr.rel (0) target = $region5
  $region4: #{forward.4} parent=0 // pred_region
    _
  $region5: #{forward.4} parent=0 // pred_fallthru
    _
  // Predicated region
  $region6: #{forward.4} parent=0 // pred_check
    _
  $region7: #{forward.4} parent=0 // pred_check_branch
    %17 = sbr.rel (0) target = $region9
  $region8: #{forward.4} parent=0 // pred_region
    _
  $region9: #{forward.4} parent=0 // pred_fallthru
    _
  // Predicated region
  $region10: #{forward.4} parent=0 // pred_check
    _
  $region11: #{forward.4} parent=0 // pred_check_branch
    %19 = sbr.rel (0) target = $region13
  $region12: #{forward.4} parent=0 // pred_region
    _
  $region13: #{forward.4} parent=0 // pred_fallthru
    _
  // Predicated region
  $region14: #{forward.4} parent=0 // pred_check
    _
  $region15: #{forward.4} parent=0 // pred_check_branch
    %21 = sbr.rel (0) target = $region17
  $region16: #{forward.4} parent=0 // pred_region
    _
  $region17: #{forward.4} parent=0 // pred_fallthru
    _
  // Predicated region
  $region18: #{forward.4} parent=0 // pred_check
    _
  $region19: #{forward.4} parent=0 // pred_check_branch
    %23 = sbr.rel (0) target = $region21
  $region20: #{forward.4} parent=0 // pred_region
    _
  $region21: #{forward.4} parent=0 // pred_fallthru
    _
  // Predicated region
  $region22: #{forward.4} parent=0 // pred_check
    _
  $region23: #{forward.4} parent=0 // pred_check_branch
    %25 = sbr.rel (0) target = $region25
  $region24: #{forward.4} parent=0 // pred_region
    _
  $region25: #{forward.4} parent=0 // pred_fallthru
    _
  // Predicated region
  $region26: #{forward.4} parent=0 // pred_check
    _
  $region27: #{forward.4} parent=0 // pred_check_branch
    %27 = sbr.rel (0) target = $region29
  $region28: #{forward.4} parent=0 // pred_region
    _
  $region29: #{forward.4} parent=0 // pred_fallthru
    _
  // Predicated region
  $region30: #{forward.4} parent=0 // pred_check
    _
  $region31: #{forward.4} parent=0 // pred_check_branch
    %29 = sbr.rel (0) target = $region33
  $region32: #{forward.4} parent=0 // pred_region
    _
  $region33: #{forward.4} parent=0 // pred_fallthru
    _
  // Predicated region
  $region34: #{forward.4} parent=0 // pred_check
    _
  $region35: #{forward.4} parent=0 // pred_check_branch
    %31 = sbr.rel (0) target = $region37
  $region36: #{forward.4} parent=0 // pred_region
    _
  $region37: #{forward.4} parent=0 // pred_fallthru
    _
  %v32 = vld [vmem:[%s0] sm:$0xff]
  %v33 = vld [vmem:[%s1] sm:$0xff]
  %v34 = vld [vmem:[%s3] sm:$0xff]
  %v35 = vld [vmem:[%s3 + $0x8] sm:$0xff]
  %v36 = vld [vmem:[%s3 + $0x10] sm:$0xff]
  %v37 = vld [vmem:[%s3 + $0x18] sm:$0xff]
  %v38 = vld [vmem:[%s3 + $0x20] sm:$0xff]
  %v39 = vld [vmem:[%s3 + $0x28] sm:$0xff]
  %v40 = vld [vmem:[%s3 + $0x30] sm:$0xff]
  %v41 = vld [vmem:[%s3 + $0x38] sm:$0xff]
  %v42 = vld [vmem:[%s3 + $0x40] sm:$0xff]
  %v43 = vld [vmem:[%s3 + $0x48] sm:$0xff]
  %v44 = vld [vmem:[%s3 + $0x50] sm:$0xff]
  %v45 = vld [vmem:[%s3 + $0x58] sm:$0xff]
  %v46 = vld [vmem:[%s3 + $0x60] sm:$0xff]
  %v47 = vld [vmem:[%s3 + $0x68] sm:$0xff]
  %v48 = vld [vmem:[%s3 + $0x70] sm:$0xff]
  %v49 = vld [vmem:[%s3 + $0x78] sm:$0xff]
  %50 = vmatprep.subr.mxu0 0.0
  %51 = vmatpush1.msra.mxu0 %v34
  %52 = vmatprep.subr.mxu0 0.0
  %53 = vmatpush1.msra.mxu0 %v35
  %54 = vmatprep.subr.mxu0 0.0
  %55 = vmatpush1.msra.mxu0 %v36
  %56 = vmatprep.subr.mxu0 0.0
  %57 = vmatpush1.msra.mxu0 %v37
  %58 = vmatprep.subr.mxu0 0.0
  %59 = vmatpush1.msra.mxu0 %v38
  %60 = vmatprep.subr.mxu0 0.0
  %61 = vmatpush1.msra.mxu0 %v39
  %62 = vmatprep.subr.mxu0 0.0
  %63 = vmatpush1.msra.mxu0 %v40
  %64 = vmatprep.subr.mxu0 0.0
  %65 = vmatpush1.msra.mxu0 %v41
  %66 = vmatprep.subr.mxu0 0.0
  %67 = vmatpush1.msra.mxu0 %v42
  %68 = vmatprep.subr.mxu0 0.0
  %69 = vmatpush1.msra.mxu0 %v43
  %70 = vmatprep.subr.mxu0 0.0
  %71 = vmatpush1.msra.mxu0 %v44
  %72 = vmatprep.subr.mxu0 0.0
  %73 = vmatpush1.msra.mxu0 %v45
  %74 = vmatprep.subr.mxu0 0.0
  %75 = vmatpush1.msra.mxu0 %v46
  %76 = vmatprep.subr.mxu0 0.0
  %77 = vmatpush1.msra.mxu0 %v47
  %78 = vmatprep.subr.mxu0 0.0
  %79 = vmatpush1.msra.mxu0 %v48
  %80 = vmatprep.subr.mxu0 0.0
  %81 = vmatpush1.msra.mxu0 %v49
  %82 = vmatprep.subr.mxu0 0.0
  %83 = vmatpush1.msra.mxu0 0.0
  %84 = vmatprep.subr.mxu0 0.0
  %85 = vmatpush1.msra.mxu0 0.0
  %86 = vmatprep.subr.mxu0 0.0
  %87 = vmatpush1.msra.mxu0 0.0
  %88 = vmatprep.subr.mxu0 0.0
  %89 = vmatpush1.msra.mxu0 0.0
  %90 = vmatprep.subr.mxu0 0.0
  %91 = vmatpush1.msra.mxu0 0.0
  %92 = vmatprep.subr.mxu0 0.0
  %93 = vmatpush1.msra.mxu0 0.0
  %94 = vmatprep.subr.mxu0 0.0
  %95 = vmatpush1.msra.mxu0 0.0
  %96 = vmatprep.subr.mxu0 0.0
  %97 = vmatpush1.msra.mxu0 0.0
  %98 = vmatprep.subr.mxu0 0.0
  %99 = vmatpush1.msra.mxu0 0.0
  %100 = vmatprep.subr.mxu0 0.0
  %101 = vmatpush1.msra.mxu0 0.0
  %102 = vmatprep.subr.mxu0 0.0
  %103 = vmatpush1.msra.mxu0 0.0
  %104 = vmatprep.subr.mxu0 0.0
  %105 = vmatpush1.msra.mxu0 0.0
  %106 = vmatprep.subr.mxu0 0.0
  %107 = vmatpush1.msra.mxu0 0.0
  %108 = vmatprep.subr.mxu0 0.0
  %109 = vmatpush1.msra.mxu0 0.0
  %110 = vmatprep.subr.mxu0 0.0
  %111 = vmatpush1.msra.mxu0 0.0
  %112 = vmatprep.subr.mxu0 0.0
  %113 = vmatpush1.msra.mxu0 0.0
  %114 = vmatprep.mubr.f32.mxu0 0.0
  %115 = vmatmul.mubr.f32.gmra.mrb[0].mxu0 %v32
  %v116 = vpop.f32.mrb[0].mxu0
  %v117 = vadd.f32 0.0, %v116
  %v118 = vpop.f32.mrb[0].mxu0
  %119 = vdwg.mxu0
  %v120 = vld [vmem:[%s4] sm:$0xff]
  %v121 = vld [vmem:[%s4 + $0x8] sm:$0xff]
  %v122 = vld [vmem:[%s4 + $0x10] sm:$0xff]
  %v123 = vld [vmem:[%s4 + $0x18] sm:$0xff]
  %v124 = vld [vmem:[%s4 + $0x20] sm:$0xff]
  %v125 = vld [vmem:[%s4 + $0x28] sm:$0xff]
  %v126 = vld [vmem:[%s4 + $0x30] sm:$0xff]
  %v127 = vld [vmem:[%s4 + $0x38] sm:$0xff]
  %v128 = vld [vmem:[%s4 + $0x40] sm:$0xff]
  %v129 = vld [vmem:[%s4 + $0x48] sm:$0xff]
  %v130 = vld [vmem:[%s4 + $0x50] sm:$0xff]
  %v131 = vld [vmem:[%s4 + $0x58] sm:$0xff]
  %v132 = vld [vmem:[%s4 + $0x60] sm:$0xff]
  %v133 = vld [vmem:[%s4 + $0x68] sm:$0xff]
  %v134 = vld [vmem:[%s4 + $0x70] sm:$0xff]
  %v135 = vld [vmem:[%s4 + $0x78] sm:$0xff]
  %136 = vmatprep.subr.mxu0 0.0
  %137 = vmatpush1.msra.mxu0 %v120
  %138 = vmatprep.subr.mxu0 0.0
  %139 = vmatpush1.msra.mxu0 %v121
  %140 = vmatprep.subr.mxu0 0.0
  %141 = vmatpush1.msra.mxu0 %v122
  %142 = vmatprep.subr.mxu0 0.0
  %143 = vmatpush1.msra.mxu0 %v123
  %144 = vmatprep.subr.mxu0 0.0
  %145 = vmatpush1.msra.mxu0 %v124
  %146 = vmatprep.subr.mxu0 0.0
  %147 = vmatpush1.msra.mxu0 %v125
  %148 = vmatprep.subr.mxu0 0.0
  %149 = vmatpush1.msra.mxu0 %v126
  %150 = vmatprep.subr.mxu0 0.0
  %151 = vmatpush1.msra.mxu0 %v127
  %152 = vmatprep.subr.mxu0 0.0
  %153 = vmatpush1.msra.mxu0 %v128
  %154 = vmatprep.subr.mxu0 0.0
  %155 = vmatpush1.msra.mxu0 %v129
  %156 = vmatprep.subr.mxu0 0.0
  %157 = vmatpush1.msra.mxu0 %v130
  %158 = vmatprep.subr.mxu0 0.0
  %159 = vmatpush1.msra.mxu0 %v131
  %160 = vmatprep.subr.mxu0 0.0
  %161 = vmatpush1.msra.mxu0 %v132
  %162 = vmatprep.subr.mxu0 0.0
  %163 = vmatpush1.msra.mxu0 %v133
  %164 = vmatprep.subr.mxu0 0.0
  %165 = vmatpush1.msra.mxu0 %v134
  %166 = vmatprep.subr.mxu0 0.0
  %167 = vmatpush1.msra.mxu0 %v135
  %168 = vmatprep.subr.mxu0 0.0
  %169 = vmatpush1.msra.mxu0 0.0
  %170 = vmatprep.subr.mxu0 0.0
  %171 = vmatpush1.msra.mxu0 0.0
  %172 = vmatprep.subr.mxu0 0.0
  %173 = vmatpush1.msra.mxu0 0.0
  %174 = vmatprep.subr.mxu0 0.0
  %175 = vmatpush1.msra.mxu0 0.0
  %176 = vmatprep.subr.mxu0 0.0
  %177 = vmatpush1.msra.mxu0 0.0
  %178 = vmatprep.subr.mxu0 0.0
  %179 = vmatpush1.msra.mxu0 0.0
  %180 = vmatprep.subr.mxu0 0.0
  %181 = vmatpush1.msra.mxu0 0.0
  %182 = vmatprep.subr.mxu0 0.0
  %183 = vmatpush1.msra.mxu0 0.0
  %184 = vmatprep.subr.mxu0 0.0
  %185 = vmatpush1.msra.mxu0 0.0
  %186 = vmatprep.subr.mxu0 0.0
  %187 = vmatpush1.msra.mxu0 0.0
  %188 = vmatprep.subr.mxu0 0.0
  %189 = vmatpush1.msra.mxu0 0.0
  %190 = vmatprep.subr.mxu0 0.0
  %191 = vmatpush1.msra.mxu0 0.0
  %192 = vmatprep.subr.mxu0 0.0
  %193 = vmatpush1.msra.mxu0 0.0
  %194 = vmatprep.subr.mxu0 0.0
  %195 = vmatpush1.msra.mxu0 0.0
  %196 = vmatprep.subr.mxu0 0.0
  %197 = vmatpush1.msra.mxu0 0.0
  %198 = vmatprep.subr.mxu0 0.0
  %199 = vmatpush1.msra.mxu0 0.0
  %200 = vmatprep.mubr.f32.mxu0 0.0
  %201 = vmatmul.mubr.f32.gmra.mrb[0].mxu0 %v33
  %v202 = vpop.f32.mrb[0].mxu0
  %v203 = vadd.f32 0.0, %v202
  %v204 = vpop.f32.mrb[0].mxu0
  %205 = vdwg.mxu0
  %v206 = vld [vmem:[%s5] sm:$0xff]
  %v207 = vld [vmem:[%s5 + $0x8] sm:$0xff]
  %v208 = vld [vmem:[%s5 + $0x10] sm:$0xff]
  %v209 = vld [vmem:[%s5 + $0x18] sm:$0xff]
  %v210 = vld [vmem:[%s5 + $0x20] sm:$0xff]
  %v211 = vld [vmem:[%s5 + $0x28] sm:$0xff]
  %v212 = vld [vmem:[%s5 + $0x30] sm:$0xff]
  %v213 = vld [vmem:[%s5 + $0x38] sm:$0xff]
  %v214 = vld [vmem:[%s5 + $0x40] sm:$0xff]
  %v215 = vld [vmem:[%s5 + $0x48] sm:$0xff]
  %v216 = vld [vmem:[%s5 + $0x50] sm:$0xff]
  %v217 = vld [vmem:[%s5 + $0x58] sm:$0xff]
  %v218 = vld [vmem:[%s5 + $0x60] sm:$0xff]
  %v219 = vld [vmem:[%s5 + $0x68] sm:$0xff]
  %v220 = vld [vmem:[%s5 + $0x70] sm:$0xff]
  %v221 = vld [vmem:[%s5 + $0x78] sm:$0xff]
  %222 = vmatprep.subr.mxu0 0.0
  %223 = vmatpush1.msra.mxu0 %v206
  %224 = vmatprep.subr.mxu0 0.0
  %225 = vmatpush1.msra.mxu0 %v207
  %226 = vmatprep.subr.mxu0 0.0
  %227 = vmatpush1.msra.mxu0 %v208
  %228 = vmatprep.subr.mxu0 0.0
  %229 = vmatpush1.msra.mxu0 %v209
  %230 = vmatprep.subr.mxu0 0.0
  %231 = vmatpush1.msra.mxu0 %v210
  %232 = vmatprep.subr.mxu0 0.0
  %233 = vmatpush1.msra.mxu0 %v211
  %234 = vmatprep.subr.mxu0 0.0
  %235 = vmatpush1.msra.mxu0 %v212
  %236 = vmatprep.subr.mxu0 0.0
  %237 = vmatpush1.msra.mxu0 %v213
  %238 = vmatprep.subr.mxu0 0.0
  %239 = vmatpush1.msra.mxu0 %v214
  %240 = vmatprep.subr.mxu0 0.0
  %241 = vmatpush1.msra.mxu0 %v215
  %242 = vmatprep.subr.mxu0 0.0
  %243 = vmatpush1.msra.mxu0 %v216
  %244 = vmatprep.subr.mxu0 0.0
  %245 = vmatpush1.msra.mxu0 %v217
  %246 = vmatprep.subr.mxu0 0.0
  %247 = vmatpush1.msra.mxu0 %v218
  %248 = vmatprep.subr.mxu0 0.0
  %249 = vmatpush1.msra.mxu0 %v219
  %250 = vmatprep.subr.mxu0 0.0
  %251 = vmatpush1.msra.mxu0 %v220
  %252 = vmatprep.subr.mxu0 0.0
  %253 = vmatpush1.msra.mxu0 %v221
  %254 = vmatprep.subr.mxu0 0.0
  %255 = vmatpush1.msra.mxu0 0.0
  %256 = vmatprep.subr.mxu0 0.0
  %257 = vmatpush1.msra.mxu0 0.0
  %258 = vmatprep.subr.mxu0 0.0
  %259 = vmatpush1.msra.mxu0 0.0
  %260 = vmatprep.subr.mxu0 0.0
  %261 = vmatpush1.msra.mxu0 0.0
  %262 = vmatprep.subr.mxu0 0.0
  %263 = vmatpush1.msra.mxu0 0.0
  %264 = vmatprep.subr.mxu0 0.0
  %265 = vmatpush1.msra.mxu0 0.0
  %266 = vmatprep.subr.mxu0 0.0
  %267 = vmatpush1.msra.mxu0 0.0
  %268 = vmatprep.subr.mxu0 0.0
  %269 = vmatpush1.msra.mxu0 0.0
  %270 = vmatprep.subr.mxu0 0.0
  %271 = vmatpush1.msra.mxu0 0.0
  %272 = vmatprep.subr.mxu0 0.0
  %273 = vmatpush1.msra.mxu0 0.0
  %274 = vmatprep.subr.mxu0 0.0
  %275 = vmatpush1.msra.mxu0 0.0
  %276 = vmatprep.subr.mxu0 0.0
  %277 = vmatpush1.msra.mxu0 0.0
  %278 = vmatprep.subr.mxu0 0.0
  %279 = vmatpush1.msra.mxu0 0.0
  %280 = vmatprep.subr.mxu0 0.0
  %281 = vmatpush1.msra.mxu0 0.0
  %282 = vmatprep.subr.mxu0 0.0
  %283 = vmatpush1.msra.mxu0 0.0
  %284 = vmatprep.subr.mxu0 0.0
  %285 = vmatpush1.msra.mxu0 0.0
  %286 = vmatprep.mubr.f32.mxu0 0.0
  %287 = vmatmul.mubr.f32.gmra.mrb[0].mxu0 %v33
  %v288 = vpop.f32.mrb[0].mxu0
  %v289 = vadd.f32 0.0, %v288
  %v290 = vpop.f32.mrb[0].mxu0
  %291 = vdwg.mxu0
  %292 = vmatprep.subr.mxu0 0.0
  %293 = vmatpush1.xpose.msra.mxu0 %v203
  %294 = vmatprep.subr.mxu0 0.0
  %295 = vmatpush1.xpose.msra.mxu0 0.0
  %296 = vmatprep.subr.mxu0 0.0
  %297 = vmatpush1.xpose.msra.mxu0 0.0
  %298 = vmatprep.subr.mxu0 0.0
  %299 = vmatpush1.xpose.msra.mxu0 0.0
  %300 = vmatprep.subr.mxu0 0.0
  %301 = vmatpush1.xpose.msra.mxu0 0.0
  %302 = vmatprep.subr.mxu0 0.0
  %303 = vmatpush1.xpose.msra.mxu0 0.0
  %304 = vmatprep.subr.mxu0 0.0
  %305 = vmatpush1.xpose.msra.mxu0 0.0
  %306 = vmatprep.subr.mxu0 0.0
  %307 = vmatpush1.xpose.msra.mxu0 0.0
  %308 = vmatprep.subr.mxu0 0.0
  %309 = vmatpush1.xpose.msra.mxu0 0.0
  %310 = vmatprep.subr.mxu0 0.0
  %311 = vmatpush1.xpose.msra.mxu0 0.0
  %312 = vmatprep.subr.mxu0 0.0
  %313 = vmatpush1.xpose.msra.mxu0 0.0
  %314 = vmatprep.subr.mxu0 0.0
  %315 = vmatpush1.xpose.msra.mxu0 0.0
  %316 = vmatprep.subr.mxu0 0.0
  %317 = vmatpush1.xpose.msra.mxu0 0.0
  %318 = vmatprep.subr.mxu0 0.0
  %319 = vmatpush1.xpose.msra.mxu0 0.0
  %320 = vmatprep.subr.mxu0 0.0
  %321 = vmatpush1.xpose.msra.mxu0 0.0
  %322 = vmatprep.subr.mxu0 0.0
  %323 = vmatpush1.xpose.msra.mxu0 0.0
  %324 = vmatprep.subr.mxu0 0.0
  %325 = vmatpush1.xpose.msra.mxu0 0.0
  %326 = vmatprep.subr.mxu0 0.0
  %327 = vmatpush1.xpose.msra.mxu0 0.0
  %328 = vmatprep.subr.mxu0 0.0
  %329 = vmatpush1.xpose.msra.mxu0 0.0
  %330 = vmatprep.subr.mxu0 0.0
  %331 = vmatpush1.xpose.msra.mxu0 0.0
  %332 = vmatprep.subr.mxu0 0.0
  %333 = vmatpush1.xpose.msra.mxu0 0.0
  %334 = vmatprep.subr.mxu0 0.0
  %335 = vmatpush1.xpose.msra.mxu0 0.0
  %336 = vmatprep.subr.mxu0 0.0
  %337 = vmatpush1.xpose.msra.mxu0 0.0
  %338 = vmatprep.subr.mxu0 0.0
  %339 = vmatpush1.xpose.msra.mxu0 0.0
  %340 = vmatprep.subr.mxu0 0.0
  %341 = vmatpush1.xpose.msra.mxu0 0.0
  %342 = vmatprep.subr.mxu0 0.0
  %343 = vmatpush1.xpose.msra.mxu0 0.0
  %344 = vmatprep.subr.mxu0 0.0
  %345 = vmatpush1.xpose.msra.mxu0 0.0
  %346 = vmatprep.subr.mxu0 0.0
  %347 = vmatpush1.xpose.msra.mxu0 0.0
  %348 = vmatprep.subr.mxu0 0.0
  %349 = vmatpush1.xpose.msra.mxu0 0.0
  %350 = vmatprep.subr.mxu0 0.0
  %351 = vmatpush1.xpose.msra.mxu0 0.0
  %352 = vmatprep.subr.mxu0 0.0
  %353 = vmatpush1.xpose.msra.mxu0 0.0
  %354 = vmatprep.subr.mxu0 0.0
  %355 = vmatpush1.xpose.msra.mxu0 0.0
  %356 = vmatprep.mubr.f32.mxu0 0.0
  %357 = vmatmul.mubr.f32.gmra.mrb[0].mxu0 %v117
  %v358 = vpop.f32.mrb[0].mxu0
  %v359 = vadd.f32 0.0, %v358
  %v360 = vpop.f32.mrb[0].mxu0
  %361 = vdwg.mxu0
  %v362 = vmul.f32 %v359, 0.088388346
  %v363 = vld [vmem:[%s2] sm:$0xff]
  %vm364 = vcmp.gt.f32.partialorder %v363, 0.0
  %v365 = vsel %vm364, %v362, -1e+09
  %vm366 = vcmask 64512
  %v367 = vsel %vm366, %v365, -inf
  %368 = vmax.xlane.f32.xlu0 %v367
  %v369 = vpop.xlane.xlu0 %368
  %v370 = vsub.f32 %v365, %v369
  %v371 = vmul.f32 %v370, 1.442695
  %v372 = vpow.pop %v371
  %v373 = vsel %vm366, %v372, 0.0
  %374 = vadd.xlane.f32.xlu0 %v373
  %v375 = vpop.xlane.xlu0 %374
  %v376 = vrcp.pop %v375
  %v377 = vmul.f32 %v372, %v376
  %v379 = vsel %vm366, %v377, 0
  %381 = vmatprep.subr.mxu0 0.0
  %382 = vmatpush1.msra.mxu0 %v289
  %383 = vmatprep.subr.mxu0 0.0
  %384 = vmatpush1.msra.mxu0 0.0
  %385 = vmatprep.subr.mxu0 0.0
  %386 = vmatpush1.msra.mxu0 0.0
  %387 = vmatprep.subr.mxu0 0.0
  %388 = vmatpush1.msra.mxu0 0.0
  %389 = vmatprep.subr.mxu0 0.0
  %390 = vmatpush1.msra.mxu0 0.0
  %391 = vmatprep.subr.mxu0 0.0
  %392 = vmatpush1.msra.mxu0 0.0
  %393 = vmatprep.subr.mxu0 0.0
  %394 = vmatpush1.msra.mxu0 0.0
  %395 = vmatprep.subr.mxu0 0.0
  %396 = vmatpush1.msra.mxu0 0.0
  %397 = vmatprep.subr.mxu0 0.0
  %398 = vmatpush1.msra.mxu0 0.0
  %399 = vmatprep.subr.mxu0 0.0
  %400 = vmatpush1.msra.mxu0 0.0
  %401 = vmatprep.subr.mxu0 0.0
  %402 = vmatpush1.msra.mxu0 0.0
  %403 = vmatprep.subr.mxu0 0.0
  %404 = vmatpush1.msra.mxu0 0.0
  %405 = vmatprep.subr.mxu0 0.0
  %406 = vmatpush1.msra.mxu0 0.0
  %407 = vmatprep.subr.mxu0 0.0
  %408 = vmatpush1.msra.mxu0 0.0
  %409 = vmatprep.subr.mxu0 0.0
  %410 = vmatpush1.msra.mxu0 0.0
  %411 = vmatprep.subr.mxu0 0.0
  %412 = vmatpush1.msra.mxu0 0.0
  %413 = vmatprep.subr.mxu0 0.0
  %414 = vmatpush1.msra.mxu0 0.0
  %415 = vmatprep.subr.mxu0 0.0
  %416 = vmatpush1.msra.mxu0 0.0
  %417 = vmatprep.subr.mxu0 0.0
  %418 = vmatpush1.msra.mxu0 0.0
  %419 = vmatprep.subr.mxu0 0.0
  %420 = vmatpush1.msra.mxu0 0.0
  %421 = vmatprep.subr.mxu0 0.0
  %422 = vmatpush1.msra.mxu0 0.0
  %423 = vmatprep.subr.mxu0 0.0
  %424 = vmatpush1.msra.mxu0 0.0
  %425 = vmatprep.subr.mxu0 0.0
  %426 = vmatpush1.msra.mxu0 0.0
  %427 = vmatprep.subr.mxu0 0.0
  %428 = vmatpush1.msra.mxu0 0.0
  %429 = vmatprep.subr.mxu0 0.0
  %430 = vmatpush1.msra.mxu0 0.0
  %431 = vmatprep.subr.mxu0 0.0
  %432 = vmatpush1.msra.mxu0 0.0
  %433 = vmatprep.subr.mxu0 0.0
  %434 = vmatpush1.msra.mxu0 0.0
  %435 = vmatprep.subr.mxu0 0.0
  %436 = vmatpush1.msra.mxu0 0.0
  %437 = vmatprep.subr.mxu0 0.0
  %438 = vmatpush1.msra.mxu0 0.0
  %439 = vmatprep.subr.mxu0 0.0
  %440 = vmatpush1.msra.mxu0 0.0
  %441 = vmatprep.subr.mxu0 0.0
  %442 = vmatpush1.msra.mxu0 0.0
  %443 = vmatprep.subr.mxu0 0.0
  %444 = vmatpush1.msra.mxu0 0.0
  %445 = vmatprep.mubr.f32.mxu0 0.0
  %446 = vmatmul.mubr.f32.gmra.mrb[0].mxu0 %v379
  %v447 = vpop.f32.mrb[0].mxu0
  %v448 = vadd.f32 0.0, %v447
  %v449 = vpop.f32.mrb[0].mxu0
  %450 = vdwg.mxu0
  %v451 = vld [vmem:[%s6] sm:$0xff]
  %v452 = vld [vmem:[%s6 + $0x8] sm:$0xff]
  %v453 = vld [vmem:[%s6 + $0x10] sm:$0xff]
  %v454 = vld [vmem:[%s6 + $0x18] sm:$0xff]
  %v455 = vld [vmem:[%s6 + $0x20] sm:$0xff]
  %v456 = vld [vmem:[%s6 + $0x28] sm:$0xff]
  %v457 = vld [vmem:[%s6 + $0x30] sm:$0xff]
  %v458 = vld [vmem:[%s6 + $0x38] sm:$0xff]
  %v459 = vld [vmem:[%s6 + $0x40] sm:$0xff]
  %v460 = vld [vmem:[%s6 + $0x48] sm:$0xff]
  %v461 = vld [vmem:[%s6 + $0x50] sm:$0xff]
  %v462 = vld [vmem:[%s6 + $0x58] sm:$0xff]
  %v463 = vld [vmem:[%s6 + $0x60] sm:$0xff]
  %v464 = vld [vmem:[%s6 + $0x68] sm:$0xff]
  %v465 = vld [vmem:[%s6 + $0x70] sm:$0xff]
  %v466 = vld [vmem:[%s6 + $0x78] sm:$0xff]
  %467 = vmatprep.subr.mxu0 0.0
  %468 = vmatpush1.msra.mxu0 %v451
  %469 = vmatprep.subr.mxu0 0.0
  %470 = vmatpush1.msra.mxu0 %v452
  %471 = vmatprep.subr.mxu0 0.0
  %472 = vmatpush1.msra.mxu0 %v453
  %473 = vmatprep.subr.mxu0 0.0
  %474 = vmatpush1.msra.mxu0 %v454
  %475 = vmatprep.subr.mxu0 0.0
  %476 = vmatpush1.msra.mxu0 %v455
  %477 = vmatprep.subr.mxu0 0.0
  %478 = vmatpush1.msra.mxu0 %v456
  %479 = vmatprep.subr.mxu0 0.0
  %480 = vmatpush1.msra.mxu0 %v457
  %481 = vmatprep.subr.mxu0 0.0
  %482 = vmatpush1.msra.mxu0 %v458
  %483 = vmatprep.subr.mxu0 0.0
  %484 = vmatpush1.msra.mxu0 %v459
  %485 = vmatprep.subr.mxu0 0.0
  %486 = vmatpush1.msra.mxu0 %v460
  %487 = vmatprep.subr.mxu0 0.0
  %488 = vmatpush1.msra.mxu0 %v461
  %489 = vmatprep.subr.mxu0 0.0
  %490 = vmatpush1.msra.mxu0 %v462
  %491 = vmatprep.subr.mxu0 0.0
  %492 = vmatpush1.msra.mxu0 %v463
  %493 = vmatprep.subr.mxu0 0.0
  %494 = vmatpush1.msra.mxu0 %v464
  %495 = vmatprep.subr.mxu0 0.0
  %496 = vmatpush1.msra.mxu0 %v465
  %497 = vmatprep.subr.mxu0 0.0
  %498 = vmatpush1.msra.mxu0 %v466
  %499 = vmatprep.subr.mxu0 0.0
  %500 = vmatpush1.msra.mxu0 0.0
  %501 = vmatprep.subr.mxu0 0.0
  %502 = vmatpush1.msra.mxu0 0.0
  %503 = vmatprep.subr.mxu0 0.0
  %504 = vmatpush1.msra.mxu0 0.0
  %505 = vmatprep.subr.mxu0 0.0
  %506 = vmatpush1.msra.mxu0 0.0
  %507 = vmatprep.subr.mxu0 0.0
  %508 = vmatpush1.msra.mxu0 0.0
  %509 = vmatprep.subr.mxu0 0.0
  %510 = vmatpush1.msra.mxu0 0.0
  %511 = vmatprep.subr.mxu0 0.0
  %512 = vmatpush1.msra.mxu0 0.0
  %513 = vmatprep.subr.mxu0 0.0
  %514 = vmatpush1.msra.mxu0 0.0
  %515 = vmatprep.subr.mxu0 0.0
  %516 = vmatpush1.msra.mxu0 0.0
  %517 = vmatprep.subr.mxu0 0.0
  %518 = vmatpush1.msra.mxu0 0.0
  %519 = vmatprep.subr.mxu0 0.0
  %520 = vmatpush1.msra.mxu0 0.0
  %521 = vmatprep.subr.mxu0 0.0
  %522 = vmatpush1.msra.mxu0 0.0
  %523 = vmatprep.subr.mxu0 0.0
  %524 = vmatpush1.msra.mxu0 0.0
  %525 = vmatprep.subr.mxu0 0.0
  %526 = vmatpush1.msra.mxu0 0.0
  %527 = vmatprep.subr.mxu0 0.0
  %528 = vmatpush1.msra.mxu0 0.0
  %529 = vmatprep.subr.mxu0 0.0
  %530 = vmatpush1.msra.mxu0 0.0
  %531 = vmatprep.mubr.f32.mxu0 0.0
  %532 = vmatmul.mubr.f32.gmra.mrb[0].mxu0 %v448
  %v533 = vpop.f32.mrb[0].mxu0
  %v534 = vadd.f32 0.0, %v533
  %v535 = vpop.f32.mrb[0].mxu0
  %536 = vdwg.mxu0
  %v537 = vadd.f32 %v32, %v534
  %v538 = vld [vmem:[%s7] sm:$0xff]
  %v539 = vld [vmem:[%s7 + $0x8] sm:$0xff]
  %v540 = vld [vmem:[%s7 + $0x10] sm:$0xff]
  %v541 = vld [vmem:[%s7 + $0x18] sm:$0xff]
  %v542 = vld [vmem:[%s7 + $0x20] sm:$0xff]
  %v543 = vld [vmem:[%s7 + $0x28] sm:$0xff]
  %v544 = vld [vmem:[%s7 + $0x30] sm:$0xff]
  %v545 = vld [vmem:[%s7 + $0x38] sm:$0xff]
  %v546 = vld [vmem:[%s7 + $0x40] sm:$0xff]
  %v547 = vld [vmem:[%s7 + $0x48] sm:$0xff]
  %v548 = vld [vmem:[%s7 + $0x50] sm:$0xff]
  %v549 = vld [vmem:[%s7 + $0x58] sm:$0xff]
  %v550 = vld [vmem:[%s7 + $0x60] sm:$0xff]
  %v551 = vld [vmem:[%s7 + $0x68] sm:$0xff]
  %v552 = vld [vmem:[%s7 + $0x70] sm:$0xff]
  %v553 = vld [vmem:[%s7 + $0x78] sm:$0xff]
  %v554 = vld [vmem:[%s7 + $0x80] sm:$0xff]
  %v555 = vld [vmem:[%s7 + $0x88] sm:$0xff]
  %v556 = vld [vmem:[%s7 + $0x90] sm:$0xff]
  %v557 = vld [vmem:[%s7 + $0x98] sm:$0xff]
  %v558 = vld [vmem:[%s7 + $0xa0] sm:$0xff]
  %v559 = vld [vmem:[%s7 + $0xa8] sm:$0xff]
  %v560 = vld [vmem:[%s7 + $0xb0] sm:$0xff]
  %v561 = vld [vmem:[%s7 + $0xb8] sm:$0xff]
  %v562 = vld [vmem:[%s7 + $0xc0] sm:$0xff]
  %v563 = vld [vmem:[%s7 + $0xc8] sm:$0xff]
  %v564 = vld [vmem:[%s7 + $0xd0] sm:$0xff]
  %v565 = vld [vmem:[%s7 + $0xd8] sm:$0xff]
  %v566 = vld [vmem:[%s7 + $0xe0] sm:$0xff]
  %v567 = vld [vmem:[%s7 + $0xe8] sm:$0xff]
  %v568 = vld [vmem:[%s7 + $0xf0] sm:$0xff]
  %v569 = vld [vmem:[%s7 + $0xf8] sm:$0xff]
  %v570 = vld [vmem:[%s7 + $0x100] sm:$0xff]
  %v571 = vld [vmem:[%s7 + $0x108] sm:$0xff]
  %v572 = vld [vmem:[%s7 + $0x110] sm:$0xff]
  %v573 = vld [vmem:[%s7 + $0x118] sm:$0xff]
  %v574 = vld [vmem:[%s7 + $0x120] sm:$0xff]
  %v575 = vld [vmem:[%s7 + $0x128] sm:$0xff]
  %v576 = vld [vmem:[%s7 + $0x130] sm:$0xff]
  %v577 = vld [vmem:[%s7 + $0x138] sm:$0xff]
  %v578 = vld [vmem:[%s7 + $0x140] sm:$0xff]
  %v579 = vld [vmem:[%s7 + $0x148] sm:$0xff]
  %v580 = vld [vmem:[%s7 + $0x150] sm:$0xff]
  %v581 = vld [vmem:[%s7 + $0x158] sm:$0xff]
  %v582 = vld [vmem:[%s7 + $0x160] sm:$0xff]
  %v583 = vld [vmem:[%s7 + $0x168] sm:$0xff]
  %v584 = vld [vmem:[%s7 + $0x170] sm:$0xff]
  %v585 = vld [vmem:[%s7 + $0x178] sm:$0xff]
  %v586 = vld [vmem:[%s7 + $0x180] sm:$0xff]
  %v587 = vld [vmem:[%s7 + $0x188] sm:$0xff]
  %v588 = vld [vmem:[%s7 + $0x190] sm:$0xff]
  %v589 = vld [vmem:[%s7 + $0x198] sm:$0xff]
  %v590 = vld [vmem:[%s7 + $0x1a0] sm:$0xff]
  %v591 = vld [vmem:[%s7 + $0x1a8] sm:$0xff]
  %v592 = vld [vmem:[%s7 + $0x1b0] sm:$0xff]
  %v593 = vld [vmem:[%s7 + $0x1b8] sm:$0xff]
  %v594 = vld [vmem:[%s7 + $0x1c0] sm:$0xff]
  %v595 = vld [vmem:[%s7 + $0x1c8] sm:$0xff]
  %v596 = vld [vmem:[%s7 + $0x1d0] sm:$0xff]
  %v597 = vld [vmem:[%s7 + $0x1d8] sm:$0xff]
  %v598 = vld [vmem:[%s7 + $0x1e0] sm:$0xff]
  %v599 = vld [vmem:[%s7 + $0x1e8] sm:$0xff]
  %v600 = vld [vmem:[%s7 + $0x1f0] sm:$0xff]
  %v601 = vld [vmem:[%s7 + $0x1f8] sm:$0xff]
  %v602 = vld [vmem:[%s8] sm:$0xf]
  %v604 = vlaneseq
  %v605 = vshrl.u32 %v604, 7
  %v606 = vsub.s32 0, %v605
  %v607 = vrot.slane %v602, %v606
  %v608 = vlaneseq
  %v609 = vshrl.u32 %v608, 7
  %v610 = vsub.s32 1, %v609
  %v611 = vrot.slane %v602, %v610
  %v612 = vlaneseq
  %v613 = vshrl.u32 %v612, 7
  %v614 = vsub.s32 2, %v613
  %v615 = vrot.slane %v602, %v614
  %v616 = vlaneseq
  %v617 = vshrl.u32 %v616, 7
  %v618 = vsub.s32 3, %v617
  %v619 = vrot.slane %v602, %v618
  %624 = vmatprep.subr.mxu0 %v539
  %625 = vmatpush1.msra.mxu0 %v538
  %626 = vmatprep.subr.mxu0 %v543
  %627 = vmatpush1.msra.mxu0 %v542
  %628 = vmatprep.subr.mxu0 %v547
  %629 = vmatpush1.msra.mxu0 %v546
  %630 = vmatprep.subr.mxu0 %v551
  %631 = vmatpush1.msra.mxu0 %v550
  %632 = vmatprep.subr.mxu0 %v555
  %633 = vmatpush1.msra.mxu0 %v554
  %634 = vmatprep.subr.mxu0 %v559
  %635 = vmatpush1.msra.mxu0 %v558
  %636 = vmatprep.subr.mxu0 %v563
  %637 = vmatpush1.msra.mxu0 %v562
  %638 = vmatprep.subr.mxu0 %v567
  %639 = vmatpush1.msra.mxu0 %v566
  %640 = vmatprep.subr.mxu0 %v571
  %641 = vmatpush1.msra.mxu0 %v570
  %642 = vmatprep.subr.mxu0 %v575
  %643 = vmatpush1.msra.mxu0 %v574
  %644 = vmatprep.subr.mxu0 %v579
  %645 = vmatpush1.msra.mxu0 %v578
  %646 = vmatprep.subr.mxu0 %v583
  %647 = vmatpush1.msra.mxu0 %v582
  %648 = vmatprep.subr.mxu0 %v587
  %649 = vmatpush1.msra.mxu0 %v586
  %650 = vmatprep.subr.mxu0 %v591
  %651 = vmatpush1.msra.mxu0 %v590
  %652 = vmatprep.subr.mxu0 %v595
  %653 = vmatpush1.msra.mxu0 %v594
  %654 = vmatprep.subr.mxu0 %v599
  %655 = vmatpush1.msra.mxu0 %v598
  %656 = vmatprep.subr.mxu0 0.0
  %657 = vmatpush1.msra.mxu0 0.0
  %658 = vmatprep.subr.mxu0 0.0
  %659 = vmatpush1.msra.mxu0 0.0
  %660 = vmatprep.subr.mxu0 0.0
  %661 = vmatpush1.msra.mxu0 0.0
  %662 = vmatprep.subr.mxu0 0.0
  %663 = vmatpush1.msra.mxu0 0.0
  %664 = vmatprep.subr.mxu0 0.0
  %665 = vmatpush1.msra.mxu0 0.0
  %666 = vmatprep.subr.mxu0 0.0
  %667 = vmatpush1.msra.mxu0 0.0
  %668 = vmatprep.subr.mxu0 0.0
  %669 = vmatpush1.msra.mxu0 0.0
  %670 = vmatprep.subr.mxu0 0.0
  %671 = vmatpush1.msra.mxu0 0.0
  %672 = vmatprep.subr.mxu0 0.0
  %673 = vmatpush1.msra.mxu0 0.0
  %674 = vmatprep.subr.mxu0 0.0
  %675 = vmatpush1.msra.mxu0 0.0
  %676 = vmatprep.subr.mxu0 0.0
  %677 = vmatpush1.msra.mxu0 0.0
  %678 = vmatprep.subr.mxu0 0.0
  %679 = vmatpush1.msra.mxu0 0.0
  %680 = vmatprep.subr.mxu0 0.0
  %681 = vmatpush1.msra.mxu0 0.0
  %682 = vmatprep.subr.mxu0 0.0
  %683 = vmatpush1.msra.mxu0 0.0
  %684 = vmatprep.subr.mxu0 0.0
  %685 = vmatpush1.msra.mxu0 0.0
  %686 = vmatprep.subr.mxu0 0.0
  %687 = vmatpush1.msra.mxu0 0.0
  %688 = vmatprep.mubr.f32.mxu0 0.0
  %689 = vmatmul.mubr.f32.gmra.mrb[0].mxu0 %v537
  %v690 = vpop.f32.mrb[0].mxu0
  %v691 = vadd.f32 %v607, %v690
  %v692 = vpop.f32.mrb[0].mxu0
  %v693 = vadd.f32 %v611, %v692
  %694 = vdwg.mxu0
  %695 = vmatprep.subr.mxu0 %v541
  %696 = vmatpush1.msra.mxu0 %v540
  %697 = vmatprep.subr.mxu0 %v545
  %698 = vmatpush1.msra.mxu0 %v544
  %699 = vmatprep.subr.mxu0 %v549
  %700 = vmatpush1.msra.mxu0 %v548
  %701 = vmatprep.subr.mxu0 %v553
  %702 = vmatpush1.msra.mxu0 %v552
  %703 = vmatprep.subr.mxu0 %v557
  %704 = vmatpush1.msra.mxu0 %v556
  %705 = vmatprep.subr.mxu0 %v561
  %706 = vmatpush1.msra.mxu0 %v560
  %707 = vmatprep.subr.mxu0 %v565
  %708 = vmatpush1.msra.mxu0 %v564
  %709 = vmatprep.subr.mxu0 %v569
  %710 = vmatpush1.msra.mxu0 %v568
  %711 = vmatprep.subr.mxu0 %v573
  %712 = vmatpush1.msra.mxu0 %v572
  %713 = vmatprep.subr.mxu0 %v577
  %714 = vmatpush1.msra.mxu0 %v576
  %715 = vmatprep.subr.mxu0 %v581
  %716 = vmatpush1.msra.mxu0 %v580
  %717 = vmatprep.subr.mxu0 %v585
  %718 = vmatpush1.msra.mxu0 %v584
  %719 = vmatprep.subr.mxu0 %v589
  %720 = vmatpush1.msra.mxu0 %v588
  %721 = vmatprep.subr.mxu0 %v593
  %722 = vmatpush1.msra.mxu0 %v592
  %723 = vmatprep.subr.mxu0 %v597
  %724 = vmatpush1.msra.mxu0 %v596
  %725 = vmatprep.subr.mxu0 %v601
  %726 = vmatpush1.msra.mxu0 %v600
  %727 = vmatprep.subr.mxu0 0.0
  %728 = vmatpush1.msra.mxu0 0.0
  %729 = vmatprep.subr.mxu0 0.0
  %730 = vmatpush1.msra.mxu0 0.0
  %731 = vmatprep.subr.mxu0 0.0
  %732 = vmatpush1.msra.mxu0 0.0
  %733 = vmatprep.subr.mxu0 0.0
  %734 = vmatpush1.msra.mxu0 0.0
  %735 = vmatprep.subr.mxu0 0.0
  %736 = vmatpush1.msra.mxu0 0.0
  %737 = vmatprep.subr.mxu0 0.0
  %738 = vmatpush1.msra.mxu0 0.0
  %739 = vmatprep.subr.mxu0 0.0
  %740 = vmatpush1.msra.mxu0 0.0
  %741 = vmatprep.subr.mxu0 0.0
  %742 = vmatpush1.msra.mxu0 0.0
  %743 = vmatprep.subr.mxu0 0.0
  %744 = vmatpush1.msra.mxu0 0.0
  %745 = vmatprep.subr.mxu0 0.0
  %746 = vmatpush1.msra.mxu0 0.0
  %747 = vmatprep.subr.mxu0 0.0
  %748 = vmatpush1.msra.mxu0 0.0
  %749 = vmatprep.subr.mxu0 0.0
  %750 = vmatpush1.msra.mxu0 0.0
  %751 = vmatprep.subr.mxu0 0.0
  %752 = vmatpush1.msra.mxu0 0.0
  %753 = vmatprep.subr.mxu0 0.0
  %754 = vmatpush1.msra.mxu0 0.0
  %755 = vmatprep.subr.mxu0 0.0
  %756 = vmatpush1.msra.mxu0 0.0
  %757 = vmatprep.subr.mxu0 0.0
  %758 = vmatpush1.msra.mxu0 0.0
  %759 = vmatprep.mubr.f32.mxu0 0.0
  %760 = vmatmul.mubr.f32.gmra.mrb[0].mxu0 %v537
  %v761 = vpop.f32.mrb[0].mxu0
  %v762 = vadd.f32 %v615, %v761
  %v763 = vpop.f32.mrb[0].mxu0
  %v764 = vadd.f32 %v619, %v763
  %765 = vdwg.mxu0
  %766 = vst [vmem:[%s9] sm:$0xff] %v691
  %767 = vst [vmem:[%s9 + $0x8] sm:$0xff] %v693
  %768 = vst [vmem:[%s9 + $0x10] sm:$0xff] %v762
  %769 = vst [vmem:[%s9 + $0x18] sm:$0xff] %v764
  // Predicated region
  $region38: #{forward.4} parent=0 // pred_check
    _
  $region39: #{forward.4} parent=0 // pred_check_branch
    %771 = sbr.rel (0) target = $region41
  $region40: #{forward.4} parent=0 // pred_region
    _
  $region41: #{forward.4} parent=0 // pred_fallthru
    _
  // Predicated region
  $region42: #{forward.4} parent=0 // pred_check
    _
  $region43: #{forward.4} parent=0 // pred_check_branch
    %773 = sbr.rel (0) target = $region45
  $region44: #{forward.4} parent=0 // pred_region
    _
  $region45: #{forward.4} parent=0 // pred_fallthru
    _

// kernel: forward.5
$region0: #{forward.5}
  #allocation0 [shape = 'u32[]', space=smem, size = 0x4, offset = 0x4, fixed_abs, tag = 'smem constant byte address 0x4 - core index']
  #allocation1 [shape = 'u32[144,128]{1,0:T(1,128)}', space=vmem, size = 0x12000, scoped, tag = 'internal scratch']
  #allocation2 [shape = 'f32[32,512]{1,0:T(8,128)}', space=vmem, size = 0x10000, scoped, tag = 'scratch operand']
  #allocation3 [shape = 'f32[32,128]{1,0:T(8,128)}', space=vmem, size = 0x4000, scoped, tag = 'scratch operand']
  %s0 = inlined_call_operand.vmem [shape: f32[32,128], index: 0, kind: input, shape index: {}]
  %s1 = inlined_call_operand.vmem [shape: f32[128,512], index: 1, kind: input, shape index: {}]
  %s2 = inlined_call_operand.vmem [shape: f32[128,512], index: 2, kind: input, shape index: {}]
  %s3 = inlined_call_operand.vmem [shape: f32[1,512], index: 3, kind: input, shape index: {}]
  %s4 = inlined_call_operand.vmem [shape: f32[128,128], index: 4, kind: input, shape index: {}]
  %s5 = inlined_call_operand.vmem [shape: f32[1,128], index: 5, kind: input, shape index: {}]
  %s6 = inlined_call_operand.vmem [shape: f32[32,128], index: 6, kind: output, shape index: {}]
  %s7 = sld [smem:[#allocation0]]
  $region34: #{forward.5} parent=0
    _
  %s9 = ssub.s32 1, %s7
  %s10 = scalar_select 0, %s9, %s7
  // Predicated region
  $region2: #{forward.5} parent=0 // pred_check
    _
  $region3: #{forward.5} parent=0 // pred_check_branch
    %12 = sbr.rel (0) target = $region5
  $region4: #{forward.5} parent=0 // pred_region
    _
  $region5: #{forward.5} parent=0 // pred_fallthru
    _
  // Predicated region
  $region6: #{forward.5} parent=0 // pred_check
    _
  $region7: #{forward.5} parent=0 // pred_check_branch
    %14 = sbr.rel (0) target = $region9
  $region8: #{forward.5} parent=0 // pred_region
    _
  $region9: #{forward.5} parent=0 // pred_fallthru
    _
  // Predicated region
  $region10: #{forward.5} parent=0 // pred_check
    _
  $region11: #{forward.5} parent=0 // pred_check_branch
    %16 = sbr.rel (0) target = $region13
  $region12: #{forward.5} parent=0 // pred_region
    _
  $region13: #{forward.5} parent=0 // pred_fallthru
    _
  // Predicated region
  $region14: #{forward.5} parent=0 // pred_check
    _
  $region15: #{forward.5} parent=0 // pred_check_branch
    %18 = sbr.rel (0) target = $region17
  $region16: #{forward.5} parent=0 // pred_region
    _
  $region17: #{forward.5} parent=0 // pred_fallthru
    _
  // Predicated region
  $region18: #{forward.5} parent=0 // pred_check
    _
  $region19: #{forward.5} parent=0 // pred_check_branch
    %20 = sbr.rel (0) target = $region21
  $region20: #{forward.5} parent=0 // pred_region
    _
  $region21: #{forward.5} parent=0 // pred_fallthru
    _
  // Predicated region
  $region22: #{forward.5} parent=0 // pred_check
    _
  $region23: #{forward.5} parent=0 // pred_check_branch
    %22 = sbr.rel (0) target = $region25
  $region24: #{forward.5} parent=0 // pred_region
    _
  $region25: #{forward.5} parent=0 // pred_fallthru
    _
  %v23 = vld [vmem:[%s0] sm:$0xff]
  %v24 = vld [vmem:[%s0 + $0x8] sm:$0xff]
  %v25 = vld [vmem:[%s0 + $0x10] sm:$0xff]
  %v26 = vld [vmem:[%s0 + $0x18] sm:$0xff]
  %v27 = vld [vmem:[%s1] sm:$0xff]
  %v28 = vld [vmem:[%s1 + $0x8] sm:$0xff]
  %v29 = vld [vmem:[%s1 + $0x10] sm:$0xff]
  %v30 = vld [vmem:[%s1 + $0x18] sm:$0xff]
  %v31 = vld [vmem:[%s1 + $0x20] sm:$0xff]
  %v32 = vld [vmem:[%s1 + $0x28] sm:$0xff]
  %v33 = vld [vmem:[%s1 + $0x30] sm:$0xff]
  %v34 = vld [vmem:[%s1 + $0x38] sm:$0xff]
  %v35 = vld [vmem:[%s1 + $0x40] sm:$0xff]
  %v36 = vld [vmem:[%s1 + $0x48] sm:$0xff]
  %v37 = vld [vmem:[%s1 + $0x50] sm:$0xff]
  %v38 = vld [vmem:[%s1 + $0x58] sm:$0xff]
  %v39 = vld [vmem:[%s1 + $0x60] sm:$0xff]
  %v40 = vld [vmem:[%s1 + $0x68] sm:$0xff]
  %v41 = vld [vmem:[%s1 + $0x70] sm:$0xff]
  %v42 = vld [vmem:[%s1 + $0x78] sm:$0xff]
  %v43 = vld [vmem:[%s1 + $0x80] sm:$0xff]
  %v44 = vld [vmem:[%s1 + $0x88] sm:$0xff]
  %v45 = vld [vmem:[%s1 + $0x90] sm:$0xff]
  %v46 = vld [vmem:[%s1 + $0x98] sm:$0xff]
  %v47 = vld [vmem:[%s1 + $0xa0] sm:$0xff]
  %v48 = vld [vmem:[%s1 + $0xa8] sm:$0xff]
  %v49 = vld [vmem:[%s1 + $0xb0] sm:$0xff]
  %v50 = vld [vmem:[%s1 + $0xb8] sm:$0xff]
  %v51 = vld [vmem:[%s1 + $0xc0] sm:$0xff]
  %v52 = vld [vmem:[%s1 + $0xc8] sm:$0xff]
  %v53 = vld [vmem:[%s1 + $0xd0] sm:$0xff]
  %v54 = vld [vmem:[%s1 + $0xd8] sm:$0xff]
  %v55 = vld [vmem:[%s1 + $0xe0] sm:$0xff]
  %v56 = vld [vmem:[%s1 + $0xe8] sm:$0xff]
  %v57 = vld [vmem:[%s1 + $0xf0] sm:$0xff]
  %v58 = vld [vmem:[%s1 + $0xf8] sm:$0xff]
  %v59 = vld [vmem:[%s1 + $0x100] sm:$0xff]
  %v60 = vld [vmem:[%s1 + $0x108] sm:$0xff]
  %v61 = vld [vmem:[%s1 + $0x110] sm:$0xff]
  %v62 = vld [vmem:[%s1 + $0x118] sm:$0xff]
  %v63 = vld [vmem:[%s1 + $0x120] sm:$0xff]
  %v64 = vld [vmem:[%s1 + $0x128] sm:$0xff]
  %v65 = vld [vmem:[%s1 + $0x130] sm:$0xff]
  %v66 = vld [vmem:[%s1 + $0x138] sm:$0xff]
  %v67 = vld [vmem:[%s1 + $0x140] sm:$0xff]
  %v68 = vld [vmem:[%s1 + $0x148] sm:$0xff]
  %v69 = vld [vmem:[%s1 + $0x150] sm:$0xff]
  %v70 = vld [vmem:[%s1 + $0x158] sm:$0xff]
  %v71 = vld [vmem:[%s1 + $0x160] sm:$0xff]
  %v72 = vld [vmem:[%s1 + $0x168] sm:$0xff]
  %v73 = vld [vmem:[%s1 + $0x170] sm:$0xff]
  %v74 = vld [vmem:[%s1 + $0x178] sm:$0xff]
  %v75 = vld [vmem:[%s1 + $0x180] sm:$0xff]
  %v76 = vld [vmem:[%s1 + $0x188] sm:$0xff]
  %v77 = vld [vmem:[%s1 + $0x190] sm:$0xff]
  %v78 = vld [vmem:[%s1 + $0x198] sm:$0xff]
  %v79 = vld [vmem:[%s1 + $0x1a0] sm:$0xff]
  %v80 = vld [vmem:[%s1 + $0x1a8] sm:$0xff]
  %v81 = vld [vmem:[%s1 + $0x1b0] sm:$0xff]
  %v82 = vld [vmem:[%s1 + $0x1b8] sm:$0xff]
  %v83 = vld [vmem:[%s1 + $0x1c0] sm:$0xff]
  %v84 = vld [vmem:[%s1 + $0x1c8] sm:$0xff]
  %v85 = vld [vmem:[%s1 + $0x1d0] sm:$0xff]
  %v86 = vld [vmem:[%s1 + $0x1d8] sm:$0xff]
  %v87 = vld [vmem:[%s1 + $0x1e0] sm:$0xff]
  %v88 = vld [vmem:[%s1 + $0x1e8] sm:$0xff]
  %v89 = vld [vmem:[%s1 + $0x1f0] sm:$0xff]
  %v90 = vld [vmem:[%s1 + $0x1f8] sm:$0xff]
  %v91 = vld [vmem:[%s3] sm:$0xf]
  %v93 = vlaneseq
  %v94 = vshrl.u32 %v93, 7
  %v95 = vsub.s32 0, %v94
  %v96 = vrot.slane %v91, %v95
  %v97 = vlaneseq
  %v98 = vshrl.u32 %v97, 7
  %v99 = vsub.s32 1, %v98
  %v100 = vrot.slane %v91, %v99
  %v101 = vlaneseq
  %v102 = vshrl.u32 %v101, 7
  %v103 = vsub.s32 2, %v102
  %v104 = vrot.slane %v91, %v103
  %v105 = vlaneseq
  %v106 = vshrl.u32 %v105, 7
  %v107 = vsub.s32 3, %v106
  %v108 = vrot.slane %v91, %v107
  %113 = vmatprep.subr.mxu0 %v28
  %114 = vmatpush1.msra.mxu0 %v27
  %115 = vmatprep.subr.mxu0 %v32
  %116 = vmatpush1.msra.mxu0 %v31
  %117 = vmatprep.subr.mxu0 %v36
  %118 = vmatpush1.msra.mxu0 %v35
  %119 = vmatprep.subr.mxu0 %v40
  %120 = vmatpush1.msra.mxu0 %v39
  %121 = vmatprep.subr.mxu0 %v44
  %122 = vmatpush1.msra.mxu0 %v43
  %123 = vmatprep.subr.mxu0 %v48
  %124 = vmatpush1.msra.mxu0 %v47
  %125 = vmatprep.subr.mxu0 %v52
  %126 = vmatpush1.msra.mxu0 %v51
  %127 = vmatprep.subr.mxu0 %v56
  %128 = vmatpush1.msra.mxu0 %v55
  %129 = vmatprep.subr.mxu0 %v60
  %130 = vmatpush1.msra.mxu0 %v59
  %131 = vmatprep.subr.mxu0 %v64
  %132 = vmatpush1.msra.mxu0 %v63
  %133 = vmatprep.subr.mxu0 %v68
  %134 = vmatpush1.msra.mxu0 %v67
  %135 = vmatprep.subr.mxu0 %v72
  %136 = vmatpush1.msra.mxu0 %v71
  %137 = vmatprep.subr.mxu0 %v76
  %138 = vmatpush1.msra.mxu0 %v75
  %139 = vmatprep.subr.mxu0 %v80
  %140 = vmatpush1.msra.mxu0 %v79
  %141 = vmatprep.subr.mxu0 %v84
  %142 = vmatpush1.msra.mxu0 %v83
  %143 = vmatprep.subr.mxu0 %v88
  %144 = vmatpush1.msra.mxu0 %v87
  %145 = vmatprep.subr.mxu0 0.0
  %146 = vmatpush1.msra.mxu0 0.0
  %147 = vmatprep.subr.mxu0 0.0
  %148 = vmatpush1.msra.mxu0 0.0
  %149 = vmatprep.subr.mxu0 0.0
  %150 = vmatpush1.msra.mxu0 0.0
  %151 = vmatprep.subr.mxu0 0.0
  %152 = vmatpush1.msra.mxu0 0.0
  %153 = vmatprep.subr.mxu0 0.0
  %154 = vmatpush1.msra.mxu0 0.0
  %155 = vmatprep.subr.mxu0 0.0
  %156 = vmatpush1.msra.mxu0 0.0
  %157 = vmatprep.subr.mxu0 0.0
  %158 = vmatpush1.msra.mxu0 0.0
  %159 = vmatprep.subr.mxu0 0.0
  %160 = vmatpush1.msra.mxu0 0.0
  %161 = vmatprep.subr.mxu0 0.0
  %162 = vmatpush1.msra.mxu0 0.0
  %163 = vmatprep.subr.mxu0 0.0
  %164 = vmatpush1.msra.mxu0 0.0
  %165 = vmatprep.subr.mxu0 0.0
  %166 = vmatpush1.msra.mxu0 0.0
  %167 = vmatprep.subr.mxu0 0.0
  %168 = vmatpush1.msra.mxu0 0.0
  %169 = vmatprep.subr.mxu0 0.0
  %170 = vmatpush1.msra.mxu0 0.0
  %171 = vmatprep.subr.mxu0 0.0
  %172 = vmatpush1.msra.mxu0 0.0
  %173 = vmatprep.subr.mxu0 0.0
  %174 = vmatpush1.msra.mxu0 0.0
  %175 = vmatprep.subr.mxu0 0.0
  %176 = vmatpush1.msra.mxu0 0.0
  %177 = vmatprep.mubr.f32.mxu0 0.0
  %178 = vmatmul.mubr.f32.gmra.mrb[0].mxu0 %v23
  %v179 = vpop.f32.mrb[0].mxu0
  %v180 = vadd.f32 %v96, %v179
  %v181 = vpop.f32.mrb[0].mxu0
  %v182 = vadd.f32 %v100, %v181
  %183 = vmatprep.mubr.f32.mxu0 0.0
  %184 = vmatmul.mubr.f32.gmra.mrb[0].mxu0 %v24
  %v185 = vpop.f32.mrb[0].mxu0
  %v186 = vadd.f32 %v96, %v185
  %v187 = vpop.f32.mrb[0].mxu0
  %v188 = vadd.f32 %v100, %v187
  %189 = vmatprep.mubr.f32.mxu0 0.0
  %190 = vmatmul.mubr.f32.gmra.mrb[0].mxu0 %v25
  %v191 = vpop.f32.mrb[0].mxu0
  %v192 = vadd.f32 %v96, %v191
  %v193 = vpop.f32.mrb[0].mxu0
  %v194 = vadd.f32 %v100, %v193
  %195 = vmatprep.mubr.f32.mxu0 0.0
  %196 = vmatmul.mubr.f32.gmra.mrb[0].mxu0 %v26
  %v197 = vpop.f32.mrb[0].mxu0
  %v198 = vadd.f32 %v96, %v197
  %v199 = vpop.f32.mrb[0].mxu0
  %v200 = vadd.f32 %v100, %v199
  %201 = vdwg.mxu0
  %202 = vmatprep.subr.mxu0 %v30
  %203 = vmatpush1.msra.mxu0 %v29
  %204 = vmatprep.subr.mxu0 %v34
  %205 = vmatpush1.msra.mxu0 %v33
  %206 = vmatprep.subr.mxu0 %v38
  %207 = vmatpush1.msra.mxu0 %v37
  %208 = vmatprep.subr.mxu0 %v42
  %209 = vmatpush1.msra.mxu0 %v41
  %210 = vmatprep.subr.mxu0 %v46
  %211 = vmatpush1.msra.mxu0 %v45
  %212 = vmatprep.subr.mxu0 %v50
  %213 = vmatpush1.msra.mxu0 %v49
  %214 = vmatprep.subr.mxu0 %v54
  %215 = vmatpush1.msra.mxu0 %v53
  %216 = vmatprep.subr.mxu0 %v58
  %217 = vmatpush1.msra.mxu0 %v57
  %218 = vmatprep.subr.mxu0 %v62
  %219 = vmatpush1.msra.mxu0 %v61
  %220 = vmatprep.subr.mxu0 %v66
  %221 = vmatpush1.msra.mxu0 %v65
  %222 = vmatprep.subr.mxu0 %v70
  %223 = vmatpush1.msra.mxu0 %v69
  %224 = vmatprep.subr.mxu0 %v74
  %225 = vmatpush1.msra.mxu0 %v73
  %226 = vmatprep.subr.mxu0 %v78
  %227 = vmatpush1.msra.mxu0 %v77
  %228 = vmatprep.subr.mxu0 %v82
  %229 = vmatpush1.msra.mxu0 %v81
  %230 = vmatprep.subr.mxu0 %v86
  %231 = vmatpush1.msra.mxu0 %v85
  %232 = vmatprep.subr.mxu0 %v90
  %233 = vmatpush1.msra.mxu0 %v89
  %234 = vmatprep.subr.mxu0 0.0
  %235 = vmatpush1.msra.mxu0 0.0
  %236 = vmatprep.subr.mxu0 0.0
  %237 = vmatpush1.msra.mxu0 0.0
  %238 = vmatprep.subr.mxu0 0.0
  %239 = vmatpush1.msra.mxu0 0.0
  %240 = vmatprep.subr.mxu0 0.0
  %241 = vmatpush1.msra.mxu0 0.0
  %242 = vmatprep.subr.mxu0 0.0
  %243 = vmatpush1.msra.mxu0 0.0
  %244 = vmatprep.subr.mxu0 0.0
  %245 = vmatpush1.msra.mxu0 0.0
  %246 = vmatprep.subr.mxu0 0.0
  %247 = vmatpush1.msra.mxu0 0.0
  %248 = vmatprep.subr.mxu0 0.0
  %249 = vmatpush1.msra.mxu0 0.0
  %250 = vmatprep.subr.mxu0 0.0
  %251 = vmatpush1.msra.mxu0 0.0
  %252 = vmatprep.subr.mxu0 0.0
  %253 = vmatpush1.msra.mxu0 0.0
  %254 = vmatprep.subr.mxu0 0.0
  %255 = vmatpush1.msra.mxu0 0.0
  %256 = vmatprep.subr.mxu0 0.0
  %257 = vmatpush1.msra.mxu0 0.0
  %258 = vmatprep.subr.mxu0 0.0
  %259 = vmatpush1.msra.mxu0 0.0
  %260 = vmatprep.subr.mxu0 0.0
  %261 = vmatpush1.msra.mxu0 0.0
  %262 = vmatprep.subr.mxu0 0.0
  %263 = vmatpush1.msra.mxu0 0.0
  %264 = vmatprep.subr.mxu0 0.0
  %265 = vmatpush1.msra.mxu0 0.0
  %266 = vmatprep.mubr.f32.mxu0 0.0
  %267 = vmatmul.mubr.f32.gmra.mrb[0].mxu0 %v23
  %v268 = vpop.f32.mrb[0].mxu0
  %v269 = vadd.f32 %v104, %v268
  %v270 = vpop.f32.mrb[0].mxu0
  %v271 = vadd.f32 %v108, %v270
  %272 = vmatprep.mubr.f32.mxu0 0.0
  %273 = vmatmul.mubr.f32.gmra.mrb[0].mxu0 %v24
  %v274 = vpop.f32.mrb[0].mxu0
  %v275 = vadd.f32 %v104, %v274
  %v276 = vpop.f32.mrb[0].mxu0
  %v277 = vadd.f32 %v108, %v276
  %278 = vmatprep.mubr.f32.mxu0 0.0
  %279 = vmatmul.mubr.f32.gmra.mrb[0].mxu0 %v25
  %v280 = vpop.f32.mrb[0].mxu0
  %v281 = vadd.f32 %v104, %v280
  %v282 = vpop.f32.mrb[0].mxu0
  %v283 = vadd.f32 %v108, %v282
  %284 = vmatprep.mubr.f32.mxu0 0.0
  %285 = vmatmul.mubr.f32.gmra.mrb[0].mxu0 %v26
  %v286 = vpop.f32.mrb[0].mxu0
  %v287 = vadd.f32 %v104, %v286
  %v288 = vpop.f32.mrb[0].mxu0
  %v289 = vadd.f32 %v108, %v288
  %290 = vdwg.mxu0
  %291 = vst [vmem:[#allocation2] sm:$0xff] %v180
  %292 = vst [vmem:[#allocation2 + $0x8] sm:$0xff] %v182
  %293 = vst [vmem:[#allocation2 + $0x10] sm:$0xff] %v269
  %294 = vst [vmem:[#allocation2 + $0x18] sm:$0xff] %v271
  %295 = vst [vmem:[#allocation2 + $0x20] sm:$0xff] %v186
  %296 = vst [vmem:[#allocation2 + $0x28] sm:$0xff] %v188
  %297 = vst [vmem:[#allocation2 + $0x30] sm:$0xff] %v275
  %298 = vst [vmem:[#allocation2 + $0x38] sm:$0xff] %v277
  %299 = vst [vmem:[#allocation2 + $0x40] sm:$0xff] %v192
  %300 = vst [vmem:[#allocation2 + $0x48] sm:$0xff] %v194
  %301 = vst [vmem:[#allocation2 + $0x50] sm:$0xff] %v281
  %302 = vst [vmem:[#allocation2 + $0x58] sm:$0xff] %v283
  %303 = vst [vmem:[#allocation2 + $0x60] sm:$0xff] %v198
  %304 = vst [vmem:[#allocation2 + $0x68] sm:$0xff] %v200
  %305 = vst [vmem:[#allocation2 + $0x70] sm:$0xff] %v287
  %306 = vst [vmem:[#allocation2 + $0x78] sm:$0xff] %v289
  %v307 = vld [vmem:[#allocation2] sm:$0x3]
  %v308 = vld [vmem:[#allocation2 + $0x8] sm:$0x3]
  %v309 = vld [vmem:[#allocation2 + $0x10] sm:$0x3]
  %v310 = vld [vmem:[#allocation2 + $0x18] sm:$0x3]
  %v311 = vld [vmem:[%s2] sm:$0xff]
  %v312 = vld [vmem:[%s2 + $0x8] sm:$0xff]
  %v313 = vld [vmem:[%s2 + $0x10] sm:$0xff]
  %v314 = vld [vmem:[%s2 + $0x18] sm:$0xff]
  %v315 = vld [vmem:[%s2 + $0x20] sm:$0xff]
  %v316 = vld [vmem:[%s2 + $0x28] sm:$0xff]
  %v317 = vld [vmem:[%s2 + $0x30] sm:$0xff]
  %v318 = vld [vmem:[%s2 + $0x38] sm:$0xff]
  %v319 = vld [vmem:[%s2 + $0x40] sm:$0xff]
  %v320 = vld [vmem:[%s2 + $0x48] sm:$0xff]
  %v321 = vld [vmem:[%s2 + $0x50] sm:$0xff]
  %v322 = vld [vmem:[%s2 + $0x58] sm:$0xff]
  %v323 = vld [vmem:[%s2 + $0x60] sm:$0xff]
  %v324 = vld [vmem:[%s2 + $0x68] sm:$0xff]
  %v325 = vld [vmem:[%s2 + $0x70] sm:$0xff]
  %v326 = vld [vmem:[%s2 + $0x78] sm:$0xff]
  %v327 = vld [vmem:[%s2 + $0x80] sm:$0xff]
  %v328 = vld [vmem:[%s2 + $0x88] sm:$0xff]
  %v329 = vld [vmem:[%s2 + $0x90] sm:$0xff]
  %v330 = vld [vmem:[%s2 + $0x98] sm:$0xff]
  %v331 = vld [vmem:[%s2 + $0xa0] sm:$0xff]
  %v332 = vld [vmem:[%s2 + $0xa8] sm:$0xff]
  %v333 = vld [vmem:[%s2 + $0xb0] sm:$0xff]
  %v334 = vld [vmem:[%s2 + $0xb8] sm:$0xff]
  %v335 = vld [vmem:[%s2 + $0xc0] sm:$0xff]
  %v336 = vld [vmem:[%s2 + $0xc8] sm:$0xff]
  %v337 = vld [vmem:[%s2 + $0xd0] sm:$0xff]
  %v338 = vld [vmem:[%s2 + $0xd8] sm:$0xff]
  %v339 = vld [vmem:[%s2 + $0xe0] sm:$0xff]
  %v340 = vld [vmem:[%s2 + $0xe8] sm:$0xff]
  %v341 = vld [vmem:[%s2 + $0xf0] sm:$0xff]
  %v342 = vld [vmem:[%s2 + $0xf8] sm:$0xff]
  %v343 = vld [vmem:[%s2 + $0x100] sm:$0xff]
  %v344 = vld [vmem:[%s2 + $0x108] sm:$0xff]
  %v345 = vld [vmem:[%s2 + $0x110] sm:$0xff]
  %v346 = vld [vmem:[%s2 + $0x118] sm:$0xff]
  %v347 = vld [vmem:[%s2 + $0x120] sm:$0xff]
  %v348 = vld [vmem:[%s2 + $0x128] sm:$0xff]
  %v349 = vld [vmem:[%s2 + $0x130] sm:$0xff]
  %v350 = vld [vmem:[%s2 + $0x138] sm:$0xff]
  %v351 = vld [vmem:[%s2 + $0x140] sm:$0xff]
  %v352 = vld [vmem:[%s2 + $0x148] sm:$0xff]
  %v353 = vld [vmem:[%s2 + $0x150] sm:$0xff]
  %v354 = vld [vmem:[%s2 + $0x158] sm:$0xff]
  %v355 = vld [vmem:[%s2 + $0x160] sm:$0xff]
  %v356 = vld [vmem:[%s2 + $0x168] sm:$0xff]
  %v357 = vld [vmem:[%s2 + $0x170] sm:$0xff]
  %v358 = vld [vmem:[%s2 + $0x178] sm:$0xff]
  %v359 = vld [vmem:[%s2 + $0x180] sm:$0xff]
  %v360 = vld [vmem:[%s2 + $0x188] sm:$0xff]
  %v361 = vld [vmem:[%s2 + $0x190] sm:$0xff]
  %v362 = vld [vmem:[%s2 + $0x198] sm:$0xff]
  %v363 = vld [vmem:[%s2 + $0x1a0] sm:$0xff]
  %v364 = vld [vmem:[%s2 + $0x1a8] sm:$0xff]
  %v365 = vld [vmem:[%s2 + $0x1b0] sm:$0xff]
  %v366 = vld [vmem:[%s2 + $0x1b8] sm:$0xff]
  %v367 = vld [vmem:[%s2 + $0x1c0] sm:$0xff]
  %v368 = vld [vmem:[%s2 + $0x1c8] sm:$0xff]
  %v369 = vld [vmem:[%s2 + $0x1d0] sm:$0xff]
  %v370 = vld [vmem:[%s2 + $0x1d8] sm:$0xff]
  %v371 = vld [vmem:[%s2 + $0x1e0] sm:$0xff]
  %v372 = vld [vmem:[%s2 + $0x1e8] sm:$0xff]
  %v373 = vld [vmem:[%s2 + $0x1f0] sm:$0xff]
  %v374 = vld [vmem:[%s2 + $0x1f8] sm:$0xff]
  %375 = vmatprep.subr.mxu0 %v312
  %376 = vmatpush1.msra.mxu0 %v311
  %377 = vmatprep.subr.mxu0 %v316
  %378 = vmatpush1.msra.mxu0 %v315
  %379 = vmatprep.subr.mxu0 %v320
  %380 = vmatpush1.msra.mxu0 %v319
  %381 = vmatprep.subr.mxu0 %v324
  %382 = vmatpush1.msra.mxu0 %v323
  %383 = vmatprep.subr.mxu0 %v328
  %384 = vmatpush1.msra.mxu0 %v327
  %385 = vmatprep.subr.mxu0 %v332
  %386 = vmatpush1.msra.mxu0 %v331
  %387 = vmatprep.subr.mxu0 %v336
  %388 = vmatpush1.msra.mxu0 %v335
  %389 = vmatprep.subr.mxu0 %v340
  %390 = vmatpush1.msra.mxu0 %v339
  %391 = vmatprep.subr.mxu0 %v344
  %392 = vmatpush1.msra.mxu0 %v343
  %393 = vmatprep.subr.mxu0 %v348
  %394 = vmatpush1.msra.mxu0 %v347
  %395 = vmatprep.subr.mxu0 %v352
  %396 = vmatpush1.msra.mxu0 %v351
  %397 = vmatprep.subr.mxu0 %v356
  %398 = vmatpush1.msra.mxu0 %v355
  %399 = vmatprep.subr.mxu0 %v360
  %400 = vmatpush1.msra.mxu0 %v359
  %401 = vmatprep.subr.mxu0 %v364
  %402 = vmatpush1.msra.mxu0 %v363
  %403 = vmatprep.subr.mxu0 %v368
  %404 = vmatpush1.msra.mxu0 %v367
  %405 = vmatprep.subr.mxu0 %v372
  %406 = vmatpush1.msra.mxu0 %v371
  %407 = vmatprep.subr.mxu0 0.0
  %408 = vmatpush1.msra.mxu0 0.0
  %409 = vmatprep.subr.mxu0 0.0
  %410 = vmatpush1.msra.mxu0 0.0
  %411 = vmatprep.subr.mxu0 0.0
  %412 = vmatpush1.msra.mxu0 0.0
  %413 = vmatprep.subr.mxu0 0.0
  %414 = vmatpush1.msra.mxu0 0.0
  %415 = vmatprep.subr.mxu0 0.0
  %416 = vmatpush1.msra.mxu0 0.0
  %417 = vmatprep.subr.mxu0 0.0
  %418 = vmatpush1.msra.mxu0 0.0
  %419 = vmatprep.subr.mxu0 0.0
  %420 = vmatpush1.msra.mxu0 0.0
  %421 = vmatprep.subr.mxu0 0.0
  %422 = vmatpush1.msra.mxu0 0.0
  %423 = vmatprep.subr.mxu0 0.0
  %424 = vmatpush1.msra.mxu0 0.0
  %425 = vmatprep.subr.mxu0 0.0
  %426 = vmatpush1.msra.mxu0 0.0
  %427 = vmatprep.subr.mxu0 0.0
  %428 = vmatpush1.msra.mxu0 0.0
  %429 = vmatprep.subr.mxu0 0.0
  %430 = vmatpush1.msra.mxu0 0.0
  %431 = vmatprep.subr.mxu0 0.0
  %432 = vmatpush1.msra.mxu0 0.0
  %433 = vmatprep.subr.mxu0 0.0
  %434 = vmatpush1.msra.mxu0 0.0
  %435 = vmatprep.subr.mxu0 0.0
  %436 = vmatpush1.msra.mxu0 0.0
  %437 = vmatprep.subr.mxu0 0.0
  %438 = vmatpush1.msra.mxu0 0.0
  %439 = vmatprep.mubr.f32.mxu0 0.0
  %440 = vmatmul.mubr.f32.gmra.mrb[0].mxu0 0.0
  %v441 = vpop.f32.mrb[0].mxu0
  %v442 = vadd.f32 0.0, %v441
  %v443 = vpop.f32.mrb[0].mxu0
  %v444 = vadd.f32 0.0, %v443
  %445 = vdwg.mxu0
  %446 = vmatprep.subr.mxu0 %v314
  %447 = vmatpush1.msra.mxu0 %v313
  %448 = vmatprep.subr.mxu0 %v318
  %449 = vmatpush1.msra.mxu0 %v317
  %450 = vmatprep.subr.mxu0 %v322
  %451 = vmatpush1.msra.mxu0 %v321
  %452 = vmatprep.subr.mxu0 %v326
  %453 = vmatpush1.msra.mxu0 %v325
  %454 = vmatprep.subr.mxu0 %v330
  %455 = vmatpush1.msra.mxu0 %v329
  %456 = vmatprep.subr.mxu0 %v334
  %457 = vmatpush1.msra.mxu0 %v333
  %458 = vmatprep.subr.mxu0 %v338
  %459 = vmatpush1.msra.mxu0 %v337
  %460 = vmatprep.subr.mxu0 %v342
  %461 = vmatpush1.msra.mxu0 %v341
  %462 = vmatprep.subr.mxu0 %v346
  %463 = vmatpush1.msra.mxu0 %v345
  %464 = vmatprep.subr.mxu0 %v350
  %465 = vmatpush1.msra.mxu0 %v349
  %466 = vmatprep.subr.mxu0 %v354
  %467 = vmatpush1.msra.mxu0 %v353
  %468 = vmatprep.subr.mxu0 %v358
  %469 = vmatpush1.msra.mxu0 %v357
  %470 = vmatprep.subr.mxu0 %v362
  %471 = vmatpush1.msra.mxu0 %v361
  %472 = vmatprep.subr.mxu0 %v366
  %473 = vmatpush1.msra.mxu0 %v365
  %474 = vmatprep.subr.mxu0 %v370
  %475 = vmatpush1.msra.mxu0 %v369
  %476 = vmatprep.subr.mxu0 %v374
  %477 = vmatpush1.msra.mxu0 %v373
  %478 = vmatprep.subr.mxu0 0.0
  %479 = vmatpush1.msra.mxu0 0.0
  %480 = vmatprep.subr.mxu0 0.0
  %481 = vmatpush1.msra.mxu0 0.0
  %482 = vmatprep.subr.mxu0 0.0
  %483 = vmatpush1.msra.mxu0 0.0
  %484 = vmatprep.subr.mxu0 0.0
  %485 = vmatpush1.msra.mxu0 0.0
  %486 = vmatprep.subr.mxu0 0.0
  %487 = vmatpush1.msra.mxu0 0.0
  %488 = vmatprep.subr.mxu0 0.0
  %489 = vmatpush1.msra.mxu0 0.0
  %490 = vmatprep.subr.mxu0 0.0
  %491 = vmatpush1.msra.mxu0 0.0
  %492 = vmatprep.subr.mxu0 0.0
  %493 = vmatpush1.msra.mxu0 0.0
  %494 = vmatprep.subr.mxu0 0.0
  %495 = vmatpush1.msra.mxu0 0.0
  %496 = vmatprep.subr.mxu0 0.0
  %497 = vmatpush1.msra.mxu0 0.0
  %498 = vmatprep.subr.mxu0 0.0
  %499 = vmatpush1.msra.mxu0 0.0
  %500 = vmatprep.subr.mxu0 0.0
  %501 = vmatpush1.msra.mxu0 0.0
  %502 = vmatprep.subr.mxu0 0.0
  %503 = vmatpush1.msra.mxu0 0.0
  %504 = vmatprep.subr.mxu0 0.0
  %505 = vmatpush1.msra.mxu0 0.0
  %506 = vmatprep.subr.mxu0 0.0
  %507 = vmatpush1.msra.mxu0 0.0
  %508 = vmatprep.subr.mxu0 0.0
  %509 = vmatpush1.msra.mxu0 0.0
  %510 = vmatprep.mubr.f32.mxu0 0.0
  %511 = vmatmul.mubr.f32.gmra.mrb[0].mxu0 0.0
  %v512 = vpop.f32.mrb[0].mxu0
  %v513 = vadd.f32 0.0, %v512
  %v514 = vpop.f32.mrb[0].mxu0
  %v515 = vadd.f32 0.0, %v514
  %516 = vdwg.mxu0
  %v517 = vadd.f32 %v307, %v442
  %v518 = vadd.f32 %v308, %v444
  %v519 = vadd.f32 %v309, %v513
  %v520 = vadd.f32 %v310, %v515
  %v521 = vxor.u32 %v517, 2147483648
  %v522 = vmul.f32 %v521, 1.442695
  %v523 = vpow.pop %v522
  %v524 = vadd.f32 %v523, 1.0
  %v525 = vrcp.pop %v524
  %v526 = vmul.f32 1.0, %v525
  %v527 = vxor.u32 %v518, 2147483648
  %v528 = vmul.f32 %v527, 1.442695
  %v529 = vpow.pop %v528
  %v530 = vadd.f32 %v529, 1.0
  %v531 = vrcp.pop %v530
  %v532 = vmul.f32 1.0, %v531
  %v533 = vtanh.pop %v519
  %v534 = vxor.u32 %v520, 2147483648
  %v535 = vmul.f32 %v534, 1.442695
  %v536 = vpow.pop %v535
  %v537 = vadd.f32 %v536, 1.0
  %v538 = vrcp.pop %v537
  %v539 = vmul.f32 1.0, %v538
  %v540 = vmul.f32 %v532, 0.0
  %v541 = vmul.f32 %v526, %v533
  %v542 = vadd.f32 %v540, %v541
  %v543 = vtanh.pop %v542
  %v544 = vmul.f32 %v539, %v543
  %545 = vst [vmem:[#allocation3] sm:$0x3] %v544
  %v546 = vld [vmem:[#allocation2] sm:$0xc]
  %v547 = vld [vmem:[#allocation2 + $0x8] sm:$0xc]
  %v548 = vld [vmem:[#allocation2 + $0x10] sm:$0xc]
  %v549 = vld [vmem:[#allocation2 + $0x18] sm:$0xc]
  %v550 = vld [vmem:[%s2] sm:$0xff]
  %v551 = vld [vmem:[%s2 + $0x8] sm:$0xff]
  %v552 = vld [vmem:[%s2 + $0x10] sm:$0xff]
  %v553 = vld [vmem:[%s2 + $0x18] sm:$0xff]
  %v554 = vld [vmem:[%s2 + $0x20] sm:$0xff]
  %v555 = vld [vmem:[%s2 + $0x28] sm:$0xff]
  %v556 = vld [vmem:[%s2 + $0x30] sm:$0xff]
  %v557 = vld [vmem:[%s2 + $0x38] sm:$0xff]
  %v558 = vld [vmem:[%s2 + $0x40] sm:$0xff]
  %v559 = vld [vmem:[%s2 + $0x48] sm:$0xff]
  %v560 = vld [vmem:[%s2 + $0x50] sm:$0xff]
  %v561 = vld [vmem:[%s2 + $0x58] sm:$0xff]
  %v562 = vld [vmem:[%s2 + $0x60] sm:$0xff]
  %v563 = vld [vmem:[%s2 + $0x68] sm:$0xff]
  %v564 = vld [vmem:[%s2 + $0x70] sm:$0xff]
  %v565 = vld [vmem:[%s2 + $0x78] sm:$0xff]
  %v566 = vld [vmem:[%s2 + $0x80] sm:$0xff]
  %v567 = vld [vmem:[%s2 + $0x88] sm:$0xff]
  %v568 = vld [vmem:[%s2 + $0x90] sm:$0xff]
  %v569 = vld [vmem:[%s2 + $0x98] sm:$0xff]
  %v570 = vld [vmem:[%s2 + $0xa0] sm:$0xff]
  %v571 = vld [vmem:[%s2 + $0xa8] sm:$0xff]
  %v572 = vld [vmem:[%s2 + $0xb0] sm:$0xff]
  %v573 = vld [vmem:[%s2 + $0xb8] sm:$0xff]
  %v574 = vld [vmem:[%s2 + $0xc0] sm:$0xff]
  %v575 = vld [vmem:[%s2 + $0xc8] sm:$0xff]
  %v576 = vld [vmem:[%s2 + $0xd0] sm:$0xff]
  %v577 = vld [vmem:[%s2 + $0xd8] sm:$0xff]
  %v578 = vld [vmem:[%s2 + $0xe0] sm:$0xff]
  %v579 = vld [vmem:[%s2 + $0xe8] sm:$0xff]
  %v580 = vld [vmem:[%s2 + $0xf0] sm:$0xff]
  %v581 = vld [vmem:[%s2 + $0xf8] sm:$0xff]
  %v582 = vld [vmem:[%s2 + $0x100] sm:$0xff]
  %v583 = vld [vmem:[%s2 + $0x108] sm:$0xff]
  %v584 = vld [vmem:[%s2 + $0x110] sm:$0xff]
  %v585 = vld [vmem:[%s2 + $0x118] sm:$0xff]
  %v586 = vld [vmem:[%s2 + $0x120] sm:$0xff]
  %v587 = vld [vmem:[%s2 + $0x128] sm:$0xff]
  %v588 = vld [vmem:[%s2 + $0x130] sm:$0xff]
  %v589 = vld [vmem:[%s2 + $0x138] sm:$0xff]
  %v590 = vld [vmem:[%s2 + $0x140] sm:$0xff]
  %v591 = vld [vmem:[%s2 + $0x148] sm:$0xff]
  %v592 = vld [vmem:[%s2 + $0x150] sm:$0xff]
  %v593 = vld [vmem:[%s2 + $0x158] sm:$0xff]
  %v594 = vld [vmem:[%s2 + $0x160] sm:$0xff]
  %v595 = vld [vmem:[%s2 + $0x168] sm:$0xff]
  %v596 = vld [vmem:[%s2 + $0x170] sm:$0xff]
  %v597 = vld [vmem:[%s2 + $0x178] sm:$0xff]
  %v598 = vld [vmem:[%s2 + $0x180] sm:$0xff]
  %v599 = vld [vmem:[%s2 + $0x188] sm:$0xff]
  %v600 = vld [vmem:[%s2 + $0x190] sm:$0xff]
  %v601 = vld [vmem:[%s2 + $0x198] sm:$0xff]
  %v602 = vld [vmem:[%s2 + $0x1a0] sm:$0xff]
  %v603 = vld [vmem:[%s2 + $0x1a8] sm:$0xff]
  %v604 = vld [vmem:[%s2 + $0x1b0] sm:$0xff]
  %v605 = vld [vmem:[%s2 + $0x1b8] sm:$0xff]
  %v606 = vld [vmem:[%s2 + $0x1c0] sm:$0xff]
  %v607 = vld [vmem:[%s2 + $0x1c8] sm:$0xff]
  %v608 = vld [vmem:[%s2 + $0x1d0] sm:$0xff]
  %v609 = vld [vmem:[%s2 + $0x1d8] sm:$0xff]
  %v610 = vld [vmem:[%s2 + $0x1e0] sm:$0xff]
  %v611 = vld [vmem:[%s2 + $0x1e8] sm:$0xff]
  %v612 = vld [vmem:[%s2 + $0x1f0] sm:$0xff]
  %v613 = vld [vmem:[%s2 + $0x1f8] sm:$0xff]
  %614 = vmatprep.subr.mxu0 %v551
  %615 = vmatpush1.msra.mxu0 %v550
  %616 = vmatprep.subr.mxu0 %v555
  %617 = vmatpush1.msra.mxu0 %v554
  %618 = vmatprep.subr.mxu0 %v559
  %619 = vmatpush1.msra.mxu0 %v558
  %620 = vmatprep.subr.mxu0 %v563
  %621 = vmatpush1.msra.mxu0 %v562
  %622 = vmatprep.subr.mxu0 %v567
  %623 = vmatpush1.msra.mxu0 %v566
  %624 = vmatprep.subr.mxu0 %v571
  %625 = vmatpush1.msra.mxu0 %v570
  %626 = vmatprep.subr.mxu0 %v575
  %627 = vmatpush1.msra.mxu0 %v574
  %628 = vmatprep.subr.mxu0 %v579
  %629 = vmatpush1.msra.mxu0 %v578
  %630 = vmatprep.subr.mxu0 %v583
  %631 = vmatpush1.msra.mxu0 %v582
  %632 = vmatprep.subr.mxu0 %v587
  %633 = vmatpush1.msra.mxu0 %v586
  %634 = vmatprep.subr.mxu0 %v591
  %635 = vmatpush1.msra.mxu0 %v590
  %636 = vmatprep.subr.mxu0 %v595
  %637 = vmatpush1.msra.mxu0 %v594
  %638 = vmatprep.subr.mxu0 %v599
  %639 = vmatpush1.msra.mxu0 %v598
  %640 = vmatprep.subr.mxu0 %v603
  %641 = vmatpush1.msra.mxu0 %v602
  %642 = vmatprep.subr.mxu0 %v607
  %643 = vmatpush1.msra.mxu0 %v606
  %644 = vmatprep.subr.mxu0 %v611
  %645 = vmatpush1.msra.mxu0 %v610
  %646 = vmatprep.subr.mxu0 0.0
  %647 = vmatpush1.msra.mxu0 0.0
  %648 = vmatprep.subr.mxu0 0.0
  %649 = vmatpush1.msra.mxu0 0.0
  %650 = vmatprep.subr.mxu0 0.0
  %651 = vmatpush1.msra.mxu0 0.0
  %652 = vmatprep.subr.mxu0 0.0
  %653 = vmatpush1.msra.mxu0 0.0
  %654 = vmatprep.subr.mxu0 0.0
  %655 = vmatpush1.msra.mxu0 0.0
  %656 = vmatprep.subr.mxu0 0.0
  %657 = vmatpush1.msra.mxu0 0.0
  %658 = vmatprep.subr.mxu0 0.0
  %659 = vmatpush1.msra.mxu0 0.0
  %660 = vmatprep.subr.mxu0 0.0
  %661 = vmatpush1.msra.mxu0 0.0
  %662 = vmatprep.subr.mxu0 0.0
  %663 = vmatpush1.msra.mxu0 0.0
  %664 = vmatprep.subr.mxu0 0.0
  %665 = vmatpush1.msra.mxu0 0.0
  %666 = vmatprep.subr.mxu0 0.0
  %667 = vmatpush1.msra.mxu0 0.0
  %668 = vmatprep.subr.mxu0 0.0
  %669 = vmatpush1.msra.mxu0 0.0
  %670 = vmatprep.subr.mxu0 0.0
  %671 = vmatpush1.msra.mxu0 0.0
  %672 = vmatprep.subr.mxu0 0.0
  %673 = vmatpush1.msra.mxu0 0.0
  %674 = vmatprep.subr.mxu0 0.0
  %675 = vmatpush1.msra.mxu0 0.0
  %676 = vmatprep.subr.mxu0 0.0
  %677 = vmatpush1.msra.mxu0 0.0
  %678 = vmatprep.mubr.f32.mxu0 0.0
  %679 = vmatmul.mubr.f32.gmra.mrb[0].mxu0 %v544
  %v680 = vpop.f32.mrb[0].mxu0
  %v681 = vadd.f32 0.0, %v680
  %v682 = vpop.f32.mrb[0].mxu0
  %v683 = vadd.f32 0.0, %v682
  %684 = vdwg.mxu0
  %685 = vmatprep.subr.mxu0 %v553
  %686 = vmatpush1.msra.mxu0 %v552
  %687 = vmatprep.subr.mxu0 %v557
  %688 = vmatpush1.msra.mxu0 %v556
  %689 = vmatprep.subr.mxu0 %v561
  %690 = vmatpush1.msra.mxu0 %v560
  %691 = vmatprep.subr.mxu0 %v565
  %692 = vmatpush1.msra.mxu0 %v564
  %693 = vmatprep.subr.mxu0 %v569
  %694 = vmatpush1.msra.mxu0 %v568
  %695 = vmatprep.subr.mxu0 %v573
  %696 = vmatpush1.msra.mxu0 %v572
  %697 = vmatprep.subr.mxu0 %v577
  %698 = vmatpush1.msra.mxu0 %v576
  %699 = vmatprep.subr.mxu0 %v581
  %700 = vmatpush1.msra.mxu0 %v580
  %701 = vmatprep.subr.mxu0 %v585
  %702 = vmatpush1.msra.mxu0 %v584
  %703 = vmatprep.subr.mxu0 %v589
  %704 = vmatpush1.msra.mxu0 %v588
  %705 = vmatprep.subr.mxu0 %v593
  %706 = vmatpush1.msra.mxu0 %v592
  %707 = vmatprep.subr.mxu0 %v597
  %708 = vmatpush1.msra.mxu0 %v596
  %709 = vmatprep.subr.mxu0 %v601
  %710 = vmatpush1.msra.mxu0 %v600
  %711 = vmatprep.subr.mxu0 %v605
  %712 = vmatpush1.msra.mxu0 %v604
  %713 = vmatprep.subr.mxu0 %v609
  %714 = vmatpush1.msra.mxu0 %v608
  %715 = vmatprep.subr.mxu0 %v613
  %716 = vmatpush1.msra.mxu0 %v612
  %717 = vmatprep.subr.mxu0 0.0
  %718 = vmatpush1.msra.mxu0 0.0
  %719 = vmatprep.subr.mxu0 0.0
  %720 = vmatpush1.msra.mxu0 0.0
  %721 = vmatprep.subr.mxu0 0.0
  %722 = vmatpush1.msra.mxu0 0.0
  %723 = vmatprep.subr.mxu0 0.0
  %724 = vmatpush1.msra.mxu0 0.0
  %725 = vmatprep.subr.mxu0 0.0
  %726 = vmatpush1.msra.mxu0 0.0
  %727 = vmatprep.subr.mxu0 0.0
  %728 = vmatpush1.msra.mxu0 0.0
  %729 = vmatprep.subr.mxu0 0.0
  %730 = vmatpush1.msra.mxu0 0.0
  %731 = vmatprep.subr.mxu0 0.0
  %732 = vmatpush1.msra.mxu0 0.0
  %733 = vmatprep.subr.mxu0 0.0
  %734 = vmatpush1.msra.mxu0 0.0
  %735 = vmatprep.subr.mxu0 0.0
  %736 = vmatpush1.msra.mxu0 0.0
  %737 = vmatprep.subr.mxu0 0.0
  %738 = vmatpush1.msra.mxu0 0.0
  %739 = vmatprep.subr.mxu0 0.0
  %740 = vmatpush1.msra.mxu0 0.0
  %741 = vmatprep.subr.mxu0 0.0
  %742 = vmatpush1.msra.mxu0 0.0
  %743 = vmatprep.subr.mxu0 0.0
  %744 = vmatpush1.msra.mxu0 0.0
  %745 = vmatprep.subr.mxu0 0.0
  %746 = vmatpush1.msra.mxu0 0.0
  %747 = vmatprep.subr.mxu0 0.0
  %748 = vmatpush1.msra.mxu0 0.0
  %749 = vmatprep.mubr.f32.mxu0 0.0
  %750 = vmatmul.mubr.f32.gmra.mrb[0].mxu0 %v544
  %v751 = vpop.f32.mrb[0].mxu0
  %v752 = vadd.f32 0.0, %v751
  %v753 = vpop.f32.mrb[0].mxu0
  %v754 = vadd.f32 0.0, %v753
  %755 = vdwg.mxu0
  %v760 = vrot.slane %v681, 6
  %v761 = vrot.slane %v683, 6
  %v762 = vrot.slane %v752, 6
  %v763 = vrot.slane %v754, 6
  %v768 = vadd.f32 %v546, %v760
  %v769 = vadd.f32 %v547, %v761
  %v770 = vadd.f32 %v548, %v762
  %v771 = vadd.f32 %v549, %v763
  %v772 = vxor.u32 %v768, 2147483648
  %v773 = vmul.f32 %v772, 1.442695
  %v774 = vpow.pop %v773
  %v775 = vadd.f32 %v774, 1.0
  %v776 = vrcp.pop %v775
  %v777 = vmul.f32 1.0, %v776
  %v778 = vxor.u32 %v769, 2147483648
  %v779 = vmul.f32 %v778, 1.442695
  %v780 = vpow.pop %v779
  %v781 = vadd.f32 %v780, 1.0
  %v782 = vrcp.pop %v781
  %v783 = vmul.f32 1.0, %v782
  %v784 = vtanh.pop %v770
  %v785 = vxor.u32 %v771, 2147483648
  %v786 = vmul.f32 %v785, 1.442695
  %v787 = vpow.pop %v786
  %v788 = vadd.f32 %v787, 1.0
  %v789 = vrcp.pop %v788
  %v790 = vmul.f32 1.0, %v789
  %v792 = vrot.slane %v542, 6
  %v794 = vmul.f32 %v783, %v792
  %v795 = vmul.f32 %v777, %v784
  %v796 = vadd.f32 %v794, %v795
  %v797 = vtanh.pop %v796
  %v798 = vmul.f32 %v790, %v797
  %799 = vst [vmem:[#allocation3] sm:$0xc] %v798
  %v800 = vld [vmem:[#allocation2] sm:$0x30]
  %v801 = vld [vmem:[#allocation2 + $0x8] sm:$0x30]
  %v802 = vld [vmem:[#allocation2 + $0x10] sm:$0x30]
  %v803 = vld [vmem:[#allocation2 + $0x18] sm:$0x30]
  %v804 = vld [vmem:[%s2] sm:$0xff]
  %v805 = vld [vmem:[%s2 + $0x8] sm:$0xff]
  %v806 = vld [vmem:[%s2 + $0x10] sm:$0xff]
  %v807 = vld [vmem:[%s2 + $0x18] sm:$0xff]
  %v808 = vld [vmem:[%s2 + $0x20] sm:$0xff]
  %v809 = vld [vmem:[%s2 + $0x28] sm:$0xff]
  %v810 = vld [vmem:[%s2 + $0x30] sm:$0xff]
  %v811 = vld [vmem:[%s2 + $0x38] sm:$0xff]
  %v812 = vld [vmem:[%s2 + $0x40] sm:$0xff]
  %v813 = vld [vmem:[%s2 + $0x48] sm:$0xff]
  %v814 = vld [vmem:[%s2 + $0x50] sm:$0xff]
  %v815 = vld [vmem:[%s2 + $0x58] sm:$0xff]
  %v816 = vld [vmem:[%s2 + $0x60] sm:$0xff]
  %v817 = vld [vmem:[%s2 + $0x68] sm:$0xff]
  %v818 = vld [vmem:[%s2 + $0x70] sm:$0xff]
  %v819 = vld [vmem:[%s2 + $0x78] sm:$0xff]
  %v820 = vld [vmem:[%s2 + $0x80] sm:$0xff]
  %v821 = vld [vmem:[%s2 + $0x88] sm:$0xff]
  %v822 = vld [vmem:[%s2 + $0x90] sm:$0xff]
  %v823 = vld [vmem:[%s2 + $0x98] sm:$0xff]
  %v824 = vld [vmem:[%s2 + $0xa0] sm:$0xff]
  %v825 = vld [vmem:[%s2 + $0xa8] sm:$0xff]
  %v826 = vld [vmem:[%s2 + $0xb0] sm:$0xff]
  %v827 = vld [vmem:[%s2 + $0xb8] sm:$0xff]
  %v828 = vld [vmem:[%s2 + $0xc0] sm:$0xff]
  %v829 = vld [vmem:[%s2 + $0xc8] sm:$0xff]
  %v830 = vld [vmem:[%s2 + $0xd0] sm:$0xff]
  %v831 = vld [vmem:[%s2 + $0xd8] sm:$0xff]
  %v832 = vld [vmem:[%s2 + $0xe0] sm:$0xff]
  %v833 = vld [vmem:[%s2 + $0xe8] sm:$0xff]
  %v834 = vld [vmem:[%s2 + $0xf0] sm:$0xff]
  %v835 = vld [vmem:[%s2 + $0xf8] sm:$0xff]
  %v836 = vld [vmem:[%s2 + $0x100] sm:$0xff]
  %v837 = vld [vmem:[%s2 + $0x108] sm:$0xff]
  %v838 = vld [vmem:[%s2 + $0x110] sm:$0xff]
  %v839 = vld [vmem:[%s2 + $0x118] sm:$0xff]
  %v840 = vld [vmem:[%s2 + $0x120] sm:$0xff]
  %v841 = vld [vmem:[%s2 + $0x128] sm:$0xff]
  %v842 = vld [vmem:[%s2 + $0x130] sm:$0xff]
  %v843 = vld [vmem:[%s2 + $0x138] sm:$0xff]
  %v844 = vld [vmem:[%s2 + $0x140] sm:$0xff]
  %v845 = vld [vmem:[%s2 + $0x148] sm:$0xff]
  %v846 = vld [vmem:[%s2 + $0x150] sm:$0xff]
  %v847 = vld [vmem:[%s2 + $0x158] sm:$0xff]
  %v848 = vld [vmem:[%s2 + $0x160] sm:$0xff]
  %v849 = vld [vmem:[%s2 + $0x168] sm:$0xff]
  %v850 = vld [vmem:[%s2 + $0x170] sm:$0xff]
  %v851 = vld [vmem:[%s2 + $0x178] sm:$0xff]
  %v852 = vld [vmem:[%s2 + $0x180] sm:$0xff]
  %v853 = vld [vmem:[%s2 + $0x188] sm:$0xff]
  %v854 = vld [vmem:[%s2 + $0x190] sm:$0xff]
  %v855 = vld [vmem:[%s2 + $0x198] sm:$0xff]
  %v856 = vld [vmem:[%s2 + $0x1a0] sm:$0xff]
  %v857 = vld [vmem:[%s2 + $0x1a8] sm:$0xff]
  %v858 = vld [vmem:[%s2 + $0x1b0] sm:$0xff]
  %v859 = vld [vmem:[%s2 + $0x1b8] sm:$0xff]
  %v860 = vld [vmem:[%s2 + $0x1c0] sm:$0xff]
  %v861 = vld [vmem:[%s2 + $0x1c8] sm:$0xff]
  %v862 = vld [vmem:[%s2 + $0x1d0] sm:$0xff]
  %v863 = vld [vmem:[%s2 + $0x1d8] sm:$0xff]
  %v864 = vld [vmem:[%s2 + $0x1e0] sm:$0xff]
  %v865 = vld [vmem:[%s2 + $0x1e8] sm:$0xff]
  %v866 = vld [vmem:[%s2 + $0x1f0] sm:$0xff]
  %v867 = vld [vmem:[%s2 + $0x1f8] sm:$0xff]
  %v869 = vrot.slane %v798, 2
  %871 = vmatprep.subr.mxu0 %v805
  %872 = vmatpush1.msra.mxu0 %v804
  %873 = vmatprep.subr.mxu0 %v809
  %874 = vmatpush1.msra.mxu0 %v808
  %875 = vmatprep.subr.mxu0 %v813
  %876 = vmatpush1.msra.mxu0 %v812
  %877 = vmatprep.subr.mxu0 %v817
  %878 = vmatpush1.msra.mxu0 %v816
  %879 = vmatprep.subr.mxu0 %v821
  %880 = vmatpush1.msra.mxu0 %v820
  %881 = vmatprep.subr.mxu0 %v825
  %882 = vmatpush1.msra.mxu0 %v824
  %883 = vmatprep.subr.mxu0 %v829
  %884 = vmatpush1.msra.mxu0 %v828
  %885 = vmatprep.subr.mxu0 %v833
  %886 = vmatpush1.msra.mxu0 %v832
  %887 = vmatprep.subr.mxu0 %v837
  %888 = vmatpush1.msra.mxu0 %v836
  %889 = vmatprep.subr.mxu0 %v841
  %890 = vmatpush1.msra.mxu0 %v840
  %891 = vmatprep.subr.mxu0 %v845
  %892 = vmatpush1.msra.mxu0 %v844
  %893 = vmatprep.subr.mxu0 %v849
  %894 = vmatpush1.msra.mxu0 %v848
  %895 = vmatprep.subr.mxu0 %v853
  %896 = vmatpush1.msra.mxu0 %v852
  %897 = vmatprep.subr.mxu0 %v857
  %898 = vmatpush1.msra.mxu0 %v856
  %899 = vmatprep.subr.mxu0 %v861
  %900 = vmatpush1.msra.mxu0 %v860
  %901 = vmatprep.subr.mxu0 %v865
  %902 = vmatpush1.msra.mxu0 %v864
  %903 = vmatprep.subr.mxu0 0.0
  %904 = vmatpush1.msra.mxu0 0.0
  %905 = vmatprep.subr.mxu0 0.0
  %906 = vmatpush1.msra.mxu0 0.0
  %907 = vmatprep.subr.mxu0 0.0
  %908 = vmatpush1.msra.mxu0 0.0
  %909 = vmatprep.subr.mxu0 0.0
  %910 = vmatpush1.msra.mxu0 0.0
  %911 = vmatprep.subr.mxu0 0.0
  %912 = vmatpush1.msra.mxu0 0.0
  %913 = vmatprep.subr.mxu0 0.0
  %914 = vmatpush1.msra.mxu0 0.0
  %915 = vmatprep.subr.mxu0 0.0
  %916 = vmatpush1.msra.mxu0 0.0
  %917 = vmatprep.subr.mxu0 0.0
  %918 = vmatpush1.msra.mxu0 0.0
  %919 = vmatprep.subr.mxu0 0.0
  %920 = vmatpush1.msra.mxu0 0.0
  %921 = vmatprep.subr.mxu0 0.0
  %922 = vmatpush1.msra.mxu0 0.0
  %923 = vmatprep.subr.mxu0 0.0
  %924 = vmatpush1.msra.mxu0 0.0
  %925 = vmatprep.subr.mxu0 0.0
  %926 = vmatpush1.msra.mxu0 0.0
  %927 = vmatprep.subr.mxu0 0.0
  %928 = vmatpush1.msra.mxu0 0.0
  %929 = vmatprep.subr.mxu0 0.0
  %930 = vmatpush1.msra.mxu0 0.0
  %931 = vmatprep.subr.mxu0 0.0
  %932 = vmatpush1.msra.mxu0 0.0
  %933 = vmatprep.subr.mxu0 0.0
  %934 = vmatpush1.msra.mxu0 0.0
  %935 = vmatprep.mubr.f32.mxu0 0.0
  %936 = vmatmul.mubr.f32.gmra.mrb[0].mxu0 %v869
  %v937 = vpop.f32.mrb[0].mxu0
  %v938 = vadd.f32 0.0, %v937
  %v939 = vpop.f32.mrb[0].mxu0
  %v940 = vadd.f32 0.0, %v939
  %941 = vdwg.mxu0
  %942 = vmatprep.subr.mxu0 %v807
  %943 = vmatpush1.msra.mxu0 %v806
  %944 = vmatprep.subr.mxu0 %v811
  %945 = vmatpush1.msra.mxu0 %v810
  %946 = vmatprep.subr.mxu0 %v815
  %947 = vmatpush1.msra.mxu0 %v814
  %948 = vmatprep.subr.mxu0 %v819
  %949 = vmatpush1.msra.mxu0 %v818
  %950 = vmatprep.subr.mxu0 %v823
  %951 = vmatpush1.msra.mxu0 %v822
  %952 = vmatprep.subr.mxu0 %v827
  %953 = vmatpush1.msra.mxu0 %v826
  %954 = vmatprep.subr.mxu0 %v831
  %955 = vmatpush1.msra.mxu0 %v830
  %956 = vmatprep.subr.mxu0 %v835
  %957 = vmatpush1.msra.mxu0 %v834
  %958 = vmatprep.subr.mxu0 %v839
  %959 = vmatpush1.msra.mxu0 %v838
  %960 = vmatprep.subr.mxu0 %v843
  %961 = vmatpush1.msra.mxu0 %v842
  %962 = vmatprep.subr.mxu0 %v847
  %963 = vmatpush1.msra.mxu0 %v846
  %964 = vmatprep.subr.mxu0 %v851
  %965 = vmatpush1.msra.mxu0 %v850
  %966 = vmatprep.subr.mxu0 %v855
  %967 = vmatpush1.msra.mxu0 %v854
  %968 = vmatprep.subr.mxu0 %v859
  %969 = vmatpush1.msra.mxu0 %v858
  %970 = vmatprep.subr.mxu0 %v863
  %971 = vmatpush1.msra.mxu0 %v862
  %972 = vmatprep.subr.mxu0 %v867
  %973 = vmatpush1.msra.mxu0 %v866
  %974 = vmatprep.subr.mxu0 0.0
  %975 = vmatpush1.msra.mxu0 0.0
  %976 = vmatprep.subr.mxu0 0.0
  %977 = vmatpush1.msra.mxu0 0.0
  %978 = vmatprep.subr.mxu0 0.0
  %979 = vmatpush1.msra.mxu0 0.0
  %980 = vmatprep.subr.mxu0 0.0
  %981 = vmatpush1.msra.mxu0 0.0
  %982 = vmatprep.subr.mxu0 0.0
  %983 = vmatpush1.msra.mxu0 0.0
  %984 = vmatprep.subr.mxu0 0.0
  %985 = vmatpush1.msra.mxu0 0.0
  %986 = vmatprep.subr.mxu0 0.0
  %987 = vmatpush1.msra.mxu0 0.0
  %988 = vmatprep.subr.mxu0 0.0
  %989 = vmatpush1.msra.mxu0 0.0
  %990 = vmatprep.subr.mxu0 0.0
  %991 = vmatpush1.msra.mxu0 0.0
  %992 = vmatprep.subr.mxu0 0.0
  %993 = vmatpush1.msra.mxu0 0.0
  %994 = vmatprep.subr.mxu0 0.0
  %995 = vmatpush1.msra.mxu0 0.0
  %996 = vmatprep.subr.mxu0 0.0
  %997 = vmatpush1.msra.mxu0 0.0
  %998 = vmatprep.subr.mxu0 0.0
  %999 = vmatpush1.msra.mxu0 0.0
  %1000 = vmatprep.subr.mxu0 0.0
  %1001 = vmatpush1.msra.mxu0 0.0
  %1002 = vmatprep.subr.mxu0 0.0
  %1003 = vmatpush1.msra.mxu0 0.0
  %1004 = vmatprep.subr.mxu0 0.0
  %1005 = vmatpush1.msra.mxu0 0.0
  %1006 = vmatprep.mubr.f32.mxu0 0.0
  %1007 = vmatmul.mubr.f32.gmra.mrb[0].mxu0 %v869
  %v1008 = vpop.f32.mrb[0].mxu0
  %v1009 = vadd.f32 0.0, %v1008
  %v1010 = vpop.f32.mrb[0].mxu0
  %v1011 = vadd.f32 0.0, %v1010
  %1012 = vdwg.mxu0
  %v1017 = vrot.slane %v938, 4
  %v1018 = vrot.slane %v940, 4
  %v1019 = vrot.slane %v1009, 4
  %v1020 = vrot.slane %v1011, 4
  %v1025 = vadd.f32 %v800, %v1017
  %v1026 = vadd.f32 %v801, %v1018
  %v1027 = vadd.f32 %v802, %v1019
  %v1028 = vadd.f32 %v803, %v1020
  %v1029 = vxor.u32 %v1025, 2147483648
  %v1030 = vmul.f32 %v1029, 1.442695
  %v1031 = vpow.pop %v1030
  %v1032 = vadd.f32 %v1031, 1.0
  %v1033 = vrcp.pop %v1032
  %v1034 = vmul.f32 1.0, %v1033
  %v1035 = vxor.u32 %v1026, 2147483648
  %v1036 = vmul.f32 %v1035, 1.442695
  %v1037 = vpow.pop %v1036
  %v1038 = vadd.f32 %v1037, 1.0
  %v1039 = vrcp.pop %v1038
  %v1040 = vmul.f32 1.0, %v1039
  %v1041 = vtanh.pop %v1027
  %v1042 = vxor.u32 %v1028, 2147483648
  %v1043 = vmul.f32 %v1042, 1.442695
  %v1044 = vpow.pop %v1043
  %v1045 = vadd.f32 %v1044, 1.0
  %v1046 = vrcp.pop %v1045
  %v1047 = vmul.f32 1.0, %v1046
  %v1049 = vrot.slane %v796, 6
  %v1051 = vmul.f32 %v1040, %v1049
  %v1052 = vmul.f32 %v1034, %v1041
  %v1053 = vadd.f32 %v1051, %v1052
  %v1054 = vtanh.pop %v1053
  %v1055 = vmul.f32 %v1047, %v1054
  %1056 = vst [vmem:[#allocation3] sm:$0x30] %v1055
  %v1057 = vld [vmem:[#allocation2] sm:$0xc0]
  %v1058 = vld [vmem:[#allocation2 + $0x8] sm:$0xc0]
  %v1059 = vld [vmem:[#allocation2 + $0x10] sm:$0xc0]
  %v1060 = vld [vmem:[#allocation2 + $0x18] sm:$0xc0]
  %v1061 = vld [vmem:[%s2] sm:$0xff]
  %v1062 = vld [vmem:[%s2 + $0x8] sm:$0xff]
  %v1063 = vld [vmem:[%s2 + $0x10] sm:$0xff]
  %v1064 = vld [vmem:[%s2 + $0x18] sm:$0xff]
  %v1065 = vld [vmem:[%s2 + $0x20] sm:$0xff]
  %v1066 = vld [vmem:[%s2 + $0x28] sm:$0xff]
  %v1067 = vld [vmem:[%s2 + $0x30] sm:$0xff]
  %v1068 = vld [vmem:[%s2 + $0x38] sm:$0xff]
  %v1069 = vld [vmem:[%s2 + $0x40] sm:$0xff]
  %v1070 = vld [vmem:[%s2 + $0x48] sm:$0xff]
  %v1071 = vld [vmem:[%s2 + $0x50] sm:$0xff]
  %v1072 = vld [vmem:[%s2 + $0x58] sm:$0xff]
  %v1073 = vld [vmem:[%s2 + $0x60] sm:$0xff]
  %v1074 = vld [vmem:[%s2 + $0x68] sm:$0xff]
  %v1075 = vld [vmem:[%s2 + $0x70] sm:$0xff]
  %v1076 = vld [vmem:[%s2 + $0x78] sm:$0xff]
  %v1077 = vld [vmem:[%s2 + $0x80] sm:$0xff]
  %v1078 = vld [vmem:[%s2 + $0x88] sm:$0xff]
  %v1079 = vld [vmem:[%s2 + $0x90] sm:$0xff]
  %v1080 = vld [vmem:[%s2 + $0x98] sm:$0xff]
  %v1081 = vld [vmem:[%s2 + $0xa0] sm:$0xff]
  %v1082 = vld [vmem:[%s2 + $0xa8] sm:$0xff]
  %v1083 = vld [vmem:[%s2 + $0xb0] sm:$0xff]
  %v1084 = vld [vmem:[%s2 + $0xb8] sm:$0xff]
  %v1085 = vld [vmem:[%s2 + $0xc0] sm:$0xff]
  %v1086 = vld [vmem:[%s2 + $0xc8] sm:$0xff]
  %v1087 = vld [vmem:[%s2 + $0xd0] sm:$0xff]
  %v1088 = vld [vmem:[%s2 + $0xd8] sm:$0xff]
  %v1089 = vld [vmem:[%s2 + $0xe0] sm:$0xff]
  %v1090 = vld [vmem:[%s2 + $0xe8] sm:$0xff]
  %v1091 = vld [vmem:[%s2 + $0xf0] sm:$0xff]
  %v1092 = vld [vmem:[%s2 + $0xf8] sm:$0xff]
  %v1093 = vld [vmem:[%s2 + $0x100] sm:$0xff]
  %v1094 = vld [vmem:[%s2 + $0x108] sm:$0xff]
  %v1095 = vld [vmem:[%s2 + $0x110] sm:$0xff]
  %v1096 = vld [vmem:[%s2 + $0x118] sm:$0xff]
  %v1097 = vld [vmem:[%s2 + $0x120] sm:$0xff]
  %v1098 = vld [vmem:[%s2 + $0x128] sm:$0xff]
  %v1099 = vld [vmem:[%s2 + $0x130] sm:$0xff]
  %v1100 = vld [vmem:[%s2 + $0x138] sm:$0xff]
  %v1101 = vld [vmem:[%s2 + $0x140] sm:$0xff]
  %v1102 = vld [vmem:[%s2 + $0x148] sm:$0xff]
  %v1103 = vld [vmem:[%s2 + $0x150] sm:$0xff]
  %v1104 = vld [vmem:[%s2 + $0x158] sm:$0xff]
  %v1105 = vld [vmem:[%s2 + $0x160] sm:$0xff]
  %v1106 = vld [vmem:[%s2 + $0x168] sm:$0xff]
  %v1107 = vld [vmem:[%s2 + $0x170] sm:$0xff]
  %v1108 = vld [vmem:[%s2 + $0x178] sm:$0xff]
  %v1109 = vld [vmem:[%s2 + $0x180] sm:$0xff]
  %v1110 = vld [vmem:[%s2 + $0x188] sm:$0xff]
  %v1111 = vld [vmem:[%s2 + $0x190] sm:$0xff]
  %v1112 = vld [vmem:[%s2 + $0x198] sm:$0xff]
  %v1113 = vld [vmem:[%s2 + $0x1a0] sm:$0xff]
  %v1114 = vld [vmem:[%s2 + $0x1a8] sm:$0xff]
  %v1115 = vld [vmem:[%s2 + $0x1b0] sm:$0xff]
  %v1116 = vld [vmem:[%s2 + $0x1b8] sm:$0xff]
  %v1117 = vld [vmem:[%s2 + $0x1c0] sm:$0xff]
  %v1118 = vld [vmem:[%s2 + $0x1c8] sm:$0xff]
  %v1119 = vld [vmem:[%s2 + $0x1d0] sm:$0xff]
  %v1120 = vld [vmem:[%s2 + $0x1d8] sm:$0xff]
  %v1121 = vld [vmem:[%s2 + $0x1e0] sm:$0xff]
  %v1122 = vld [vmem:[%s2 + $0x1e8] sm:$0xff]
  %v1123 = vld [vmem:[%s2 + $0x1f0] sm:$0xff]
  %v1124 = vld [vmem:[%s2 + $0x1f8] sm:$0xff]
  %v1126 = vrot.slane %v1055, 4
  %1128 = vmatprep.subr.mxu0 %v1062
  %1129 = vmatpush1.msra.mxu0 %v1061
  %1130 = vmatprep.subr.mxu0 %v1066
  %1131 = vmatpush1.msra.mxu0 %v1065
  %1132 = vmatprep.subr.mxu0 %v1070
  %1133 = vmatpush1.msra.mxu0 %v1069
  %1134 = vmatprep.subr.mxu0 %v1074
  %1135 = vmatpush1.msra.mxu0 %v1073
  %1136 = vmatprep.subr.mxu0 %v1078
  %1137 = vmatpush1.msra.mxu0 %v1077
  %1138 = vmatprep.subr.mxu0 %v1082
  %1139 = vmatpush1.msra.mxu0 %v1081
  %1140 = vmatprep.subr.mxu0 %v1086
  %1141 = vmatpush1.msra.mxu0 %v1085
  %1142 = vmatprep.subr.mxu0 %v1090
  %1143 = vmatpush1.msra.mxu0 %v1089
  %1144 = vmatprep.subr.mxu0 %v1094
  %1145 = vmatpush1.msra.mxu0 %v1093
  %1146 = vmatprep.subr.mxu0 %v1098
  %1147 = vmatpush1.msra.mxu0 %v1097
  %1148 = vmatprep.subr.mxu0 %v1102
  %1149 = vmatpush1.msra.mxu0 %v1101
  %1150 = vmatprep.subr.mxu0 %v1106
  %1151 = vmatpush1.msra.mxu0 %v1105
  %1152 = vmatprep.subr.mxu0 %v1110
  %1153 = vmatpush1.msra.mxu0 %v1109
  %1154 = vmatprep.subr.mxu0 %v1114
  %1155 = vmatpush1.msra.mxu0 %v1113
  %1156 = vmatprep.subr.mxu0 %v1118
  %1157 = vmatpush1.msra.mxu0 %v1117
  %1158 = vmatprep.subr.mxu0 %v1122
  %1159 = vmatpush1.msra.mxu0 %v1121
  %1160 = vmatprep.subr.mxu0 0.0
  %1161 = vmatpush1.msra.mxu0 0.0
  %1162 = vmatprep.subr.mxu0 0.0
  %1163 = vmatpush1.msra.mxu0 0.0
  %1164 = vmatprep.subr.mxu0 0.0
  %1165 = vmatpush1.msra.mxu0 0.0
  %1166 = vmatprep.subr.mxu0 0.0
  %1167 = vmatpush1.msra.mxu0 0.0
  %1168 = vmatprep.subr.mxu0 0.0
  %1169 = vmatpush1.msra.mxu0 0.0
  %1170 = vmatprep.subr.mxu0 0.0
  %1171 = vmatpush1.msra.mxu0 0.0
  %1172 = vmatprep.subr.mxu0 0.0
  %1173 = vmatpush1.msra.mxu0 0.0
  %1174 = vmatprep.subr.mxu0 0.0
  %1175 = vmatpush1.msra.mxu0 0.0
  %1176 = vmatprep.subr.mxu0 0.0
  %1177 = vmatpush1.msra.mxu0 0.0
  %1178 = vmatprep.subr.mxu0 0.0
  %1179 = vmatpush1.msra.mxu0 0.0
  %1180 = vmatprep.subr.mxu0 0.0
  %1181 = vmatpush1.msra.mxu0 0.0
  %1182 = vmatprep.subr.mxu0 0.0
  %1183 = vmatpush1.msra.mxu0 0.0
  %1184 = vmatprep.subr.mxu0 0.0
  %1185 = vmatpush1.msra.mxu0 0.0
  %1186 = vmatprep.subr.mxu0 0.0
  %1187 = vmatpush1.msra.mxu0 0.0
  %1188 = vmatprep.subr.mxu0 0.0
  %1189 = vmatpush1.msra.mxu0 0.0
  %1190 = vmatprep.subr.mxu0 0.0
  %1191 = vmatpush1.msra.mxu0 0.0
  %1192 = vmatprep.mubr.f32.mxu0 0.0
  %1193 = vmatmul.mubr.f32.gmra.mrb[0].mxu0 %v1126
  %v1194 = vpop.f32.mrb[0].mxu0
  %v1195 = vadd.f32 0.0, %v1194
  %v1196 = vpop.f32.mrb[0].mxu0
  %v1197 = vadd.f32 0.0, %v1196
  %1198 = vdwg.mxu0
  %1199 = vmatprep.subr.mxu0 %v1064
  %1200 = vmatpush1.msra.mxu0 %v1063
  %1201 = vmatprep.subr.mxu0 %v1068
  %1202 = vmatpush1.msra.mxu0 %v1067
  %1203 = vmatprep.subr.mxu0 %v1072
  %1204 = vmatpush1.msra.mxu0 %v1071
  %1205 = vmatprep.subr.mxu0 %v1076
  %1206 = vmatpush1.msra.mxu0 %v1075
  %1207 = vmatprep.subr.mxu0 %v1080
  %1208 = vmatpush1.msra.mxu0 %v1079
  %1209 = vmatprep.subr.mxu0 %v1084
  %1210 = vmatpush1.msra.mxu0 %v1083
  %1211 = vmatprep.subr.mxu0 %v1088
  %1212 = vmatpush1.msra.mxu0 %v1087
  %1213 = vmatprep.subr.mxu0 %v1092
  %1214 = vmatpush1.msra.mxu0 %v1091
  %1215 = vmatprep.subr.mxu0 %v1096
  %1216 = vmatpush1.msra.mxu0 %v1095
  %1217 = vmatprep.subr.mxu0 %v1100
  %1218 = vmatpush1.msra.mxu0 %v1099
  %1219 = vmatprep.subr.mxu0 %v1104
  %1220 = vmatpush1.msra.mxu0 %v1103
  %1221 = vmatprep.subr.mxu0 %v1108
  %1222 = vmatpush1.msra.mxu0 %v1107
  %1223 = vmatprep.subr.mxu0 %v1112
  %1224 = vmatpush1.msra.mxu0 %v1111
  %1225 = vmatprep.subr.mxu0 %v1116
  %1226 = vmatpush1.msra.mxu0 %v1115
  %1227 = vmatprep.subr.mxu0 %v1120
  %1228 = vmatpush1.msra.mxu0 %v1119
  %1229 = vmatprep.subr.mxu0 %v1124
  %1230 = vmatpush1.msra.mxu0 %v1123
  %1231 = vmatprep.subr.mxu0 0.0
  %1232 = vmatpush1.msra.mxu0 0.0
  %1233 = vmatprep.subr.mxu0 0.0
  %1234 = vmatpush1.msra.mxu0 0.0
  %1235 = vmatprep.subr.mxu0 0.0
  %1236 = vmatpush1.msra.mxu0 0.0
  %1237 = vmatprep.subr.mxu0 0.0
  %1238 = vmatpush1.msra.mxu0 0.0
  %1239 = vmatprep.subr.mxu0 0.0
  %1240 = vmatpush1.msra.mxu0 0.0
  %1241 = vmatprep.subr.mxu0 0.0
  %1242 = vmatpush1.msra.mxu0 0.0
  %1243 = vmatprep.subr.mxu0 0.0
  %1244 = vmatpush1.msra.mxu0 0.0
  %1245 = vmatprep.subr.mxu0 0.0
  %1246 = vmatpush1.msra.mxu0 0.0
  %1247 = vmatprep.subr.mxu0 0.0
  %1248 = vmatpush1.msra.mxu0 0.0
  %1249 = vmatprep.subr.mxu0 0.0
  %1250 = vmatpush1.msra.mxu0 0.0
  %1251 = vmatprep.subr.mxu0 0.0
  %1252 = vmatpush1.msra.mxu0 0.0
  %1253 = vmatprep.subr.mxu0 0.0
  %1254 = vmatpush1.msra.mxu0 0.0
  %1255 = vmatprep.subr.mxu0 0.0
  %1256 = vmatpush1.msra.mxu0 0.0
  %1257 = vmatprep.subr.mxu0 0.0
  %1258 = vmatpush1.msra.mxu0 0.0
  %1259 = vmatprep.subr.mxu0 0.0
  %1260 = vmatpush1.msra.mxu0 0.0
  %1261 = vmatprep.subr.mxu0 0.0
  %1262 = vmatpush1.msra.mxu0 0.0
  %1263 = vmatprep.mubr.f32.mxu0 0.0
  %1264 = vmatmul.mubr.f32.gmra.mrb[0].mxu0 %v1126
  %v1265 = vpop.f32.mrb[0].mxu0
  %v1266 = vadd.f32 0.0, %v1265
  %v1267 = vpop.f32.mrb[0].mxu0
  %v1268 = vadd.f32 0.0, %v1267
  %1269 = vdwg.mxu0
  %v1274 = vrot.slane %v1195, 2
  %v1275 = vrot.slane %v1197, 2
  %v1276 = vrot.slane %v1266, 2
  %v1277 = vrot.slane %v1268, 2
  %v1282 = vadd.f32 %v1057, %v1274
  %v1283 = vadd.f32 %v1058, %v1275
  %v1284 = vadd.f32 %v1059, %v1276
  %v1285 = vadd.f32 %v1060, %v1277
  %v1286 = vxor.u32 %v1282, 2147483648
  %v1287 = vmul.f32 %v1286, 1.442695
  %v1288 = vpow.pop %v1287
  %v1289 = vadd.f32 %v1288, 1.0
  %v1290 = vrcp.pop %v1289
  %v1291 = vmul.f32 1.0, %v1290
  %v1292 = vxor.u32 %v1283, 2147483648
  %v1293 = vmul.f32 %v1292, 1.442695
  %v1294 = vpow.pop %v1293
  %v1295 = vadd.f32 %v1294, 1.0
  %v1296 = vrcp.pop %v1295
  %v1297 = vmul.f32 1.0, %v1296
  %v1298 = vtanh.pop %v1284
  %v1299 = vxor.u32 %v1285, 2147483648
  %v1300 = vmul.f32 %v1299, 1.442695
  %v1301 = vpow.pop %v1300
  %v1302 = vadd.f32 %v1301, 1.0
  %v1303 = vrcp.pop %v1302
  %v1304 = vmul.f32 1.0, %v1303
  %v1306 = vrot.slane %v1053, 6
  %v1308 = vmul.f32 %v1297, %v1306
  %v1309 = vmul.f32 %v1291, %v1298
  %v1310 = vadd.f32 %v1308, %v1309
  %v1311 = vtanh.pop %v1310
  %v1312 = vmul.f32 %v1304, %v1311
  %1313 = vst [vmem:[#allocation3] sm:$0xc0] %v1312
  %v1314 = vld [vmem:[#allocation2 + $0x20] sm:$0x3]
  %v1315 = vld [vmem:[#allocation2 + $0x28] sm:$0x3]
  %v1316 = vld [vmem:[#allocation2 + $0x30] sm:$0x3]
  %v1317 = vld [vmem:[#allocation2 + $0x38] sm:$0x3]
  %v1318 = vld [vmem:[%s2] sm:$0xff]
  %v1319 = vld [vmem:[%s2 + $0x8] sm:$0xff]
  %v1320 = vld [vmem:[%s2 + $0x10] sm:$0xff]
  %v1321 = vld [vmem:[%s2 + $0x18] sm:$0xff]
  %v1322 = vld [vmem:[%s2 + $0x20] sm:$0xff]
  %v1323 = vld [vmem:[%s2 + $0x28] sm:$0xff]
  %v1324 = vld [vmem:[%s2 + $0x30] sm:$0xff]
  %v1325 = vld [vmem:[%s2 + $0x38] sm:$0xff]
  %v1326 = vld [vmem:[%s2 + $0x40] sm:$0xff]
  %v1327 = vld [vmem:[%s2 + $0x48] sm:$0xff]
  %v1328 = vld [vmem:[%s2 + $0x50] sm:$0xff]
  %v1329 = vld [vmem:[%s2 + $0x58] sm:$0xff]
  %v1330 = vld [vmem:[%s2 + $0x60] sm:$0xff]
  %v1331 = vld [vmem:[%s2 + $0x68] sm:$0xff]
  %v1332 = vld [vmem:[%s2 + $0x70] sm:$0xff]
  %v1333 = vld [vmem:[%s2 + $0x78] sm:$0xff]
  %v1334 = vld [vmem:[%s2 + $0x80] sm:$0xff]
  %v1335 = vld [vmem:[%s2 + $0x88] sm:$0xff]
  %v1336 = vld [vmem:[%s2 + $0x90] sm:$0xff]
  %v1337 = vld [vmem:[%s2 + $0x98] sm:$0xff]
  %v1338 = vld [vmem:[%s2 + $0xa0] sm:$0xff]
  %v1339 = vld [vmem:[%s2 + $0xa8] sm:$0xff]
  %v1340 = vld [vmem:[%s2 + $0xb0] sm:$0xff]
  %v1341 = vld [vmem:[%s2 + $0xb8] sm:$0xff]
  %v1342 = vld [vmem:[%s2 + $0xc0] sm:$0xff]
  %v1343 = vld [vmem:[%s2 + $0xc8] sm:$0xff]
  %v1344 = vld [vmem:[%s2 + $0xd0] sm:$0xff]
  %v1345 = vld [vmem:[%s2 + $0xd8] sm:$0xff]
  %v1346 = vld [vmem:[%s2 + $0xe0] sm:$0xff]
  %v1347 = vld [vmem:[%s2 + $0xe8] sm:$0xff]
  %v1348 = vld [vmem:[%s2 + $0xf0] sm:$0xff]
  %v1349 = vld [vmem:[%s2 + $0xf8] sm:$0xff]
  %v1350 = vld [vmem:[%s2 + $0x100] sm:$0xff]
  %v1351 = vld [vmem:[%s2 + $0x108] sm:$0xff]
  %v1352 = vld [vmem:[%s2 + $0x110] sm:$0xff]
  %v1353 = vld [vmem:[%s2 + $0x118] sm:$0xff]
  %v1354 = vld [vmem:[%s2 + $0x120] sm:$0xff]
  %v1355 = vld [vmem:[%s2 + $0x128] sm:$0xff]
  %v1356 = vld [vmem:[%s2 + $0x130] sm:$0xff]
  %v1357 = vld [vmem:[%s2 + $0x138] sm:$0xff]
  %v1358 = vld [vmem:[%s2 + $0x140] sm:$0xff]
  %v1359 = vld [vmem:[%s2 + $0x148] sm:$0xff]
  %v1360 = vld [vmem:[%s2 + $0x150] sm:$0xff]
  %v1361 = vld [vmem:[%s2 + $0x158] sm:$0xff]
  %v1362 = vld [vmem:[%s2 + $0x160] sm:$0xff]
  %v1363 = vld [vmem:[%s2 + $0x168] sm:$0xff]
  %v1364 = vld [vmem:[%s2 + $0x170] sm:$0xff]
  %v1365 = vld [vmem:[%s2 + $0x178] sm:$0xff]
  %v1366 = vld [vmem:[%s2 + $0x180] sm:$0xff]
  %v1367 = vld [vmem:[%s2 + $0x188] sm:$0xff]
  %v1368 = vld [vmem:[%s2 + $0x190] sm:$0xff]
  %v1369 = vld [vmem:[%s2 + $0x198] sm:$0xff]
  %v1370 = vld [vmem:[%s2 + $0x1a0] sm:$0xff]
  %v1371 = vld [vmem:[%s2 + $0x1a8] sm:$0xff]
  %v1372 = vld [vmem:[%s2 + $0x1b0] sm:$0xff]
  %v1373 = vld [vmem:[%s2 + $0x1b8] sm:$0xff]
  %v1374 = vld [vmem:[%s2 + $0x1c0] sm:$0xff]
  %v1375 = vld [vmem:[%s2 + $0x1c8] sm:$0xff]
  %v1376 = vld [vmem:[%s2 + $0x1d0] sm:$0xff]
  %v1377 = vld [vmem:[%s2 + $0x1d8] sm:$0xff]
  %v1378 = vld [vmem:[%s2 + $0x1e0] sm:$0xff]
  %v1379 = vld [vmem:[%s2 + $0x1e8] sm:$0xff]
  %v1380 = vld [vmem:[%s2 + $0x1f0] sm:$0xff]
  %v1381 = vld [vmem:[%s2 + $0x1f8] sm:$0xff]
  %v1383 = vrot.slane %v1312, 6
  %1385 = vmatprep.subr.mxu0 %v1319
  %1386 = vmatpush1.msra.mxu0 %v1318
  %1387 = vmatprep.subr.mxu0 %v1323
  %1388 = vmatpush1.msra.mxu0 %v1322
  %1389 = vmatprep.subr.mxu0 %v1327
  %1390 = vmatpush1.msra.mxu0 %v1326
  %1391 = vmatprep.subr.mxu0 %v1331
  %1392 = vmatpush1.msra.mxu0 %v1330
  %1393 = vmatprep.subr.mxu0 %v1335
  %1394 = vmatpush1.msra.mxu0 %v1334
  %1395 = vmatprep.subr.mxu0 %v1339
  %1396 = vmatpush1.msra.mxu0 %v1338
  %1397 = vmatprep.subr.mxu0 %v1343
  %1398 = vmatpush1.msra.mxu0 %v1342
  %1399 = vmatprep.subr.mxu0 %v1347
  %1400 = vmatpush1.msra.mxu0 %v1346
  %1401 = vmatprep.subr.mxu0 %v1351
  %1402 = vmatpush1.msra.mxu0 %v1350
  %1403 = vmatprep.subr.mxu0 %v1355
  %1404 = vmatpush1.msra.mxu0 %v1354
  %1405 = vmatprep.subr.mxu0 %v1359
  %1406 = vmatpush1.msra.mxu0 %v1358
  %1407 = vmatprep.subr.mxu0 %v1363
  %1408 = vmatpush1.msra.mxu0 %v1362
  %1409 = vmatprep.subr.mxu0 %v1367
  %1410 = vmatpush1.msra.mxu0 %v1366
  %1411 = vmatprep.subr.mxu0 %v1371
  %1412 = vmatpush1.msra.mxu0 %v1370
  %1413 = vmatprep.subr.mxu0 %v1375
  %1414 = vmatpush1.msra.mxu0 %v1374
  %1415 = vmatprep.subr.mxu0 %v1379
  %1416 = vmatpush1.msra.mxu0 %v1378
  %1417 = vmatprep.subr.mxu0 0.0
  %1418 = vmatpush1.msra.mxu0 0.0
  %1419 = vmatprep.subr.mxu0 0.0
  %1420 = vmatpush1.msra.mxu0 0.0
  %1421 = vmatprep.subr.mxu0 0.0
  %1422 = vmatpush1.msra.mxu0 0.0
  %1423 = vmatprep.subr.mxu0 0.0
  %1424 = vmatpush1.msra.mxu0 0.0
  %1425 = vmatprep.subr.mxu0 0.0
  %1426 = vmatpush1.msra.mxu0 0.0
  %1427 = vmatprep.subr.mxu0 0.0
  %1428 = vmatpush1.msra.mxu0 0.0
  %1429 = vmatprep.subr.mxu0 0.0
  %1430 = vmatpush1.msra.mxu0 0.0
  %1431 = vmatprep.subr.mxu0 0.0
  %1432 = vmatpush1.msra.mxu0 0.0
  %1433 = vmatprep.subr.mxu0 0.0
  %1434 = vmatpush1.msra.mxu0 0.0
  %1435 = vmatprep.subr.mxu0 0.0
  %1436 = vmatpush1.msra.mxu0 0.0
  %1437 = vmatprep.subr.mxu0 0.0
  %1438 = vmatpush1.msra.mxu0 0.0
  %1439 = vmatprep.subr.mxu0 0.0
  %1440 = vmatpush1.msra.mxu0 0.0
  %1441 = vmatprep.subr.mxu0 0.0
  %1442 = vmatpush1.msra.mxu0 0.0
  %1443 = vmatprep.subr.mxu0 0.0
  %1444 = vmatpush1.msra.mxu0 0.0
  %1445 = vmatprep.subr.mxu0 0.0
  %1446 = vmatpush1.msra.mxu0 0.0
  %1447 = vmatprep.subr.mxu0 0.0
  %1448 = vmatpush1.msra.mxu0 0.0
  %1449 = vmatprep.mubr.f32.mxu0 0.0
  %1450 = vmatmul.mubr.f32.gmra.mrb[0].mxu0 %v1383
  %v1451 = vpop.f32.mrb[0].mxu0
  %v1452 = vadd.f32 0.0, %v1451
  %v1453 = vpop.f32.mrb[0].mxu0
  %v1454 = vadd.f32 0.0, %v1453
  %1455 = vdwg.mxu0
  %1456 = vmatprep.subr.mxu0 %v1321
  %1457 = vmatpush1.msra.mxu0 %v1320
  %1458 = vmatprep.subr.mxu0 %v1325
  %1459 = vmatpush1.msra.mxu0 %v1324
  %1460 = vmatprep.subr.mxu0 %v1329
  %1461 = vmatpush1.msra.mxu0 %v1328
  %1462 = vmatprep.subr.mxu0 %v1333
  %1463 = vmatpush1.msra.mxu0 %v1332
  %1464 = vmatprep.subr.mxu0 %v1337
  %1465 = vmatpush1.msra.mxu0 %v1336
  %1466 = vmatprep.subr.mxu0 %v1341
  %1467 = vmatpush1.msra.mxu0 %v1340
  %1468 = vmatprep.subr.mxu0 %v1345
  %1469 = vmatpush1.msra.mxu0 %v1344
  %1470 = vmatprep.subr.mxu0 %v1349
  %1471 = vmatpush1.msra.mxu0 %v1348
  %1472 = vmatprep.subr.mxu0 %v1353
  %1473 = vmatpush1.msra.mxu0 %v1352
  %1474 = vmatprep.subr.mxu0 %v1357
  %1475 = vmatpush1.msra.mxu0 %v1356
  %1476 = vmatprep.subr.mxu0 %v1361
  %1477 = vmatpush1.msra.mxu0 %v1360
  %1478 = vmatprep.subr.mxu0 %v1365
  %1479 = vmatpush1.msra.mxu0 %v1364
  %1480 = vmatprep.subr.mxu0 %v1369
  %1481 = vmatpush1.msra.mxu0 %v1368
  %1482 = vmatprep.subr.mxu0 %v1373
  %1483 = vmatpush1.msra.mxu0 %v1372
  %1484 = vmatprep.subr.mxu0 %v1377
  %1485 = vmatpush1.msra.mxu0 %v1376
  %1486 = vmatprep.subr.mxu0 %v1381
  %1487 = vmatpush1.msra.mxu0 %v1380
  %1488 = vmatprep.subr.mxu0 0.0
  %1489 = vmatpush1.msra.mxu0 0.0
  %1490 = vmatprep.subr.mxu0 0.0
  %1491 = vmatpush1.msra.mxu0 0.0
  %1492 = vmatprep.subr.mxu0 0.0
  %1493 = vmatpush1.msra.mxu0 0.0
  %1494 = vmatprep.subr.mxu0 0.0
  %1495 = vmatpush1.msra.mxu0 0.0
  %1496 = vmatprep.subr.mxu0 0.0
  %1497 = vmatpush1.msra.mxu0 0.0
  %1498 = vmatprep.subr.mxu0 0.0
  %1499 = vmatpush1.msra.mxu0 0.0
  %1500 = vmatprep.subr.mxu0 0.0
  %1501 = vmatpush1.msra.mxu0 0.0
  %1502 = vmatprep.subr.mxu0 0.0
  %1503 = vmatpush1.msra.mxu0 0.0
  %1504 = vmatprep.subr.mxu0 0.0
  %1505 = vmatpush1.msra.mxu0 0.0
  %1506 = vmatprep.subr.mxu0 0.0
  %1507 = vmatpush1.msra.mxu0 0.0
  %1508 = vmatprep.subr.mxu0 0.0
  %1509 = vmatpush1.msra.mxu0 0.0
  %1510 = vmatprep.subr.mxu0 0.0
  %1511 = vmatpush1.msra.mxu0 0.0
  %1512 = vmatprep.subr.mxu0 0.0
  %1513 = vmatpush1.msra.mxu0 0.0
  %1514 = vmatprep.subr.mxu0 0.0
  %1515 = vmatpush1.msra.mxu0 0.0
  %1516 = vmatprep.subr.mxu0 0.0
  %1517 = vmatpush1.msra.mxu0 0.0
  %1518 = vmatprep.subr.mxu0 0.0
  %1519 = vmatpush1.msra.mxu0 0.0
  %1520 = vmatprep.mubr.f32.mxu0 0.0
  %1521 = vmatmul.mubr.f32.gmra.mrb[0].mxu0 %v1383
  %v1522 = vpop.f32.mrb[0].mxu0
  %v1523 = vadd.f32 0.0, %v1522
  %v1524 = vpop.f32.mrb[0].mxu0
  %v1525 = vadd.f32 0.0, %v1524
  %1526 = vdwg.mxu0
  %v1527 = vadd.f32 %v1314, %v1452
  %v1528 = vadd.f32 %v1315, %v1454
  %v1529 = vadd.f32 %v1316, %v1523
  %v1530 = vadd.f32 %v1317, %v1525
  %v1531 = vxor.u32 %v1527, 2147483648
  %v1532 = vmul.f32 %v1531, 1.442695
  %v1533 = vpow.pop %v1532
  %v1534 = vadd.f32 %v1533, 1.0
  %v1535 = vrcp.pop %v1534
  %v1536 = vmul.f32 1.0, %v1535
  %v1537 = vxor.u32 %v1528, 2147483648
  %v1538 = vmul.f32 %v1537, 1.442695
  %v1539 = vpow.pop %v1538
  %v1540 = vadd.f32 %v1539, 1.0
  %v1541 = vrcp.pop %v1540
  %v1542 = vmul.f32 1.0, %v1541
  %v1543 = vtanh.pop %v1529
  %v1544 = vxor.u32 %v1530, 2147483648
  %v1545 = vmul.f32 %v1544, 1.442695
  %v1546 = vpow.pop %v1545
  %v1547 = vadd.f32 %v1546, 1.0
  %v1548 = vrcp.pop %v1547
  %v1549 = vmul.f32 1.0, %v1548
  %v1551 = vrot.slane %v1310, 6
  %v1553 = vmul.f32 %v1542, %v1551
  %v1554 = vmul.f32 %v1536, %v1543
  %v1555 = vadd.f32 %v1553, %v1554
  %v1556 = vtanh.pop %v1555
  %v1557 = vmul.f32 %v1549, %v1556
  %1558 = vst [vmem:[#allocation3 + $0x8] sm:$0x3] %v1557
  %v1559 = vld [vmem:[#allocation2 + $0x20] sm:$0xc]
  %v1560 = vld [vmem:[#allocation2 + $0x28] sm:$0xc]
  %v1561 = vld [vmem:[#allocation2 + $0x30] sm:$0xc]
  %v1562 = vld [vmem:[#allocation2 + $0x38] sm:$0xc]
  %v1563 = vld [vmem:[%s2] sm:$0xff]
  %v1564 = vld [vmem:[%s2 + $0x8] sm:$0xff]
  %v1565 = vld [vmem:[%s2 + $0x10] sm:$0xff]
  %v1566 = vld [vmem:[%s2 + $0x18] sm:$0xff]
  %v1567 = vld [vmem:[%s2 + $0x20] sm:$0xff]
  %v1568 = vld [vmem:[%s2 + $0x28] sm:$0xff]
  %v1569 = vld [vmem:[%s2 + $0x30] sm:$0xff]
  %v1570 = vld [vmem:[%s2 + $0x38] sm:$0xff]
  %v1571 = vld [vmem:[%s2 + $0x40] sm:$0xff]
  %v1572 = vld [vmem:[%s2 + $0x48] sm:$0xff]
  %v1573 = vld [vmem:[%s2 + $0x50] sm:$0xff]
  %v1574 = vld [vmem:[%s2 + $0x58] sm:$0xff]
  %v1575 = vld [vmem:[%s2 + $0x60] sm:$0xff]
  %v1576 = vld [vmem:[%s2 + $0x68] sm:$0xff]
  %v1577 = vld [vmem:[%s2 + $0x70] sm:$0xff]
  %v1578 = vld [vmem:[%s2 + $0x78] sm:$0xff]
  %v1579 = vld [vmem:[%s2 + $0x80] sm:$0xff]
  %v1580 = vld [vmem:[%s2 + $0x88] sm:$0xff]
  %v1581 = vld [vmem:[%s2 + $0x90] sm:$0xff]
  %v1582 = vld [vmem:[%s2 + $0x98] sm:$0xff]
  %v1583 = vld [vmem:[%s2 + $0xa0] sm:$0xff]
  %v1584 = vld [vmem:[%s2 + $0xa8] sm:$0xff]
  %v1585 = vld [vmem:[%s2 + $0xb0] sm:$0xff]
  %v1586 = vld [vmem:[%s2 + $0xb8] sm:$0xff]
  %v1587 = vld [vmem:[%s2 + $0xc0] sm:$0xff]
  %v1588 = vld [vmem:[%s2 + $0xc8] sm:$0xff]
  %v1589 = vld [vmem:[%s2 + $0xd0] sm:$0xff]
  %v1590 = vld [vmem:[%s2 + $0xd8] sm:$0xff]
  %v1591 = vld [vmem:[%s2 + $0xe0] sm:$0xff]
  %v1592 = vld [vmem:[%s2 + $0xe8] sm:$0xff]
  %v1593 = vld [vmem:[%s2 + $0xf0] sm:$0xff]
  %v1594 = vld [vmem:[%s2 + $0xf8] sm:$0xff]
  %v1595 = vld [vmem:[%s2 + $0x100] sm:$0xff]
  %v1596 = vld [vmem:[%s2 + $0x108] sm:$0xff]
  %v1597 = vld [vmem:[%s2 + $0x110] sm:$0xff]
  %v1598 = vld [vmem:[%s2 + $0x118] sm:$0xff]
  %v1599 = vld [vmem:[%s2 + $0x120] sm:$0xff]
  %v1600 = vld [vmem:[%s2 + $0x128] sm:$0xff]
  %v1601 = vld [vmem:[%s2 + $0x130] sm:$0xff]
  %v1602 = vld [vmem:[%s2 + $0x138] sm:$0xff]
  %v1603 = vld [vmem:[%s2 + $0x140] sm:$0xff]
  %v1604 = vld [vmem:[%s2 + $0x148] sm:$0xff]
  %v1605 = vld [vmem:[%s2 + $0x150] sm:$0xff]
  %v1606 = vld [vmem:[%s2 + $0x158] sm:$0xff]
  %v1607 = vld [vmem:[%s2 + $0x160] sm:$0xff]
  %v1608 = vld [vmem:[%s2 + $0x168] sm:$0xff]
  %v1609 = vld [vmem:[%s2 + $0x170] sm:$0xff]
  %v1610 = vld [vmem:[%s2 + $0x178] sm:$0xff]
  %v1611 = vld [vmem:[%s2 + $0x180] sm:$0xff]
  %v1612 = vld [vmem:[%s2 + $0x188] sm:$0xff]
  %v1613 = vld [vmem:[%s2 + $0x190] sm:$0xff]
  %v1614 = vld [vmem:[%s2 + $0x198] sm:$0xff]
  %v1615 = vld [vmem:[%s2 + $0x1a0] sm:$0xff]
  %v1616 = vld [vmem:[%s2 + $0x1a8] sm:$0xff]
  %v1617 = vld [vmem:[%s2 + $0x1b0] sm:$0xff]
  %v1618 = vld [vmem:[%s2 + $0x1b8] sm:$0xff]
  %v1619 = vld [vmem:[%s2 + $0x1c0] sm:$0xff]
  %v1620 = vld [vmem:[%s2 + $0x1c8] sm:$0xff]
  %v1621 = vld [vmem:[%s2 + $0x1d0] sm:$0xff]
  %v1622 = vld [vmem:[%s2 + $0x1d8] sm:$0xff]
  %v1623 = vld [vmem:[%s2 + $0x1e0] sm:$0xff]
  %v1624 = vld [vmem:[%s2 + $0x1e8] sm:$0xff]
  %v1625 = vld [vmem:[%s2 + $0x1f0] sm:$0xff]
  %v1626 = vld [vmem:[%s2 + $0x1f8] sm:$0xff]
  %1627 = vmatprep.subr.mxu0 %v1564
  %1628 = vmatpush1.msra.mxu0 %v1563
  %1629 = vmatprep.subr.mxu0 %v1568
  %1630 = vmatpush1.msra.mxu0 %v1567
  %1631 = vmatprep.subr.mxu0 %v1572
  %1632 = vmatpush1.msra.mxu0 %v1571
  %1633 = vmatprep.subr.mxu0 %v1576
  %1634 = vmatpush1.msra.mxu0 %v1575
  %1635 = vmatprep.subr.mxu0 %v1580
  %1636 = vmatpush1.msra.mxu0 %v1579
  %1637 = vmatprep.subr.mxu0 %v1584
  %1638 = vmatpush1.msra.mxu0 %v1583
  %1639 = vmatprep.subr.mxu0 %v1588
  %1640 = vmatpush1.msra.mxu0 %v1587
  %1641 = vmatprep.subr.mxu0 %v1592
  %1642 = vmatpush1.msra.mxu0 %v1591
  %1643 = vmatprep.subr.mxu0 %v1596
  %1644 = vmatpush1.msra.mxu0 %v1595
  %1645 = vmatprep.subr.mxu0 %v1600
  %1646 = vmatpush1.msra.mxu0 %v1599
  %1647 = vmatprep.subr.mxu0 %v1604
  %1648 = vmatpush1.msra.mxu0 %v1603
  %1649 = vmatprep.subr.mxu0 %v1608
  %1650 = vmatpush1.msra.mxu0 %v1607
  %1651 = vmatprep.subr.mxu0 %v1612
  %1652 = vmatpush1.msra.mxu0 %v1611
  %1653 = vmatprep.subr.mxu0 %v1616
  %1654 = vmatpush1.msra.mxu0 %v1615
  %1655 = vmatprep.subr.mxu0 %v1620
  %1656 = vmatpush1.msra.mxu0 %v1619
  %1657 = vmatprep.subr.mxu0 %v1624
  %1658 = vmatpush1.msra.mxu0 %v1623
  %1659 = vmatprep.subr.mxu0 0.0
  %1660 = vmatpush1.msra.mxu0 0.0
  %1661 = vmatprep.subr.mxu0 0.0
  %1662 = vmatpush1.msra.mxu0 0.0
  %1663 = vmatprep.subr.mxu0 0.0
  %1664 = vmatpush1.msra.mxu0 0.0
  %1665 = vmatprep.subr.mxu0 0.0
  %1666 = vmatpush1.msra.mxu0 0.0
  %1667 = vmatprep.subr.mxu0 0.0
  %1668 = vmatpush1.msra.mxu0 0.0
  %1669 = vmatprep.subr.mxu0 0.0
  %1670 = vmatpush1.msra.mxu0 0.0
  %1671 = vmatprep.subr.mxu0 0.0
  %1672 = vmatpush1.msra.mxu0 0.0
  %1673 = vmatprep.subr.mxu0 0.0
  %1674 = vmatpush1.msra.mxu0 0.0
  %1675 = vmatprep.subr.mxu0 0.0
  %1676 = vmatpush1.msra.mxu0 0.0
  %1677 = vmatprep.subr.mxu0 0.0
  %1678 = vmatpush1.msra.mxu0 0.0
  %1679 = vmatprep.subr.mxu0 0.0
  %1680 = vmatpush1.msra.mxu0 0.0
  %1681 = vmatprep.subr.mxu0 0.0
  %1682 = vmatpush1.msra.mxu0 0.0
  %1683 = vmatprep.subr.mxu0 0.0
  %1684 = vmatpush1.msra.mxu0 0.0
  %1685 = vmatprep.subr.mxu0 0.0
  %1686 = vmatpush1.msra.mxu0 0.0
  %1687 = vmatprep.subr.mxu0 0.0
  %1688 = vmatpush1.msra.mxu0 0.0
  %1689 = vmatprep.subr.mxu0 0.0
  %1690 = vmatpush1.msra.mxu0 0.0
  %1691 = vmatprep.mubr.f32.mxu0 0.0
  %1692 = vmatmul.mubr.f32.gmra.mrb[0].mxu0 %v1557
  %v1693 = vpop.f32.mrb[0].mxu0
  %v1694 = vadd.f32 0.0, %v1693
  %v1695 = vpop.f32.mrb[0].mxu0
  %v1696 = vadd.f32 0.0, %v1695
  %1697 = vdwg.mxu0
  %1698 = vmatprep.subr.mxu0 %v1566
  %1699 = vmatpush1.msra.mxu0 %v1565
  %1700 = vmatprep.subr.mxu0 %v1570
  %1701 = vmatpush1.msra.mxu0 %v1569
  %1702 = vmatprep.subr.mxu0 %v1574
  %1703 = vmatpush1.msra.mxu0 %v1573
  %1704 = vmatprep.subr.mxu0 %v1578
  %1705 = vmatpush1.msra.mxu0 %v1577
  %1706 = vmatprep.subr.mxu0 %v1582
  %1707 = vmatpush1.msra.mxu0 %v1581
  %1708 = vmatprep.subr.mxu0 %v1586
  %1709 = vmatpush1.msra.mxu0 %v1585
  %1710 = vmatprep.subr.mxu0 %v1590
  %1711 = vmatpush1.msra.mxu0 %v1589
  %1712 = vmatprep.subr.mxu0 %v1594
  %1713 = vmatpush1.msra.mxu0 %v1593
  %1714 = vmatprep.subr.mxu0 %v1598
  %1715 = vmatpush1.msra.mxu0 %v1597
  %1716 = vmatprep.subr.mxu0 %v1602
  %1717 = vmatpush1.msra.mxu0 %v1601
  %1718 = vmatprep.subr.mxu0 %v1606
  %1719 = vmatpush1.msra.mxu0 %v1605
  %1720 = vmatprep.subr.mxu0 %v1610
  %1721 = vmatpush1.msra.mxu0 %v1609
  %1722 = vmatprep.subr.mxu0 %v1614
  %1723 = vmatpush1.msra.mxu0 %v1613
  %1724 = vmatprep.subr.mxu0 %v1618
  %1725 = vmatpush1.msra.mxu0 %v1617
  %1726 = vmatprep.subr.mxu0 %v1622
  %1727 = vmatpush1.msra.mxu0 %v1621
  %1728 = vmatprep.subr.mxu0 %v1626
  %1729 = vmatpush1.msra.mxu0 %v1625
  %1730 = vmatprep.subr.mxu0 0.0
  %1731 = vmatpush1.msra.mxu0 0.0
  %1732 = vmatprep.subr.mxu0 0.0
  %1733 = vmatpush1.msra.mxu0 0.0
  %1734 = vmatprep.subr.mxu0 0.0
  %1735 = vmatpush1.msra.mxu0 0.0
  %1736 = vmatprep.subr.mxu0 0.0
  %1737 = vmatpush1.msra.mxu0 0.0
  %1738 = vmatprep.subr.mxu0 0.0
  %1739 = vmatpush1.msra.mxu0 0.0
  %1740 = vmatprep.subr.mxu0 0.0
  %1741 = vmatpush1.msra.mxu0 0.0
  %1742 = vmatprep.subr.mxu0 0.0
  %1743 = vmatpush1.msra.mxu0 0.0
  %1744 = vmatprep.subr.mxu0 0.0
  %1745 = vmatpush1.msra.mxu0 0.0
  %1746 = vmatprep.subr.mxu0 0.0
  %1747 = vmatpush1.msra.mxu0 0.0
  %1748 = vmatprep.subr.mxu0 0.0
  %1749 = vmatpush1.msra.mxu0 0.0
  %1750 = vmatprep.subr.mxu0 0.0
  %1751 = vmatpush1.msra.mxu0 0.0
  %1752 = vmatprep.subr.mxu0 0.0
  %1753 = vmatpush1.msra.mxu0 0.0
  %1754 = vmatprep.subr.mxu0 0.0
  %1755 = vmatpush1.msra.mxu0 0.0
  %1756 = vmatprep.subr.mxu0 0.0
  %1757 = vmatpush1.msra.mxu0 0.0
  %1758 = vmatprep.subr.mxu0 0.0
  %1759 = vmatpush1.msra.mxu0 0.0
  %1760 = vmatprep.subr.mxu0 0.0
  %1761 = vmatpush1.msra.mxu0 0.0
  %1762 = vmatprep.mubr.f32.mxu0 0.0
  %1763 = vmatmul.mubr.f32.gmra.mrb[0].mxu0 %v1557
  %v1764 = vpop.f32.mrb[0].mxu0
  %v1765 = vadd.f32 0.0, %v1764
  %v1766 = vpop.f32.mrb[0].mxu0
  %v1767 = vadd.f32 0.0, %v1766
  %1768 = vdwg.mxu0
  %v1773 = vrot.slane %v1694, 6
  %v1774 = vrot.slane %v1696, 6
  %v1775 = vrot.slane %v1765, 6
  %v1776 = vrot.slane %v1767, 6
  %v1781 = vadd.f32 %v1559, %v1773
  %v1782 = vadd.f32 %v1560, %v1774
  %v1783 = vadd.f32 %v1561, %v1775
  %v1784 = vadd.f32 %v1562, %v1776
  %v1785 = vxor.u32 %v1781, 2147483648
  %v1786 = vmul.f32 %v1785, 1.442695
  %v1787 = vpow.pop %v1786
  %v1788 = vadd.f32 %v1787, 1.0
  %v1789 = vrcp.pop %v1788
  %v1790 = vmul.f32 1.0, %v1789
  %v1791 = vxor.u32 %v1782, 2147483648
  %v1792 = vmul.f32 %v1791, 1.442695
  %v1793 = vpow.pop %v1792
  %v1794 = vadd.f32 %v1793, 1.0
  %v1795 = vrcp.pop %v1794
  %v1796 = vmul.f32 1.0, %v1795
  %v1797 = vtanh.pop %v1783
  %v1798 = vxor.u32 %v1784, 2147483648
  %v1799 = vmul.f32 %v1798, 1.442695
  %v1800 = vpow.pop %v1799
  %v1801 = vadd.f32 %v1800, 1.0
  %v1802 = vrcp.pop %v1801
  %v1803 = vmul.f32 1.0, %v1802
  %v1805 = vrot.slane %v1555, 6
  %v1807 = vmul.f32 %v1796, %v1805
  %v1808 = vmul.f32 %v1790, %v1797
  %v1809 = vadd.f32 %v1807, %v1808
  %v1810 = vtanh.pop %v1809
  %v1811 = vmul.f32 %v1803, %v1810
  %1812 = vst [vmem:[#allocation3 + $0x8] sm:$0xc] %v1811
  %v1813 = vld [vmem:[#allocation2 + $0x20] sm:$0x30]
  %v1814 = vld [vmem:[#allocation2 + $0x28] sm:$0x30]
  %v1815 = vld [vmem:[#allocation2 + $0x30] sm:$0x30]
  %v1816 = vld [vmem:[#allocation2 + $0x38] sm:$0x30]
  %v1817 = vld [vmem:[%s2] sm:$0xff]
  %v1818 = vld [vmem:[%s2 + $0x8] sm:$0xff]
  %v1819 = vld [vmem:[%s2 + $0x10] sm:$0xff]
  %v1820 = vld [vmem:[%s2 + $0x18] sm:$0xff]
  %v1821 = vld [vmem:[%s2 + $0x20] sm:$0xff]
  %v1822 = vld [vmem:[%s2 + $0x28] sm:$0xff]
  %v1823 = vld [vmem:[%s2 + $0x30] sm:$0xff]
  %v1824 = vld [vmem:[%s2 + $0x38] sm:$0xff]
  %v1825 = vld [vmem:[%s2 + $0x40] sm:$0xff]
  %v1826 = vld [vmem:[%s2 + $0x48] sm:$0xff]
  %v1827 = vld [vmem:[%s2 + $0x50] sm:$0xff]
  %v1828 = vld [vmem:[%s2 + $0x58] sm:$0xff]
  %v1829 = vld [vmem:[%s2 + $0x60] sm:$0xff]
  %v1830 = vld [vmem:[%s2 + $0x68] sm:$0xff]
  %v1831 = vld [vmem:[%s2 + $0x70] sm:$0xff]
  %v1832 = vld [vmem:[%s2 + $0x78] sm:$0xff]
  %v1833 = vld [vmem:[%s2 + $0x80] sm:$0xff]
  %v1834 = vld [vmem:[%s2 + $0x88] sm:$0xff]
  %v1835 = vld [vmem:[%s2 + $0x90] sm:$0xff]
  %v1836 = vld [vmem:[%s2 + $0x98] sm:$0xff]
  %v1837 = vld [vmem:[%s2 + $0xa0] sm:$0xff]
  %v1838 = vld [vmem:[%s2 + $0xa8] sm:$0xff]
  %v1839 = vld [vmem:[%s2 + $0xb0] sm:$0xff]
  %v1840 = vld [vmem:[%s2 + $0xb8] sm:$0xff]
  %v1841 = vld [vmem:[%s2 + $0xc0] sm:$0xff]
  %v1842 = vld [vmem:[%s2 + $0xc8] sm:$0xff]
  %v1843 = vld [vmem:[%s2 + $0xd0] sm:$0xff]
  %v1844 = vld [vmem:[%s2 + $0xd8] sm:$0xff]
  %v1845 = vld [vmem:[%s2 + $0xe0] sm:$0xff]
  %v1846 = vld [vmem:[%s2 + $0xe8] sm:$0xff]
  %v1847 = vld [vmem:[%s2 + $0xf0] sm:$0xff]
  %v1848 = vld [vmem:[%s2 + $0xf8] sm:$0xff]
  %v1849 = vld [vmem:[%s2 + $0x100] sm:$0xff]
  %v1850 = vld [vmem:[%s2 + $0x108] sm:$0xff]
  %v1851 = vld [vmem:[%s2 + $0x110] sm:$0xff]
  %v1852 = vld [vmem:[%s2 + $0x118] sm:$0xff]
  %v1853 = vld [vmem:[%s2 + $0x120] sm:$0xff]
  %v1854 = vld [vmem:[%s2 + $0x128] sm:$0xff]
  %v1855 = vld [vmem:[%s2 + $0x130] sm:$0xff]
  %v1856 = vld [vmem:[%s2 + $0x138] sm:$0xff]
  %v1857 = vld [vmem:[%s2 + $0x140] sm:$0xff]
  %v1858 = vld [vmem:[%s2 + $0x148] sm:$0xff]
  %v1859 = vld [vmem:[%s2 + $0x150] sm:$0xff]
  %v1860 = vld [vmem:[%s2 + $0x158] sm:$0xff]
  %v1861 = vld [vmem:[%s2 + $0x160] sm:$0xff]
  %v1862 = vld [vmem:[%s2 + $0x168] sm:$0xff]
  %v1863 = vld [vmem:[%s2 + $0x170] sm:$0xff]
  %v1864 = vld [vmem:[%s2 + $0x178] sm:$0xff]
  %v1865 = vld [vmem:[%s2 + $0x180] sm:$0xff]
  %v1866 = vld [vmem:[%s2 + $0x188] sm:$0xff]
  %v1867 = vld [vmem:[%s2 + $0x190] sm:$0xff]
  %v1868 = vld [vmem:[%s2 + $0x198] sm:$0xff]
  %v1869 = vld [vmem:[%s2 + $0x1a0] sm:$0xff]
  %v1870 = vld [vmem:[%s2 + $0x1a8] sm:$0xff]
  %v1871 = vld [vmem:[%s2 + $0x1b0] sm:$0xff]
  %v1872 = vld [vmem:[%s2 + $0x1b8] sm:$0xff]
  %v1873 = vld [vmem:[%s2 + $0x1c0] sm:$0xff]
  %v1874 = vld [vmem:[%s2 + $0x1c8] sm:$0xff]
  %v1875 = vld [vmem:[%s2 + $0x1d0] sm:$0xff]
  %v1876 = vld [vmem:[%s2 + $0x1d8] sm:$0xff]
  %v1877 = vld [vmem:[%s2 + $0x1e0] sm:$0xff]
  %v1878 = vld [vmem:[%s2 + $0x1e8] sm:$0xff]
  %v1879 = vld [vmem:[%s2 + $0x1f0] sm:$0xff]
  %v1880 = vld [vmem:[%s2 + $0x1f8] sm:$0xff]
  %v1882 = vrot.slane %v1811, 2
  %1884 = vmatprep.subr.mxu0 %v1818
  %1885 = vmatpush1.msra.mxu0 %v1817
  %1886 = vmatprep.subr.mxu0 %v1822
  %1887 = vmatpush1.msra.mxu0 %v1821
  %1888 = vmatprep.subr.mxu0 %v1826
  %1889 = vmatpush1.msra.mxu0 %v1825
  %1890 = vmatprep.subr.mxu0 %v1830
  %1891 = vmatpush1.msra.mxu0 %v1829
  %1892 = vmatprep.subr.mxu0 %v1834
  %1893 = vmatpush1.msra.mxu0 %v1833
  %1894 = vmatprep.subr.mxu0 %v1838
  %1895 = vmatpush1.msra.mxu0 %v1837
  %1896 = vmatprep.subr.mxu0 %v1842
  %1897 = vmatpush1.msra.mxu0 %v1841
  %1898 = vmatprep.subr.mxu0 %v1846
  %1899 = vmatpush1.msra.mxu0 %v1845
  %1900 = vmatprep.subr.mxu0 %v1850
  %1901 = vmatpush1.msra.mxu0 %v1849
  %1902 = vmatprep.subr.mxu0 %v1854
  %1903 = vmatpush1.msra.mxu0 %v1853
  %1904 = vmatprep.subr.mxu0 %v1858
  %1905 = vmatpush1.msra.mxu0 %v1857
  %1906 = vmatprep.subr.mxu0 %v1862
  %1907 = vmatpush1.msra.mxu0 %v1861
  %1908 = vmatprep.subr.mxu0 %v1866
  %1909 = vmatpush1.msra.mxu0 %v1865
  %1910 = vmatprep.subr.mxu0 %v1870
  %1911 = vmatpush1.msra.mxu0 %v1869
  %1912 = vmatprep.subr.mxu0 %v1874
  %1913 = vmatpush1.msra.mxu0 %v1873
  %1914 = vmatprep.subr.mxu0 %v1878
  %1915 = vmatpush1.msra.mxu0 %v1877
  %1916 = vmatprep.subr.mxu0 0.0
  %1917 = vmatpush1.msra.mxu0 0.0
  %1918 = vmatprep.subr.mxu0 0.0
  %1919 = vmatpush1.msra.mxu0 0.0
  %1920 = vmatprep.subr.mxu0 0.0
  %1921 = vmatpush1.msra.mxu0 0.0
  %1922 = vmatprep.subr.mxu0 0.0
  %1923 = vmatpush1.msra.mxu0 0.0
  %1924 = vmatprep.subr.mxu0 0.0
  %1925 = vmatpush1.msra.mxu0 0.0
  %1926 = vmatprep.subr.mxu0 0.0
  %1927 = vmatpush1.msra.mxu0 0.0
  %1928 = vmatprep.subr.mxu0 0.0
  %1929 = vmatpush1.msra.mxu0 0.0
  %1930 = vmatprep.subr.mxu0 0.0
  %1931 = vmatpush1.msra.mxu0 0.0
  %1932 = vmatprep.subr.mxu0 0.0
  %1933 = vmatpush1.msra.mxu0 0.0
  %1934 = vmatprep.subr.mxu0 0.0
  %1935 = vmatpush1.msra.mxu0 0.0
  %1936 = vmatprep.subr.mxu0 0.0
  %1937 = vmatpush1.msra.mxu0 0.0
  %1938 = vmatprep.subr.mxu0 0.0
  %1939 = vmatpush1.msra.mxu0 0.0
  %1940 = vmatprep.subr.mxu0 0.0
  %1941 = vmatpush1.msra.mxu0 0.0
  %1942 = vmatprep.subr.mxu0 0.0
  %1943 = vmatpush1.msra.mxu0 0.0
  %1944 = vmatprep.subr.mxu0 0.0
  %1945 = vmatpush1.msra.mxu0 0.0
  %1946 = vmatprep.subr.mxu0 0.0
  %1947 = vmatpush1.msra.mxu0 0.0
  %1948 = vmatprep.mubr.f32.mxu0 0.0
  %1949 = vmatmul.mubr.f32.gmra.mrb[0].mxu0 %v1882
  %v1950 = vpop.f32.mrb[0].mxu0
  %v1951 = vadd.f32 0.0, %v1950
  %v1952 = vpop.f32.mrb[0].mxu0
  %v1953 = vadd.f32 0.0, %v1952
  %1954 = vdwg.mxu0
  %1955 = vmatprep.subr.mxu0 %v1820
  %1956 = vmatpush1.msra.mxu0 %v1819
  %1957 = vmatprep.subr.mxu0 %v1824
  %1958 = vmatpush1.msra.mxu0 %v1823
  %1959 = vmatprep.subr.mxu0 %v1828
  %1960 = vmatpush1.msra.mxu0 %v1827
  %1961 = vmatprep.subr.mxu0 %v1832
  %1962 = vmatpush1.msra.mxu0 %v1831
  %1963 = vmatprep.subr.mxu0 %v1836
  %1964 = vmatpush1.msra.mxu0 %v1835
  %1965 = vmatprep.subr.mxu0 %v1840
  %1966 = vmatpush1.msra.mxu0 %v1839
  %1967 = vmatprep.subr.mxu0 %v1844
  %1968 = vmatpush1.msra.mxu0 %v1843
  %1969 = vmatprep.subr.mxu0 %v1848
  %1970 = vmatpush1.msra.mxu0 %v1847
  %1971 = vmatprep.subr.mxu0 %v1852
  %1972 = vmatpush1.msra.mxu0 %v1851
  %1973 = vmatprep.subr.mxu0 %v1856
  %1974 = vmatpush1.msra.mxu0 %v1855
  %1975 = vmatprep.subr.mxu0 %v1860
  %1976 = vmatpush1.msra.mxu0 %v1859
  %1977 = vmatprep.subr.mxu0 %v1864
  %1978 = vmatpush1.msra.mxu0 %v1863
  %1979 = vmatprep.subr.mxu0 %v1868
  %1980 = vmatpush1.msra.mxu0 %v1867
  %1981 = vmatprep.subr.mxu0 %v1872
  %1982 = vmatpush1.msra.mxu0 %v1871
  %1983 = vmatprep.subr.mxu0 %v1876
  %1984 = vmatpush1.msra.mxu0 %v1875
  %1985 = vmatprep.subr.mxu0 %v1880
  %1986 = vmatpush1.msra.mxu0 %v1879
  %1987 = vmatprep.subr.mxu0 0.0
  %1988 = vmatpush1.msra.mxu0 0.0
  %1989 = vmatprep.subr.mxu0 0.0
  %1990 = vmatpush1.msra.mxu0 0.0
  %1991 = vmatprep.subr.mxu0 0.0
  %1992 = vmatpush1.msra.mxu0 0.0
  %1993 = vmatprep.subr.mxu0 0.0
  %1994 = vmatpush1.msra.mxu0 0.0
  %1995 = vmatprep.subr.mxu0 0.0
  %1996 = vmatpush1.msra.mxu0 0.0
  %1997 = vmatprep.subr.mxu0 0.0
  %1998 = vmatpush1.msra.mxu0 0.0
  %1999 = vmatprep.subr.mxu0 0.0
  %2000 = vmatpush1.msra.mxu0 0.0
  %2001 = vmatprep.subr.mxu0 0.0
  %2002 = vmatpush1.msra.mxu0 0.0
  %2003 = vmatprep.subr.mxu0 0.0
  %2004 = vmatpush1.msra.mxu0 0.0
  %2005 = vmatprep.subr.mxu0 0.0
  %2006 = vmatpush1.msra.mxu0 0.0
  %2007 = vmatprep.subr.mxu0 0.0
  %2008 = vmatpush1.msra.mxu0 0.0
  %2009 = vmatprep.subr.mxu0 0.0
  %2010 = vmatpush1.msra.mxu0 0.0
  %2011 = vmatprep.subr.mxu0 0.0
  %2012 = vmatpush1.msra.mxu0 0.0
  %2013 = vmatprep.subr.mxu0 0.0
  %2014 = vmatpush1.msra.mxu0 0.0
  %2015 = vmatprep.subr.mxu0 0.0
  %2016 = vmatpush1.msra.mxu0 0.0
  %2017 = vmatprep.subr.mxu0 0.0
  %2018 = vmatpush1.msra.mxu0 0.0
  %2019 = vmatprep.mubr.f32.mxu0 0.0
  %2020 = vmatmul.mubr.f32.gmra.mrb[0].mxu0 %v1882
  %v2021 = vpop.f32.mrb[0].mxu0
  %v2022 = vadd.f32 0.0, %v2021
  %v2023 = vpop.f32.mrb[0].mxu0
  %v2024 = vadd.f32 0.0, %v2023
  %2025 = vdwg.mxu0
  %v2030 = vrot.slane %v1951, 4
  %v2031 = vrot.slane %v1953, 4
  %v2032 = vrot.slane %v2022, 4
  %v2033 = vrot.slane %v2024, 4
  %v2038 = vadd.f32 %v1813, %v2030
  %v2039 = vadd.f32 %v1814, %v2031
  %v2040 = vadd.f32 %v1815, %v2032
  %v2041 = vadd.f32 %v1816, %v2033
  %v2042 = vxor.u32 %v2038, 2147483648
  %v2043 = vmul.f32 %v2042, 1.442695
  %v2044 = vpow.pop %v2043
  %v2045 = vadd.f32 %v2044, 1.0
  %v2046 = vrcp.pop %v2045
  %v2047 = vmul.f32 1.0, %v2046
  %v2048 = vxor.u32 %v2039, 2147483648
  %v2049 = vmul.f32 %v2048, 1.442695
  %v2050 = vpow.pop %v2049
  %v2051 = vadd.f32 %v2050, 1.0
  %v2052 = vrcp.pop %v2051
  %v2053 = vmul.f32 1.0, %v2052
  %v2054 = vtanh.pop %v2040
  %v2055 = vxor.u32 %v2041, 2147483648
  %v2056 = vmul.f32 %v2055, 1.442695
  %v2057 = vpow.pop %v2056
  %v2058 = vadd.f32 %v2057, 1.0
  %v2059 = vrcp.pop %v2058
  %v2060 = vmul.f32 1.0, %v2059
  %v2062 = vrot.slane %v1809, 6
  %v2064 = vmul.f32 %v2053, %v2062
  %v2065 = vmul.f32 %v2047, %v2054
  %v2066 = vadd.f32 %v2064, %v2065
  %v2067 = vtanh.pop %v2066
  %v2068 = vmul.f32 %v2060, %v2067
  %2069 = vst [vmem:[#allocation3 + $0x8] sm:$0x30] %v2068
  %v2070 = vld [vmem:[#allocation2 + $0x20] sm:$0xc0]
  %v2071 = vld [vmem:[#allocation2 + $0x28] sm:$0xc0]
  %v2072 = vld [vmem:[#allocation2 + $0x30] sm:$0xc0]
  %v2073 = vld [vmem:[#allocation2 + $0x38] sm:$0xc0]
  %v2074 = vld [vmem:[%s2] sm:$0xff]
  %v2075 = vld [vmem:[%s2 + $0x8] sm:$0xff]
  %v2076 = vld [vmem:[%s2 + $0x10] sm:$0xff]
  %v2077 = vld [vmem:[%s2 + $0x18] sm:$0xff]
  %v2078 = vld [vmem:[%s2 + $0x20] sm:$0xff]
  %v2079 = vld [vmem:[%s2 + $0x28] sm:$0xff]
  %v2080 = vld [vmem:[%s2 + $0x30] sm:$0xff]
  %v2081 = vld [vmem:[%s2 + $0x38] sm:$0xff]
  %v2082 = vld [vmem:[%s2 + $0x40] sm:$0xff]
  %v2083 = vld [vmem:[%s2 + $0x48] sm:$0xff]
  %v2084 = vld [vmem:[%s2 + $0x50] sm:$0xff]
  %v2085 = vld [vmem:[%s2 + $0x58] sm:$0xff]
  %v2086 = vld [vmem:[%s2 + $0x60] sm:$0xff]
  %v2087 = vld [vmem:[%s2 + $0x68] sm:$0xff]
  %v2088 = vld [vmem:[%s2 + $0x70] sm:$0xff]
  %v2089 = vld [vmem:[%s2 + $0x78] sm:$0xff]
  %v2090 = vld [vmem:[%s2 + $0x80] sm:$0xff]
  %v2091 = vld [vmem:[%s2 + $0x88] sm:$0xff]
  %v2092 = vld [vmem:[%s2 + $0x90] sm:$0xff]
  %v2093 = vld [vmem:[%s2 + $0x98] sm:$0xff]
  %v2094 = vld [vmem:[%s2 + $0xa0] sm:$0xff]
  %v2095 = vld [vmem:[%s2 + $0xa8] sm:$0xff]
  %v2096 = vld [vmem:[%s2 + $0xb0] sm:$0xff]
  %v2097 = vld [vmem:[%s2 + $0xb8] sm:$0xff]
  %v2098 = vld [vmem:[%s2 + $0xc0] sm:$0xff]
  %v2099 = vld [vmem:[%s2 + $0xc8] sm:$0xff]
  %v2100 = vld [vmem:[%s2 + $0xd0] sm:$0xff]
  %v2101 = vld [vmem:[%s2 + $0xd8] sm:$0xff]
  %v2102 = vld [vmem:[%s2 + $0xe0] sm:$0xff]
  %v2103 = vld [vmem:[%s2 + $0xe8] sm:$0xff]
  %v2104 = vld [vmem:[%s2 + $0xf0] sm:$0xff]
  %v2105 = vld [vmem:[%s2 + $0xf8] sm:$0xff]
  %v2106 = vld [vmem:[%s2 + $0x100] sm:$0xff]
  %v2107 = vld [vmem:[%s2 + $0x108] sm:$0xff]
  %v2108 = vld [vmem:[%s2 + $0x110] sm:$0xff]
  %v2109 = vld [vmem:[%s2 + $0x118] sm:$0xff]
  %v2110 = vld [vmem:[%s2 + $0x120] sm:$0xff]
  %v2111 = vld [vmem:[%s2 + $0x128] sm:$0xff]
  %v2112 = vld [vmem:[%s2 + $0x130] sm:$0xff]
  %v2113 = vld [vmem:[%s2 + $0x138] sm:$0xff]
  %v2114 = vld [vmem:[%s2 + $0x140] sm:$0xff]
  %v2115 = vld [vmem:[%s2 + $0x148] sm:$0xff]
  %v2116 = vld [vmem:[%s2 + $0x150] sm:$0xff]
  %v2117 = vld [vmem:[%s2 + $0x158] sm:$0xff]
  %v2118 = vld [vmem:[%s2 + $0x160] sm:$0xff]
  %v2119 = vld [vmem:[%s2 + $0x168] sm:$0xff]
  %v2120 = vld [vmem:[%s2 + $0x170] sm:$0xff]
  %v2121 = vld [vmem:[%s2 + $0x178] sm:$0xff]
  %v2122 = vld [vmem:[%s2 + $0x180] sm:$0xff]
  %v2123 = vld [vmem:[%s2 + $0x188] sm:$0xff]
  %v2124 = vld [vmem:[%s2 + $0x190] sm:$0xff]
  %v2125 = vld [vmem:[%s2 + $0x198] sm:$0xff]
  %v2126 = vld [vmem:[%s2 + $0x1a0] sm:$0xff]
  %v2127 = vld [vmem:[%s2 + $0x1a8] sm:$0xff]
  %v2128 = vld [vmem:[%s2 + $0x1b0] sm:$0xff]
  %v2129 = vld [vmem:[%s2 + $0x1b8] sm:$0xff]
  %v2130 = vld [vmem:[%s2 + $0x1c0] sm:$0xff]
  %v2131 = vld [vmem:[%s2 + $0x1c8] sm:$0xff]
  %v2132 = vld [vmem:[%s2 + $0x1d0] sm:$0xff]
  %v2133 = vld [vmem:[%s2 + $0x1d8] sm:$0xff]
  %v2134 = vld [vmem:[%s2 + $0x1e0] sm:$0xff]
  %v2135 = vld [vmem:[%s2 + $0x1e8] sm:$0xff]
  %v2136 = vld [vmem:[%s2 + $0x1f0] sm:$0xff]
  %v2137 = vld [vmem:[%s2 + $0x1f8] sm:$0xff]
  %v2139 = vrot.slane %v2068, 4
  %2141 = vmatprep.subr.mxu0 %v2075
  %2142 = vmatpush1.msra.mxu0 %v2074
  %2143 = vmatprep.subr.mxu0 %v2079
  %2144 = vmatpush1.msra.mxu0 %v2078
  %2145 = vmatprep.subr.mxu0 %v2083
  %2146 = vmatpush1.msra.mxu0 %v2082
  %2147 = vmatprep.subr.mxu0 %v2087
  %2148 = vmatpush1.msra.mxu0 %v2086
  %2149 = vmatprep.subr.mxu0 %v2091
  %2150 = vmatpush1.msra.mxu0 %v2090
  %2151 = vmatprep.subr.mxu0 %v2095
  %2152 = vmatpush1.msra.mxu0 %v2094
  %2153 = vmatprep.subr.mxu0 %v2099
  %2154 = vmatpush1.msra.mxu0 %v2098
  %2155 = vmatprep.subr.mxu0 %v2103
  %2156 = vmatpush1.msra.mxu0 %v2102
  %2157 = vmatprep.subr.mxu0 %v2107
  %2158 = vmatpush1.msra.mxu0 %v2106
  %2159 = vmatprep.subr.mxu0 %v2111
  %2160 = vmatpush1.msra.mxu0 %v2110
  %2161 = vmatprep.subr.mxu0 %v2115
  %2162 = vmatpush1.msra.mxu0 %v2114
  %2163 = vmatprep.subr.mxu0 %v2119
  %2164 = vmatpush1.msra.mxu0 %v2118
  %2165 = vmatprep.subr.mxu0 %v2123
  %2166 = vmatpush1.msra.mxu0 %v2122
  %2167 = vmatprep.subr.mxu0 %v2127
  %2168 = vmatpush1.msra.mxu0 %v2126
  %2169 = vmatprep.subr.mxu0 %v2131
  %2170 = vmatpush1.msra.mxu0 %v2130
  %2171 = vmatprep.subr.mxu0 %v2135
  %2172 = vmatpush1.msra.mxu0 %v2134
  %2173 = vmatprep.subr.mxu0 0.0
  %2174 = vmatpush1.msra.mxu0 0.0
  %2175 = vmatprep.subr.mxu0 0.0
  %2176 = vmatpush1.msra.mxu0 0.0
  %2177 = vmatprep.subr.mxu0 0.0
  %2178 = vmatpush1.msra.mxu0 0.0
  %2179 = vmatprep.subr.mxu0 0.0
  %2180 = vmatpush1.msra.mxu0 0.0
  %2181 = vmatprep.subr.mxu0 0.0
  %2182 = vmatpush1.msra.mxu0 0.0
  %2183 = vmatprep.subr.mxu0 0.0
  %2184 = vmatpush1.msra.mxu0 0.0
  %2185 = vmatprep.subr.mxu0 0.0
  %2186 = vmatpush1.msra.mxu0 0.0
  %2187 = vmatprep.subr.mxu0 0.0
  %2188 = vmatpush1.msra.mxu0 0.0
  %2189 = vmatprep.subr.mxu0 0.0
  %2190 = vmatpush1.msra.mxu0 0.0
  %2191 = vmatprep.subr.mxu0 0.0
  %2192 = vmatpush1.msra.mxu0 0.0
  %2193 = vmatprep.subr.mxu0 0.0
  %2194 = vmatpush1.msra.mxu0 0.0
  %2195 = vmatprep.subr.mxu0 0.0
  %2196 = vmatpush1.msra.mxu0 0.0
  %2197 = vmatprep.subr.mxu0 0.0
  %2198 = vmatpush1.msra.mxu0 0.0
  %2199 = vmatprep.subr.mxu0 0.0
  %2200 = vmatpush1.msra.mxu0 0.0
  %2201 = vmatprep.subr.mxu0 0.0
  %2202 = vmatpush1.msra.mxu0 0.0
  %2203 = vmatprep.subr.mxu0 0.0
  %2204 = vmatpush1.msra.mxu0 0.0
  %2205 = vmatprep.mubr.f32.mxu0 0.0
  %2206 = vmatmul.mubr.f32.gmra.mrb[0].mxu0 %v2139
  %v2207 = vpop.f32.mrb[0].mxu0
  %v2208 = vadd.f32 0.0, %v2207
  %v2209 = vpop.f32.mrb[0].mxu0
  %v2210 = vadd.f32 0.0, %v2209
  %2211 = vdwg.mxu0
  %2212 = vmatprep.subr.mxu0 %v2077
  %2213 = vmatpush1.msra.mxu0 %v2076
  %2214 = vmatprep.subr.mxu0 %v2081
  %2215 = vmatpush1.msra.mxu0 %v2080
  %2216 = vmatprep.subr.mxu0 %v2085
  %2217 = vmatpush1.msra.mxu0 %v2084
  %2218 = vmatprep.subr.mxu0 %v2089
  %2219 = vmatpush1.msra.mxu0 %v2088
  %2220 = vmatprep.subr.mxu0 %v2093
  %2221 = vmatpush1.msra.mxu0 %v2092
  %2222 = vmatprep.subr.mxu0 %v2097
  %2223 = vmatpush1.msra.mxu0 %v2096
  %2224 = vmatprep.subr.mxu0 %v2101
  %2225 = vmatpush1.msra.mxu0 %v2100
  %2226 = vmatprep.subr.mxu0 %v2105
  %2227 = vmatpush1.msra.mxu0 %v2104
  %2228 = vmatprep.subr.mxu0 %v2109
  %2229 = vmatpush1.msra.mxu0 %v2108
  %2230 = vmatprep.subr.mxu0 %v2113
  %2231 = vmatpush1.msra.mxu0 %v2112
  %2232 = vmatprep.subr.mxu0 %v2117
  %2233 = vmatpush1.msra.mxu0 %v2116
  %2234 = vmatprep.subr.mxu0 %v2121
  %2235 = vmatpush1.msra.mxu0 %v2120
  %2236 = vmatprep.subr.mxu0 %v2125
  %2237 = vmatpush1.msra.mxu0 %v2124
  %2238 = vmatprep.subr.mxu0 %v2129
  %2239 = vmatpush1.msra.mxu0 %v2128
  %2240 = vmatprep.subr.mxu0 %v2133
  %2241 = vmatpush1.msra.mxu0 %v2132
  %2242 = vmatprep.subr.mxu0 %v2137
  %2243 = vmatpush1.msra.mxu0 %v2136
  %2244 = vmatprep.subr.mxu0 0.0
  %2245 = vmatpush1.msra.mxu0 0.0
  %2246 = vmatprep.subr.mxu0 0.0
  %2247 = vmatpush1.msra.mxu0 0.0
  %2248 = vmatprep.subr.mxu0 0.0
  %2249 = vmatpush1.msra.mxu0 0.0
  %2250 = vmatprep.subr.mxu0 0.0
  %2251 = vmatpush1.msra.mxu0 0.0
  %2252 = vmatprep.subr.mxu0 0.0
  %2253 = vmatpush1.msra.mxu0 0.0
  %2254 = vmatprep.subr.mxu0 0.0
  %2255 = vmatpush1.msra.mxu0 0.0
  %2256 = vmatprep.subr.mxu0 0.0
  %2257 = vmatpush1.msra.mxu0 0.0
  %2258 = vmatprep.subr.mxu0 0.0
  %2259 = vmatpush1.msra.mxu0 0.0
  %2260 = vmatprep.subr.mxu0 0.0
  %2261 = vmatpush1.msra.mxu0 0.0
  %2262 = vmatprep.subr.mxu0 0.0
  %2263 = vmatpush1.msra.mxu0 0.0
  %2264 = vmatprep.subr.mxu0 0.0
  %2265 = vmatpush1.msra.mxu0 0.0
  %2266 = vmatprep.subr.mxu0 0.0
  %2267 = vmatpush1.msra.mxu0 0.0
  %2268 = vmatprep.subr.mxu0 0.0
  %2269 = vmatpush1.msra.mxu0 0.0
  %2270 = vmatprep.subr.mxu0 0.0
  %2271 = vmatpush1.msra.mxu0 0.0
  %2272 = vmatprep.subr.mxu0 0.0
  %2273 = vmatpush1.msra.mxu0 0.0
  %2274 = vmatprep.subr.mxu0 0.0
  %2275 = vmatpush1.msra.mxu0 0.0
  %2276 = vmatprep.mubr.f32.mxu0 0.0
  %2277 = vmatmul.mubr.f32.gmra.mrb[0].mxu0 %v2139
  %v2278 = vpop.f32.mrb[0].mxu0
  %v2279 = vadd.f32 0.0, %v2278
  %v2280 = vpop.f32.mrb[0].mxu0
  %v2281 = vadd.f32 0.0, %v2280
  %2282 = vdwg.mxu0
  %v2287 = vrot.slane %v2208, 2
  %v2288 = vrot.slane %v2210, 2
  %v2289 = vrot.slane %v2279, 2
  %v2290 = vrot.slane %v2281, 2
  %v2295 = vadd.f32 %v2070, %v2287
  %v2296 = vadd.f32 %v2071, %v2288
  %v2297 = vadd.f32 %v2072, %v2289
  %v2298 = vadd.f32 %v2073, %v2290
  %v2299 = vxor.u32 %v2295, 2147483648
  %v2300 = vmul.f32 %v2299, 1.442695
  %v2301 = vpow.pop %v2300
  %v2302 = vadd.f32 %v2301, 1.0
  %v2303 = vrcp.pop %v2302
  %v2304 = vmul.f32 1.0, %v2303
  %v2305 = vxor.u32 %v2296, 2147483648
  %v2306 = vmul.f32 %v2305, 1.442695
  %v2307 = vpow.pop %v2306
  %v2308 = vadd.f32 %v2307, 1.0
  %v2309 = vrcp.pop %v2308
  %v2310 = vmul.f32 1.0, %v2309
  %v2311 = vtanh.pop %v2297
  %v2312 = vxor.u32 %v2298, 2147483648
  %v2313 = vmul.f32 %v2312, 1.442695
  %v2314 = vpow.pop %v2313
  %v2315 = vadd.f32 %v2314, 1.0
  %v2316 = vrcp.pop %v2315
  %v2317 = vmul.f32 1.0, %v2316
  %v2319 = vrot.slane %v2066, 6
  %v2321 = vmul.f32 %v2310, %v2319
  %v2322 = vmul.f32 %v2304, %v2311
  %v2323 = vadd.f32 %v2321, %v2322
  %v2324 = vtanh.pop %v2323
  %v2325 = vmul.f32 %v2317, %v2324
  %2326 = vst [vmem:[#allocation3 + $0x8] sm:$0xc0] %v2325
  %v2327 = vld [vmem:[#allocation2 + $0x40] sm:$0x3]
  %v2328 = vld [vmem:[#allocation2 + $0x48] sm:$0x3]
  %v2329 = vld [vmem:[#allocation2 + $0x50] sm:$0x3]
  %v2330 = vld [vmem:[#allocation2 + $0x58] sm:$0x3]
  %v2331 = vld [vmem:[%s2] sm:$0xff]
  %v2332 = vld [vmem:[%s2 + $0x8] sm:$0xff]
  %v2333 = vld [vmem:[%s2 + $0x10] sm:$0xff]
  %v2334 = vld [vmem:[%s2 + $0x18] sm:$0xff]
  %v2335 = vld [vmem:[%s2 + $0x20] sm:$0xff]
  %v2336 = vld [vmem:[%s2 + $0x28] sm:$0xff]
  %v2337 = vld [vmem:[%s2 + $0x30] sm:$0xff]
  %v2338 = vld [vmem:[%s2 + $0x38] sm:$0xff]
  %v2339 = vld [vmem:[%s2 + $0x40] sm:$0xff]
  %v2340 = vld [vmem:[%s2 + $0x48] sm:$0xff]
  %v2341 = vld [vmem:[%s2 + $0x50] sm:$0xff]
  %v2342 = vld [vmem:[%s2 + $0x58] sm:$0xff]
  %v2343 = vld [vmem:[%s2 + $0x60] sm:$0xff]
  %v2344 = vld [vmem:[%s2 + $0x68] sm:$0xff]
  %v2345 = vld [vmem:[%s2 + $0x70] sm:$0xff]
  %v2346 = vld [vmem:[%s2 + $0x78] sm:$0xff]
  %v2347 = vld [vmem:[%s2 + $0x80] sm:$0xff]
  %v2348 = vld [vmem:[%s2 + $0x88] sm:$0xff]
  %v2349 = vld [vmem:[%s2 + $0x90] sm:$0xff]
  %v2350 = vld [vmem:[%s2 + $0x98] sm:$0xff]
  %v2351 = vld [vmem:[%s2 + $0xa0] sm:$0xff]
  %v2352 = vld [vmem:[%s2 + $0xa8] sm:$0xff]
  %v2353 = vld [vmem:[%s2 + $0xb0] sm:$0xff]
  %v2354 = vld [vmem:[%s2 + $0xb8] sm:$0xff]
  %v2355 = vld [vmem:[%s2 + $0xc0] sm:$0xff]
  %v2356 = vld [vmem:[%s2 + $0xc8] sm:$0xff]
  %v2357 = vld [vmem:[%s2 + $0xd0] sm:$0xff]
  %v2358 = vld [vmem:[%s2 + $0xd8] sm:$0xff]
  %v2359 = vld [vmem:[%s2 + $0xe0] sm:$0xff]
  %v2360 = vld [vmem:[%s2 + $0xe8] sm:$0xff]
  %v2361 = vld [vmem:[%s2 + $0xf0] sm:$0xff]
  %v2362 = vld [vmem:[%s2 + $0xf8] sm:$0xff]
  %v2363 = vld [vmem:[%s2 + $0x100] sm:$0xff]
  %v2364 = vld [vmem:[%s2 + $0x108] sm:$0xff]
  %v2365 = vld [vmem:[%s2 + $0x110] sm:$0xff]
  %v2366 = vld [vmem:[%s2 + $0x118] sm:$0xff]
  %v2367 = vld [vmem:[%s2 + $0x120] sm:$0xff]
  %v2368 = vld [vmem:[%s2 + $0x128] sm:$0xff]
  %v2369 = vld [vmem:[%s2 + $0x130] sm:$0xff]
  %v2370 = vld [vmem:[%s2 + $0x138] sm:$0xff]
  %v2371 = vld [vmem:[%s2 + $0x140] sm:$0xff]
  %v2372 = vld [vmem:[%s2 + $0x148] sm:$0xff]
  %v2373 = vld [vmem:[%s2 + $0x150] sm:$0xff]
  %v2374 = vld [vmem:[%s2 + $0x158] sm:$0xff]
  %v2375 = vld [vmem:[%s2 + $0x160] sm:$0xff]
  %v2376 = vld [vmem:[%s2 + $0x168] sm:$0xff]
  %v2377 = vld [vmem:[%s2 + $0x170] sm:$0xff]
  %v2378 = vld [vmem:[%s2 + $0x178] sm:$0xff]
  %v2379 = vld [vmem:[%s2 + $0x180] sm:$0xff]
  %v2380 = vld [vmem:[%s2 + $0x188] sm:$0xff]
  %v2381 = vld [vmem:[%s2 + $0x190] sm:$0xff]
  %v2382 = vld [vmem:[%s2 + $0x198] sm:$0xff]
  %v2383 = vld [vmem:[%s2 + $0x1a0] sm:$0xff]
  %v2384 = vld [vmem:[%s2 + $0x1a8] sm:$0xff]
  %v2385 = vld [vmem:[%s2 + $0x1b0] sm:$0xff]
  %v2386 = vld [vmem:[%s2 + $0x1b8] sm:$0xff]
  %v2387 = vld [vmem:[%s2 + $0x1c0] sm:$0xff]
  %v2388 = vld [vmem:[%s2 + $0x1c8] sm:$0xff]
  %v2389 = vld [vmem:[%s2 + $0x1d0] sm:$0xff]
  %v2390 = vld [vmem:[%s2 + $0x1d8] sm:$0xff]
  %v2391 = vld [vmem:[%s2 + $0x1e0] sm:$0xff]
  %v2392 = vld [vmem:[%s2 + $0x1e8] sm:$0xff]
  %v2393 = vld [vmem:[%s2 + $0x1f0] sm:$0xff]
  %v2394 = vld [vmem:[%s2 + $0x1f8] sm:$0xff]
  %v2396 = vrot.slane %v2325, 6
  %2398 = vmatprep.subr.mxu0 %v2332
  %2399 = vmatpush1.msra.mxu0 %v2331
  %2400 = vmatprep.subr.mxu0 %v2336
  %2401 = vmatpush1.msra.mxu0 %v2335
  %2402 = vmatprep.subr.mxu0 %v2340
  %2403 = vmatpush1.msra.mxu0 %v2339
  %2404 = vmatprep.subr.mxu0 %v2344
  %2405 = vmatpush1.msra.mxu0 %v2343
  %2406 = vmatprep.subr.mxu0 %v2348
  %2407 = vmatpush1.msra.mxu0 %v2347
  %2408 = vmatprep.subr.mxu0 %v2352
  %2409 = vmatpush1.msra.mxu0 %v2351
  %2410 = vmatprep.subr.mxu0 %v2356
  %2411 = vmatpush1.msra.mxu0 %v2355
  %2412 = vmatprep.subr.mxu0 %v2360
  %2413 = vmatpush1.msra.mxu0 %v2359
  %2414 = vmatprep.subr.mxu0 %v2364
  %2415 = vmatpush1.msra.mxu0 %v2363
  %2416 = vmatprep.subr.mxu0 %v2368
  %2417 = vmatpush1.msra.mxu0 %v2367
  %2418 = vmatprep.subr.mxu0 %v2372
  %2419 = vmatpush1.msra.mxu0 %v2371
  %2420 = vmatprep.subr.mxu0 %v2376
  %2421 = vmatpush1.msra.mxu0 %v2375
  %2422 = vmatprep.subr.mxu0 %v2380
  %2423 = vmatpush1.msra.mxu0 %v2379
  %2424 = vmatprep.subr.mxu0 %v2384
  %2425 = vmatpush1.msra.mxu0 %v2383
  %2426 = vmatprep.subr.mxu0 %v2388
  %2427 = vmatpush1.msra.mxu0 %v2387
  %2428 = vmatprep.subr.mxu0 %v2392
  %2429 = vmatpush1.msra.mxu0 %v2391
  %2430 = vmatprep.subr.mxu0 0.0
  %2431 = vmatpush1.msra.mxu0 0.0
  %2432 = vmatprep.subr.mxu0 0.0
  %2433 = vmatpush1.msra.mxu0 0.0
  %2434 = vmatprep.subr.mxu0 0.0
  %2435 = vmatpush1.msra.mxu0 0.0
  %2436 = vmatprep.subr.mxu0 0.0
  %2437 = vmatpush1.msra.mxu0 0.0
  %2438 = vmatprep.subr.mxu0 0.0
  %2439 = vmatpush1.msra.mxu0 0.0
  %2440 = vmatprep.subr.mxu0 0.0
  %2441 = vmatpush1.msra.mxu0 0.0
  %2442 = vmatprep.subr.mxu0 0.0
  %2443 = vmatpush1.msra.mxu0 0.0
  %2444 = vmatprep.subr.mxu0 0.0
  %2445 = vmatpush1.msra.mxu0 0.0
  %2446 = vmatprep.subr.mxu0 0.0
  %2447 = vmatpush1.msra.mxu0 0.0
  %2448 = vmatprep.subr.mxu0 0.0
  %2449 = vmatpush1.msra.mxu0 0.0
  %2450 = vmatprep.subr.mxu0 0.0
  %2451 = vmatpush1.msra.mxu0 0.0
  %2452 = vmatprep.subr.mxu0 0.0
  %2453 = vmatpush1.msra.mxu0 0.0
  %2454 = vmatprep.subr.mxu0 0.0
  %2455 = vmatpush1.msra.mxu0 0.0
  %2456 = vmatprep.subr.mxu0 0.0
  %2457 = vmatpush1.msra.mxu0 0.0
  %2458 = vmatprep.subr.mxu0 0.0
  %2459 = vmatpush1.msra.mxu0 0.0
  %2460 = vmatprep.subr.mxu0 0.0
  %2461 = vmatpush1.msra.mxu0 0.0
  %2462 = vmatprep.mubr.f32.mxu0 0.0
  %2463 = vmatmul.mubr.f32.gmra.mrb[0].mxu0 %v2396
  %v2464 = vpop.f32.mrb[0].mxu0
  %v2465 = vadd.f32 0.0, %v2464
  %v2466 = vpop.f32.mrb[0].mxu0
  %v2467 = vadd.f32 0.0, %v2466
  %2468 = vdwg.mxu0
  %2469 = vmatprep.subr.mxu0 %v2334
  %2470 = vmatpush1.msra.mxu0 %v2333
  %2471 = vmatprep.subr.mxu0 %v2338
  %2472 = vmatpush1.msra.mxu0 %v2337
  %2473 = vmatprep.subr.mxu0 %v2342
  %2474 = vmatpush1.msra.mxu0 %v2341
  %2475 = vmatprep.subr.mxu0 %v2346
  %2476 = vmatpush1.msra.mxu0 %v2345
  %2477 = vmatprep.subr.mxu0 %v2350
  %2478 = vmatpush1.msra.mxu0 %v2349
  %2479 = vmatprep.subr.mxu0 %v2354
  %2480 = vmatpush1.msra.mxu0 %v2353
  %2481 = vmatprep.subr.mxu0 %v2358
  %2482 = vmatpush1.msra.mxu0 %v2357
  %2483 = vmatprep.subr.mxu0 %v2362
  %2484 = vmatpush1.msra.mxu0 %v2361
  %2485 = vmatprep.subr.mxu0 %v2366
  %2486 = vmatpush1.msra.mxu0 %v2365
  %2487 = vmatprep.subr.mxu0 %v2370
  %2488 = vmatpush1.msra.mxu0 %v2369
  %2489 = vmatprep.subr.mxu0 %v2374
  %2490 = vmatpush1.msra.mxu0 %v2373
  %2491 = vmatprep.subr.mxu0 %v2378
  %2492 = vmatpush1.msra.mxu0 %v2377
  %2493 = vmatprep.subr.mxu0 %v2382
  %2494 = vmatpush1.msra.mxu0 %v2381
  %2495 = vmatprep.subr.mxu0 %v2386
  %2496 = vmatpush1.msra.mxu0 %v2385
  %2497 = vmatprep.subr.mxu0 %v2390
  %2498 = vmatpush1.msra.mxu0 %v2389
  %2499 = vmatprep.subr.mxu0 %v2394
  %2500 = vmatpush1.msra.mxu0 %v2393
  %2501 = vmatprep.subr.mxu0 0.0
  %2502 = vmatpush1.msra.mxu0 0.0
  %2503 = vmatprep.subr.mxu0 0.0
  %2504 = vmatpush1.msra.mxu0 0.0
  %2505 = vmatprep.subr.mxu0 0.0
  %2506 = vmatpush1.msra.mxu0 0.0
  %2507 = vmatprep.subr.mxu0 0.0
  %2508 = vmatpush1.msra.mxu0 0.0
  %2509 = vmatprep.subr.mxu0 0.0
  %2510 = vmatpush1.msra.mxu0 0.0
  %2511 = vmatprep.subr.mxu0 0.0
  %2512 = vmatpush1.msra.mxu0 0.0
  %2513 = vmatprep.subr.mxu0 0.0
  %2514 = vmatpush1.msra.mxu0 0.0
  %2515 = vmatprep.subr.mxu0 0.0
  %2516 = vmatpush1.msra.mxu0 0.0
  %2517 = vmatprep.subr.mxu0 0.0
  %2518 = vmatpush1.msra.mxu0 0.0
  %2519 = vmatprep.subr.mxu0 0.0
  %2520 = vmatpush1.msra.mxu0 0.0
  %2521 = vmatprep.subr.mxu0 0.0
  %2522 = vmatpush1.msra.mxu0 0.0
  %2523 = vmatprep.subr.mxu0 0.0
  %2524 = vmatpush1.msra.mxu0 0.0
  %2525 = vmatprep.subr.mxu0 0.0
  %2526 = vmatpush1.msra.mxu0 0.0
  %2527 = vmatprep.subr.mxu0 0.0
  %2528 = vmatpush1.msra.mxu0 0.0
  %2529 = vmatprep.subr.mxu0 0.0
  %2530 = vmatpush1.msra.mxu0 0.0
  %2531 = vmatprep.subr.mxu0 0.0
  %2532 = vmatpush1.msra.mxu0 0.0
  %2533 = vmatprep.mubr.f32.mxu0 0.0
  %2534 = vmatmul.mubr.f32.gmra.mrb[0].mxu0 %v2396
  %v2535 = vpop.f32.mrb[0].mxu0
  %v2536 = vadd.f32 0.0, %v2535
  %v2537 = vpop.f32.mrb[0].mxu0
  %v2538 = vadd.f32 0.0, %v2537
  %2539 = vdwg.mxu0
  %v2540 = vadd.f32 %v2327, %v2465
  %v2541 = vadd.f32 %v2328, %v2467
  %v2542 = vadd.f32 %v2329, %v2536
  %v2543 = vadd.f32 %v2330, %v2538
  %v2544 = vxor.u32 %v2540, 2147483648
  %v2545 = vmul.f32 %v2544, 1.442695
  %v2546 = vpow.pop %v2545
  %v2547 = vadd.f32 %v2546, 1.0
  %v2548 = vrcp.pop %v2547
  %v2549 = vmul.f32 1.0, %v2548
  %v2550 = vxor.u32 %v2541, 2147483648
  %v2551 = vmul.f32 %v2550, 1.442695
  %v2552 = vpow.pop %v2551
  %v2553 = vadd.f32 %v2552, 1.0
  %v2554 = vrcp.pop %v2553
  %v2555 = vmul.f32 1.0, %v2554
  %v2556 = vtanh.pop %v2542
  %v2557 = vxor.u32 %v2543, 2147483648
  %v2558 = vmul.f32 %v2557, 1.442695
  %v2559 = vpow.pop %v2558
  %v2560 = vadd.f32 %v2559, 1.0
  %v2561 = vrcp.pop %v2560
  %v2562 = vmul.f32 1.0, %v2561
  %v2564 = vrot.slane %v2323, 6
  %v2566 = vmul.f32 %v2555, %v2564
  %v2567 = vmul.f32 %v2549, %v2556
  %v2568 = vadd.f32 %v2566, %v2567
  %v2569 = vtanh.pop %v2568
  %v2570 = vmul.f32 %v2562, %v2569
  %2571 = vst [vmem:[#allocation3 + $0x10] sm:$0x3] %v2570
  %v2572 = vld [vmem:[#allocation2 + $0x40] sm:$0xc]
  %v2573 = vld [vmem:[#allocation2 + $0x48] sm:$0xc]
  %v2574 = vld [vmem:[#allocation2 + $0x50] sm:$0xc]
  %v2575 = vld [vmem:[#allocation2 + $0x58] sm:$0xc]
  %v2576 = vld [vmem:[%s2] sm:$0xff]
  %v2577 = vld [vmem:[%s2 + $0x8] sm:$0xff]
  %v2578 = vld [vmem:[%s2 + $0x10] sm:$0xff]
  %v2579 = vld [vmem:[%s2 + $0x18] sm:$0xff]
  %v2580 = vld [vmem:[%s2 + $0x20] sm:$0xff]
  %v2581 = vld [vmem:[%s2 + $0x28] sm:$0xff]
  %v2582 = vld [vmem:[%s2 + $0x30] sm:$0xff]
  %v2583 = vld [vmem:[%s2 + $0x38] sm:$0xff]
  %v2584 = vld [vmem:[%s2 + $0x40] sm:$0xff]
  %v2585 = vld [vmem:[%s2 + $0x48] sm:$0xff]
  %v2586 = vld [vmem:[%s2 + $0x50] sm:$0xff]
  %v2587 = vld [vmem:[%s2 + $0x58] sm:$0xff]
  %v2588 = vld [vmem:[%s2 + $0x60] sm:$0xff]
  %v2589 = vld [vmem:[%s2 + $0x68] sm:$0xff]
  %v2590 = vld [vmem:[%s2 + $0x70] sm:$0xff]
  %v2591 = vld [vmem:[%s2 + $0x78] sm:$0xff]
  %v2592 = vld [vmem:[%s2 + $0x80] sm:$0xff]
  %v2593 = vld [vmem:[%s2 + $0x88] sm:$0xff]
  %v2594 = vld [vmem:[%s2 + $0x90] sm:$0xff]
  %v2595 = vld [vmem:[%s2 + $0x98] sm:$0xff]
  %v2596 = vld [vmem:[%s2 + $0xa0] sm:$0xff]
  %v2597 = vld [vmem:[%s2 + $0xa8] sm:$0xff]
  %v2598 = vld [vmem:[%s2 + $0xb0] sm:$0xff]
  %v2599 = vld [vmem:[%s2 + $0xb8] sm:$0xff]
  %v2600 = vld [vmem:[%s2 + $0xc0] sm:$0xff]
  %v2601 = vld [vmem:[%s2 + $0xc8] sm:$0xff]
  %v2602 = vld [vmem:[%s2 + $0xd0] sm:$0xff]
  %v2603 = vld [vmem:[%s2 + $0xd8] sm:$0xff]
  %v2604 = vld [vmem:[%s2 + $0xe0] sm:$0xff]
  %v2605 = vld [vmem:[%s2 + $0xe8] sm:$0xff]
  %v2606 = vld [vmem:[%s2 + $0xf0] sm:$0xff]
  %v2607 = vld [vmem:[%s2 + $0xf8] sm:$0xff]
  %v2608 = vld [vmem:[%s2 + $0x100] sm:$0xff]
  %v2609 = vld [vmem:[%s2 + $0x108] sm:$0xff]
  %v2610 = vld [vmem:[%s2 + $0x110] sm:$0xff]
  %v2611 = vld [vmem:[%s2 + $0x118] sm:$0xff]
  %v2612 = vld [vmem:[%s2 + $0x120] sm:$0xff]
  %v2613 = vld [vmem:[%s2 + $0x128] sm:$0xff]
  %v2614 = vld [vmem:[%s2 + $0x130] sm:$0xff]
  %v2615 = vld [vmem:[%s2 + $0x138] sm:$0xff]
  %v2616 = vld [vmem:[%s2 + $0x140] sm:$0xff]
  %v2617 = vld [vmem:[%s2 + $0x148] sm:$0xff]
  %v2618 = vld [vmem:[%s2 + $0x150] sm:$0xff]
  %v2619 = vld [vmem:[%s2 + $0x158] sm:$0xff]
  %v2620 = vld [vmem:[%s2 + $0x160] sm:$0xff]
  %v2621 = vld [vmem:[%s2 + $0x168] sm:$0xff]
  %v2622 = vld [vmem:[%s2 + $0x170] sm:$0xff]
  %v2623 = vld [vmem:[%s2 + $0x178] sm:$0xff]
  %v2624 = vld [vmem:[%s2 + $0x180] sm:$0xff]
  %v2625 = vld [vmem:[%s2 + $0x188] sm:$0xff]
  %v2626 = vld [vmem:[%s2 + $0x190] sm:$0xff]
  %v2627 = vld [vmem:[%s2 + $0x198] sm:$0xff]
  %v2628 = vld [vmem:[%s2 + $0x1a0] sm:$0xff]
  %v2629 = vld [vmem:[%s2 + $0x1a8] sm:$0xff]
  %v2630 = vld [vmem:[%s2 + $0x1b0] sm:$0xff]
  %v2631 = vld [vmem:[%s2 + $0x1b8] sm:$0xff]
  %v2632 = vld [vmem:[%s2 + $0x1c0] sm:$0xff]
  %v2633 = vld [vmem:[%s2 + $0x1c8] sm:$0xff]
  %v2634 = vld [vmem:[%s2 + $0x1d0] sm:$0xff]
  %v2635 = vld [vmem:[%s2 + $0x1d8] sm:$0xff]
  %v2636 = vld [vmem:[%s2 + $0x1e0] sm:$0xff]
  %v2637 = vld [vmem:[%s2 + $0x1e8] sm:$0xff]
  %v2638 = vld [vmem:[%s2 + $0x1f0] sm:$0xff]
  %v2639 = vld [vmem:[%s2 + $0x1f8] sm:$0xff]
  %2640 = vmatprep.subr.mxu0 %v2577
  %2641 = vmatpush1.msra.mxu0 %v2576
  %2642 = vmatprep.subr.mxu0 %v2581
  %2643 = vmatpush1.msra.mxu0 %v2580
  %2644 = vmatprep.subr.mxu0 %v2585
  %2645 = vmatpush1.msra.mxu0 %v2584
  %2646 = vmatprep.subr.mxu0 %v2589
  %2647 = vmatpush1.msra.mxu0 %v2588
  %2648 = vmatprep.subr.mxu0 %v2593
  %2649 = vmatpush1.msra.mxu0 %v2592
  %2650 = vmatprep.subr.mxu0 %v2597
  %2651 = vmatpush1.msra.mxu0 %v2596
  %2652 = vmatprep.subr.mxu0 %v2601
  %2653 = vmatpush1.msra.mxu0 %v2600
  %2654 = vmatprep.subr.mxu0 %v2605
  %2655 = vmatpush1.msra.mxu0 %v2604
  %2656 = vmatprep.subr.mxu0 %v2609
  %2657 = vmatpush1.msra.mxu0 %v2608
  %2658 = vmatprep.subr.mxu0 %v2613
  %2659 = vmatpush1.msra.mxu0 %v2612
  %2660 = vmatprep.subr.mxu0 %v2617
  %2661 = vmatpush1.msra.mxu0 %v2616
  %2662 = vmatprep.subr.mxu0 %v2621
  %2663 = vmatpush1.msra.mxu0 %v2620
  %2664 = vmatprep.subr.mxu0 %v2625
  %2665 = vmatpush1.msra.mxu0 %v2624
  %2666 = vmatprep.subr.mxu0 %v2629
  %2667 = vmatpush1.msra.mxu0 %v2628
  %2668 = vmatprep.subr.mxu0 %v2633
  %2669 = vmatpush1.msra.mxu0 %v2632
  %2670 = vmatprep.subr.mxu0 %v2637
  %2671 = vmatpush1.msra.mxu0 %v2636
  %2672 = vmatprep.subr.mxu0 0.0
  %2673 = vmatpush1.msra.mxu0 0.0
  %2674 = vmatprep.subr.mxu0 0.0
  %2675 = vmatpush1.msra.mxu0 0.0
  %2676 = vmatprep.subr.mxu0 0.0
  %2677 = vmatpush1.msra.mxu0 0.0
  %2678 = vmatprep.subr.mxu0 0.0
  %2679 = vmatpush1.msra.mxu0 0.0
  %2680 = vmatprep.subr.mxu0 0.0
  %2681 = vmatpush1.msra.mxu0 0.0
  %2682 = vmatprep.subr.mxu0 0.0
  %2683 = vmatpush1.msra.mxu0 0.0
  %2684 = vmatprep.subr.mxu0 0.0
  %2685 = vmatpush1.msra.mxu0 0.0
  %2686 = vmatprep.subr.mxu0 0.0
  %2687 = vmatpush1.msra.mxu0 0.0
  %2688 = vmatprep.subr.mxu0 0.0
  %2689 = vmatpush1.msra.mxu0 0.0
  %2690 = vmatprep.subr.mxu0 0.0
  %2691 = vmatpush1.msra.mxu0 0.0
  %2692 = vmatprep.subr.mxu0 0.0
  %2693 = vmatpush1.msra.mxu0 0.0
  %2694 = vmatprep.subr.mxu0 0.0
  %2695 = vmatpush1.msra.mxu0 0.0
  %2696 = vmatprep.subr.mxu0 0.0
  %2697 = vmatpush1.msra.mxu0 0.0
  %2698 = vmatprep.subr.mxu0 0.0
  %2699 = vmatpush1.msra.mxu0 0.0
  %2700 = vmatprep.subr.mxu0 0.0
  %2701 = vmatpush1.msra.mxu0 0.0
  %2702 = vmatprep.subr.mxu0 0.0
  %2703 = vmatpush1.msra.mxu0 0.0
  %2704 = vmatprep.mubr.f32.mxu0 0.0
  %2705 = vmatmul.mubr.f32.gmra.mrb[0].mxu0 %v2570
  %v2706 = vpop.f32.mrb[0].mxu0
  %v2707 = vadd.f32 0.0, %v2706
  %v2708 = vpop.f32.mrb[0].mxu0
  %v2709 = vadd.f32 0.0, %v2708
  %2710 = vdwg.mxu0
  %2711 = vmatprep.subr.mxu0 %v2579
  %2712 = vmatpush1.msra.mxu0 %v2578
  %2713 = vmatprep.subr.mxu0 %v2583
  %2714 = vmatpush1.msra.mxu0 %v2582
  %2715 = vmatprep.subr.mxu0 %v2587
  %2716 = vmatpush1.msra.mxu0 %v2586
  %2717 = vmatprep.subr.mxu0 %v2591
  %2718 = vmatpush1.msra.mxu0 %v2590
  %2719 = vmatprep.subr.mxu0 %v2595
  %2720 = vmatpush1.msra.mxu0 %v2594
  %2721 = vmatprep.subr.mxu0 %v2599
  %2722 = vmatpush1.msra.mxu0 %v2598
  %2723 = vmatprep.subr.mxu0 %v2603
  %2724 = vmatpush1.msra.mxu0 %v2602
  %2725 = vmatprep.subr.mxu0 %v2607
  %2726 = vmatpush1.msra.mxu0 %v2606
  %2727 = vmatprep.subr.mxu0 %v2611
  %2728 = vmatpush1.msra.mxu0 %v2610
  %2729 = vmatprep.subr.mxu0 %v2615
  %2730 = vmatpush1.msra.mxu0 %v2614
  %2731 = vmatprep.subr.mxu0 %v2619
  %2732 = vmatpush1.msra.mxu0 %v2618
  %2733 = vmatprep.subr.mxu0 %v2623
  %2734 = vmatpush1.msra.mxu0 %v2622
  %2735 = vmatprep.subr.mxu0 %v2627
  %2736 = vmatpush1.msra.mxu0 %v2626
  %2737 = vmatprep.subr.mxu0 %v2631
  %2738 = vmatpush1.msra.mxu0 %v2630
  %2739 = vmatprep.subr.mxu0 %v2635
  %2740 = vmatpush1.msra.mxu0 %v2634
  %2741 = vmatprep.subr.mxu0 %v2639
  %2742 = vmatpush1.msra.mxu0 %v2638
  %2743 = vmatprep.subr.mxu0 0.0
  %2744 = vmatpush1.msra.mxu0 0.0
  %2745 = vmatprep.subr.mxu0 0.0
  %2746 = vmatpush1.msra.mxu0 0.0
  %2747 = vmatprep.subr.mxu0 0.0
  %2748 = vmatpush1.msra.mxu0 0.0
  %2749 = vmatprep.subr.mxu0 0.0
  %2750 = vmatpush1.msra.mxu0 0.0
  %2751 = vmatprep.subr.mxu0 0.0
  %2752 = vmatpush1.msra.mxu0 0.0
  %2753 = vmatprep.subr.mxu0 0.0
  %2754 = vmatpush1.msra.mxu0 0.0
  %2755 = vmatprep.subr.mxu0 0.0
  %2756 = vmatpush1.msra.mxu0 0.0
  %2757 = vmatprep.subr.mxu0 0.0
  %2758 = vmatpush1.msra.mxu0 0.0
  %2759 = vmatprep.subr.mxu0 0.0
  %2760 = vmatpush1.msra.mxu0 0.0
  %2761 = vmatprep.subr.mxu0 0.0
  %2762 = vmatpush1.msra.mxu0 0.0
  %2763 = vmatprep.subr.mxu0 0.0
  %2764 = vmatpush1.msra.mxu0 0.0
  %2765 = vmatprep.subr.mxu0 0.0
  %2766 = vmatpush1.msra.mxu0 0.0
  %2767 = vmatprep.subr.mxu0 0.0
  %2768 = vmatpush1.msra.mxu0 0.0
  %2769 = vmatprep.subr.mxu0 0.0
  %2770 = vmatpush1.msra.mxu0 0.0
  %2771 = vmatprep.subr.mxu0 0.0
  %2772 = vmatpush1.msra.mxu0 0.0
  %2773 = vmatprep.subr.mxu0 0.0
  %2774 = vmatpush1.msra.mxu0 0.0
  %2775 = vmatprep.mubr.f32.mxu0 0.0
  %2776 = vmatmul.mubr.f32.gmra.mrb[0].mxu0 %v2570
  %v2777 = vpop.f32.mrb[0].mxu0
  %v2778 = vadd.f32 0.0, %v2777
  %v2779 = vpop.f32.mrb[0].mxu0
  %v2780 = vadd.f32 0.0, %v2779
  %2781 = vdwg.mxu0
  %v2786 = vrot.slane %v2707, 6
  %v2787 = vrot.slane %v2709, 6
  %v2788 = vrot.slane %v2778, 6
  %v2789 = vrot.slane %v2780, 6
  %v2794 = vadd.f32 %v2572, %v2786
  %v2795 = vadd.f32 %v2573, %v2787
  %v2796 = vadd.f32 %v2574, %v2788
  %v2797 = vadd.f32 %v2575, %v2789
  %v2798 = vxor.u32 %v2794, 2147483648
  %v2799 = vmul.f32 %v2798, 1.442695
  %v2800 = vpow.pop %v2799
  %v2801 = vadd.f32 %v2800, 1.0
  %v2802 = vrcp.pop %v2801
  %v2803 = vmul.f32 1.0, %v2802
  %v2804 = vxor.u32 %v2795, 2147483648
  %v2805 = vmul.f32 %v2804, 1.442695
  %v2806 = vpow.pop %v2805
  %v2807 = vadd.f32 %v2806, 1.0
  %v2808 = vrcp.pop %v2807
  %v2809 = vmul.f32 1.0, %v2808
  %v2810 = vtanh.pop %v2796
  %v2811 = vxor.u32 %v2797, 2147483648
  %v2812 = vmul.f32 %v2811, 1.442695
  %v2813 = vpow.pop %v2812
  %v2814 = vadd.f32 %v2813, 1.0
  %v2815 = vrcp.pop %v2814
  %v2816 = vmul.f32 1.0, %v2815
  %v2818 = vrot.slane %v2568, 6
  %v2820 = vmul.f32 %v2809, %v2818
  %v2821 = vmul.f32 %v2803, %v2810
  %v2822 = vadd.f32 %v2820, %v2821
  %v2823 = vtanh.pop %v2822
  %v2824 = vmul.f32 %v2816, %v2823
  %2825 = vst [vmem:[#allocation3 + $0x10] sm:$0xc] %v2824
  %v2826 = vld [vmem:[#allocation2 + $0x40] sm:$0x30]
  %v2827 = vld [vmem:[#allocation2 + $0x48] sm:$0x30]
  %v2828 = vld [vmem:[#allocation2 + $0x50] sm:$0x30]
  %v2829 = vld [vmem:[#allocation2 + $0x58] sm:$0x30]
  %v2830 = vld [vmem:[%s2] sm:$0xff]
  %v2831 = vld [vmem:[%s2 + $0x8] sm:$0xff]
  %v2832 = vld [vmem:[%s2 + $0x10] sm:$0xff]
  %v2833 = vld [vmem:[%s2 + $0x18] sm:$0xff]
  %v2834 = vld [vmem:[%s2 + $0x20] sm:$0xff]
  %v2835 = vld [vmem:[%s2 + $0x28] sm:$0xff]
  %v2836 = vld [vmem:[%s2 + $0x30] sm:$0xff]
  %v2837 = vld [vmem:[%s2 + $0x38] sm:$0xff]
  %v2838 = vld [vmem:[%s2 + $0x40] sm:$0xff]
  %v2839 = vld [vmem:[%s2 + $0x48] sm:$0xff]
  %v2840 = vld [vmem:[%s2 + $0x50] sm:$0xff]
  %v2841 = vld [vmem:[%s2 + $0x58] sm:$0xff]
  %v2842 = vld [vmem:[%s2 + $0x60] sm:$0xff]
  %v2843 = vld [vmem:[%s2 + $0x68] sm:$0xff]
  %v2844 = vld [vmem:[%s2 + $0x70] sm:$0xff]
  %v2845 = vld [vmem:[%s2 + $0x78] sm:$0xff]
  %v2846 = vld [vmem:[%s2 + $0x80] sm:$0xff]
  %v2847 = vld [vmem:[%s2 + $0x88] sm:$0xff]
  %v2848 = vld [vmem:[%s2 + $0x90] sm:$0xff]
  %v2849 = vld [vmem:[%s2 + $0x98] sm:$0xff]
  %v2850 = vld [vmem:[%s2 + $0xa0] sm:$0xff]
  %v2851 = vld [vmem:[%s2 + $0xa8] sm:$0xff]
  %v2852 = vld [vmem:[%s2 + $0xb0] sm:$0xff]
  %v2853 = vld [vmem:[%s2 + $0xb8] sm:$0xff]
  %v2854 = vld [vmem:[%s2 + $0xc0] sm:$0xff]
  %v2855 = vld [vmem:[%s2 + $0xc8] sm:$0xff]
  %v2856 = vld [vmem:[%s2 + $0xd0] sm:$0xff]
  %v2857 = vld [vmem:[%s2 + $0xd8] sm:$0xff]
  %v2858 = vld [vmem:[%s2 + $0xe0] sm:$0xff]
  %v2859 = vld [vmem:[%s2 + $0xe8] sm:$0xff]
  %v2860 = vld [vmem:[%s2 + $0xf0] sm:$0xff]
  %v2861 = vld [vmem:[%s2 + $0xf8] sm:$0xff]
  %v2862 = vld [vmem:[%s2 + $0x100] sm:$0xff]
  %v2863 = vld [vmem:[%s2 + $0x108] sm:$0xff]
  %v2864 = vld [vmem:[%s2 + $0x110] sm:$0xff]
  %v2865 = vld [vmem:[%s2 + $0x118] sm:$0xff]
  %v2866 = vld [vmem:[%s2 + $0x120] sm:$0xff]
  %v2867 = vld [vmem:[%s2 + $0x128] sm:$0xff]
  %v2868 = vld [vmem:[%s2 + $0x130] sm:$0xff]
  %v2869 = vld [vmem:[%s2 + $0x138] sm:$0xff]
  %v2870 = vld [vmem:[%s2 + $0x140] sm:$0xff]
  %v2871 = vld [vmem:[%s2 + $0x148] sm:$0xff]
  %v2872 = vld [vmem:[%s2 + $0x150] sm:$0xff]
  %v2873 = vld [vmem:[%s2 + $0x158] sm:$0xff]
  %v2874 = vld [vmem:[%s2 + $0x160] sm:$0xff]
  %v2875 = vld [vmem:[%s2 + $0x168] sm:$0xff]
  %v2876 = vld [vmem:[%s2 + $0x170] sm:$0xff]
  %v2877 = vld [vmem:[%s2 + $0x178] sm:$0xff]
  %v2878 = vld [vmem:[%s2 + $0x180] sm:$0xff]
  %v2879 = vld [vmem:[%s2 + $0x188] sm:$0xff]
  %v2880 = vld [vmem:[%s2 + $0x190] sm:$0xff]
  %v2881 = vld [vmem:[%s2 + $0x198] sm:$0xff]
  %v2882 = vld [vmem:[%s2 + $0x1a0] sm:$0xff]
  %v2883 = vld [vmem:[%s2 + $0x1a8] sm:$0xff]
  %v2884 = vld [vmem:[%s2 + $0x1b0] sm:$0xff]
  %v2885 = vld [vmem:[%s2 + $0x1b8] sm:$0xff]
  %v2886 = vld [vmem:[%s2 + $0x1c0] sm:$0xff]
  %v2887 = vld [vmem:[%s2 + $0x1c8] sm:$0xff]
  %v2888 = vld [vmem:[%s2 + $0x1d0] sm:$0xff]
  %v2889 = vld [vmem:[%s2 + $0x1d8] sm:$0xff]
  %v2890 = vld [vmem:[%s2 + $0x1e0] sm:$0xff]
  %v2891 = vld [vmem:[%s2 + $0x1e8] sm:$0xff]
  %v2892 = vld [vmem:[%s2 + $0x1f0] sm:$0xff]
  %v2893 = vld [vmem:[%s2 + $0x1f8] sm:$0xff]
  %v2895 = vrot.slane %v2824, 2
  %2897 = vmatprep.subr.mxu0 %v2831
  %2898 = vmatpush1.msra.mxu0 %v2830
  %2899 = vmatprep.subr.mxu0 %v2835
  %2900 = vmatpush1.msra.mxu0 %v2834
  %2901 = vmatprep.subr.mxu0 %v2839
  %2902 = vmatpush1.msra.mxu0 %v2838
  %2903 = vmatprep.subr.mxu0 %v2843
  %2904 = vmatpush1.msra.mxu0 %v2842
  %2905 = vmatprep.subr.mxu0 %v2847
  %2906 = vmatpush1.msra.mxu0 %v2846
  %2907 = vmatprep.subr.mxu0 %v2851
  %2908 = vmatpush1.msra.mxu0 %v2850
  %2909 = vmatprep.subr.mxu0 %v2855
  %2910 = vmatpush1.msra.mxu0 %v2854
  %2911 = vmatprep.subr.mxu0 %v2859
  %2912 = vmatpush1.msra.mxu0 %v2858
  %2913 = vmatprep.subr.mxu0 %v2863
  %2914 = vmatpush1.msra.mxu0 %v2862
  %2915 = vmatprep.subr.mxu0 %v2867
  %2916 = vmatpush1.msra.mxu0 %v2866
  %2917 = vmatprep.subr.mxu0 %v2871
  %2918 = vmatpush1.msra.mxu0 %v2870
  %2919 = vmatprep.subr.mxu0 %v2875
  %2920 = vmatpush1.msra.mxu0 %v2874
  %2921 = vmatprep.subr.mxu0 %v2879
  %2922 = vmatpush1.msra.mxu0 %v2878
  %2923 = vmatprep.subr.mxu0 %v2883
  %2924 = vmatpush1.msra.mxu0 %v2882
  %2925 = vmatprep.subr.mxu0 %v2887
  %2926 = vmatpush1.msra.mxu0 %v2886
  %2927 = vmatprep.subr.mxu0 %v2891
  %2928 = vmatpush1.msra.mxu0 %v2890
  %2929 = vmatprep.subr.mxu0 0.0
  %2930 = vmatpush1.msra.mxu0 0.0
  %2931 = vmatprep.subr.mxu0 0.0
  %2932 = vmatpush1.msra.mxu0 0.0
  %2933 = vmatprep.subr.mxu0 0.0
  %2934 = vmatpush1.msra.mxu0 0.0
  %2935 = vmatprep.subr.mxu0 0.0
  %2936 = vmatpush1.msra.mxu0 0.0
  %2937 = vmatprep.subr.mxu0 0.0
  %2938 = vmatpush1.msra.mxu0 0.0
  %2939 = vmatprep.subr.mxu0 0.0
  %2940 = vmatpush1.msra.mxu0 0.0
  %2941 = vmatprep.subr.mxu0 0.0
  %2942 = vmatpush1.msra.mxu0 0.0
  %2943 = vmatprep.subr.mxu0 0.0
  %2944 = vmatpush1.msra.mxu0 0.0
  %2945 = vmatprep.subr.mxu0 0.0
  %2946 = vmatpush1.msra.mxu0 0.0
  %2947 = vmatprep.subr.mxu0 0.0
  %2948 = vmatpush1.msra.mxu0 0.0
  %2949 = vmatprep.subr.mxu0 0.0
  %2950 = vmatpush1.msra.mxu0 0.0
  %2951 = vmatprep.subr.mxu0 0.0
  %2952 = vmatpush1.msra.mxu0 0.0
  %2953 = vmatprep.subr.mxu0 0.0
  %2954 = vmatpush1.msra.mxu0 0.0
  %2955 = vmatprep.subr.mxu0 0.0
  %2956 = vmatpush1.msra.mxu0 0.0
  %2957 = vmatprep.subr.mxu0 0.0
  %2958 = vmatpush1.msra.mxu0 0.0
  %2959 = vmatprep.subr.mxu0 0.0
  %2960 = vmatpush1.msra.mxu0 0.0
  %2961 = vmatprep.mubr.f32.mxu0 0.0
  %2962 = vmatmul.mubr.f32.gmra.mrb[0].mxu0 %v2895
  %v2963 = vpop.f32.mrb[0].mxu0
  %v2964 = vadd.f32 0.0, %v2963
  %v2965 = vpop.f32.mrb[0].mxu0
  %v2966 = vadd.f32 0.0, %v2965
  %2967 = vdwg.mxu0
  %2968 = vmatprep.subr.mxu0 %v2833
  %2969 = vmatpush1.msra.mxu0 %v2832
  %2970 = vmatprep.subr.mxu0 %v2837
  %2971 = vmatpush1.msra.mxu0 %v2836
  %2972 = vmatprep.subr.mxu0 %v2841
  %2973 = vmatpush1.msra.mxu0 %v2840
  %2974 = vmatprep.subr.mxu0 %v2845
  %2975 = vmatpush1.msra.mxu0 %v2844
  %2976 = vmatprep.subr.mxu0 %v2849
  %2977 = vmatpush1.msra.mxu0 %v2848
  %2978 = vmatprep.subr.mxu0 %v2853
  %2979 = vmatpush1.msra.mxu0 %v2852
  %2980 = vmatprep.subr.mxu0 %v2857
  %2981 = vmatpush1.msra.mxu0 %v2856
  %2982 = vmatprep.subr.mxu0 %v2861
  %2983 = vmatpush1.msra.mxu0 %v2860
  %2984 = vmatprep.subr.mxu0 %v2865
  %2985 = vmatpush1.msra.mxu0 %v2864
  %2986 = vmatprep.subr.mxu0 %v2869
  %2987 = vmatpush1.msra.mxu0 %v2868
  %2988 = vmatprep.subr.mxu0 %v2873
  %2989 = vmatpush1.msra.mxu0 %v2872
  %2990 = vmatprep.subr.mxu0 %v2877
  %2991 = vmatpush1.msra.mxu0 %v2876
  %2992 = vmatprep.subr.mxu0 %v2881
  %2993 = vmatpush1.msra.mxu0 %v2880
  %2994 = vmatprep.subr.mxu0 %v2885
  %2995 = vmatpush1.msra.mxu0 %v2884
  %2996 = vmatprep.subr.mxu0 %v2889
  %2997 = vmatpush1.msra.mxu0 %v2888
  %2998 = vmatprep.subr.mxu0 %v2893
  %2999 = vmatpush1.msra.mxu0 %v2892
  %3000 = vmatprep.subr.mxu0 0.0
  %3001 = vmatpush1.msra.mxu0 0.0
  %3002 = vmatprep.subr.mxu0 0.0
  %3003 = vmatpush1.msra.mxu0 0.0
  %3004 = vmatprep.subr.mxu0 0.0
  %3005 = vmatpush1.msra.mxu0 0.0
  %3006 = vmatprep.subr.mxu0 0.0
  %3007 = vmatpush1.msra.mxu0 0.0
  %3008 = vmatprep.subr.mxu0 0.0
  %3009 = vmatpush1.msra.mxu0 0.0
  %3010 = vmatprep.subr.mxu0 0.0
  %3011 = vmatpush1.msra.mxu0 0.0
  %3012 = vmatprep.subr.mxu0 0.0
  %3013 = vmatpush1.msra.mxu0 0.0
  %3014 = vmatprep.subr.mxu0 0.0
  %3015 = vmatpush1.msra.mxu0 0.0
  %3016 = vmatprep.subr.mxu0 0.0
  %3017 = vmatpush1.msra.mxu0 0.0
  %3018 = vmatprep.subr.mxu0 0.0
  %3019 = vmatpush1.msra.mxu0 0.0
  %3020 = vmatprep.subr.mxu0 0.0
  %3021 = vmatpush1.msra.mxu0 0.0
  %3022 = vmatprep.subr.mxu0 0.0
  %3023 = vmatpush1.msra.mxu0 0.0
  %3024 = vmatprep.subr.mxu0 0.0
  %3025 = vmatpush1.msra.mxu0 0.0
  %3026 = vmatprep.subr.mxu0 0.0
  %3027 = vmatpush1.msra.mxu0 0.0
  %3028 = vmatprep.subr.mxu0 0.0
  %3029 = vmatpush1.msra.mxu0 0.0
  %3030 = vmatprep.subr.mxu0 0.0
  %3031 = vmatpush1.msra.mxu0 0.0
  %3032 = vmatprep.mubr.f32.mxu0 0.0
  %3033 = vmatmul.mubr.f32.gmra.mrb[0].mxu0 %v2895
  %v3034 = vpop.f32.mrb[0].mxu0
  %v3035 = vadd.f32 0.0, %v3034
  %v3036 = vpop.f32.mrb[0].mxu0
  %v3037 = vadd.f32 0.0, %v3036
  %3038 = vdwg.mxu0
  %v3043 = vrot.slane %v2964, 4
  %v3044 = vrot.slane %v2966, 4
  %v3045 = vrot.slane %v3035, 4
  %v3046 = vrot.slane %v3037, 4
  %v3051 = vadd.f32 %v2826, %v3043
  %v3052 = vadd.f32 %v2827, %v3044
  %v3053 = vadd.f32 %v2828, %v3045
  %v3054 = vadd.f32 %v2829, %v3046
  %v3055 = vxor.u32 %v3051, 2147483648
  %v3056 = vmul.f32 %v3055, 1.442695
  %v3057 = vpow.pop %v3056
  %v3058 = vadd.f32 %v3057, 1.0
  %v3059 = vrcp.pop %v3058
  %v3060 = vmul.f32 1.0, %v3059
  %v3061 = vxor.u32 %v3052, 2147483648
  %v3062 = vmul.f32 %v3061, 1.442695
  %v3063 = vpow.pop %v3062
  %v3064 = vadd.f32 %v3063, 1.0
  %v3065 = vrcp.pop %v3064
  %v3066 = vmul.f32 1.0, %v3065
  %v3067 = vtanh.pop %v3053
  %v3068 = vxor.u32 %v3054, 2147483648
  %v3069 = vmul.f32 %v3068, 1.442695
  %v3070 = vpow.pop %v3069
  %v3071 = vadd.f32 %v3070, 1.0
  %v3072 = vrcp.pop %v3071
  %v3073 = vmul.f32 1.0, %v3072
  %v3075 = vrot.slane %v2822, 6
  %v3077 = vmul.f32 %v3066, %v3075
  %v3078 = vmul.f32 %v3060, %v3067
  %v3079 = vadd.f32 %v3077, %v3078
  %v3080 = vtanh.pop %v3079
  %v3081 = vmul.f32 %v3073, %v3080
  %3082 = vst [vmem:[#allocation3 + $0x10] sm:$0x30] %v3081
  %v3083 = vld [vmem:[#allocation2 + $0x40] sm:$0xc0]
  %v3084 = vld [vmem:[#allocation2 + $0x48] sm:$0xc0]
  %v3085 = vld [vmem:[#allocation2 + $0x50] sm:$0xc0]
  %v3086 = vld [vmem:[#allocation2 + $0x58] sm:$0xc0]
  %v3087 = vld [vmem:[%s2] sm:$0xff]
  %v3088 = vld [vmem:[%s2 + $0x8] sm:$0xff]
  %v3089 = vld [vmem:[%s2 + $0x10] sm:$0xff]
  %v3090 = vld [vmem:[%s2 + $0x18] sm:$0xff]
  %v3091 = vld [vmem:[%s2 + $0x20] sm:$0xff]
  %v3092 = vld [vmem:[%s2 + $0x28] sm:$0xff]
  %v3093 = vld [vmem:[%s2 + $0x30] sm:$0xff]
  %v3094 = vld [vmem:[%s2 + $0x38] sm:$0xff]
  %v3095 = vld [vmem:[%s2 + $0x40] sm:$0xff]
  %v3096 = vld [vmem:[%s2 + $0x48] sm:$0xff]
  %v3097 = vld [vmem:[%s2 + $0x50] sm:$0xff]
  %v3098 = vld [vmem:[%s2 + $0x58] sm:$0xff]
  %v3099 = vld [vmem:[%s2 + $0x60] sm:$0xff]
  %v3100 = vld [vmem:[%s2 + $0x68] sm:$0xff]
  %v3101 = vld [vmem:[%s2 + $0x70] sm:$0xff]
  %v3102 = vld [vmem:[%s2 + $0x78] sm:$0xff]
  %v3103 = vld [vmem:[%s2 + $0x80] sm:$0xff]
  %v3104 = vld [vmem:[%s2 + $0x88] sm:$0xff]
  %v3105 = vld [vmem:[%s2 + $0x90] sm:$0xff]
  %v3106 = vld [vmem:[%s2 + $0x98] sm:$0xff]
  %v3107 = vld [vmem:[%s2 + $0xa0] sm:$0xff]
  %v3108 = vld [vmem:[%s2 + $0xa8] sm:$0xff]
  %v3109 = vld [vmem:[%s2 + $0xb0] sm:$0xff]
  %v3110 = vld [vmem:[%s2 + $0xb8] sm:$0xff]
  %v3111 = vld [vmem:[%s2 + $0xc0] sm:$0xff]
  %v3112 = vld [vmem:[%s2 + $0xc8] sm:$0xff]
  %v3113 = vld [vmem:[%s2 + $0xd0] sm:$0xff]
  %v3114 = vld [vmem:[%s2 + $0xd8] sm:$0xff]
  %v3115 = vld [vmem:[%s2 + $0xe0] sm:$0xff]
  %v3116 = vld [vmem:[%s2 + $0xe8] sm:$0xff]
  %v3117 = vld [vmem:[%s2 + $0xf0] sm:$0xff]
  %v3118 = vld [vmem:[%s2 + $0xf8] sm:$0xff]
  %v3119 = vld [vmem:[%s2 + $0x100] sm:$0xff]
  %v3120 = vld [vmem:[%s2 + $0x108] sm:$0xff]
  %v3121 = vld [vmem:[%s2 + $0x110] sm:$0xff]
  %v3122 = vld [vmem:[%s2 + $0x118] sm:$0xff]
  %v3123 = vld [vmem:[%s2 + $0x120] sm:$0xff]
  %v3124 = vld [vmem:[%s2 + $0x128] sm:$0xff]
  %v3125 = vld [vmem:[%s2 + $0x130] sm:$0xff]
  %v3126 = vld [vmem:[%s2 + $0x138] sm:$0xff]
  %v3127 = vld [vmem:[%s2 + $0x140] sm:$0xff]
  %v3128 = vld [vmem:[%s2 + $0x148] sm:$0xff]
  %v3129 = vld [vmem:[%s2 + $0x150] sm:$0xff]
  %v3130 = vld [vmem:[%s2 + $0x158] sm:$0xff]
  %v3131 = vld [vmem:[%s2 + $0x160] sm:$0xff]
  %v3132 = vld [vmem:[%s2 + $0x168] sm:$0xff]
  %v3133 = vld [vmem:[%s2 + $0x170] sm:$0xff]
  %v3134 = vld [vmem:[%s2 + $0x178] sm:$0xff]
  %v3135 = vld [vmem:[%s2 + $0x180] sm:$0xff]
  %v3136 = vld [vmem:[%s2 + $0x188] sm:$0xff]
  %v3137 = vld [vmem:[%s2 + $0x190] sm:$0xff]
  %v3138 = vld [vmem:[%s2 + $0x198] sm:$0xff]
  %v3139 = vld [vmem:[%s2 + $0x1a0] sm:$0xff]
  %v3140 = vld [vmem:[%s2 + $0x1a8] sm:$0xff]
  %v3141 = vld [vmem:[%s2 + $0x1b0] sm:$0xff]
  %v3142 = vld [vmem:[%s2 + $0x1b8] sm:$0xff]
  %v3143 = vld [vmem:[%s2 + $0x1c0] sm:$0xff]
  %v3144 = vld [vmem:[%s2 + $0x1c8] sm:$0xff]
  %v3145 = vld [vmem:[%s2 + $0x1d0] sm:$0xff]
  %v3146 = vld [vmem:[%s2 + $0x1d8] sm:$0xff]
  %v3147 = vld [vmem:[%s2 + $0x1e0] sm:$0xff]
  %v3148 = vld [vmem:[%s2 + $0x1e8] sm:$0xff]
  %v3149 = vld [vmem:[%s2 + $0x1f0] sm:$0xff]
  %v3150 = vld [vmem:[%s2 + $0x1f8] sm:$0xff]
  %v3152 = vrot.slane %v3081, 4
  %3154 = vmatprep.subr.mxu0 %v3088
  %3155 = vmatpush1.msra.mxu0 %v3087
  %3156 = vmatprep.subr.mxu0 %v3092
  %3157 = vmatpush1.msra.mxu0 %v3091
  %3158 = vmatprep.subr.mxu0 %v3096
  %3159 = vmatpush1.msra.mxu0 %v3095
  %3160 = vmatprep.subr.mxu0 %v3100
  %3161 = vmatpush1.msra.mxu0 %v3099
  %3162 = vmatprep.subr.mxu0 %v3104
  %3163 = vmatpush1.msra.mxu0 %v3103
  %3164 = vmatprep.subr.mxu0 %v3108
  %3165 = vmatpush1.msra.mxu0 %v3107
  %3166 = vmatprep.subr.mxu0 %v3112
  %3167 = vmatpush1.msra.mxu0 %v3111
  %3168 = vmatprep.subr.mxu0 %v3116
  %3169 = vmatpush1.msra.mxu0 %v3115
  %3170 = vmatprep.subr.mxu0 %v3120
  %3171 = vmatpush1.msra.mxu0 %v3119
  %3172 = vmatprep.subr.mxu0 %v3124
  %3173 = vmatpush1.msra.mxu0 %v3123
  %3174 = vmatprep.subr.mxu0 %v3128
  %3175 = vmatpush1.msra.mxu0 %v3127
  %3176 = vmatprep.subr.mxu0 %v3132
  %3177 = vmatpush1.msra.mxu0 %v3131
  %3178 = vmatprep.subr.mxu0 %v3136
  %3179 = vmatpush1.msra.mxu0 %v3135
  %3180 = vmatprep.subr.mxu0 %v3140
  %3181 = vmatpush1.msra.mxu0 %v3139
  %3182 = vmatprep.subr.mxu0 %v3144
  %3183 = vmatpush1.msra.mxu0 %v3143
  %3184 = vmatprep.subr.mxu0 %v3148
  %3185 = vmatpush1.msra.mxu0 %v3147
  %3186 = vmatprep.subr.mxu0 0.0
  %3187 = vmatpush1.msra.mxu0 0.0
  %3188 = vmatprep.subr.mxu0 0.0
  %3189 = vmatpush1.msra.mxu0 0.0
  %3190 = vmatprep.subr.mxu0 0.0
  %3191 = vmatpush1.msra.mxu0 0.0
  %3192 = vmatprep.subr.mxu0 0.0
  %3193 = vmatpush1.msra.mxu0 0.0
  %3194 = vmatprep.subr.mxu0 0.0
  %3195 = vmatpush1.msra.mxu0 0.0
  %3196 = vmatprep.subr.mxu0 0.0
  %3197 = vmatpush1.msra.mxu0 0.0
  %3198 = vmatprep.subr.mxu0 0.0
  %3199 = vmatpush1.msra.mxu0 0.0
  %3200 = vmatprep.subr.mxu0 0.0
  %3201 = vmatpush1.msra.mxu0 0.0
  %3202 = vmatprep.subr.mxu0 0.0
  %3203 = vmatpush1.msra.mxu0 0.0
  %3204 = vmatprep.subr.mxu0 0.0
  %3205 = vmatpush1.msra.mxu0 0.0
  %3206 = vmatprep.subr.mxu0 0.0
  %3207 = vmatpush1.msra.mxu0 0.0
  %3208 = vmatprep.subr.mxu0 0.0
  %3209 = vmatpush1.msra.mxu0 0.0
  %3210 = vmatprep.subr.mxu0 0.0
  %3211 = vmatpush1.msra.mxu0 0.0
  %3212 = vmatprep.subr.mxu0 0.0
  %3213 = vmatpush1.msra.mxu0 0.0
  %3214 = vmatprep.subr.mxu0 0.0
  %3215 = vmatpush1.msra.mxu0 0.0
  %3216 = vmatprep.subr.mxu0 0.0
  %3217 = vmatpush1.msra.mxu0 0.0
  %3218 = vmatprep.mubr.f32.mxu0 0.0
  %3219 = vmatmul.mubr.f32.gmra.mrb[0].mxu0 %v3152
  %v3220 = vpop.f32.mrb[0].mxu0
  %v3221 = vadd.f32 0.0, %v3220
  %v3222 = vpop.f32.mrb[0].mxu0
  %v3223 = vadd.f32 0.0, %v3222
  %3224 = vdwg.mxu0
  %3225 = vmatprep.subr.mxu0 %v3090
  %3226 = vmatpush1.msra.mxu0 %v3089
  %3227 = vmatprep.subr.mxu0 %v3094
  %3228 = vmatpush1.msra.mxu0 %v3093
  %3229 = vmatprep.subr.mxu0 %v3098
  %3230 = vmatpush1.msra.mxu0 %v3097
  %3231 = vmatprep.subr.mxu0 %v3102
  %3232 = vmatpush1.msra.mxu0 %v3101
  %3233 = vmatprep.subr.mxu0 %v3106
  %3234 = vmatpush1.msra.mxu0 %v3105
  %3235 = vmatprep.subr.mxu0 %v3110
  %3236 = vmatpush1.msra.mxu0 %v3109
  %3237 = vmatprep.subr.mxu0 %v3114
  %3238 = vmatpush1.msra.mxu0 %v3113
  %3239 = vmatprep.subr.mxu0 %v3118
  %3240 = vmatpush1.msra.mxu0 %v3117
  %3241 = vmatprep.subr.mxu0 %v3122
  %3242 = vmatpush1.msra.mxu0 %v3121
  %3243 = vmatprep.subr.mxu0 %v3126
  %3244 = vmatpush1.msra.mxu0 %v3125
  %3245 = vmatprep.subr.mxu0 %v3130
  %3246 = vmatpush1.msra.mxu0 %v3129
  %3247 = vmatprep.subr.mxu0 %v3134
  %3248 = vmatpush1.msra.mxu0 %v3133
  %3249 = vmatprep.subr.mxu0 %v3138
  %3250 = vmatpush1.msra.mxu0 %v3137
  %3251 = vmatprep.subr.mxu0 %v3142
  %3252 = vmatpush1.msra.mxu0 %v3141
  %3253 = vmatprep.subr.mxu0 %v3146
  %3254 = vmatpush1.msra.mxu0 %v3145
  %3255 = vmatprep.subr.mxu0 %v3150
  %3256 = vmatpush1.msra.mxu0 %v3149
  %3257 = vmatprep.subr.mxu0 0.0
  %3258 = vmatpush1.msra.mxu0 0.0
  %3259 = vmatprep.subr.mxu0 0.0
  %3260 = vmatpush1.msra.mxu0 0.0
  %3261 = vmatprep.subr.mxu0 0.0
  %3262 = vmatpush1.msra.mxu0 0.0
  %3263 = vmatprep.subr.mxu0 0.0
  %3264 = vmatpush1.msra.mxu0 0.0
  %3265 = vmatprep.subr.mxu0 0.0
  %3266 = vmatpush1.msra.mxu0 0.0
  %3267 = vmatprep.subr.mxu0 0.0
  %3268 = vmatpush1.msra.mxu0 0.0
  %3269 = vmatprep.subr.mxu0 0.0
  %3270 = vmatpush1.msra.mxu0 0.0
  %3271 = vmatprep.subr.mxu0 0.0
  %3272 = vmatpush1.msra.mxu0 0.0
  %3273 = vmatprep.subr.mxu0 0.0
  %3274 = vmatpush1.msra.mxu0 0.0
  %3275 = vmatprep.subr.mxu0 0.0
  %3276 = vmatpush1.msra.mxu0 0.0
  %3277 = vmatprep.subr.mxu0 0.0
  %3278 = vmatpush1.msra.mxu0 0.0
  %3279 = vmatprep.subr.mxu0 0.0
  %3280 = vmatpush1.msra.mxu0 0.0
  %3281 = vmatprep.subr.mxu0 0.0
  %3282 = vmatpush1.msra.mxu0 0.0
  %3283 = vmatprep.subr.mxu0 0.0
  %3284 = vmatpush1.msra.mxu0 0.0
  %3285 = vmatprep.subr.mxu0 0.0
  %3286 = vmatpush1.msra.mxu0 0.0
  %3287 = vmatprep.subr.mxu0 0.0
  %3288 = vmatpush1.msra.mxu0 0.0
  %3289 = vmatprep.mubr.f32.mxu0 0.0
  %3290 = vmatmul.mubr.f32.gmra.mrb[0].mxu0 %v3152
  %v3291 = vpop.f32.mrb[0].mxu0
  %v3292 = vadd.f32 0.0, %v3291
  %v3293 = vpop.f32.mrb[0].mxu0
  %v3294 = vadd.f32 0.0, %v3293
  %3295 = vdwg.mxu0
  %v3300 = vrot.slane %v3221, 2
  %v3301 = vrot.slane %v3223, 2
  %v3302 = vrot.slane %v3292, 2
  %v3303 = vrot.slane %v3294, 2
  %v3308 = vadd.f32 %v3083, %v3300
  %v3309 = vadd.f32 %v3084, %v3301
  %v3310 = vadd.f32 %v3085, %v3302
  %v3311 = vadd.f32 %v3086, %v3303
  %v3312 = vxor.u32 %v3308, 2147483648
  %v3313 = vmul.f32 %v3312, 1.442695
  %v3314 = vpow.pop %v3313
  %v3315 = vadd.f32 %v3314, 1.0
  %v3316 = vrcp.pop %v3315
  %v3317 = vmul.f32 1.0, %v3316
  %v3318 = vxor.u32 %v3309, 2147483648
  %v3319 = vmul.f32 %v3318, 1.442695
  %v3320 = vpow.pop %v3319
  %v3321 = vadd.f32 %v3320, 1.0
  %v3322 = vrcp.pop %v3321
  %v3323 = vmul.f32 1.0, %v3322
  %v3324 = vtanh.pop %v3310
  %v3325 = vxor.u32 %v3311, 2147483648
  %v3326 = vmul.f32 %v3325, 1.442695
  %v3327 = vpow.pop %v3326
  %v3328 = vadd.f32 %v3327, 1.0
  %v3329 = vrcp.pop %v3328
  %v3330 = vmul.f32 1.0, %v3329
  %v3332 = vrot.slane %v3079, 6
  %v3334 = vmul.f32 %v3323, %v3332
  %v3335 = vmul.f32 %v3317, %v3324
  %v3336 = vadd.f32 %v3334, %v3335
  %v3337 = vtanh.pop %v3336
  %v3338 = vmul.f32 %v3330, %v3337
  %3339 = vst [vmem:[#allocation3 + $0x10] sm:$0xc0] %v3338
  %v3340 = vld [vmem:[#allocation2 + $0x60] sm:$0x3]
  %v3341 = vld [vmem:[#allocation2 + $0x68] sm:$0x3]
  %v3342 = vld [vmem:[#allocation2 + $0x70] sm:$0x3]
  %v3343 = vld [vmem:[#allocation2 + $0x78] sm:$0x3]
  %v3344 = vld [vmem:[%s2] sm:$0xff]
  %v3345 = vld [vmem:[%s2 + $0x8] sm:$0xff]
  %v3346 = vld [vmem:[%s2 + $0x10] sm:$0xff]
  %v3347 = vld [vmem:[%s2 + $0x18] sm:$0xff]
  %v3348 = vld [vmem:[%s2 + $0x20] sm:$0xff]
  %v3349 = vld [vmem:[%s2 + $0x28] sm:$0xff]
  %v3350 = vld [vmem:[%s2 + $0x30] sm:$0xff]
  %v3351 = vld [vmem:[%s2 + $0x38] sm:$0xff]
  %v3352 = vld [vmem:[%s2 + $0x40] sm:$0xff]
  %v3353 = vld [vmem:[%s2 + $0x48] sm:$0xff]
  %v3354 = vld [vmem:[%s2 + $0x50] sm:$0xff]
  %v3355 = vld [vmem:[%s2 + $0x58] sm:$0xff]
  %v3356 = vld [vmem:[%s2 + $0x60] sm:$0xff]
  %v3357 = vld [vmem:[%s2 + $0x68] sm:$0xff]
  %v3358 = vld [vmem:[%s2 + $0x70] sm:$0xff]
  %v3359 = vld [vmem:[%s2 + $0x78] sm:$0xff]
  %v3360 = vld [vmem:[%s2 + $0x80] sm:$0xff]
  %v3361 = vld [vmem:[%s2 + $0x88] sm:$0xff]
  %v3362 = vld [vmem:[%s2 + $0x90] sm:$0xff]
  %v3363 = vld [vmem:[%s2 + $0x98] sm:$0xff]
  %v3364 = vld [vmem:[%s2 + $0xa0] sm:$0xff]
  %v3365 = vld [vmem:[%s2 + $0xa8] sm:$0xff]
  %v3366 = vld [vmem:[%s2 + $0xb0] sm:$0xff]
  %v3367 = vld [vmem:[%s2 + $0xb8] sm:$0xff]
  %v3368 = vld [vmem:[%s2 + $0xc0] sm:$0xff]
  %v3369 = vld [vmem:[%s2 + $0xc8] sm:$0xff]
  %v3370 = vld [vmem:[%s2 + $0xd0] sm:$0xff]
  %v3371 = vld [vmem:[%s2 + $0xd8] sm:$0xff]
  %v3372 = vld [vmem:[%s2 + $0xe0] sm:$0xff]
  %v3373 = vld [vmem:[%s2 + $0xe8] sm:$0xff]
  %v3374 = vld [vmem:[%s2 + $0xf0] sm:$0xff]
  %v3375 = vld [vmem:[%s2 + $0xf8] sm:$0xff]
  %v3376 = vld [vmem:[%s2 + $0x100] sm:$0xff]
  %v3377 = vld [vmem:[%s2 + $0x108] sm:$0xff]
  %v3378 = vld [vmem:[%s2 + $0x110] sm:$0xff]
  %v3379 = vld [vmem:[%s2 + $0x118] sm:$0xff]
  %v3380 = vld [vmem:[%s2 + $0x120] sm:$0xff]
  %v3381 = vld [vmem:[%s2 + $0x128] sm:$0xff]
  %v3382 = vld [vmem:[%s2 + $0x130] sm:$0xff]
  %v3383 = vld [vmem:[%s2 + $0x138] sm:$0xff]
  %v3384 = vld [vmem:[%s2 + $0x140] sm:$0xff]
  %v3385 = vld [vmem:[%s2 + $0x148] sm:$0xff]
  %v3386 = vld [vmem:[%s2 + $0x150] sm:$0xff]
  %v3387 = vld [vmem:[%s2 + $0x158] sm:$0xff]
  %v3388 = vld [vmem:[%s2 + $0x160] sm:$0xff]
  %v3389 = vld [vmem:[%s2 + $0x168] sm:$0xff]
  %v3390 = vld [vmem:[%s2 + $0x170] sm:$0xff]
  %v3391 = vld [vmem:[%s2 + $0x178] sm:$0xff]
  %v3392 = vld [vmem:[%s2 + $0x180] sm:$0xff]
  %v3393 = vld [vmem:[%s2 + $0x188] sm:$0xff]
  %v3394 = vld [vmem:[%s2 + $0x190] sm:$0xff]
  %v3395 = vld [vmem:[%s2 + $0x198] sm:$0xff]
  %v3396 = vld [vmem:[%s2 + $0x1a0] sm:$0xff]
  %v3397 = vld [vmem:[%s2 + $0x1a8] sm:$0xff]
  %v3398 = vld [vmem:[%s2 + $0x1b0] sm:$0xff]
  %v3399 = vld [vmem:[%s2 + $0x1b8] sm:$0xff]
  %v3400 = vld [vmem:[%s2 + $0x1c0] sm:$0xff]
  %v3401 = vld [vmem:[%s2 + $0x1c8] sm:$0xff]
  %v3402 = vld [vmem:[%s2 + $0x1d0] sm:$0xff]
  %v3403 = vld [vmem:[%s2 + $0x1d8] sm:$0xff]
  %v3404 = vld [vmem:[%s2 + $0x1e0] sm:$0xff]
  %v3405 = vld [vmem:[%s2 + $0x1e8] sm:$0xff]
  %v3406 = vld [vmem:[%s2 + $0x1f0] sm:$0xff]
  %v3407 = vld [vmem:[%s2 + $0x1f8] sm:$0xff]
  %v3409 = vrot.slane %v3338, 6
  %3411 = vmatprep.subr.mxu0 %v3345
  %3412 = vmatpush1.msra.mxu0 %v3344
  %3413 = vmatprep.subr.mxu0 %v3349
  %3414 = vmatpush1.msra.mxu0 %v3348
  %3415 = vmatprep.subr.mxu0 %v3353
  %3416 = vmatpush1.msra.mxu0 %v3352
  %3417 = vmatprep.subr.mxu0 %v3357
  %3418 = vmatpush1.msra.mxu0 %v3356
  %3419 = vmatprep.subr.mxu0 %v3361
  %3420 = vmatpush1.msra.mxu0 %v3360
  %3421 = vmatprep.subr.mxu0 %v3365
  %3422 = vmatpush1.msra.mxu0 %v3364
  %3423 = vmatprep.subr.mxu0 %v3369
  %3424 = vmatpush1.msra.mxu0 %v3368
  %3425 = vmatprep.subr.mxu0 %v3373
  %3426 = vmatpush1.msra.mxu0 %v3372
  %3427 = vmatprep.subr.mxu0 %v3377
  %3428 = vmatpush1.msra.mxu0 %v3376
  %3429 = vmatprep.subr.mxu0 %v3381
  %3430 = vmatpush1.msra.mxu0 %v3380
  %3431 = vmatprep.subr.mxu0 %v3385
  %3432 = vmatpush1.msra.mxu0 %v3384
  %3433 = vmatprep.subr.mxu0 %v3389
  %3434 = vmatpush1.msra.mxu0 %v3388
  %3435 = vmatprep.subr.mxu0 %v3393
  %3436 = vmatpush1.msra.mxu0 %v3392
  %3437 = vmatprep.subr.mxu0 %v3397
  %3438 = vmatpush1.msra.mxu0 %v3396
  %3439 = vmatprep.subr.mxu0 %v3401
  %3440 = vmatpush1.msra.mxu0 %v3400
  %3441 = vmatprep.subr.mxu0 %v3405
  %3442 = vmatpush1.msra.mxu0 %v3404
  %3443 = vmatprep.subr.mxu0 0.0
  %3444 = vmatpush1.msra.mxu0 0.0
  %3445 = vmatprep.subr.mxu0 0.0
  %3446 = vmatpush1.msra.mxu0 0.0
  %3447 = vmatprep.subr.mxu0 0.0
  %3448 = vmatpush1.msra.mxu0 0.0
  %3449 = vmatprep.subr.mxu0 0.0
  %3450 = vmatpush1.msra.mxu0 0.0
  %3451 = vmatprep.subr.mxu0 0.0
  %3452 = vmatpush1.msra.mxu0 0.0
  %3453 = vmatprep.subr.mxu0 0.0
  %3454 = vmatpush1.msra.mxu0 0.0
  %3455 = vmatprep.subr.mxu0 0.0
  %3456 = vmatpush1.msra.mxu0 0.0
  %3457 = vmatprep.subr.mxu0 0.0
  %3458 = vmatpush1.msra.mxu0 0.0
  %3459 = vmatprep.subr.mxu0 0.0
  %3460 = vmatpush1.msra.mxu0 0.0
  %3461 = vmatprep.subr.mxu0 0.0
  %3462 = vmatpush1.msra.mxu0 0.0
  %3463 = vmatprep.subr.mxu0 0.0
  %3464 = vmatpush1.msra.mxu0 0.0
  %3465 = vmatprep.subr.mxu0 0.0
  %3466 = vmatpush1.msra.mxu0 0.0
  %3467 = vmatprep.subr.mxu0 0.0
  %3468 = vmatpush1.msra.mxu0 0.0
  %3469 = vmatprep.subr.mxu0 0.0
  %3470 = vmatpush1.msra.mxu0 0.0
  %3471 = vmatprep.subr.mxu0 0.0
  %3472 = vmatpush1.msra.mxu0 0.0
  %3473 = vmatprep.subr.mxu0 0.0
  %3474 = vmatpush1.msra.mxu0 0.0
  %3475 = vmatprep.mubr.f32.mxu0 0.0
  %3476 = vmatmul.mubr.f32.gmra.mrb[0].mxu0 %v3409
  %v3477 = vpop.f32.mrb[0].mxu0
  %v3478 = vadd.f32 0.0, %v3477
  %v3479 = vpop.f32.mrb[0].mxu0
  %v3480 = vadd.f32 0.0, %v3479
  %3481 = vdwg.mxu0
  %3482 = vmatprep.subr.mxu0 %v3347
  %3483 = vmatpush1.msra.mxu0 %v3346
  %3484 = vmatprep.subr.mxu0 %v3351
  %3485 = vmatpush1.msra.mxu0 %v3350
  %3486 = vmatprep.subr.mxu0 %v3355
  %3487 = vmatpush1.msra.mxu0 %v3354
  %3488 = vmatprep.subr.mxu0 %v3359
  %3489 = vmatpush1.msra.mxu0 %v3358
  %3490 = vmatprep.subr.mxu0 %v3363
  %3491 = vmatpush1.msra.mxu0 %v3362
  %3492 = vmatprep.subr.mxu0 %v3367
  %3493 = vmatpush1.msra.mxu0 %v3366
  %3494 = vmatprep.subr.mxu0 %v3371
  %3495 = vmatpush1.msra.mxu0 %v3370
  %3496 = vmatprep.subr.mxu0 %v3375
  %3497 = vmatpush1.msra.mxu0 %v3374
  %3498 = vmatprep.subr.mxu0 %v3379
  %3499 = vmatpush1.msra.mxu0 %v3378
  %3500 = vmatprep.subr.mxu0 %v3383
  %3501 = vmatpush1.msra.mxu0 %v3382
  %3502 = vmatprep.subr.mxu0 %v3387
  %3503 = vmatpush1.msra.mxu0 %v3386
  %3504 = vmatprep.subr.mxu0 %v3391
  %3505 = vmatpush1.msra.mxu0 %v3390
  %3506 = vmatprep.subr.mxu0 %v3395
  %3507 = vmatpush1.msra.mxu0 %v3394
  %3508 = vmatprep.subr.mxu0 %v3399
  %3509 = vmatpush1.msra.mxu0 %v3398
  %3510 = vmatprep.subr.mxu0 %v3403
  %3511 = vmatpush1.msra.mxu0 %v3402
  %3512 = vmatprep.subr.mxu0 %v3407
  %3513 = vmatpush1.msra.mxu0 %v3406
  %3514 = vmatprep.subr.mxu0 0.0
  %3515 = vmatpush1.msra.mxu0 0.0
  %3516 = vmatprep.subr.mxu0 0.0
  %3517 = vmatpush1.msra.mxu0 0.0
  %3518 = vmatprep.subr.mxu0 0.0
  %3519 = vmatpush1.msra.mxu0 0.0
  %3520 = vmatprep.subr.mxu0 0.0
  %3521 = vmatpush1.msra.mxu0 0.0
  %3522 = vmatprep.subr.mxu0 0.0
  %3523 = vmatpush1.msra.mxu0 0.0
  %3524 = vmatprep.subr.mxu0 0.0
  %3525 = vmatpush1.msra.mxu0 0.0
  %3526 = vmatprep.subr.mxu0 0.0
  %3527 = vmatpush1.msra.mxu0 0.0
  %3528 = vmatprep.subr.mxu0 0.0
  %3529 = vmatpush1.msra.mxu0 0.0
  %3530 = vmatprep.subr.mxu0 0.0
  %3531 = vmatpush1.msra.mxu0 0.0
  %3532 = vmatprep.subr.mxu0 0.0
  %3533 = vmatpush1.msra.mxu0 0.0
  %3534 = vmatprep.subr.mxu0 0.0
  %3535 = vmatpush1.msra.mxu0 0.0
  %3536 = vmatprep.subr.mxu0 0.0
  %3537 = vmatpush1.msra.mxu0 0.0
  %3538 = vmatprep.subr.mxu0 0.0
  %3539 = vmatpush1.msra.mxu0 0.0
  %3540 = vmatprep.subr.mxu0 0.0
  %3541 = vmatpush1.msra.mxu0 0.0
  %3542 = vmatprep.subr.mxu0 0.0
  %3543 = vmatpush1.msra.mxu0 0.0
  %3544 = vmatprep.subr.mxu0 0.0
  %3545 = vmatpush1.msra.mxu0 0.0
  %3546 = vmatprep.mubr.f32.mxu0 0.0
  %3547 = vmatmul.mubr.f32.gmra.mrb[0].mxu0 %v3409
  %v3548 = vpop.f32.mrb[0].mxu0
  %v3549 = vadd.f32 0.0, %v3548
  %v3550 = vpop.f32.mrb[0].mxu0
  %v3551 = vadd.f32 0.0, %v3550
  %3552 = vdwg.mxu0
  %v3553 = vadd.f32 %v3340, %v3478
  %v3554 = vadd.f32 %v3341, %v3480
  %v3555 = vadd.f32 %v3342, %v3549
  %v3556 = vadd.f32 %v3343, %v3551
  %v3557 = vxor.u32 %v3553, 2147483648
  %v3558 = vmul.f32 %v3557, 1.442695
  %v3559 = vpow.pop %v3558
  %v3560 = vadd.f32 %v3559, 1.0
  %v3561 = vrcp.pop %v3560
  %v3562 = vmul.f32 1.0, %v3561
  %v3563 = vxor.u32 %v3554, 2147483648
  %v3564 = vmul.f32 %v3563, 1.442695
  %v3565 = vpow.pop %v3564
  %v3566 = vadd.f32 %v3565, 1.0
  %v3567 = vrcp.pop %v3566
  %v3568 = vmul.f32 1.0, %v3567
  %v3569 = vtanh.pop %v3555
  %v3570 = vxor.u32 %v3556, 2147483648
  %v3571 = vmul.f32 %v3570, 1.442695
  %v3572 = vpow.pop %v3571
  %v3573 = vadd.f32 %v3572, 1.0
  %v3574 = vrcp.pop %v3573
  %v3575 = vmul.f32 1.0, %v3574
  %v3577 = vrot.slane %v3336, 6
  %v3579 = vmul.f32 %v3568, %v3577
  %v3580 = vmul.f32 %v3562, %v3569
  %v3581 = vadd.f32 %v3579, %v3580
  %v3582 = vtanh.pop %v3581
  %v3583 = vmul.f32 %v3575, %v3582
  %3584 = vst [vmem:[#allocation3 + $0x18] sm:$0x3] %v3583
  %v3585 = vld [vmem:[#allocation2 + $0x60] sm:$0xc]
  %v3586 = vld [vmem:[#allocation2 + $0x68] sm:$0xc]
  %v3587 = vld [vmem:[#allocation2 + $0x70] sm:$0xc]
  %v3588 = vld [vmem:[#allocation2 + $0x78] sm:$0xc]
  %v3589 = vld [vmem:[%s2] sm:$0xff]
  %v3590 = vld [vmem:[%s2 + $0x8] sm:$0xff]
  %v3591 = vld [vmem:[%s2 + $0x10] sm:$0xff]
  %v3592 = vld [vmem:[%s2 + $0x18] sm:$0xff]
  %v3593 = vld [vmem:[%s2 + $0x20] sm:$0xff]
  %v3594 = vld [vmem:[%s2 + $0x28] sm:$0xff]
  %v3595 = vld [vmem:[%s2 + $0x30] sm:$0xff]
  %v3596 = vld [vmem:[%s2 + $0x38] sm:$0xff]
  %v3597 = vld [vmem:[%s2 + $0x40] sm:$0xff]
  %v3598 = vld [vmem:[%s2 + $0x48] sm:$0xff]
  %v3599 = vld [vmem:[%s2 + $0x50] sm:$0xff]
  %v3600 = vld [vmem:[%s2 + $0x58] sm:$0xff]
  %v3601 = vld [vmem:[%s2 + $0x60] sm:$0xff]
  %v3602 = vld [vmem:[%s2 + $0x68] sm:$0xff]
  %v3603 = vld [vmem:[%s2 + $0x70] sm:$0xff]
  %v3604 = vld [vmem:[%s2 + $0x78] sm:$0xff]
  %v3605 = vld [vmem:[%s2 + $0x80] sm:$0xff]
  %v3606 = vld [vmem:[%s2 + $0x88] sm:$0xff]
  %v3607 = vld [vmem:[%s2 + $0x90] sm:$0xff]
  %v3608 = vld [vmem:[%s2 + $0x98] sm:$0xff]
  %v3609 = vld [vmem:[%s2 + $0xa0] sm:$0xff]
  %v3610 = vld [vmem:[%s2 + $0xa8] sm:$0xff]
  %v3611 = vld [vmem:[%s2 + $0xb0] sm:$0xff]
  %v3612 = vld [vmem:[%s2 + $0xb8] sm:$0xff]
  %v3613 = vld [vmem:[%s2 + $0xc0] sm:$0xff]
  %v3614 = vld [vmem:[%s2 + $0xc8] sm:$0xff]
  %v3615 = vld [vmem:[%s2 + $0xd0] sm:$0xff]
  %v3616 = vld [vmem:[%s2 + $0xd8] sm:$0xff]
  %v3617 = vld [vmem:[%s2 + $0xe0] sm:$0xff]
  %v3618 = vld [vmem:[%s2 + $0xe8] sm:$0xff]
  %v3619 = vld [vmem:[%s2 + $0xf0] sm:$0xff]
  %v3620 = vld [vmem:[%s2 + $0xf8] sm:$0xff]
  %v3621 = vld [vmem:[%s2 + $0x100] sm:$0xff]
  %v3622 = vld [vmem:[%s2 + $0x108] sm:$0xff]
  %v3623 = vld [vmem:[%s2 + $0x110] sm:$0xff]
  %v3624 = vld [vmem:[%s2 + $0x118] sm:$0xff]
  %v3625 = vld [vmem:[%s2 + $0x120] sm:$0xff]
  %v3626 = vld [vmem:[%s2 + $0x128] sm:$0xff]
  %v3627 = vld [vmem:[%s2 + $0x130] sm:$0xff]
  %v3628 = vld [vmem:[%s2 + $0x138] sm:$0xff]
  %v3629 = vld [vmem:[%s2 + $0x140] sm:$0xff]
  %v3630 = vld [vmem:[%s2 + $0x148] sm:$0xff]
  %v3631 = vld [vmem:[%s2 + $0x150] sm:$0xff]
  %v3632 = vld [vmem:[%s2 + $0x158] sm:$0xff]
  %v3633 = vld [vmem:[%s2 + $0x160] sm:$0xff]
  %v3634 = vld [vmem:[%s2 + $0x168] sm:$0xff]
  %v3635 = vld [vmem:[%s2 + $0x170] sm:$0xff]
  %v3636 = vld [vmem:[%s2 + $0x178] sm:$0xff]
  %v3637 = vld [vmem:[%s2 + $0x180] sm:$0xff]
  %v3638 = vld [vmem:[%s2 + $0x188] sm:$0xff]
  %v3639 = vld [vmem:[%s2 + $0x190] sm:$0xff]
  %v3640 = vld [vmem:[%s2 + $0x198] sm:$0xff]
  %v3641 = vld [vmem:[%s2 + $0x1a0] sm:$0xff]
  %v3642 = vld [vmem:[%s2 + $0x1a8] sm:$0xff]
  %v3643 = vld [vmem:[%s2 + $0x1b0] sm:$0xff]
  %v3644 = vld [vmem:[%s2 + $0x1b8] sm:$0xff]
  %v3645 = vld [vmem:[%s2 + $0x1c0] sm:$0xff]
  %v3646 = vld [vmem:[%s2 + $0x1c8] sm:$0xff]
  %v3647 = vld [vmem:[%s2 + $0x1d0] sm:$0xff]
  %v3648 = vld [vmem:[%s2 + $0x1d8] sm:$0xff]
  %v3649 = vld [vmem:[%s2 + $0x1e0] sm:$0xff]
  %v3650 = vld [vmem:[%s2 + $0x1e8] sm:$0xff]
  %v3651 = vld [vmem:[%s2 + $0x1f0] sm:$0xff]
  %v3652 = vld [vmem:[%s2 + $0x1f8] sm:$0xff]
  %3653 = vmatprep.subr.mxu0 %v3590
  %3654 = vmatpush1.msra.mxu0 %v3589
  %3655 = vmatprep.subr.mxu0 %v3594
  %3656 = vmatpush1.msra.mxu0 %v3593
  %3657 = vmatprep.subr.mxu0 %v3598
  %3658 = vmatpush1.msra.mxu0 %v3597
  %3659 = vmatprep.subr.mxu0 %v3602
  %3660 = vmatpush1.msra.mxu0 %v3601
  %3661 = vmatprep.subr.mxu0 %v3606
  %3662 = vmatpush1.msra.mxu0 %v3605
  %3663 = vmatprep.subr.mxu0 %v3610
  %3664 = vmatpush1.msra.mxu0 %v3609
  %3665 = vmatprep.subr.mxu0 %v3614
  %3666 = vmatpush1.msra.mxu0 %v3613
  %3667 = vmatprep.subr.mxu0 %v3618
  %3668 = vmatpush1.msra.mxu0 %v3617
  %3669 = vmatprep.subr.mxu0 %v3622
  %3670 = vmatpush1.msra.mxu0 %v3621
  %3671 = vmatprep.subr.mxu0 %v3626
  %3672 = vmatpush1.msra.mxu0 %v3625
  %3673 = vmatprep.subr.mxu0 %v3630
  %3674 = vmatpush1.msra.mxu0 %v3629
  %3675 = vmatprep.subr.mxu0 %v3634
  %3676 = vmatpush1.msra.mxu0 %v3633
  %3677 = vmatprep.subr.mxu0 %v3638
  %3678 = vmatpush1.msra.mxu0 %v3637
  %3679 = vmatprep.subr.mxu0 %v3642
  %3680 = vmatpush1.msra.mxu0 %v3641
  %3681 = vmatprep.subr.mxu0 %v3646
  %3682 = vmatpush1.msra.mxu0 %v3645
  %3683 = vmatprep.subr.mxu0 %v3650
  %3684 = vmatpush1.msra.mxu0 %v3649
  %3685 = vmatprep.subr.mxu0 0.0
  %3686 = vmatpush1.msra.mxu0 0.0
  %3687 = vmatprep.subr.mxu0 0.0
  %3688 = vmatpush1.msra.mxu0 0.0
  %3689 = vmatprep.subr.mxu0 0.0
  %3690 = vmatpush1.msra.mxu0 0.0
  %3691 = vmatprep.subr.mxu0 0.0
  %3692 = vmatpush1.msra.mxu0 0.0
  %3693 = vmatprep.subr.mxu0 0.0
  %3694 = vmatpush1.msra.mxu0 0.0
  %3695 = vmatprep.subr.mxu0 0.0
  %3696 = vmatpush1.msra.mxu0 0.0
  %3697 = vmatprep.subr.mxu0 0.0
  %3698 = vmatpush1.msra.mxu0 0.0
  %3699 = vmatprep.subr.mxu0 0.0
  %3700 = vmatpush1.msra.mxu0 0.0
  %3701 = vmatprep.subr.mxu0 0.0
  %3702 = vmatpush1.msra.mxu0 0.0
  %3703 = vmatprep.subr.mxu0 0.0
  %3704 = vmatpush1.msra.mxu0 0.0
  %3705 = vmatprep.subr.mxu0 0.0
  %3706 = vmatpush1.msra.mxu0 0.0
  %3707 = vmatprep.subr.mxu0 0.0
  %3708 = vmatpush1.msra.mxu0 0.0
  %3709 = vmatprep.subr.mxu0 0.0
  %3710 = vmatpush1.msra.mxu0 0.0
  %3711 = vmatprep.subr.mxu0 0.0
  %3712 = vmatpush1.msra.mxu0 0.0
  %3713 = vmatprep.subr.mxu0 0.0
  %3714 = vmatpush1.msra.mxu0 0.0
  %3715 = vmatprep.subr.mxu0 0.0
  %3716 = vmatpush1.msra.mxu0 0.0
  %3717 = vmatprep.mubr.f32.mxu0 0.0
  %3718 = vmatmul.mubr.f32.gmra.mrb[0].mxu0 %v3583
  %v3719 = vpop.f32.mrb[0].mxu0
  %v3720 = vadd.f32 0.0, %v3719
  %v3721 = vpop.f32.mrb[0].mxu0
  %v3722 = vadd.f32 0.0, %v3721
  %3723 = vdwg.mxu0
  %3724 = vmatprep.subr.mxu0 %v3592
  %3725 = vmatpush1.msra.mxu0 %v3591
  %3726 = vmatprep.subr.mxu0 %v3596
  %3727 = vmatpush1.msra.mxu0 %v3595
  %3728 = vmatprep.subr.mxu0 %v3600
  %3729 = vmatpush1.msra.mxu0 %v3599
  %3730 = vmatprep.subr.mxu0 %v3604
  %3731 = vmatpush1.msra.mxu0 %v3603
  %3732 = vmatprep.subr.mxu0 %v3608
  %3733 = vmatpush1.msra.mxu0 %v3607
  %3734 = vmatprep.subr.mxu0 %v3612
  %3735 = vmatpush1.msra.mxu0 %v3611
  %3736 = vmatprep.subr.mxu0 %v3616
  %3737 = vmatpush1.msra.mxu0 %v3615
  %3738 = vmatprep.subr.mxu0 %v3620
  %3739 = vmatpush1.msra.mxu0 %v3619
  %3740 = vmatprep.subr.mxu0 %v3624
  %3741 = vmatpush1.msra.mxu0 %v3623
  %3742 = vmatprep.subr.mxu0 %v3628
  %3743 = vmatpush1.msra.mxu0 %v3627
  %3744 = vmatprep.subr.mxu0 %v3632
  %3745 = vmatpush1.msra.mxu0 %v3631
  %3746 = vmatprep.subr.mxu0 %v3636
  %3747 = vmatpush1.msra.mxu0 %v3635
  %3748 = vmatprep.subr.mxu0 %v3640
  %3749 = vmatpush1.msra.mxu0 %v3639
  %3750 = vmatprep.subr.mxu0 %v3644
  %3751 = vmatpush1.msra.mxu0 %v3643
  %3752 = vmatprep.subr.mxu0 %v3648
  %3753 = vmatpush1.msra.mxu0 %v3647
  %3754 = vmatprep.subr.mxu0 %v3652
  %3755 = vmatpush1.msra.mxu0 %v3651
  %3756 = vmatprep.subr.mxu0 0.0
  %3757 = vmatpush1.msra.mxu0 0.0
  %3758 = vmatprep.subr.mxu0 0.0
  %3759 = vmatpush1.msra.mxu0 0.0
  %3760 = vmatprep.subr.mxu0 0.0
  %3761 = vmatpush1.msra.mxu0 0.0
  %3762 = vmatprep.subr.mxu0 0.0
  %3763 = vmatpush1.msra.mxu0 0.0
  %3764 = vmatprep.subr.mxu0 0.0
  %3765 = vmatpush1.msra.mxu0 0.0
  %3766 = vmatprep.subr.mxu0 0.0
  %3767 = vmatpush1.msra.mxu0 0.0
  %3768 = vmatprep.subr.mxu0 0.0
  %3769 = vmatpush1.msra.mxu0 0.0
  %3770 = vmatprep.subr.mxu0 0.0
  %3771 = vmatpush1.msra.mxu0 0.0
  %3772 = vmatprep.subr.mxu0 0.0
  %3773 = vmatpush1.msra.mxu0 0.0
  %3774 = vmatprep.subr.mxu0 0.0
  %3775 = vmatpush1.msra.mxu0 0.0
  %3776 = vmatprep.subr.mxu0 0.0
  %3777 = vmatpush1.msra.mxu0 0.0
  %3778 = vmatprep.subr.mxu0 0.0
  %3779 = vmatpush1.msra.mxu0 0.0
  %3780 = vmatprep.subr.mxu0 0.0
  %3781 = vmatpush1.msra.mxu0 0.0
  %3782 = vmatprep.subr.mxu0 0.0
  %3783 = vmatpush1.msra.mxu0 0.0
  %3784 = vmatprep.subr.mxu0 0.0
  %3785 = vmatpush1.msra.mxu0 0.0
  %3786 = vmatprep.subr.mxu0 0.0
  %3787 = vmatpush1.msra.mxu0 0.0
  %3788 = vmatprep.mubr.f32.mxu0 0.0
  %3789 = vmatmul.mubr.f32.gmra.mrb[0].mxu0 %v3583
  %v3790 = vpop.f32.mrb[0].mxu0
  %v3791 = vadd.f32 0.0, %v3790
  %v3792 = vpop.f32.mrb[0].mxu0
  %v3793 = vadd.f32 0.0, %v3792
  %3794 = vdwg.mxu0
  %v3799 = vrot.slane %v3720, 6
  %v3800 = vrot.slane %v3722, 6
  %v3801 = vrot.slane %v3791, 6
  %v3802 = vrot.slane %v3793, 6
  %v3807 = vadd.f32 %v3585, %v3799
  %v3808 = vadd.f32 %v3586, %v3800
  %v3809 = vadd.f32 %v3587, %v3801
  %v3810 = vadd.f32 %v3588, %v3802
  %v3811 = vxor.u32 %v3807, 2147483648
  %v3812 = vmul.f32 %v3811, 1.442695
  %v3813 = vpow.pop %v3812
  %v3814 = vadd.f32 %v3813, 1.0
  %v3815 = vrcp.pop %v3814
  %v3816 = vmul.f32 1.0, %v3815
  %v3817 = vxor.u32 %v3808, 2147483648
  %v3818 = vmul.f32 %v3817, 1.442695
  %v3819 = vpow.pop %v3818
  %v3820 = vadd.f32 %v3819, 1.0
  %v3821 = vrcp.pop %v3820
  %v3822 = vmul.f32 1.0, %v3821
  %v3823 = vtanh.pop %v3809
  %v3824 = vxor.u32 %v3810, 2147483648
  %v3825 = vmul.f32 %v3824, 1.442695
  %v3826 = vpow.pop %v3825
  %v3827 = vadd.f32 %v3826, 1.0
  %v3828 = vrcp.pop %v3827
  %v3829 = vmul.f32 1.0, %v3828
  %v3831 = vrot.slane %v3581, 6
  %v3833 = vmul.f32 %v3822, %v3831
  %v3834 = vmul.f32 %v3816, %v3823
  %v3835 = vadd.f32 %v3833, %v3834
  %v3836 = vtanh.pop %v3835
  %v3837 = vmul.f32 %v3829, %v3836
  %3838 = vst [vmem:[#allocation3 + $0x18] sm:$0xc] %v3837
  %v3839 = vld [vmem:[#allocation2 + $0x60] sm:$0x30]
  %v3840 = vld [vmem:[#allocation2 + $0x68] sm:$0x30]
  %v3841 = vld [vmem:[#allocation2 + $0x70] sm:$0x30]
  %v3842 = vld [vmem:[#allocation2 + $0x78] sm:$0x30]
  %v3843 = vld [vmem:[%s2] sm:$0xff]
  %v3844 = vld [vmem:[%s2 + $0x8] sm:$0xff]
  %v3845 = vld [vmem:[%s2 + $0x10] sm:$0xff]
  %v3846 = vld [vmem:[%s2 + $0x18] sm:$0xff]
  %v3847 = vld [vmem:[%s2 + $0x20] sm:$0xff]
  %v3848 = vld [vmem:[%s2 + $0x28] sm:$0xff]
  %v3849 = vld [vmem:[%s2 + $0x30] sm:$0xff]
  %v3850 = vld [vmem:[%s2 + $0x38] sm:$0xff]
  %v3851 = vld [vmem:[%s2 + $0x40] sm:$0xff]
  %v3852 = vld [vmem:[%s2 + $0x48] sm:$0xff]
  %v3853 = vld [vmem:[%s2 + $0x50] sm:$0xff]
  %v3854 = vld [vmem:[%s2 + $0x58] sm:$0xff]
  %v3855 = vld [vmem:[%s2 + $0x60] sm:$0xff]
  %v3856 = vld [vmem:[%s2 + $0x68] sm:$0xff]
  %v3857 = vld [vmem:[%s2 + $0x70] sm:$0xff]
  %v3858 = vld [vmem:[%s2 + $0x78] sm:$0xff]
  %v3859 = vld [vmem:[%s2 + $0x80] sm:$0xff]
  %v3860 = vld [vmem:[%s2 + $0x88] sm:$0xff]
  %v3861 = vld [vmem:[%s2 + $0x90] sm:$0xff]
  %v3862 = vld [vmem:[%s2 + $0x98] sm:$0xff]
  %v3863 = vld [vmem:[%s2 + $0xa0] sm:$0xff]
  %v3864 = vld [vmem:[%s2 + $0xa8] sm:$0xff]
  %v3865 = vld [vmem:[%s2 + $0xb0] sm:$0xff]
  %v3866 = vld [vmem:[%s2 + $0xb8] sm:$0xff]
  %v3867 = vld [vmem:[%s2 + $0xc0] sm:$0xff]
  %v3868 = vld [vmem:[%s2 + $0xc8] sm:$0xff]
  %v3869 = vld [vmem:[%s2 + $0xd0] sm:$0xff]
  %v3870 = vld [vmem:[%s2 + $0xd8] sm:$0xff]
  %v3871 = vld [vmem:[%s2 + $0xe0] sm:$0xff]
  %v3872 = vld [vmem:[%s2 + $0xe8] sm:$0xff]
  %v3873 = vld [vmem:[%s2 + $0xf0] sm:$0xff]
  %v3874 = vld [vmem:[%s2 + $0xf8] sm:$0xff]
  %v3875 = vld [vmem:[%s2 + $0x100] sm:$0xff]
  %v3876 = vld [vmem:[%s2 + $0x108] sm:$0xff]
  %v3877 = vld [vmem:[%s2 + $0x110] sm:$0xff]
  %v3878 = vld [vmem:[%s2 + $0x118] sm:$0xff]
  %v3879 = vld [vmem:[%s2 + $0x120] sm:$0xff]
  %v3880 = vld [vmem:[%s2 + $0x128] sm:$0xff]
  %v3881 = vld [vmem:[%s2 + $0x130] sm:$0xff]
  %v3882 = vld [vmem:[%s2 + $0x138] sm:$0xff]
  %v3883 = vld [vmem:[%s2 + $0x140] sm:$0xff]
  %v3884 = vld [vmem:[%s2 + $0x148] sm:$0xff]
  %v3885 = vld [vmem:[%s2 + $0x150] sm:$0xff]
  %v3886 = vld [vmem:[%s2 + $0x158] sm:$0xff]
  %v3887 = vld [vmem:[%s2 + $0x160] sm:$0xff]
  %v3888 = vld [vmem:[%s2 + $0x168] sm:$0xff]
  %v3889 = vld [vmem:[%s2 + $0x170] sm:$0xff]
  %v3890 = vld [vmem:[%s2 + $0x178] sm:$0xff]
  %v3891 = vld [vmem:[%s2 + $0x180] sm:$0xff]
  %v3892 = vld [vmem:[%s2 + $0x188] sm:$0xff]
  %v3893 = vld [vmem:[%s2 + $0x190] sm:$0xff]
  %v3894 = vld [vmem:[%s2 + $0x198] sm:$0xff]
  %v3895 = vld [vmem:[%s2 + $0x1a0] sm:$0xff]
  %v3896 = vld [vmem:[%s2 + $0x1a8] sm:$0xff]
  %v3897 = vld [vmem:[%s2 + $0x1b0] sm:$0xff]
  %v3898 = vld [vmem:[%s2 + $0x1b8] sm:$0xff]
  %v3899 = vld [vmem:[%s2 + $0x1c0] sm:$0xff]
  %v3900 = vld [vmem:[%s2 + $0x1c8] sm:$0xff]
  %v3901 = vld [vmem:[%s2 + $0x1d0] sm:$0xff]
  %v3902 = vld [vmem:[%s2 + $0x1d8] sm:$0xff]
  %v3903 = vld [vmem:[%s2 + $0x1e0] sm:$0xff]
  %v3904 = vld [vmem:[%s2 + $0x1e8] sm:$0xff]
  %v3905 = vld [vmem:[%s2 + $0x1f0] sm:$0xff]
  %v3906 = vld [vmem:[%s2 + $0x1f8] sm:$0xff]
  %v3908 = vrot.slane %v3837, 2
  %3910 = vmatprep.subr.mxu0 %v3844
  %3911 = vmatpush1.msra.mxu0 %v3843
  %3912 = vmatprep.subr.mxu0 %v3848
  %3913 = vmatpush1.msra.mxu0 %v3847
  %3914 = vmatprep.subr.mxu0 %v3852
  %3915 = vmatpush1.msra.mxu0 %v3851
  %3916 = vmatprep.subr.mxu0 %v3856
  %3917 = vmatpush1.msra.mxu0 %v3855
  %3918 = vmatprep.subr.mxu0 %v3860
  %3919 = vmatpush1.msra.mxu0 %v3859
  %3920 = vmatprep.subr.mxu0 %v3864
  %3921 = vmatpush1.msra.mxu0 %v3863
  %3922 = vmatprep.subr.mxu0 %v3868
  %3923 = vmatpush1.msra.mxu0 %v3867
  %3924 = vmatprep.subr.mxu0 %v3872
  %3925 = vmatpush1.msra.mxu0 %v3871
  %3926 = vmatprep.subr.mxu0 %v3876
  %3927 = vmatpush1.msra.mxu0 %v3875
  %3928 = vmatprep.subr.mxu0 %v3880
  %3929 = vmatpush1.msra.mxu0 %v3879
  %3930 = vmatprep.subr.mxu0 %v3884
  %3931 = vmatpush1.msra.mxu0 %v3883
  %3932 = vmatprep.subr.mxu0 %v3888
  %3933 = vmatpush1.msra.mxu0 %v3887
  %3934 = vmatprep.subr.mxu0 %v3892
  %3935 = vmatpush1.msra.mxu0 %v3891
  %3936 = vmatprep.subr.mxu0 %v3896
  %3937 = vmatpush1.msra.mxu0 %v3895
  %3938 = vmatprep.subr.mxu0 %v3900
  %3939 = vmatpush1.msra.mxu0 %v3899
  %3940 = vmatprep.subr.mxu0 %v3904
  %3941 = vmatpush1.msra.mxu0 %v3903
  %3942 = vmatprep.subr.mxu0 0.0
  %3943 = vmatpush1.msra.mxu0 0.0
  %3944 = vmatprep.subr.mxu0 0.0
  %3945 = vmatpush1.msra.mxu0 0.0
  %3946 = vmatprep.subr.mxu0 0.0
  %3947 = vmatpush1.msra.mxu0 0.0
  %3948 = vmatprep.subr.mxu0 0.0
  %3949 = vmatpush1.msra.mxu0 0.0
  %3950 = vmatprep.subr.mxu0 0.0
  %3951 = vmatpush1.msra.mxu0 0.0
  %3952 = vmatprep.subr.mxu0 0.0
  %3953 = vmatpush1.msra.mxu0 0.0
  %3954 = vmatprep.subr.mxu0 0.0
  %3955 = vmatpush1.msra.mxu0 0.0
  %3956 = vmatprep.subr.mxu0 0.0
  %3957 = vmatpush1.msra.mxu0 0.0
  %3958 = vmatprep.subr.mxu0 0.0
  %3959 = vmatpush1.msra.mxu0 0.0
  %3960 = vmatprep.subr.mxu0 0.0
  %3961 = vmatpush1.msra.mxu0 0.0
  %3962 = vmatprep.subr.mxu0 0.0
  %3963 = vmatpush1.msra.mxu0 0.0
  %3964 = vmatprep.subr.mxu0 0.0
  %3965 = vmatpush1.msra.mxu0 0.0
  %3966 = vmatprep.subr.mxu0 0.0
  %3967 = vmatpush1.msra.mxu0 0.0
  %3968 = vmatprep.subr.mxu0 0.0
  %3969 = vmatpush1.msra.mxu0 0.0
  %3970 = vmatprep.subr.mxu0 0.0
  %3971 = vmatpush1.msra.mxu0 0.0
  %3972 = vmatprep.subr.mxu0 0.0
  %3973 = vmatpush1.msra.mxu0 0.0
  %3974 = vmatprep.mubr.f32.mxu0 0.0
  %3975 = vmatmul.mubr.f32.gmra.mrb[0].mxu0 %v3908
  %v3976 = vpop.f32.mrb[0].mxu0
  %v3977 = vadd.f32 0.0, %v3976
  %v3978 = vpop.f32.mrb[0].mxu0
  %v3979 = vadd.f32 0.0, %v3978
  %3980 = vdwg.mxu0
  %3981 = vmatprep.subr.mxu0 %v3846
  %3982 = vmatpush1.msra.mxu0 %v3845
  %3983 = vmatprep.subr.mxu0 %v3850
  %3984 = vmatpush1.msra.mxu0 %v3849
  %3985 = vmatprep.subr.mxu0 %v3854
  %3986 = vmatpush1.msra.mxu0 %v3853
  %3987 = vmatprep.subr.mxu0 %v3858
  %3988 = vmatpush1.msra.mxu0 %v3857
  %3989 = vmatprep.subr.mxu0 %v3862
  %3990 = vmatpush1.msra.mxu0 %v3861
  %3991 = vmatprep.subr.mxu0 %v3866
  %3992 = vmatpush1.msra.mxu0 %v3865
  %3993 = vmatprep.subr.mxu0 %v3870
  %3994 = vmatpush1.msra.mxu0 %v3869
  %3995 = vmatprep.subr.mxu0 %v3874
  %3996 = vmatpush1.msra.mxu0 %v3873
  %3997 = vmatprep.subr.mxu0 %v3878
  %3998 = vmatpush1.msra.mxu0 %v3877
  %3999 = vmatprep.subr.mxu0 %v3882
  %4000 = vmatpush1.msra.mxu0 %v3881
  %4001 = vmatprep.subr.mxu0 %v3886
  %4002 = vmatpush1.msra.mxu0 %v3885
  %4003 = vmatprep.subr.mxu0 %v3890
  %4004 = vmatpush1.msra.mxu0 %v3889
  %4005 = vmatprep.subr.mxu0 %v3894
  %4006 = vmatpush1.msra.mxu0 %v3893
  %4007 = vmatprep.subr.mxu0 %v3898
  %4008 = vmatpush1.msra.mxu0 %v3897
  %4009 = vmatprep.subr.mxu0 %v3902
  %4010 = vmatpush1.msra.mxu0 %v3901
  %4011 = vmatprep.subr.mxu0 %v3906
  %4012 = vmatpush1.msra.mxu0 %v3905
  %4013 = vmatprep.subr.mxu0 0.0
  %4014 = vmatpush1.msra.mxu0 0.0
  %4015 = vmatprep.subr.mxu0 0.0
  %4016 = vmatpush1.msra.mxu0 0.0
  %4017 = vmatprep.subr.mxu0 0.0
  %4018 = vmatpush1.msra.mxu0 0.0
  %4019 = vmatprep.subr.mxu0 0.0
  %4020 = vmatpush1.msra.mxu0 0.0
  %4021 = vmatprep.subr.mxu0 0.0
  %4022 = vmatpush1.msra.mxu0 0.0
  %4023 = vmatprep.subr.mxu0 0.0
  %4024 = vmatpush1.msra.mxu0 0.0
  %4025 = vmatprep.subr.mxu0 0.0
  %4026 = vmatpush1.msra.mxu0 0.0
  %4027 = vmatprep.subr.mxu0 0.0
  %4028 = vmatpush1.msra.mxu0 0.0
  %4029 = vmatprep.subr.mxu0 0.0
  %4030 = vmatpush1.msra.mxu0 0.0
  %4031 = vmatprep.subr.mxu0 0.0
  %4032 = vmatpush1.msra.mxu0 0.0
  %4033 = vmatprep.subr.mxu0 0.0
  %4034 = vmatpush1.msra.mxu0 0.0
  %4035 = vmatprep.subr.mxu0 0.0
  %4036 = vmatpush1.msra.mxu0 0.0
  %4037 = vmatprep.subr.mxu0 0.0
  %4038 = vmatpush1.msra.mxu0 0.0
  %4039 = vmatprep.subr.mxu0 0.0
  %4040 = vmatpush1.msra.mxu0 0.0
  %4041 = vmatprep.subr.mxu0 0.0
  %4042 = vmatpush1.msra.mxu0 0.0
  %4043 = vmatprep.subr.mxu0 0.0
  %4044 = vmatpush1.msra.mxu0 0.0
  %4045 = vmatprep.mubr.f32.mxu0 0.0
  %4046 = vmatmul.mubr.f32.gmra.mrb[0].mxu0 %v3908
  %v4047 = vpop.f32.mrb[0].mxu0
  %v4048 = vadd.f32 0.0, %v4047
  %v4049 = vpop.f32.mrb[0].mxu0
  %v4050 = vadd.f32 0.0, %v4049
  %4051 = vdwg.mxu0
  %v4056 = vrot.slane %v3977, 4
  %v4057 = vrot.slane %v3979, 4
  %v4058 = vrot.slane %v4048, 4
  %v4059 = vrot.slane %v4050, 4
  %v4064 = vadd.f32 %v3839, %v4056
  %v4065 = vadd.f32 %v3840, %v4057
  %v4066 = vadd.f32 %v3841, %v4058
  %v4067 = vadd.f32 %v3842, %v4059
  %v4068 = vxor.u32 %v4064, 2147483648
  %v4069 = vmul.f32 %v4068, 1.442695
  %v4070 = vpow.pop %v4069
  %v4071 = vadd.f32 %v4070, 1.0
  %v4072 = vrcp.pop %v4071
  %v4073 = vmul.f32 1.0, %v4072
  %v4074 = vxor.u32 %v4065, 2147483648
  %v4075 = vmul.f32 %v4074, 1.442695
  %v4076 = vpow.pop %v4075
  %v4077 = vadd.f32 %v4076, 1.0
  %v4078 = vrcp.pop %v4077
  %v4079 = vmul.f32 1.0, %v4078
  %v4080 = vtanh.pop %v4066
  %v4081 = vxor.u32 %v4067, 2147483648
  %v4082 = vmul.f32 %v4081, 1.442695
  %v4083 = vpow.pop %v4082
  %v4084 = vadd.f32 %v4083, 1.0
  %v4085 = vrcp.pop %v4084
  %v4086 = vmul.f32 1.0, %v4085
  %v4088 = vrot.slane %v3835, 6
  %v4090 = vmul.f32 %v4079, %v4088
  %v4091 = vmul.f32 %v4073, %v4080
  %v4092 = vadd.f32 %v4090, %v4091
  %v4093 = vtanh.pop %v4092
  %v4094 = vmul.f32 %v4086, %v4093
  %4095 = vst [vmem:[#allocation3 + $0x18] sm:$0x30] %v4094
  %v4096 = vld [vmem:[#allocation2 + $0x60] sm:$0xc0]
  %v4097 = vld [vmem:[#allocation2 + $0x68] sm:$0xc0]
  %v4098 = vld [vmem:[#allocation2 + $0x70] sm:$0xc0]
  %v4099 = vld [vmem:[#allocation2 + $0x78] sm:$0xc0]
  %v4100 = vld [vmem:[%s2] sm:$0xff]
  %v4101 = vld [vmem:[%s2 + $0x8] sm:$0xff]
  %v4102 = vld [vmem:[%s2 + $0x10] sm:$0xff]
  %v4103 = vld [vmem:[%s2 + $0x18] sm:$0xff]
  %v4104 = vld [vmem:[%s2 + $0x20] sm:$0xff]
  %v4105 = vld [vmem:[%s2 + $0x28] sm:$0xff]
  %v4106 = vld [vmem:[%s2 + $0x30] sm:$0xff]
  %v4107 = vld [vmem:[%s2 + $0x38] sm:$0xff]
  %v4108 = vld [vmem:[%s2 + $0x40] sm:$0xff]
  %v4109 = vld [vmem:[%s2 + $0x48] sm:$0xff]
  %v4110 = vld [vmem:[%s2 + $0x50] sm:$0xff]
  %v4111 = vld [vmem:[%s2 + $0x58] sm:$0xff]
  %v4112 = vld [vmem:[%s2 + $0x60] sm:$0xff]
  %v4113 = vld [vmem:[%s2 + $0x68] sm:$0xff]
  %v4114 = vld [vmem:[%s2 + $0x70] sm:$0xff]
  %v4115 = vld [vmem:[%s2 + $0x78] sm:$0xff]
  %v4116 = vld [vmem:[%s2 + $0x80] sm:$0xff]
  %v4117 = vld [vmem:[%s2 + $0x88] sm:$0xff]
  %v4118 = vld [vmem:[%s2 + $0x90] sm:$0xff]
  %v4119 = vld [vmem:[%s2 + $0x98] sm:$0xff]
  %v4120 = vld [vmem:[%s2 + $0xa0] sm:$0xff]
  %v4121 = vld [vmem:[%s2 + $0xa8] sm:$0xff]
  %v4122 = vld [vmem:[%s2 + $0xb0] sm:$0xff]
  %v4123 = vld [vmem:[%s2 + $0xb8] sm:$0xff]
  %v4124 = vld [vmem:[%s2 + $0xc0] sm:$0xff]
  %v4125 = vld [vmem:[%s2 + $0xc8] sm:$0xff]
  %v4126 = vld [vmem:[%s2 + $0xd0] sm:$0xff]
  %v4127 = vld [vmem:[%s2 + $0xd8] sm:$0xff]
  %v4128 = vld [vmem:[%s2 + $0xe0] sm:$0xff]
  %v4129 = vld [vmem:[%s2 + $0xe8] sm:$0xff]
  %v4130 = vld [vmem:[%s2 + $0xf0] sm:$0xff]
  %v4131 = vld [vmem:[%s2 + $0xf8] sm:$0xff]
  %v4132 = vld [vmem:[%s2 + $0x100] sm:$0xff]
  %v4133 = vld [vmem:[%s2 + $0x108] sm:$0xff]
  %v4134 = vld [vmem:[%s2 + $0x110] sm:$0xff]
  %v4135 = vld [vmem:[%s2 + $0x118] sm:$0xff]
  %v4136 = vld [vmem:[%s2 + $0x120] sm:$0xff]
  %v4137 = vld [vmem:[%s2 + $0x128] sm:$0xff]
  %v4138 = vld [vmem:[%s2 + $0x130] sm:$0xff]
  %v4139 = vld [vmem:[%s2 + $0x138] sm:$0xff]
  %v4140 = vld [vmem:[%s2 + $0x140] sm:$0xff]
  %v4141 = vld [vmem:[%s2 + $0x148] sm:$0xff]
  %v4142 = vld [vmem:[%s2 + $0x150] sm:$0xff]
  %v4143 = vld [vmem:[%s2 + $0x158] sm:$0xff]
  %v4144 = vld [vmem:[%s2 + $0x160] sm:$0xff]
  %v4145 = vld [vmem:[%s2 + $0x168] sm:$0xff]
  %v4146 = vld [vmem:[%s2 + $0x170] sm:$0xff]
  %v4147 = vld [vmem:[%s2 + $0x178] sm:$0xff]
  %v4148 = vld [vmem:[%s2 + $0x180] sm:$0xff]
  %v4149 = vld [vmem:[%s2 + $0x188] sm:$0xff]
  %v4150 = vld [vmem:[%s2 + $0x190] sm:$0xff]
  %v4151 = vld [vmem:[%s2 + $0x198] sm:$0xff]
  %v4152 = vld [vmem:[%s2 + $0x1a0] sm:$0xff]
  %v4153 = vld [vmem:[%s2 + $0x1a8] sm:$0xff]
  %v4154 = vld [vmem:[%s2 + $0x1b0] sm:$0xff]
  %v4155 = vld [vmem:[%s2 + $0x1b8] sm:$0xff]
  %v4156 = vld [vmem:[%s2 + $0x1c0] sm:$0xff]
  %v4157 = vld [vmem:[%s2 + $0x1c8] sm:$0xff]
  %v4158 = vld [vmem:[%s2 + $0x1d0] sm:$0xff]
  %v4159 = vld [vmem:[%s2 + $0x1d8] sm:$0xff]
  %v4160 = vld [vmem:[%s2 + $0x1e0] sm:$0xff]
  %v4161 = vld [vmem:[%s2 + $0x1e8] sm:$0xff]
  %v4162 = vld [vmem:[%s2 + $0x1f0] sm:$0xff]
  %v4163 = vld [vmem:[%s2 + $0x1f8] sm:$0xff]
  %v4165 = vrot.slane %v4094, 4
  %4167 = vmatprep.subr.mxu0 %v4101
  %4168 = vmatpush1.msra.mxu0 %v4100
  %4169 = vmatprep.subr.mxu0 %v4105
  %4170 = vmatpush1.msra.mxu0 %v4104
  %4171 = vmatprep.subr.mxu0 %v4109
  %4172 = vmatpush1.msra.mxu0 %v4108
  %4173 = vmatprep.subr.mxu0 %v4113
  %4174 = vmatpush1.msra.mxu0 %v4112
  %4175 = vmatprep.subr.mxu0 %v4117
  %4176 = vmatpush1.msra.mxu0 %v4116
  %4177 = vmatprep.subr.mxu0 %v4121
  %4178 = vmatpush1.msra.mxu0 %v4120
  %4179 = vmatprep.subr.mxu0 %v4125
  %4180 = vmatpush1.msra.mxu0 %v4124
  %4181 = vmatprep.subr.mxu0 %v4129
  %4182 = vmatpush1.msra.mxu0 %v4128
  %4183 = vmatprep.subr.mxu0 %v4133
  %4184 = vmatpush1.msra.mxu0 %v4132
  %4185 = vmatprep.subr.mxu0 %v4137
  %4186 = vmatpush1.msra.mxu0 %v4136
  %4187 = vmatprep.subr.mxu0 %v4141
  %4188 = vmatpush1.msra.mxu0 %v4140
  %4189 = vmatprep.subr.mxu0 %v4145
  %4190 = vmatpush1.msra.mxu0 %v4144
  %4191 = vmatprep.subr.mxu0 %v4149
  %4192 = vmatpush1.msra.mxu0 %v4148
  %4193 = vmatprep.subr.mxu0 %v4153
  %4194 = vmatpush1.msra.mxu0 %v4152
  %4195 = vmatprep.subr.mxu0 %v4157
  %4196 = vmatpush1.msra.mxu0 %v4156
  %4197 = vmatprep.subr.mxu0 %v4161
  %4198 = vmatpush1.msra.mxu0 %v4160
  %4199 = vmatprep.subr.mxu0 0.0
  %4200 = vmatpush1.msra.mxu0 0.0
  %4201 = vmatprep.subr.mxu0 0.0
  %4202 = vmatpush1.msra.mxu0 0.0
  %4203 = vmatprep.subr.mxu0 0.0
  %4204 = vmatpush1.msra.mxu0 0.0
  %4205 = vmatprep.subr.mxu0 0.0
  %4206 = vmatpush1.msra.mxu0 0.0
  %4207 = vmatprep.subr.mxu0 0.0
  %4208 = vmatpush1.msra.mxu0 0.0
  %4209 = vmatprep.subr.mxu0 0.0
  %4210 = vmatpush1.msra.mxu0 0.0
  %4211 = vmatprep.subr.mxu0 0.0
  %4212 = vmatpush1.msra.mxu0 0.0
  %4213 = vmatprep.subr.mxu0 0.0
  %4214 = vmatpush1.msra.mxu0 0.0
  %4215 = vmatprep.subr.mxu0 0.0
  %4216 = vmatpush1.msra.mxu0 0.0
  %4217 = vmatprep.subr.mxu0 0.0
  %4218 = vmatpush1.msra.mxu0 0.0
  %4219 = vmatprep.subr.mxu0 0.0
  %4220 = vmatpush1.msra.mxu0 0.0
  %4221 = vmatprep.subr.mxu0 0.0
  %4222 = vmatpush1.msra.mxu0 0.0
  %4223 = vmatprep.subr.mxu0 0.0
  %4224 = vmatpush1.msra.mxu0 0.0
  %4225 = vmatprep.subr.mxu0 0.0
  %4226 = vmatpush1.msra.mxu0 0.0
  %4227 = vmatprep.subr.mxu0 0.0
  %4228 = vmatpush1.msra.mxu0 0.0
  %4229 = vmatprep.subr.mxu0 0.0
  %4230 = vmatpush1.msra.mxu0 0.0
  %4231 = vmatprep.mubr.f32.mxu0 0.0
  %4232 = vmatmul.mubr.f32.gmra.mrb[0].mxu0 %v4165
  %v4233 = vpop.f32.mrb[0].mxu0
  %v4234 = vadd.f32 0.0, %v4233
  %v4235 = vpop.f32.mrb[0].mxu0
  %v4236 = vadd.f32 0.0, %v4235
  %4237 = vdwg.mxu0
  %4238 = vmatprep.subr.mxu0 %v4103
  %4239 = vmatpush1.msra.mxu0 %v4102
  %4240 = vmatprep.subr.mxu0 %v4107
  %4241 = vmatpush1.msra.mxu0 %v4106
  %4242 = vmatprep.subr.mxu0 %v4111
  %4243 = vmatpush1.msra.mxu0 %v4110
  %4244 = vmatprep.subr.mxu0 %v4115
  %4245 = vmatpush1.msra.mxu0 %v4114
  %4246 = vmatprep.subr.mxu0 %v4119
  %4247 = vmatpush1.msra.mxu0 %v4118
  %4248 = vmatprep.subr.mxu0 %v4123
  %4249 = vmatpush1.msra.mxu0 %v4122
  %4250 = vmatprep.subr.mxu0 %v4127
  %4251 = vmatpush1.msra.mxu0 %v4126
  %4252 = vmatprep.subr.mxu0 %v4131
  %4253 = vmatpush1.msra.mxu0 %v4130
  %4254 = vmatprep.subr.mxu0 %v4135
  %4255 = vmatpush1.msra.mxu0 %v4134
  %4256 = vmatprep.subr.mxu0 %v4139
  %4257 = vmatpush1.msra.mxu0 %v4138
  %4258 = vmatprep.subr.mxu0 %v4143
  %4259 = vmatpush1.msra.mxu0 %v4142
  %4260 = vmatprep.subr.mxu0 %v4147
  %4261 = vmatpush1.msra.mxu0 %v4146
  %4262 = vmatprep.subr.mxu0 %v4151
  %4263 = vmatpush1.msra.mxu0 %v4150
  %4264 = vmatprep.subr.mxu0 %v4155
  %4265 = vmatpush1.msra.mxu0 %v4154
  %4266 = vmatprep.subr.mxu0 %v4159
  %4267 = vmatpush1.msra.mxu0 %v4158
  %4268 = vmatprep.subr.mxu0 %v4163
  %4269 = vmatpush1.msra.mxu0 %v4162
  %4270 = vmatprep.subr.mxu0 0.0
  %4271 = vmatpush1.msra.mxu0 0.0
  %4272 = vmatprep.subr.mxu0 0.0
  %4273 = vmatpush1.msra.mxu0 0.0
  %4274 = vmatprep.subr.mxu0 0.0
  %4275 = vmatpush1.msra.mxu0 0.0
  %4276 = vmatprep.subr.mxu0 0.0
  %4277 = vmatpush1.msra.mxu0 0.0
  %4278 = vmatprep.subr.mxu0 0.0
  %4279 = vmatpush1.msra.mxu0 0.0
  %4280 = vmatprep.subr.mxu0 0.0
  %4281 = vmatpush1.msra.mxu0 0.0
  %4282 = vmatprep.subr.mxu0 0.0
  %4283 = vmatpush1.msra.mxu0 0.0
  %4284 = vmatprep.subr.mxu0 0.0
  %4285 = vmatpush1.msra.mxu0 0.0
  %4286 = vmatprep.subr.mxu0 0.0
  %4287 = vmatpush1.msra.mxu0 0.0
  %4288 = vmatprep.subr.mxu0 0.0
  %4289 = vmatpush1.msra.mxu0 0.0
  %4290 = vmatprep.subr.mxu0 0.0
  %4291 = vmatpush1.msra.mxu0 0.0
  %4292 = vmatprep.subr.mxu0 0.0
  %4293 = vmatpush1.msra.mxu0 0.0
  %4294 = vmatprep.subr.mxu0 0.0
  %4295 = vmatpush1.msra.mxu0 0.0
  %4296 = vmatprep.subr.mxu0 0.0
  %4297 = vmatpush1.msra.mxu0 0.0
  %4298 = vmatprep.subr.mxu0 0.0
  %4299 = vmatpush1.msra.mxu0 0.0
  %4300 = vmatprep.subr.mxu0 0.0
  %4301 = vmatpush1.msra.mxu0 0.0
  %4302 = vmatprep.mubr.f32.mxu0 0.0
  %4303 = vmatmul.mubr.f32.gmra.mrb[0].mxu0 %v4165
  %v4304 = vpop.f32.mrb[0].mxu0
  %v4305 = vadd.f32 0.0, %v4304
  %v4306 = vpop.f32.mrb[0].mxu0
  %v4307 = vadd.f32 0.0, %v4306
  %4308 = vdwg.mxu0
  %v4313 = vrot.slane %v4234, 2
  %v4314 = vrot.slane %v4236, 2
  %v4315 = vrot.slane %v4305, 2
  %v4316 = vrot.slane %v4307, 2
  %v4321 = vadd.f32 %v4096, %v4313
  %v4322 = vadd.f32 %v4097, %v4314
  %v4323 = vadd.f32 %v4098, %v4315
  %v4324 = vadd.f32 %v4099, %v4316
  %v4325 = vxor.u32 %v4321, 2147483648
  %v4326 = vmul.f32 %v4325, 1.442695
  %v4327 = vpow.pop %v4326
  %v4328 = vadd.f32 %v4327, 1.0
  %v4329 = vrcp.pop %v4328
  %v4330 = vmul.f32 1.0, %v4329
  %v4331 = vxor.u32 %v4322, 2147483648
  %v4332 = vmul.f32 %v4331, 1.442695
  %v4333 = vpow.pop %v4332
  %v4334 = vadd.f32 %v4333, 1.0
  %v4335 = vrcp.pop %v4334
  %v4336 = vmul.f32 1.0, %v4335
  %v4337 = vtanh.pop %v4323
  %v4338 = vxor.u32 %v4324, 2147483648
  %v4339 = vmul.f32 %v4338, 1.442695
  %v4340 = vpow.pop %v4339
  %v4341 = vadd.f32 %v4340, 1.0
  %v4342 = vrcp.pop %v4341
  %v4343 = vmul.f32 1.0, %v4342
  %v4345 = vrot.slane %v4092, 6
  %v4347 = vmul.f32 %v4336, %v4345
  %v4348 = vmul.f32 %v4330, %v4337
  %v4349 = vadd.f32 %v4347, %v4348
  %v4350 = vtanh.pop %v4349
  %v4351 = vmul.f32 %v4343, %v4350
  %4352 = vst [vmem:[#allocation3 + $0x18] sm:$0xc0] %v4351
  %v4353 = vld [vmem:[#allocation3] sm:$0xff]
  %v4354 = vld [vmem:[#allocation3 + $0x8] sm:$0xff]
  %v4355 = vld [vmem:[#allocation3 + $0x10] sm:$0xff]
  %v4356 = vld [vmem:[#allocation3 + $0x18] sm:$0xff]
  %v4357 = vld [vmem:[%s4] sm:$0xff]
  %v4358 = vld [vmem:[%s4 + $0x8] sm:$0xff]
  %v4359 = vld [vmem:[%s4 + $0x10] sm:$0xff]
  %v4360 = vld [vmem:[%s4 + $0x18] sm:$0xff]
  %v4361 = vld [vmem:[%s4 + $0x20] sm:$0xff]
  %v4362 = vld [vmem:[%s4 + $0x28] sm:$0xff]
  %v4363 = vld [vmem:[%s4 + $0x30] sm:$0xff]
  %v4364 = vld [vmem:[%s4 + $0x38] sm:$0xff]
  %v4365 = vld [vmem:[%s4 + $0x40] sm:$0xff]
  %v4366 = vld [vmem:[%s4 + $0x48] sm:$0xff]
  %v4367 = vld [vmem:[%s4 + $0x50] sm:$0xff]
  %v4368 = vld [vmem:[%s4 + $0x58] sm:$0xff]
  %v4369 = vld [vmem:[%s4 + $0x60] sm:$0xff]
  %v4370 = vld [vmem:[%s4 + $0x68] sm:$0xff]
  %v4371 = vld [vmem:[%s4 + $0x70] sm:$0xff]
  %v4372 = vld [vmem:[%s4 + $0x78] sm:$0xff]
  %v4373 = vld [vmem:[%s5] sm:$0x1]
  %v4375 = vlaneseq
  %v4376 = vshrl.u32 %v4375, 7
  %v4377 = vsub.s32 0, %v4376
  %v4378 = vrot.slane %v4373, %v4377
  %4380 = vmatprep.subr.mxu0 0.0
  %4381 = vmatpush1.msra.mxu0 %v4357
  %4382 = vmatprep.subr.mxu0 0.0
  %4383 = vmatpush1.msra.mxu0 %v4358
  %4384 = vmatprep.subr.mxu0 0.0
  %4385 = vmatpush1.msra.mxu0 %v4359
  %4386 = vmatprep.subr.mxu0 0.0
  %4387 = vmatpush1.msra.mxu0 %v4360
  %4388 = vmatprep.subr.mxu0 0.0
  %4389 = vmatpush1.msra.mxu0 %v4361
  %4390 = vmatprep.subr.mxu0 0.0
  %4391 = vmatpush1.msra.mxu0 %v4362
  %4392 = vmatprep.subr.mxu0 0.0
  %4393 = vmatpush1.msra.mxu0 %v4363
  %4394 = vmatprep.subr.mxu0 0.0
  %4395 = vmatpush1.msra.mxu0 %v4364
  %4396 = vmatprep.subr.mxu0 0.0
  %4397 = vmatpush1.msra.mxu0 %v4365
  %4398 = vmatprep.subr.mxu0 0.0
  %4399 = vmatpush1.msra.mxu0 %v4366
  %4400 = vmatprep.subr.mxu0 0.0
  %4401 = vmatpush1.msra.mxu0 %v4367
  %4402 = vmatprep.subr.mxu0 0.0
  %4403 = vmatpush1.msra.mxu0 %v4368
  %4404 = vmatprep.subr.mxu0 0.0
  %4405 = vmatpush1.msra.mxu0 %v4369
  %4406 = vmatprep.subr.mxu0 0.0
  %4407 = vmatpush1.msra.mxu0 %v4370
  %4408 = vmatprep.subr.mxu0 0.0
  %4409 = vmatpush1.msra.mxu0 %v4371
  %4410 = vmatprep.subr.mxu0 0.0
  %4411 = vmatpush1.msra.mxu0 %v4372
  %4412 = vmatprep.subr.mxu0 0.0
  %4413 = vmatpush1.msra.mxu0 0.0
  %4414 = vmatprep.subr.mxu0 0.0
  %4415 = vmatpush1.msra.mxu0 0.0
  %4416 = vmatprep.subr.mxu0 0.0
  %4417 = vmatpush1.msra.mxu0 0.0
  %4418 = vmatprep.subr.mxu0 0.0
  %4419 = vmatpush1.msra.mxu0 0.0
  %4420 = vmatprep.subr.mxu0 0.0
  %4421 = vmatpush1.msra.mxu0 0.0
  %4422 = vmatprep.subr.mxu0 0.0
  %4423 = vmatpush1.msra.mxu0 0.0
  %4424 = vmatprep.subr.mxu0 0.0
  %4425 = vmatpush1.msra.mxu0 0.0
  %4426 = vmatprep.subr.mxu0 0.0
  %4427 = vmatpush1.msra.mxu0 0.0
  %4428 = vmatprep.subr.mxu0 0.0
  %4429 = vmatpush1.msra.mxu0 0.0
  %4430 = vmatprep.subr.mxu0 0.0
  %4431 = vmatpush1.msra.mxu0 0.0
  %4432 = vmatprep.subr.mxu0 0.0
  %4433 = vmatpush1.msra.mxu0 0.0
  %4434 = vmatprep.subr.mxu0 0.0
  %4435 = vmatpush1.msra.mxu0 0.0
  %4436 = vmatprep.subr.mxu0 0.0
  %4437 = vmatpush1.msra.mxu0 0.0
  %4438 = vmatprep.subr.mxu0 0.0
  %4439 = vmatpush1.msra.mxu0 0.0
  %4440 = vmatprep.subr.mxu0 0.0
  %4441 = vmatpush1.msra.mxu0 0.0
  %4442 = vmatprep.subr.mxu0 0.0
  %4443 = vmatpush1.msra.mxu0 0.0
  %4444 = vmatprep.mubr.f32.mxu0 0.0
  %4445 = vmatmul.mubr.f32.gmra.mrb[0].mxu0 %v4353
  %v4446 = vpop.f32.mrb[0].mxu0
  %v4447 = vadd.f32 %v4378, %v4446
  %v4448 = vpop.f32.mrb[0].mxu0
  %4449 = vmatprep.mubr.f32.mxu0 0.0
  %4450 = vmatmul.mubr.f32.gmra.mrb[0].mxu0 %v4354
  %v4451 = vpop.f32.mrb[0].mxu0
  %v4452 = vadd.f32 %v4378, %v4451
  %v4453 = vpop.f32.mrb[0].mxu0
  %4454 = vmatprep.mubr.f32.mxu0 0.0
  %4455 = vmatmul.mubr.f32.gmra.mrb[0].mxu0 %v4355
  %v4456 = vpop.f32.mrb[0].mxu0
  %v4457 = vadd.f32 %v4378, %v4456
  %v4458 = vpop.f32.mrb[0].mxu0
  %4459 = vmatprep.mubr.f32.mxu0 0.0
  %4460 = vmatmul.mubr.f32.gmra.mrb[0].mxu0 %v4356
  %v4461 = vpop.f32.mrb[0].mxu0
  %v4462 = vadd.f32 %v4378, %v4461
  %v4463 = vpop.f32.mrb[0].mxu0
  %4464 = vdwg.mxu0
  %4465 = vst [vmem:[%s6] sm:$0xff] %v4447
  %4466 = vst [vmem:[%s6 + $0x8] sm:$0xff] %v4452
  %4467 = vst [vmem:[%s6 + $0x10] sm:$0xff] %v4457
  %4468 = vst [vmem:[%s6 + $0x18] sm:$0xff] %v4462
  // Predicated region
  $region26: #{forward.5} parent=0 // pred_check
    _
  $region27: #{forward.5} parent=0 // pred_check_branch
    %4470 = sbr.rel (0) target = $region29
  $region28: #{forward.5} parent=0 // pred_region
    _
  $region29: #{forward.5} parent=0 // pred_fallthru
    _
  // Predicated region
  $region30: #{forward.5} parent=0 // pred_check
    _
  $region31: #{forward.5} parent=0 // pred_check_branch
    %4472 = sbr.rel (0) target = $region33
  $region32: #{forward.5} parent=0 // pred_region
    _
  $region33: #{forward.5} parent=0 // pred_fallthru
    _

</llo_original>
